<compile_context>
chip_gen: v5e
topology: v5e:2x2
jax: 0.10.0
libtpu: 0.0.40
codegen_flags: <defaults>
</compile_context>

<pallas_src>
import numpy as np
import jax
import jax.numpy as jnp
from jax.experimental import pallas as pl
from jax.experimental.pallas import tpu as pltpu

BN_EPS = 1e-5
LRELU_SLOPE = 0.2


# ---------------------------------------------------------------------------
# In-kernel helpers
# ---------------------------------------------------------------------------
def _bn_lrelu(y, gamma, beta, n_real):
    """Training-mode BatchNorm (batch stats, biased var) folded into a single
    per-channel scale/shift, then LeakyReLU(0.2).

    y: (R_pad, C) f32.  Rows beyond n_real are exactly zero, so they do not
    perturb the sums; we divide by the real row count."""
    inv_n = 1.0 / float(n_real)
    mean = jnp.sum(y, axis=0, keepdims=True) * inv_n
    mean_sq = jnp.sum(y * y, axis=0, keepdims=True) * inv_n
    var = jnp.maximum(mean_sq - mean * mean, 0.0)
    scale = gamma * jax.lax.rsqrt(var + BN_EPS)
    shift = beta - mean * scale
    out = y * scale + shift
    return jnp.where(out > 0, out, LRELU_SLOPE * out)


def _one_hot_gather(idx_ref, a_bf16):
    """Row gather via MXU: build the stacked one-hot matrix in-kernel (iota +
    compare on the VPU, no HBM traffic) and multiply.  idx == -1 rows (padding)
    come out all-zero.

    idx_ref: (R_stack, 1) int32;  a_bf16: (R_in, C) bf16  ->  (R_stack, C) bf16
    """
    r_stack = idx_ref.shape[0]
    r_in = a_bf16.shape[0]
    lanes = jax.lax.broadcasted_iota(jnp.int32, (r_stack, r_in), 1)
    sel = jnp.where(lanes == idx_ref[...], 1.0, 0.0).astype(jnp.bfloat16)
    # One-hot rows => the f32 MXU result holds exact bf16 values, so the cast
    # back to bf16 is lossless (kept f32 pop for lowering robustness).
    p = jnp.dot(sel, a_bf16, preferred_element_type=jnp.float32)
    return p.astype(jnp.bfloat16)


def _conv_from_patches(p_stack, w_ref, r_out):
    """p_stack: (T*r_out, Cin) bf16 tap-major stacked patches;
    w_ref: (T, Cin, Cout) bf16.  Returns (r_out, Cout) f32."""
    n_taps, _, c_out = w_ref.shape
    acc = jnp.zeros((r_out, c_out), jnp.float32)
    for t in range(n_taps):                 # static unroll; slices are 8-row aligned
        acc = acc + jnp.dot(p_stack[t * r_out:(t + 1) * r_out, :], w_ref[t],
                            preferred_element_type=jnp.float32)
    return acc


# ---------------------------------------------------------------------------
# Single fused Pallas kernel
# ---------------------------------------------------------------------------
def discriminator_kernel(p1_ref, w1_ref, idx2_ref, idx3_ref, idx4_ref,
                         gb_ref, wfc_ref, w2_hbm, w3_hbm, w4_hbm,
                         o_ref, w2_v, w3_v, w4_v, sem):
    # Kick off the big weight DMAs immediately so they overlap with earlier layers.
    cp2 = pltpu.make_async_copy(w2_hbm, w2_v, sem.at[0]); cp2.start()
    cp3 = pltpu.make_async_copy(w3_hbm, w3_v, sem.at[1]); cp3.start()
    cp4 = pltpu.make_async_copy(w4_hbm, w4_v, sem.at[2]); cp4.start()

    n_batch = o_ref.shape[0]
    c1 = w1_ref.shape[1]
    c2, c3, c4 = w2_v.shape[2], w3_v.shape[2], w4_v.shape[2]
    r1 = p1_ref.shape[0]
    r2 = idx2_ref.shape[0] // w2_v.shape[0]
    r3 = idx3_ref.shape[0] // w3_v.shape[0]
    r4p = idx4_ref.shape[0] // w4_v.shape[0]     # padded rows of the final feature map
    r4 = n_batch * 9                             # real rows (3x3 per sample)

    gb = gb_ref[...]                             # (16, 256) packed gammas/betas/fc-bias

    # ---- layer 1: Conv2d(2,64,4,2,1)+BN+LReLU (im2col patches built in wrapper) ----
    y1 = jnp.dot(p1_ref[...], w1_ref[...], preferred_element_type=jnp.float32)
    a1 = _bn_lrelu(y1, gb[0:1, 0:c1], gb[1:2, 0:c1], r1).astype(jnp.bfloat16)

    # ---- layer 2: Conv2d(64,128,4,2,1)+BN+LReLU ----------------------------------
    p2 = _one_hot_gather(idx2_ref, a1)           # (16*72, 64) bf16
    cp2.wait()
    y2 = _conv_from_patches(p2, w2_v, r2)        # (72, 128) f32
    a2 = _bn_lrelu(y2, gb[2:3, 0:c2], gb[3:4, 0:c2], r2).astype(jnp.bfloat16)

    # ---- layer 3: Conv2d(128,128,3,1,1)+BN+LReLU ----------------------------------
    p3 = _one_hot_gather(idx3_ref, a2)           # (9*72, 128) bf16
    cp3.wait()
    y3 = _conv_from_patches(p3, w3_v, r3)        # (72, 128) f32
    a3 = _bn_lrelu(y3, gb[4:5, 0:c3], gb[5:6, 0:c3], r3).astype(jnp.bfloat16)

    # ---- layer 4: Conv2d(128,256,4,2,1)+BN+LReLU ----------------------------------
    p4 = _one_hot_gather(idx4_ref, a3)           # (16*24, 128) bf16
    cp4.wait()
    y4 = _conv_from_patches(p4, w4_v, r4p)       # (24, 256) f32; rows >= 18 are zero
    a4 = _bn_lrelu(y4, gb[6:7, 0:c4], gb[7:8, 0:c4], r4)        # stats over real rows

    # ---- Flatten + Linear(2304, 1) + Sigmoid ---------------------------------------
    # fc weight pre-permuted to the kernel row order and zero-padded -> padded rows
    # of a4 (nonzero after BN shift) contribute nothing.
    prod = a4 * wfc_ref[...]                                         # (24, 256) f32
    r_io = jax.lax.broadcasted_iota(jnp.int32, (n_batch, r4p), 1)
    n_io = jax.lax.broadcasted_iota(jnp.int32, (n_batch, r4p), 0)
    pool = jnp.where((r_io >= n_io * 9) & (r_io < (n_io + 1) * 9), 1.0, 0.0)
    pooled = jnp.dot(pool, prod, preferred_element_type=jnp.float32)  # (N, 256)
    logit = jnp.sum(pooled, axis=1, keepdims=True) + gb[8:9, 0:1]     # (N, 1)
    o_ref[...] = 1.0 / (1.0 + jnp.exp(-logit))


# ---------------------------------------------------------------------------
# Wrapper-side constant preparation (done once, outside the hot path)
# ---------------------------------------------------------------------------
def _round8(x):
    return ((x + 7) // 8) * 8


def _build_gather_idx(n, h_in, w_in, kh, kw, stride, pad, r_out_pad):
    """Int32 index table idx[t, r] = flattened input row gathered by tap t for
    output row r ((b, oh, ow) order); -1 marks padding taps / padded rows."""
    oh_ = (h_in + 2 * pad - kh) // stride + 1
    ow_ = (w_in + 2 * pad - kw) // stride + 1
    idx = np.full((kh * kw, r_out_pad), -1, np.int32)
    for b in range(n):
        for oh in range(oh_):
            for ow in range(ow_):
                r = (b * oh_ + oh) * ow_ + ow
                for i in range(kh):
                    for j in range(kw):
                        ih = oh * stride - pad + i
                        iw = ow * stride - pad + j
                        if 0 <= ih < h_in and 0 <= iw < w_in:
                            idx[i * kw + j, r] = (b * h_in + ih) * w_in + iw
    return jnp.asarray(idx.reshape(-1, 1))       # (T * r_out_pad, 1)


def prepare_operands(params, n):
    def w_mat(w):     # (Cout,Cin,KH,KW) -> (KH*KW*Cin, Cout) bf16
        cout, cin, kh, kw = w.shape
        return jnp.transpose(w, (2, 3, 1, 0)).reshape(kh * kw * cin, cout).astype(jnp.bfloat16)

    def w_taps(w):    # (Cout,Cin,KH,KW) -> (KH*KW, Cin, Cout) bf16
        cout, cin, kh, kw = w.shape
        return jnp.transpose(w, (2, 3, 1, 0)).reshape(kh * kw, cin, cout).astype(jnp.bfloat16)

    # Conv biases intentionally dropped: with batch-statistic BatchNorm they are
    # exactly cancelled by the mean subtraction.
    (w1, _, g1, b1) = params["c1"]
    (w2, _, g2, b2) = params["c2"]
    (w3, _, g3, b3) = params["c3"]
    (w4, _, g4, b4) = params["c4"]
    w_fc, b_fc = params["fc"]

    r2p = _round8(n * 6 * 6)       # 72
    r3p = _round8(n * 6 * 6)       # 72
    r4p = _round8(n * 3 * 3)       # 24

    ops = {
        "w1": w_mat(w1),
        "w2": w_taps(w2), "w3": w_taps(w3), "w4": w_taps(w4),
        "idx2": _build_gather_idx(n, 12, 12, 4, 4, 2, 1, r2p),   # (16*72, 1)
        "idx3": _build_gather_idx(n, 6, 6, 3, 3, 1, 1, r3p),     # ( 9*72, 1)
        "idx4": _build_gather_idx(n, 6, 6, 4, 4, 2, 1, r4p),     # (16*24, 1)
    }

    # Pack all per-channel BN params + fc bias into ONE (16, 256) f32 array.
    gb = np.zeros((16, 256), np.float32)
    for row, vec in enumerate([g1, b1, g2, b2, g3, b3, g4, b4]):
        v = np.asarray(vec, np.float32)
        gb[row, :v.shape[0]] = v
    gb[8, 0] = float(np.asarray(b_fc).reshape(-1)[0])
    ops["gb"] = jnp.asarray(gb)

    # fc weight: permute PyTorch channel-major flatten (c*9+oh*3+ow) to the kernel
    # row order (oh*3+ow, c), tile per sample, zero-pad to r4p rows.
    wfc_rows = np.asarray(w_fc, np.float32).reshape(256, 3, 3).transpose(1, 2, 0).reshape(9, 256)
    wfc = np.zeros((r4p, 256), np.float32)
    wfc[: n * 9] = np.tile(wfc_rows, (n, 1))
    ops["wfc"] = jnp.asarray(wfc)
    return ops


def _im2col_first_layer(x_nhwc, kh, kw, stride, pad):
    """Layer-1 im2col in XLA (input is tiny; fuses with the NCHW->NHWC transpose)."""
    n, h, w, c = x_nhwc.shape
    oh = (h + 2 * pad - kh) // stride + 1
    ow = (w + 2 * pad - kw) // stride + 1
    xp = jnp.pad(x_nhwc, ((0, 0), (pad, pad), (pad, pad), (0, 0)))
    cols = []
    for i in range(kh):
        for j in range(kw):
            cols.append(xp[:, i:i + stride * oh:stride, j:j + stride * ow:stride, :])
    return jnp.stack(cols, axis=3).reshape(n * oh * ow, kh * kw * c)


def discriminator_forward(x_nchw, ops):
    n = x_nchw.shape[0]
    x = jnp.transpose(x_nchw, (0, 2, 3, 1)).astype(jnp.float32)          # NHWC
    p1 = _im2col_first_layer(x, 4, 4, 2, 1).astype(jnp.bfloat16)         # (N*144, 32)

    vmem = pl.BlockSpec(memory_space=pltpu.MemorySpace.VMEM)
    hbm = pl.BlockSpec(memory_space=pl.ANY)                              # manual DMA

    out = pl.pallas_call(
        discriminator_kernel,
        out_shape=jax.ShapeDtypeStruct((n, 1), jnp.float32),
        in_specs=[vmem] * 7 + [hbm] * 3,
        out_specs=vmem,
        scratch_shapes=[
            pltpu.VMEM(ops["w2"].shape, jnp.bfloat16),
            pltpu.VMEM(ops["w3"].shape, jnp.bfloat16),
            pltpu.VMEM(ops["w4"].shape, jnp.bfloat16),
            pltpu.SemaphoreType.DMA((3,)),
        ],
        compiler_params=pltpu.CompilerParams(vmem_limit_bytes=32 * 1024 * 1024),
    )(p1, ops["w1"], ops["idx2"], ops["idx3"], ops["idx4"], ops["gb"], ops["wfc"],
      ops["w2"], ops["w3"], ops["w4"])
    return out


# ---------------------------------------------------------------------------
# Pure-JAX reference (PyTorch training-mode semantics) for validation
# ---------------------------------------------------------------------------
def reference_forward(x_nchw, params):
    def conv_bn_lrelu_ref(x, w, b, gamma, beta, stride, pad):
        y = jax.lax.conv_general_dilated(
            x, w, window_strides=(stride, stride),
            padding=((pad, pad), (pad, pad)),
            dimension_numbers=("NCHW", "OIHW", "NCHW"))
        y = y + b.reshape(1, -1, 1, 1)
        mean = jnp.mean(y, axis=(0, 2, 3), keepdims=True)
        var = jnp.mean((y - mean) ** 2, axis=(0, 2, 3), keepdims=True)
        y = (y - mean) * jax.lax.rsqrt(var + BN_EPS)
        y = y * gamma.reshape(1, -1, 1, 1) + beta.reshape(1, -1, 1, 1)
        return jnp.where(y > 0, y, LRELU_SLOPE * y)

    x = x_nchw.astype(jnp.float32)
    x = conv_bn_lrelu_ref(x, *params["c1"], 2, 1)
    x = conv_bn_lrelu_ref(x, *params["c2"], 2, 1)
    x = conv_bn_lrelu_ref(x, *params["c3"], 1, 1)
    x = conv_bn_lrelu_ref(x, *params["c4"], 2, 1)
    flat = x.reshape(x.shape[0], -1)                    # channel-major flatten
    w_fc, b_fc = params["fc"]
    return jax.nn.sigmoid(flat @ w_fc.T + b_fc)


# ---------------------------------------------------------------------------
# Deterministic parameter init (synthetic weights, no checkpoint)
# ---------------------------------------------------------------------------
def init_params(key):
    def conv_layer(key, cout, cin, kh, kw):
        k1, k2 = jax.random.split(key)
        w = 0.05 * jax.random.normal(k1, (cout, cin, kh, kw), jnp.float32)
        b = 0.05 * jax.random.normal(k2, (cout,), jnp.float32)
        gamma = jnp.ones((cout,), jnp.float32)   # BN default init
        beta = jnp.zeros((cout,), jnp.float32)
        return (w, b, gamma, beta)

    keys = jax.random.split(key, 5)
    params = {
        "c1": conv_layer(keys[0], 64, 2, 4, 4),
        "c2": conv_layer(keys[1], 128, 64, 4, 4),
        "c3": conv_layer(keys[2], 128, 128, 3, 3),
        "c4": conv_layer(keys[3], 256, 128, 4, 4),
    }
    kf1, kf2 = jax.random.split(keys[4])
    params["fc"] = (0.05 * jax.random.normal(kf1, (1, 256 * 3 * 3), jnp.float32),
                    0.05 * jax.random.normal(kf2, (1,), jnp.float32))
    return params


if __name__ == "__main__":
    key = jax.random.PRNGKey(0)
    k_x, k_p = jax.random.split(key)

    # Input consistent with Linear(256*3*3, 1): (N=2, C=2, H=24, W=24)
    x = jax.random.normal(k_x, (2, 2, 24, 24), jnp.float32)
    params = init_params(k_p)
    ops = prepare_operands(params, n=2)

    fwd = jax.jit(discriminator_forward)
    out = jax.block_until_ready(fwd(x, ops))
    ref = jax.block_until_ready(reference_forward(x, params))

    assert out.shape == (2, 1), out.shape
    assert bool(jnp.all(jnp.isfinite(out)))
    assert bool(jnp.all((out >= 0.0) & (out <= 1.0)))
    assert float(jnp.max(jnp.abs(out - ref))) < 5e-2, float(jnp.max(jnp.abs(out - ref)))
    print("KERNEL_OK")
</pallas_src>

<mosaic_0001>
module attributes {stable_mosaic.version = 11 : i64} {
  func.func @discriminator_kernel(%arg0: memref<288x32xbf16, #tpu.memory_space<vmem>>, %arg1: memref<32x64xbf16, #tpu.memory_space<vmem>>, %arg2: memref<1152x1xi32, #tpu.memory_space<vmem>>, %arg3: memref<648x1xi32, #tpu.memory_space<vmem>>, %arg4: memref<384x1xi32, #tpu.memory_space<vmem>>, %arg5: memref<16x256xf32, #tpu.memory_space<vmem>>, %arg6: memref<24x256xf32, #tpu.memory_space<vmem>>, %arg7: memref<16x64x128xbf16, #tpu.memory_space<any>>, %arg8: memref<9x128x128xbf16, #tpu.memory_space<any>>, %arg9: memref<16x128x256xbf16, #tpu.memory_space<any>>, %arg10: memref<2x1xf32, #tpu.memory_space<vmem>>, %arg11: memref<16x64x128xbf16, #tpu.memory_space<vmem>>, %arg12: memref<9x128x128xbf16, #tpu.memory_space<vmem>>, %arg13: memref<16x128x256xbf16, #tpu.memory_space<vmem>>, %arg14: memref<3x!tpu.dma_semaphore, #tpu.memory_space<semaphore_mem>>) attributes {dimension_semantics = [], scalar_prefetch = 0 : i64, scratch_operands = 4 : i64, tpu.core_type = #tpu.core_type<tc>} {
    %c0_i32 = arith.constant 0 : i32
    %0 = tpu.memref_slice %arg14[%c0_i32] : memref<3x!tpu.dma_semaphore, #tpu.memory_space<semaphore_mem>> -> memref<1x!tpu.dma_semaphore, #tpu.memory_space<semaphore_mem>>
    %1 = tpu.memref_squeeze %0 : memref<1x!tpu.dma_semaphore, #tpu.memory_space<semaphore_mem>> -> memref<!tpu.dma_semaphore, #tpu.memory_space<semaphore_mem>>
    tpu.enqueue_dma source(%arg7 : memref<16x64x128xbf16, #tpu.memory_space<any>>) target(%arg11 : memref<16x64x128xbf16, #tpu.memory_space<vmem>>) target_semaphore(%1 : memref<!tpu.dma_semaphore, #tpu.memory_space<semaphore_mem>>)
    %c1_i32 = arith.constant 1 : i32
    %2 = tpu.memref_slice %arg14[%c1_i32] : memref<3x!tpu.dma_semaphore, #tpu.memory_space<semaphore_mem>> -> memref<1x!tpu.dma_semaphore, #tpu.memory_space<semaphore_mem>>
    %3 = tpu.memref_squeeze %2 : memref<1x!tpu.dma_semaphore, #tpu.memory_space<semaphore_mem>> -> memref<!tpu.dma_semaphore, #tpu.memory_space<semaphore_mem>>
    tpu.enqueue_dma source(%arg8 : memref<9x128x128xbf16, #tpu.memory_space<any>>) target(%arg12 : memref<9x128x128xbf16, #tpu.memory_space<vmem>>) target_semaphore(%3 : memref<!tpu.dma_semaphore, #tpu.memory_space<semaphore_mem>>)
    %c2_i32 = arith.constant 2 : i32
    %4 = tpu.memref_slice %arg14[%c2_i32] : memref<3x!tpu.dma_semaphore, #tpu.memory_space<semaphore_mem>> -> memref<1x!tpu.dma_semaphore, #tpu.memory_space<semaphore_mem>>
    %5 = tpu.memref_squeeze %4 : memref<1x!tpu.dma_semaphore, #tpu.memory_space<semaphore_mem>> -> memref<!tpu.dma_semaphore, #tpu.memory_space<semaphore_mem>>
    tpu.enqueue_dma source(%arg9 : memref<16x128x256xbf16, #tpu.memory_space<any>>) target(%arg13 : memref<16x128x256xbf16, #tpu.memory_space<vmem>>) target_semaphore(%5 : memref<!tpu.dma_semaphore, #tpu.memory_space<semaphore_mem>>)
    %c0 = arith.constant 0 : index
    %c0_0 = arith.constant 0 : index
    %6 = vector.load %arg5[%c0, %c0_0] : memref<16x256xf32, #tpu.memory_space<vmem>>, vector<16x256xf32>
    %c0_1 = arith.constant 0 : index
    %c0_2 = arith.constant 0 : index
    %7 = vector.load %arg0[%c0_1, %c0_2] : memref<288x32xbf16, #tpu.memory_space<vmem>>, vector<288x32xbf16>
    %c0_3 = arith.constant 0 : index
    %c0_4 = arith.constant 0 : index
    %8 = vector.load %arg1[%c0_3, %c0_4] : memref<32x64xbf16, #tpu.memory_space<vmem>>, vector<32x64xbf16>
    %cst = arith.constant dense<0.000000e+00> : vector<288x64xf32>
    %9 = tpu.matmul %7, %8, %cst {dimension_numbers = #tpu.dot_dimension_numbers<[1], [0], [0], [1], [0, 0, 1, 1], [], []>} : vector<288x32xbf16>, vector<32x64xbf16>, vector<288x64xf32> -> vector<288x64xf32>
    %10 = vector.extract_strided_slice %6 {offsets = [0, 0], sizes = [1, 64], strides = [1, 1]} : vector<16x256xf32> to vector<1x64xf32>
    %11 = vector.extract_strided_slice %6 {offsets = [1, 0], sizes = [1, 64], strides = [1, 1]} : vector<16x256xf32> to vector<1x64xf32>
    %cst_5 = arith.constant dense<0.000000e+00> : vector<64xf32>
    %12 = vector.multi_reduction <add>, %9, %cst_5 [0] : vector<288x64xf32> to vector<64xf32>
    %13 = vector.shape_cast %12 : vector<64xf32> to vector<1x64xf32>
    %cst_6 = arith.constant 0.00347222225 : f32
    %14 = vector.broadcast %cst_6 : f32 to vector<1x64xf32>
    %15 = arith.mulf %13, %14 : vector<1x64xf32>
    %16 = arith.mulf %9, %9 : vector<288x64xf32>
    %cst_7 = arith.constant dense<0.000000e+00> : vector<64xf32>
    %17 = vector.multi_reduction <add>, %16, %cst_7 [0] : vector<288x64xf32> to vector<64xf32>
    %18 = vector.shape_cast %17 : vector<64xf32> to vector<1x64xf32>
    %cst_8 = arith.constant 0.00347222225 : f32
    %19 = vector.broadcast %cst_8 : f32 to vector<1x64xf32>
    %20 = arith.mulf %18, %19 : vector<1x64xf32>
    %21 = arith.mulf %15, %15 : vector<1x64xf32>
    %22 = arith.subf %20, %21 : vector<1x64xf32>
    %cst_9 = arith.constant 0.000000e+00 : f32
    %23 = vector.broadcast %cst_9 : f32 to vector<1x64xf32>
    %24 = arith.maximumf %22, %23 : vector<1x64xf32>
    %cst_10 = arith.constant 9.99999974E-6 : f32
    %25 = vector.broadcast %cst_10 : f32 to vector<1x64xf32>
    %26 = arith.addf %24, %25 : vector<1x64xf32>
    %27 = math.rsqrt %26 : vector<1x64xf32>
    %28 = arith.mulf %10, %27 : vector<1x64xf32>
    %29 = arith.mulf %15, %28 : vector<1x64xf32>
    %30 = arith.subf %11, %29 : vector<1x64xf32>
    %31 = vector.broadcast %28 : vector<1x64xf32> to vector<288x64xf32>
    %32 = arith.mulf %9, %31 : vector<288x64xf32>
    %33 = vector.broadcast %30 : vector<1x64xf32> to vector<288x64xf32>
    %34 = arith.addf %32, %33 : vector<288x64xf32>
    %cst_11 = arith.constant 0.000000e+00 : f32
    %35 = vector.broadcast %cst_11 : f32 to vector<288x64xf32>
    %36 = arith.cmpf ogt, %34, %35 : vector<288x64xf32>
    %cst_12 = arith.constant 2.000000e-01 : f32
    %37 = vector.broadcast %cst_12 : f32 to vector<288x64xf32>
    %38 = arith.mulf %37, %34 : vector<288x64xf32>
    %39 = arith.select %36, %34, %38 : vector<288x64xi1>, vector<288x64xf32>
    %40 = arith.truncf %39 : vector<288x64xf32> to vector<288x64xbf16>
    %41 = tpu.iota {dimensions = array<i32: 1>} : vector<1152x288xi32>
    %c0_13 = arith.constant 0 : index
    %c0_14 = arith.constant 0 : index
    %42 = vector.load %arg2[%c0_13, %c0_14] : memref<1152x1xi32, #tpu.memory_space<vmem>>, vector<1152x1xi32>
    %43 = vector.broadcast %42 : vector<1152x1xi32> to vector<1152x288xi32>
    %44 = arith.cmpi eq, %41, %43 : vector<1152x288xi32>
    %cst_15 = arith.constant 1.000000e+00 : f32
    %cst_16 = arith.constant 0.000000e+00 : f32
    %45 = vector.broadcast %cst_15 : f32 to vector<1152x288xf32>
    %46 = vector.broadcast %cst_16 : f32 to vector<1152x288xf32>
    %47 = arith.select %44, %45, %46 : vector<1152x288xi1>, vector<1152x288xf32>
    %48 = arith.truncf %47 : vector<1152x288xf32> to vector<1152x288xbf16>
    %cst_17 = arith.constant dense<0.000000e+00> : vector<1152x64xf32>
    %49 = tpu.matmul %48, %40, %cst_17 {dimension_numbers = #tpu.dot_dimension_numbers<[1], [0], [0], [1], [0, 0, 1, 1], [], []>} : vector<1152x288xbf16>, vector<288x64xbf16>, vector<1152x64xf32> -> vector<1152x64xf32>
    %50 = arith.truncf %49 : vector<1152x64xf32> to vector<1152x64xbf16>
    %c0_i32_18 = arith.constant 0 : i32
    %51 = tpu.memref_slice %arg14[%c0_i32_18] : memref<3x!tpu.dma_semaphore, #tpu.memory_space<semaphore_mem>> -> memref<1x!tpu.dma_semaphore, #tpu.memory_space<semaphore_mem>>
    %52 = tpu.memref_squeeze %51 : memref<1x!tpu.dma_semaphore, #tpu.memory_space<semaphore_mem>> -> memref<!tpu.dma_semaphore, #tpu.memory_space<semaphore_mem>>
    tpu.wait_dma2 semaphore(%52 : memref<!tpu.dma_semaphore, #tpu.memory_space<semaphore_mem>>) src(%arg7 : memref<16x64x128xbf16, #tpu.memory_space<any>>) dst(%arg11 : memref<16x64x128xbf16, #tpu.memory_space<vmem>>)
    %cst_19 = arith.constant 0.000000e+00 : f32
    %53 = vector.broadcast %cst_19 : f32 to vector<72x128xf32>
    %54 = vector.extract_strided_slice %50 {offsets = [0, 0], sizes = [72, 64], strides = [1, 1]} : vector<1152x64xbf16> to vector<72x64xbf16>
    %c0_20 = arith.constant 0 : index
    %c0_21 = arith.constant 0 : index
    %c0_22 = arith.constant 0 : index
    %55 = vector.load %arg11[%c0_20, %c0_21, %c0_22] : memref<16x64x128xbf16, #tpu.memory_space<vmem>>, vector<1x64x128xbf16>
    %56 = vector.shape_cast %55 : vector<1x64x128xbf16> to vector<64x128xbf16>
    %cst_23 = arith.constant dense<0.000000e+00> : vector<72x128xf32>
    %57 = tpu.matmul %54, %56, %cst_23 {dimension_numbers = #tpu.dot_dimension_numbers<[1], [0], [0], [1], [0, 0, 1, 1], [], []>} : vector<72x64xbf16>, vector<64x128xbf16>, vector<72x128xf32> -> vector<72x128xf32>
    %58 = arith.addf %53, %57 : vector<72x128xf32>
    %59 = vector.extract_strided_slice %50 {offsets = [72, 0], sizes = [72, 64], strides = [1, 1]} : vector<1152x64xbf16> to vector<72x64xbf16>
    %c1 = arith.constant 1 : index
    %c0_24 = arith.constant 0 : index
    %c0_25 = arith.constant 0 : index
    %60 = vector.load %arg11[%c1, %c0_24, %c0_25] : memref<16x64x128xbf16, #tpu.memory_space<vmem>>, vector<1x64x128xbf16>
    %61 = vector.shape_cast %60 : vector<1x64x128xbf16> to vector<64x128xbf16>
    %cst_26 = arith.constant dense<0.000000e+00> : vector<72x128xf32>
    %62 = tpu.matmul %59, %61, %cst_26 {dimension_numbers = #tpu.dot_dimension_numbers<[1], [0], [0], [1], [0, 0, 1, 1], [], []>} : vector<72x64xbf16>, vector<64x128xbf16>, vector<72x128xf32> -> vector<72x128xf32>
    %63 = arith.addf %58, %62 : vector<72x128xf32>
    %64 = vector.extract_strided_slice %50 {offsets = [144, 0], sizes = [72, 64], strides = [1, 1]} : vector<1152x64xbf16> to vector<72x64xbf16>
    %c2 = arith.constant 2 : index
    %c0_27 = arith.constant 0 : index
    %c0_28 = arith.constant 0 : index
    %65 = vector.load %arg11[%c2, %c0_27, %c0_28] : memref<16x64x128xbf16, #tpu.memory_space<vmem>>, vector<1x64x128xbf16>
    %66 = vector.shape_cast %65 : vector<1x64x128xbf16> to vector<64x128xbf16>
    %cst_29 = arith.constant dense<0.000000e+00> : vector<72x128xf32>
    %67 = tpu.matmul %64, %66, %cst_29 {dimension_numbers = #tpu.dot_dimension_numbers<[1], [0], [0], [1], [0, 0, 1, 1], [], []>} : vector<72x64xbf16>, vector<64x128xbf16>, vector<72x128xf32> -> vector<72x128xf32>
    %68 = arith.addf %63, %67 : vector<72x128xf32>
    %69 = vector.extract_strided_slice %50 {offsets = [216, 0], sizes = [72, 64], strides = [1, 1]} : vector<1152x64xbf16> to vector<72x64xbf16>
    %c3 = arith.constant 3 : index
    %c0_30 = arith.constant 0 : index
    %c0_31 = arith.constant 0 : index
    %70 = vector.load %arg11[%c3, %c0_30, %c0_31] : memref<16x64x128xbf16, #tpu.memory_space<vmem>>, vector<1x64x128xbf16>
    %71 = vector.shape_cast %70 : vector<1x64x128xbf16> to vector<64x128xbf16>
    %cst_32 = arith.constant dense<0.000000e+00> : vector<72x128xf32>
    %72 = tpu.matmul %69, %71, %cst_32 {dimension_numbers = #tpu.dot_dimension_numbers<[1], [0], [0], [1], [0, 0, 1, 1], [], []>} : vector<72x64xbf16>, vector<64x128xbf16>, vector<72x128xf32> -> vector<72x128xf32>
    %73 = arith.addf %68, %72 : vector<72x128xf32>
    %74 = vector.extract_strided_slice %50 {offsets = [288, 0], sizes = [72, 64], strides = [1, 1]} : vector<1152x64xbf16> to vector<72x64xbf16>
    %c4 = arith.constant 4 : index
    %c0_33 = arith.constant 0 : index
    %c0_34 = arith.constant 0 : index
    %75 = vector.load %arg11[%c4, %c0_33, %c0_34] : memref<16x64x128xbf16, #tpu.memory_space<vmem>>, vector<1x64x128xbf16>
    %76 = vector.shape_cast %75 : vector<1x64x128xbf16> to vector<64x128xbf16>
    %cst_35 = arith.constant dense<0.000000e+00> : vector<72x128xf32>
    %77 = tpu.matmul %74, %76, %cst_35 {dimension_numbers = #tpu.dot_dimension_numbers<[1], [0], [0], [1], [0, 0, 1, 1], [], []>} : vector<72x64xbf16>, vector<64x128xbf16>, vector<72x128xf32> -> vector<72x128xf32>
    %78 = arith.addf %73, %77 : vector<72x128xf32>
    %79 = vector.extract_strided_slice %50 {offsets = [360, 0], sizes = [72, 64], strides = [1, 1]} : vector<1152x64xbf16> to vector<72x64xbf16>
    %c5 = arith.constant 5 : index
    %c0_36 = arith.constant 0 : index
    %c0_37 = arith.constant 0 : index
    %80 = vector.load %arg11[%c5, %c0_36, %c0_37] : memref<16x64x128xbf16, #tpu.memory_space<vmem>>, vector<1x64x128xbf16>
    %81 = vector.shape_cast %80 : vector<1x64x128xbf16> to vector<64x128xbf16>
    %cst_38 = arith.constant dense<0.000000e+00> : vector<72x128xf32>
    %82 = tpu.matmul %79, %81, %cst_38 {dimension_numbers = #tpu.dot_dimension_numbers<[1], [0], [0], [1], [0, 0, 1, 1], [], []>} : vector<72x64xbf16>, vector<64x128xbf16>, vector<72x128xf32> -> vector<72x128xf32>
    %83 = arith.addf %78, %82 : vector<72x128xf32>
    %84 = vector.extract_strided_slice %50 {offsets = [432, 0], sizes = [72, 64], strides = [1, 1]} : vector<1152x64xbf16> to vector<72x64xbf16>
    %c6 = arith.constant 6 : index
    %c0_39 = arith.constant 0 : index
    %c0_40 = arith.constant 0 : index
    %85 = vector.load %arg11[%c6, %c0_39, %c0_40] : memref<16x64x128xbf16, #tpu.memory_space<vmem>>, vector<1x64x128xbf16>
    %86 = vector.shape_cast %85 : vector<1x64x128xbf16> to vector<64x128xbf16>
    %cst_41 = arith.constant dense<0.000000e+00> : vector<72x128xf32>
    %87 = tpu.matmul %84, %86, %cst_41 {dimension_numbers = #tpu.dot_dimension_numbers<[1], [0], [0], [1], [0, 0, 1, 1], [], []>} : vector<72x64xbf16>, vector<64x128xbf16>, vector<72x128xf32> -> vector<72x128xf32>
    %88 = arith.addf %83, %87 : vector<72x128xf32>
    %89 = vector.extract_strided_slice %50 {offsets = [504, 0], sizes = [72, 64], strides = [1, 1]} : vector<1152x64xbf16> to vector<72x64xbf16>
    %c7 = arith.constant 7 : index
    %c0_42 = arith.constant 0 : index
    %c0_43 = arith.constant 0 : index
    %90 = vector.load %arg11[%c7, %c0_42, %c0_43] : memref<16x64x128xbf16, #tpu.memory_space<vmem>>, vector<1x64x128xbf16>
    %91 = vector.shape_cast %90 : vector<1x64x128xbf16> to vector<64x128xbf16>
    %cst_44 = arith.constant dense<0.000000e+00> : vector<72x128xf32>
    %92 = tpu.matmul %89, %91, %cst_44 {dimension_numbers = #tpu.dot_dimension_numbers<[1], [0], [0], [1], [0, 0, 1, 1], [], []>} : vector<72x64xbf16>, vector<64x128xbf16>, vector<72x128xf32> -> vector<72x128xf32>
    %93 = arith.addf %88, %92 : vector<72x128xf32>
    %94 = vector.extract_strided_slice %50 {offsets = [576, 0], sizes = [72, 64], strides = [1, 1]} : vector<1152x64xbf16> to vector<72x64xbf16>
    %c8 = arith.constant 8 : index
    %c0_45 = arith.constant 0 : index
    %c0_46 = arith.constant 0 : index
    %95 = vector.load %arg11[%c8, %c0_45, %c0_46] : memref<16x64x128xbf16, #tpu.memory_space<vmem>>, vector<1x64x128xbf16>
    %96 = vector.shape_cast %95 : vector<1x64x128xbf16> to vector<64x128xbf16>
    %cst_47 = arith.constant dense<0.000000e+00> : vector<72x128xf32>
    %97 = tpu.matmul %94, %96, %cst_47 {dimension_numbers = #tpu.dot_dimension_numbers<[1], [0], [0], [1], [0, 0, 1, 1], [], []>} : vector<72x64xbf16>, vector<64x128xbf16>, vector<72x128xf32> -> vector<72x128xf32>
    %98 = arith.addf %93, %97 : vector<72x128xf32>
    %99 = vector.extract_strided_slice %50 {offsets = [648, 0], sizes = [72, 64], strides = [1, 1]} : vector<1152x64xbf16> to vector<72x64xbf16>
    %c9 = arith.constant 9 : index
    %c0_48 = arith.constant 0 : index
    %c0_49 = arith.constant 0 : index
    %100 = vector.load %arg11[%c9, %c0_48, %c0_49] : memref<16x64x128xbf16, #tpu.memory_space<vmem>>, vector<1x64x128xbf16>
    %101 = vector.shape_cast %100 : vector<1x64x128xbf16> to vector<64x128xbf16>
    %cst_50 = arith.constant dense<0.000000e+00> : vector<72x128xf32>
    %102 = tpu.matmul %99, %101, %cst_50 {dimension_numbers = #tpu.dot_dimension_numbers<[1], [0], [0], [1], [0, 0, 1, 1], [], []>} : vector<72x64xbf16>, vector<64x128xbf16>, vector<72x128xf32> -> vector<72x128xf32>
    %103 = arith.addf %98, %102 : vector<72x128xf32>
    %104 = vector.extract_strided_slice %50 {offsets = [720, 0], sizes = [72, 64], strides = [1, 1]} : vector<1152x64xbf16> to vector<72x64xbf16>
    %c10 = arith.constant 10 : index
    %c0_51 = arith.constant 0 : index
    %c0_52 = arith.constant 0 : index
    %105 = vector.load %arg11[%c10, %c0_51, %c0_52] : memref<16x64x128xbf16, #tpu.memory_space<vmem>>, vector<1x64x128xbf16>
    %106 = vector.shape_cast %105 : vector<1x64x128xbf16> to vector<64x128xbf16>
    %cst_53 = arith.constant dense<0.000000e+00> : vector<72x128xf32>
    %107 = tpu.matmul %104, %106, %cst_53 {dimension_numbers = #tpu.dot_dimension_numbers<[1], [0], [0], [1], [0, 0, 1, 1], [], []>} : vector<72x64xbf16>, vector<64x128xbf16>, vector<72x128xf32> -> vector<72x128xf32>
    %108 = arith.addf %103, %107 : vector<72x128xf32>
    %109 = vector.extract_strided_slice %50 {offsets = [792, 0], sizes = [72, 64], strides = [1, 1]} : vector<1152x64xbf16> to vector<72x64xbf16>
    %c11 = arith.constant 11 : index
    %c0_54 = arith.constant 0 : index
    %c0_55 = arith.constant 0 : index
    %110 = vector.load %arg11[%c11, %c0_54, %c0_55] : memref<16x64x128xbf16, #tpu.memory_space<vmem>>, vector<1x64x128xbf16>
    %111 = vector.shape_cast %110 : vector<1x64x128xbf16> to vector<64x128xbf16>
    %cst_56 = arith.constant dense<0.000000e+00> : vector<72x128xf32>
    %112 = tpu.matmul %109, %111, %cst_56 {dimension_numbers = #tpu.dot_dimension_numbers<[1], [0], [0], [1], [0, 0, 1, 1], [], []>} : vector<72x64xbf16>, vector<64x128xbf16>, vector<72x128xf32> -> vector<72x128xf32>
    %113 = arith.addf %108, %112 : vector<72x128xf32>
    %114 = vector.extract_strided_slice %50 {offsets = [864, 0], sizes = [72, 64], strides = [1, 1]} : vector<1152x64xbf16> to vector<72x64xbf16>
    %c12 = arith.constant 12 : index
    %c0_57 = arith.constant 0 : index
    %c0_58 = arith.constant 0 : index
    %115 = vector.load %arg11[%c12, %c0_57, %c0_58] : memref<16x64x128xbf16, #tpu.memory_space<vmem>>, vector<1x64x128xbf16>
    %116 = vector.shape_cast %115 : vector<1x64x128xbf16> to vector<64x128xbf16>
    %cst_59 = arith.constant dense<0.000000e+00> : vector<72x128xf32>
    %117 = tpu.matmul %114, %116, %cst_59 {dimension_numbers = #tpu.dot_dimension_numbers<[1], [0], [0], [1], [0, 0, 1, 1], [], []>} : vector<72x64xbf16>, vector<64x128xbf16>, vector<72x128xf32> -> vector<72x128xf32>
    %118 = arith.addf %113, %117 : vector<72x128xf32>
    %119 = vector.extract_strided_slice %50 {offsets = [936, 0], sizes = [72, 64], strides = [1, 1]} : vector<1152x64xbf16> to vector<72x64xbf16>
    %c13 = arith.constant 13 : index
    %c0_60 = arith.constant 0 : index
    %c0_61 = arith.constant 0 : index
    %120 = vector.load %arg11[%c13, %c0_60, %c0_61] : memref<16x64x128xbf16, #tpu.memory_space<vmem>>, vector<1x64x128xbf16>
    %121 = vector.shape_cast %120 : vector<1x64x128xbf16> to vector<64x128xbf16>
    %cst_62 = arith.constant dense<0.000000e+00> : vector<72x128xf32>
    %122 = tpu.matmul %119, %121, %cst_62 {dimension_numbers = #tpu.dot_dimension_numbers<[1], [0], [0], [1], [0, 0, 1, 1], [], []>} : vector<72x64xbf16>, vector<64x128xbf16>, vector<72x128xf32> -> vector<72x128xf32>
    %123 = arith.addf %118, %122 : vector<72x128xf32>
    %124 = vector.extract_strided_slice %50 {offsets = [1008, 0], sizes = [72, 64], strides = [1, 1]} : vector<1152x64xbf16> to vector<72x64xbf16>
    %c14 = arith.constant 14 : index
    %c0_63 = arith.constant 0 : index
    %c0_64 = arith.constant 0 : index
    %125 = vector.load %arg11[%c14, %c0_63, %c0_64] : memref<16x64x128xbf16, #tpu.memory_space<vmem>>, vector<1x64x128xbf16>
    %126 = vector.shape_cast %125 : vector<1x64x128xbf16> to vector<64x128xbf16>
    %cst_65 = arith.constant dense<0.000000e+00> : vector<72x128xf32>
    %127 = tpu.matmul %124, %126, %cst_65 {dimension_numbers = #tpu.dot_dimension_numbers<[1], [0], [0], [1], [0, 0, 1, 1], [], []>} : vector<72x64xbf16>, vector<64x128xbf16>, vector<72x128xf32> -> vector<72x128xf32>
    %128 = arith.addf %123, %127 : vector<72x128xf32>
    %129 = vector.extract_strided_slice %50 {offsets = [1080, 0], sizes = [72, 64], strides = [1, 1]} : vector<1152x64xbf16> to vector<72x64xbf16>
    %c15 = arith.constant 15 : index
    %c0_66 = arith.constant 0 : index
    %c0_67 = arith.constant 0 : index
    %130 = vector.load %arg11[%c15, %c0_66, %c0_67] : memref<16x64x128xbf16, #tpu.memory_space<vmem>>, vector<1x64x128xbf16>
    %131 = vector.shape_cast %130 : vector<1x64x128xbf16> to vector<64x128xbf16>
    %cst_68 = arith.constant dense<0.000000e+00> : vector<72x128xf32>
    %132 = tpu.matmul %129, %131, %cst_68 {dimension_numbers = #tpu.dot_dimension_numbers<[1], [0], [0], [1], [0, 0, 1, 1], [], []>} : vector<72x64xbf16>, vector<64x128xbf16>, vector<72x128xf32> -> vector<72x128xf32>
    %133 = arith.addf %128, %132 : vector<72x128xf32>
    %134 = vector.extract_strided_slice %6 {offsets = [2, 0], sizes = [1, 128], strides = [1, 1]} : vector<16x256xf32> to vector<1x128xf32>
    %135 = vector.extract_strided_slice %6 {offsets = [3, 0], sizes = [1, 128], strides = [1, 1]} : vector<16x256xf32> to vector<1x128xf32>
    %cst_69 = arith.constant dense<0.000000e+00> : vector<128xf32>
    %136 = vector.multi_reduction <add>, %133, %cst_69 [0] : vector<72x128xf32> to vector<128xf32>
    %137 = vector.shape_cast %136 : vector<128xf32> to vector<1x128xf32>
    %cst_70 = arith.constant 0.013888889 : f32
    %138 = vector.broadcast %cst_70 : f32 to vector<1x128xf32>
    %139 = arith.mulf %137, %138 : vector<1x128xf32>
    %140 = arith.mulf %133, %133 : vector<72x128xf32>
    %cst_71 = arith.constant dense<0.000000e+00> : vector<128xf32>
    %141 = vector.multi_reduction <add>, %140, %cst_71 [0] : vector<72x128xf32> to vector<128xf32>
    %142 = vector.shape_cast %141 : vector<128xf32> to vector<1x128xf32>
    %cst_72 = arith.constant 0.013888889 : f32
    %143 = vector.broadcast %cst_72 : f32 to vector<1x128xf32>
    %144 = arith.mulf %142, %143 : vector<1x128xf32>
    %145 = arith.mulf %139, %139 : vector<1x128xf32>
    %146 = arith.subf %144, %145 : vector<1x128xf32>
    %cst_73 = arith.constant 0.000000e+00 : f32
    %147 = vector.broadcast %cst_73 : f32 to vector<1x128xf32>
    %148 = arith.maximumf %146, %147 : vector<1x128xf32>
    %cst_74 = arith.constant 9.99999974E-6 : f32
    %149 = vector.broadcast %cst_74 : f32 to vector<1x128xf32>
    %150 = arith.addf %148, %149 : vector<1x128xf32>
    %151 = math.rsqrt %150 : vector<1x128xf32>
    %152 = arith.mulf %134, %151 : vector<1x128xf32>
    %153 = arith.mulf %139, %152 : vector<1x128xf32>
    %154 = arith.subf %135, %153 : vector<1x128xf32>
    %155 = vector.broadcast %152 : vector<1x128xf32> to vector<72x128xf32>
    %156 = arith.mulf %133, %155 : vector<72x128xf32>
    %157 = vector.broadcast %154 : vector<1x128xf32> to vector<72x128xf32>
    %158 = arith.addf %156, %157 : vector<72x128xf32>
    %cst_75 = arith.constant 0.000000e+00 : f32
    %159 = vector.broadcast %cst_75 : f32 to vector<72x128xf32>
    %160 = arith.cmpf ogt, %158, %159 : vector<72x128xf32>
    %cst_76 = arith.constant 2.000000e-01 : f32
    %161 = vector.broadcast %cst_76 : f32 to vector<72x128xf32>
    %162 = arith.mulf %161, %158 : vector<72x128xf32>
    %163 = arith.select %160, %158, %162 : vector<72x128xi1>, vector<72x128xf32>
    %164 = arith.truncf %163 : vector<72x128xf32> to vector<72x128xbf16>
    %165 = tpu.iota {dimensions = array<i32: 1>} : vector<648x72xi32>
    %c0_77 = arith.constant 0 : index
    %c0_78 = arith.constant 0 : index
    %166 = vector.load %arg3[%c0_77, %c0_78] : memref<648x1xi32, #tpu.memory_space<vmem>>, vector<648x1xi32>
    %167 = vector.broadcast %166 : vector<648x1xi32> to vector<648x72xi32>
    %168 = arith.cmpi eq, %165, %167 : vector<648x72xi32>
    %cst_79 = arith.constant 1.000000e+00 : f32
    %cst_80 = arith.constant 0.000000e+00 : f32
    %169 = vector.broadcast %cst_79 : f32 to vector<648x72xf32>
    %170 = vector.broadcast %cst_80 : f32 to vector<648x72xf32>
    %171 = arith.select %168, %169, %170 : vector<648x72xi1>, vector<648x72xf32>
    %172 = arith.truncf %171 : vector<648x72xf32> to vector<648x72xbf16>
    %cst_81 = arith.constant dense<0.000000e+00> : vector<648x128xf32>
    %173 = tpu.matmul %172, %164, %cst_81 {dimension_numbers = #tpu.dot_dimension_numbers<[1], [0], [0], [1], [0, 0, 1, 1], [], []>} : vector<648x72xbf16>, vector<72x128xbf16>, vector<648x128xf32> -> vector<648x128xf32>
    %174 = arith.truncf %173 : vector<648x128xf32> to vector<648x128xbf16>
    %c1_i32_82 = arith.constant 1 : i32
    %175 = tpu.memref_slice %arg14[%c1_i32_82] : memref<3x!tpu.dma_semaphore, #tpu.memory_space<semaphore_mem>> -> memref<1x!tpu.dma_semaphore, #tpu.memory_space<semaphore_mem>>
    %176 = tpu.memref_squeeze %175 : memref<1x!tpu.dma_semaphore, #tpu.memory_space<semaphore_mem>> -> memref<!tpu.dma_semaphore, #tpu.memory_space<semaphore_mem>>
    tpu.wait_dma2 semaphore(%176 : memref<!tpu.dma_semaphore, #tpu.memory_space<semaphore_mem>>) src(%arg8 : memref<9x128x128xbf16, #tpu.memory_space<any>>) dst(%arg12 : memref<9x128x128xbf16, #tpu.memory_space<vmem>>)
    %cst_83 = arith.constant 0.000000e+00 : f32
    %177 = vector.broadcast %cst_83 : f32 to vector<72x128xf32>
    %178 = vector.extract_strided_slice %174 {offsets = [0, 0], sizes = [72, 128], strides = [1, 1]} : vector<648x128xbf16> to vector<72x128xbf16>
    %c0_84 = arith.constant 0 : index
    %c0_85 = arith.constant 0 : index
    %c0_86 = arith.constant 0 : index
    %179 = vector.load %arg12[%c0_84, %c0_85, %c0_86] : memref<9x128x128xbf16, #tpu.memory_space<vmem>>, vector<1x128x128xbf16>
    %180 = vector.shape_cast %179 : vector<1x128x128xbf16> to vector<128x128xbf16>
    %cst_87 = arith.constant dense<0.000000e+00> : vector<72x128xf32>
    %181 = tpu.matmul %178, %180, %cst_87 {dimension_numbers = #tpu.dot_dimension_numbers<[1], [0], [0], [1], [0, 0, 1, 1], [], []>} : vector<72x128xbf16>, vector<128x128xbf16>, vector<72x128xf32> -> vector<72x128xf32>
    %182 = arith.addf %177, %181 : vector<72x128xf32>
    %183 = vector.extract_strided_slice %174 {offsets = [72, 0], sizes = [72, 128], strides = [1, 1]} : vector<648x128xbf16> to vector<72x128xbf16>
    %c1_88 = arith.constant 1 : index
    %c0_89 = arith.constant 0 : index
    %c0_90 = arith.constant 0 : index
    %184 = vector.load %arg12[%c1_88, %c0_89, %c0_90] : memref<9x128x128xbf16, #tpu.memory_space<vmem>>, vector<1x128x128xbf16>
    %185 = vector.shape_cast %184 : vector<1x128x128xbf16> to vector<128x128xbf16>
    %cst_91 = arith.constant dense<0.000000e+00> : vector<72x128xf32>
    %186 = tpu.matmul %183, %185, %cst_91 {dimension_numbers = #tpu.dot_dimension_numbers<[1], [0], [0], [1], [0, 0, 1, 1], [], []>} : vector<72x128xbf16>, vector<128x128xbf16>, vector<72x128xf32> -> vector<72x128xf32>
    %187 = arith.addf %182, %186 : vector<72x128xf32>
    %188 = vector.extract_strided_slice %174 {offsets = [144, 0], sizes = [72, 128], strides = [1, 1]} : vector<648x128xbf16> to vector<72x128xbf16>
    %c2_92 = arith.constant 2 : index
    %c0_93 = arith.constant 0 : index
    %c0_94 = arith.constant 0 : index
    %189 = vector.load %arg12[%c2_92, %c0_93, %c0_94] : memref<9x128x128xbf16, #tpu.memory_space<vmem>>, vector<1x128x128xbf16>
    %190 = vector.shape_cast %189 : vector<1x128x128xbf16> to vector<128x128xbf16>
    %cst_95 = arith.constant dense<0.000000e+00> : vector<72x128xf32>
    %191 = tpu.matmul %188, %190, %cst_95 {dimension_numbers = #tpu.dot_dimension_numbers<[1], [0], [0], [1], [0, 0, 1, 1], [], []>} : vector<72x128xbf16>, vector<128x128xbf16>, vector<72x128xf32> -> vector<72x128xf32>
    %192 = arith.addf %187, %191 : vector<72x128xf32>
    %193 = vector.extract_strided_slice %174 {offsets = [216, 0], sizes = [72, 128], strides = [1, 1]} : vector<648x128xbf16> to vector<72x128xbf16>
    %c3_96 = arith.constant 3 : index
    %c0_97 = arith.constant 0 : index
    %c0_98 = arith.constant 0 : index
    %194 = vector.load %arg12[%c3_96, %c0_97, %c0_98] : memref<9x128x128xbf16, #tpu.memory_space<vmem>>, vector<1x128x128xbf16>
    %195 = vector.shape_cast %194 : vector<1x128x128xbf16> to vector<128x128xbf16>
    %cst_99 = arith.constant dense<0.000000e+00> : vector<72x128xf32>
    %196 = tpu.matmul %193, %195, %cst_99 {dimension_numbers = #tpu.dot_dimension_numbers<[1], [0], [0], [1], [0, 0, 1, 1], [], []>} : vector<72x128xbf16>, vector<128x128xbf16>, vector<72x128xf32> -> vector<72x128xf32>
    %197 = arith.addf %192, %196 : vector<72x128xf32>
    %198 = vector.extract_strided_slice %174 {offsets = [288, 0], sizes = [72, 128], strides = [1, 1]} : vector<648x128xbf16> to vector<72x128xbf16>
    %c4_100 = arith.constant 4 : index
    %c0_101 = arith.constant 0 : index
    %c0_102 = arith.constant 0 : index
    %199 = vector.load %arg12[%c4_100, %c0_101, %c0_102] : memref<9x128x128xbf16, #tpu.memory_space<vmem>>, vector<1x128x128xbf16>
    %200 = vector.shape_cast %199 : vector<1x128x128xbf16> to vector<128x128xbf16>
    %cst_103 = arith.constant dense<0.000000e+00> : vector<72x128xf32>
    %201 = tpu.matmul %198, %200, %cst_103 {dimension_numbers = #tpu.dot_dimension_numbers<[1], [0], [0], [1], [0, 0, 1, 1], [], []>} : vector<72x128xbf16>, vector<128x128xbf16>, vector<72x128xf32> -> vector<72x128xf32>
    %202 = arith.addf %197, %201 : vector<72x128xf32>
    %203 = vector.extract_strided_slice %174 {offsets = [360, 0], sizes = [72, 128], strides = [1, 1]} : vector<648x128xbf16> to vector<72x128xbf16>
    %c5_104 = arith.constant 5 : index
    %c0_105 = arith.constant 0 : index
    %c0_106 = arith.constant 0 : index
    %204 = vector.load %arg12[%c5_104, %c0_105, %c0_106] : memref<9x128x128xbf16, #tpu.memory_space<vmem>>, vector<1x128x128xbf16>
    %205 = vector.shape_cast %204 : vector<1x128x128xbf16> to vector<128x128xbf16>
    %cst_107 = arith.constant dense<0.000000e+00> : vector<72x128xf32>
    %206 = tpu.matmul %203, %205, %cst_107 {dimension_numbers = #tpu.dot_dimension_numbers<[1], [0], [0], [1], [0, 0, 1, 1], [], []>} : vector<72x128xbf16>, vector<128x128xbf16>, vector<72x128xf32> -> vector<72x128xf32>
    %207 = arith.addf %202, %206 : vector<72x128xf32>
    %208 = vector.extract_strided_slice %174 {offsets = [432, 0], sizes = [72, 128], strides = [1, 1]} : vector<648x128xbf16> to vector<72x128xbf16>
    %c6_108 = arith.constant 6 : index
    %c0_109 = arith.constant 0 : index
    %c0_110 = arith.constant 0 : index
    %209 = vector.load %arg12[%c6_108, %c0_109, %c0_110] : memref<9x128x128xbf16, #tpu.memory_space<vmem>>, vector<1x128x128xbf16>
    %210 = vector.shape_cast %209 : vector<1x128x128xbf16> to vector<128x128xbf16>
    %cst_111 = arith.constant dense<0.000000e+00> : vector<72x128xf32>
    %211 = tpu.matmul %208, %210, %cst_111 {dimension_numbers = #tpu.dot_dimension_numbers<[1], [0], [0], [1], [0, 0, 1, 1], [], []>} : vector<72x128xbf16>, vector<128x128xbf16>, vector<72x128xf32> -> vector<72x128xf32>
    %212 = arith.addf %207, %211 : vector<72x128xf32>
    %213 = vector.extract_strided_slice %174 {offsets = [504, 0], sizes = [72, 128], strides = [1, 1]} : vector<648x128xbf16> to vector<72x128xbf16>
    %c7_112 = arith.constant 7 : index
    %c0_113 = arith.constant 0 : index
    %c0_114 = arith.constant 0 : index
    %214 = vector.load %arg12[%c7_112, %c0_113, %c0_114] : memref<9x128x128xbf16, #tpu.memory_space<vmem>>, vector<1x128x128xbf16>
    %215 = vector.shape_cast %214 : vector<1x128x128xbf16> to vector<128x128xbf16>
    %cst_115 = arith.constant dense<0.000000e+00> : vector<72x128xf32>
    %216 = tpu.matmul %213, %215, %cst_115 {dimension_numbers = #tpu.dot_dimension_numbers<[1], [0], [0], [1], [0, 0, 1, 1], [], []>} : vector<72x128xbf16>, vector<128x128xbf16>, vector<72x128xf32> -> vector<72x128xf32>
    %217 = arith.addf %212, %216 : vector<72x128xf32>
    %218 = vector.extract_strided_slice %174 {offsets = [576, 0], sizes = [72, 128], strides = [1, 1]} : vector<648x128xbf16> to vector<72x128xbf16>
    %c8_116 = arith.constant 8 : index
    %c0_117 = arith.constant 0 : index
    %c0_118 = arith.constant 0 : index
    %219 = vector.load %arg12[%c8_116, %c0_117, %c0_118] : memref<9x128x128xbf16, #tpu.memory_space<vmem>>, vector<1x128x128xbf16>
    %220 = vector.shape_cast %219 : vector<1x128x128xbf16> to vector<128x128xbf16>
    %cst_119 = arith.constant dense<0.000000e+00> : vector<72x128xf32>
    %221 = tpu.matmul %218, %220, %cst_119 {dimension_numbers = #tpu.dot_dimension_numbers<[1], [0], [0], [1], [0, 0, 1, 1], [], []>} : vector<72x128xbf16>, vector<128x128xbf16>, vector<72x128xf32> -> vector<72x128xf32>
    %222 = arith.addf %217, %221 : vector<72x128xf32>
    %223 = vector.extract_strided_slice %6 {offsets = [4, 0], sizes = [1, 128], strides = [1, 1]} : vector<16x256xf32> to vector<1x128xf32>
    %224 = vector.extract_strided_slice %6 {offsets = [5, 0], sizes = [1, 128], strides = [1, 1]} : vector<16x256xf32> to vector<1x128xf32>
    %cst_120 = arith.constant dense<0.000000e+00> : vector<128xf32>
    %225 = vector.multi_reduction <add>, %222, %cst_120 [0] : vector<72x128xf32> to vector<128xf32>
    %226 = vector.shape_cast %225 : vector<128xf32> to vector<1x128xf32>
    %cst_121 = arith.constant 0.013888889 : f32
    %227 = vector.broadcast %cst_121 : f32 to vector<1x128xf32>
    %228 = arith.mulf %226, %227 : vector<1x128xf32>
    %229 = arith.mulf %222, %222 : vector<72x128xf32>
    %cst_122 = arith.constant dense<0.000000e+00> : vector<128xf32>
    %230 = vector.multi_reduction <add>, %229, %cst_122 [0] : vector<72x128xf32> to vector<128xf32>
    %231 = vector.shape_cast %230 : vector<128xf32> to vector<1x128xf32>
    %cst_123 = arith.constant 0.013888889 : f32
    %232 = vector.broadcast %cst_123 : f32 to vector<1x128xf32>
    %233 = arith.mulf %231, %232 : vector<1x128xf32>
    %234 = arith.mulf %228, %228 : vector<1x128xf32>
    %235 = arith.subf %233, %234 : vector<1x128xf32>
    %cst_124 = arith.constant 0.000000e+00 : f32
    %236 = vector.broadcast %cst_124 : f32 to vector<1x128xf32>
    %237 = arith.maximumf %235, %236 : vector<1x128xf32>
    %cst_125 = arith.constant 9.99999974E-6 : f32
    %238 = vector.broadcast %cst_125 : f32 to vector<1x128xf32>
    %239 = arith.addf %237, %238 : vector<1x128xf32>
    %240 = math.rsqrt %239 : vector<1x128xf32>
    %241 = arith.mulf %223, %240 : vector<1x128xf32>
    %242 = arith.mulf %228, %241 : vector<1x128xf32>
    %243 = arith.subf %224, %242 : vector<1x128xf32>
    %244 = vector.broadcast %241 : vector<1x128xf32> to vector<72x128xf32>
    %245 = arith.mulf %222, %244 : vector<72x128xf32>
    %246 = vector.broadcast %243 : vector<1x128xf32> to vector<72x128xf32>
    %247 = arith.addf %245, %246 : vector<72x128xf32>
    %cst_126 = arith.constant 0.000000e+00 : f32
    %248 = vector.broadcast %cst_126 : f32 to vector<72x128xf32>
    %249 = arith.cmpf ogt, %247, %248 : vector<72x128xf32>
    %cst_127 = arith.constant 2.000000e-01 : f32
    %250 = vector.broadcast %cst_127 : f32 to vector<72x128xf32>
    %251 = arith.mulf %250, %247 : vector<72x128xf32>
    %252 = arith.select %249, %247, %251 : vector<72x128xi1>, vector<72x128xf32>
    %253 = arith.truncf %252 : vector<72x128xf32> to vector<72x128xbf16>
    %254 = tpu.iota {dimensions = array<i32: 1>} : vector<384x72xi32>
    %c0_128 = arith.constant 0 : index
    %c0_129 = arith.constant 0 : index
    %255 = vector.load %arg4[%c0_128, %c0_129] : memref<384x1xi32, #tpu.memory_space<vmem>>, vector<384x1xi32>
    %256 = vector.broadcast %255 : vector<384x1xi32> to vector<384x72xi32>
    %257 = arith.cmpi eq, %254, %256 : vector<384x72xi32>
    %cst_130 = arith.constant 1.000000e+00 : f32
    %cst_131 = arith.constant 0.000000e+00 : f32
    %258 = vector.broadcast %cst_130 : f32 to vector<384x72xf32>
    %259 = vector.broadcast %cst_131 : f32 to vector<384x72xf32>
    %260 = arith.select %257, %258, %259 : vector<384x72xi1>, vector<384x72xf32>
    %261 = arith.truncf %260 : vector<384x72xf32> to vector<384x72xbf16>
    %cst_132 = arith.constant dense<0.000000e+00> : vector<384x128xf32>
    %262 = tpu.matmul %261, %253, %cst_132 {dimension_numbers = #tpu.dot_dimension_numbers<[1], [0], [0], [1], [0, 0, 1, 1], [], []>} : vector<384x72xbf16>, vector<72x128xbf16>, vector<384x128xf32> -> vector<384x128xf32>
    %263 = arith.truncf %262 : vector<384x128xf32> to vector<384x128xbf16>
    %c2_i32_133 = arith.constant 2 : i32
    %264 = tpu.memref_slice %arg14[%c2_i32_133] : memref<3x!tpu.dma_semaphore, #tpu.memory_space<semaphore_mem>> -> memref<1x!tpu.dma_semaphore, #tpu.memory_space<semaphore_mem>>
    %265 = tpu.memref_squeeze %264 : memref<1x!tpu.dma_semaphore, #tpu.memory_space<semaphore_mem>> -> memref<!tpu.dma_semaphore, #tpu.memory_space<semaphore_mem>>
    tpu.wait_dma2 semaphore(%265 : memref<!tpu.dma_semaphore, #tpu.memory_space<semaphore_mem>>) src(%arg9 : memref<16x128x256xbf16, #tpu.memory_space<any>>) dst(%arg13 : memref<16x128x256xbf16, #tpu.memory_space<vmem>>)
    %cst_134 = arith.constant 0.000000e+00 : f32
    %266 = vector.broadcast %cst_134 : f32 to vector<24x256xf32>
    %267 = vector.extract_strided_slice %263 {offsets = [0, 0], sizes = [24, 128], strides = [1, 1]} : vector<384x128xbf16> to vector<24x128xbf16>
    %c0_135 = arith.constant 0 : index
    %c0_136 = arith.constant 0 : index
    %c0_137 = arith.constant 0 : index
    %268 = vector.load %arg13[%c0_135, %c0_136, %c0_137] : memref<16x128x256xbf16, #tpu.memory_space<vmem>>, vector<1x128x256xbf16>
    %269 = vector.shape_cast %268 : vector<1x128x256xbf16> to vector<128x256xbf16>
    %cst_138 = arith.constant dense<0.000000e+00> : vector<24x256xf32>
    %270 = tpu.matmul %267, %269, %cst_138 {dimension_numbers = #tpu.dot_dimension_numbers<[1], [0], [0], [1], [0, 0, 1, 1], [], []>} : vector<24x128xbf16>, vector<128x256xbf16>, vector<24x256xf32> -> vector<24x256xf32>
    %271 = arith.addf %266, %270 : vector<24x256xf32>
    %272 = vector.extract_strided_slice %263 {offsets = [24, 0], sizes = [24, 128], strides = [1, 1]} : vector<384x128xbf16> to vector<24x128xbf16>
    %c1_139 = arith.constant 1 : index
    %c0_140 = arith.constant 0 : index
    %c0_141 = arith.constant 0 : index
    %273 = vector.load %arg13[%c1_139, %c0_140, %c0_141] : memref<16x128x256xbf16, #tpu.memory_space<vmem>>, vector<1x128x256xbf16>
    %274 = vector.shape_cast %273 : vector<1x128x256xbf16> to vector<128x256xbf16>
    %cst_142 = arith.constant dense<0.000000e+00> : vector<24x256xf32>
    %275 = tpu.matmul %272, %274, %cst_142 {dimension_numbers = #tpu.dot_dimension_numbers<[1], [0], [0], [1], [0, 0, 1, 1], [], []>} : vector<24x128xbf16>, vector<128x256xbf16>, vector<24x256xf32> -> vector<24x256xf32>
    %276 = arith.addf %271, %275 : vector<24x256xf32>
    %277 = vector.extract_strided_slice %263 {offsets = [48, 0], sizes = [24, 128], strides = [1, 1]} : vector<384x128xbf16> to vector<24x128xbf16>
    %c2_143 = arith.constant 2 : index
    %c0_144 = arith.constant 0 : index
    %c0_145 = arith.constant 0 : index
    %278 = vector.load %arg13[%c2_143, %c0_144, %c0_145] : memref<16x128x256xbf16, #tpu.memory_space<vmem>>, vector<1x128x256xbf16>
    %279 = vector.shape_cast %278 : vector<1x128x256xbf16> to vector<128x256xbf16>
    %cst_146 = arith.constant dense<0.000000e+00> : vector<24x256xf32>
    %280 = tpu.matmul %277, %279, %cst_146 {dimension_numbers = #tpu.dot_dimension_numbers<[1], [0], [0], [1], [0, 0, 1, 1], [], []>} : vector<24x128xbf16>, vector<128x256xbf16>, vector<24x256xf32> -> vector<24x256xf32>
    %281 = arith.addf %276, %280 : vector<24x256xf32>
    %282 = vector.extract_strided_slice %263 {offsets = [72, 0], sizes = [24, 128], strides = [1, 1]} : vector<384x128xbf16> to vector<24x128xbf16>
    %c3_147 = arith.constant 3 : index
    %c0_148 = arith.constant 0 : index
    %c0_149 = arith.constant 0 : index
    %283 = vector.load %arg13[%c3_147, %c0_148, %c0_149] : memref<16x128x256xbf16, #tpu.memory_space<vmem>>, vector<1x128x256xbf16>
    %284 = vector.shape_cast %283 : vector<1x128x256xbf16> to vector<128x256xbf16>
    %cst_150 = arith.constant dense<0.000000e+00> : vector<24x256xf32>
    %285 = tpu.matmul %282, %284, %cst_150 {dimension_numbers = #tpu.dot_dimension_numbers<[1], [0], [0], [1], [0, 0, 1, 1], [], []>} : vector<24x128xbf16>, vector<128x256xbf16>, vector<24x256xf32> -> vector<24x256xf32>
    %286 = arith.addf %281, %285 : vector<24x256xf32>
    %287 = vector.extract_strided_slice %263 {offsets = [96, 0], sizes = [24, 128], strides = [1, 1]} : vector<384x128xbf16> to vector<24x128xbf16>
    %c4_151 = arith.constant 4 : index
    %c0_152 = arith.constant 0 : index
    %c0_153 = arith.constant 0 : index
    %288 = vector.load %arg13[%c4_151, %c0_152, %c0_153] : memref<16x128x256xbf16, #tpu.memory_space<vmem>>, vector<1x128x256xbf16>
    %289 = vector.shape_cast %288 : vector<1x128x256xbf16> to vector<128x256xbf16>
    %cst_154 = arith.constant dense<0.000000e+00> : vector<24x256xf32>
    %290 = tpu.matmul %287, %289, %cst_154 {dimension_numbers = #tpu.dot_dimension_numbers<[1], [0], [0], [1], [0, 0, 1, 1], [], []>} : vector<24x128xbf16>, vector<128x256xbf16>, vector<24x256xf32> -> vector<24x256xf32>
    %291 = arith.addf %286, %290 : vector<24x256xf32>
    %292 = vector.extract_strided_slice %263 {offsets = [120, 0], sizes = [24, 128], strides = [1, 1]} : vector<384x128xbf16> to vector<24x128xbf16>
    %c5_155 = arith.constant 5 : index
    %c0_156 = arith.constant 0 : index
    %c0_157 = arith.constant 0 : index
    %293 = vector.load %arg13[%c5_155, %c0_156, %c0_157] : memref<16x128x256xbf16, #tpu.memory_space<vmem>>, vector<1x128x256xbf16>
    %294 = vector.shape_cast %293 : vector<1x128x256xbf16> to vector<128x256xbf16>
    %cst_158 = arith.constant dense<0.000000e+00> : vector<24x256xf32>
    %295 = tpu.matmul %292, %294, %cst_158 {dimension_numbers = #tpu.dot_dimension_numbers<[1], [0], [0], [1], [0, 0, 1, 1], [], []>} : vector<24x128xbf16>, vector<128x256xbf16>, vector<24x256xf32> -> vector<24x256xf32>
    %296 = arith.addf %291, %295 : vector<24x256xf32>
    %297 = vector.extract_strided_slice %263 {offsets = [144, 0], sizes = [24, 128], strides = [1, 1]} : vector<384x128xbf16> to vector<24x128xbf16>
    %c6_159 = arith.constant 6 : index
    %c0_160 = arith.constant 0 : index
    %c0_161 = arith.constant 0 : index
    %298 = vector.load %arg13[%c6_159, %c0_160, %c0_161] : memref<16x128x256xbf16, #tpu.memory_space<vmem>>, vector<1x128x256xbf16>
    %299 = vector.shape_cast %298 : vector<1x128x256xbf16> to vector<128x256xbf16>
    %cst_162 = arith.constant dense<0.000000e+00> : vector<24x256xf32>
    %300 = tpu.matmul %297, %299, %cst_162 {dimension_numbers = #tpu.dot_dimension_numbers<[1], [0], [0], [1], [0, 0, 1, 1], [], []>} : vector<24x128xbf16>, vector<128x256xbf16>, vector<24x256xf32> -> vector<24x256xf32>
    %301 = arith.addf %296, %300 : vector<24x256xf32>
    %302 = vector.extract_strided_slice %263 {offsets = [168, 0], sizes = [24, 128], strides = [1, 1]} : vector<384x128xbf16> to vector<24x128xbf16>
    %c7_163 = arith.constant 7 : index
    %c0_164 = arith.constant 0 : index
    %c0_165 = arith.constant 0 : index
    %303 = vector.load %arg13[%c7_163, %c0_164, %c0_165] : memref<16x128x256xbf16, #tpu.memory_space<vmem>>, vector<1x128x256xbf16>
    %304 = vector.shape_cast %303 : vector<1x128x256xbf16> to vector<128x256xbf16>
    %cst_166 = arith.constant dense<0.000000e+00> : vector<24x256xf32>
    %305 = tpu.matmul %302, %304, %cst_166 {dimension_numbers = #tpu.dot_dimension_numbers<[1], [0], [0], [1], [0, 0, 1, 1], [], []>} : vector<24x128xbf16>, vector<128x256xbf16>, vector<24x256xf32> -> vector<24x256xf32>
    %306 = arith.addf %301, %305 : vector<24x256xf32>
    %307 = vector.extract_strided_slice %263 {offsets = [192, 0], sizes = [24, 128], strides = [1, 1]} : vector<384x128xbf16> to vector<24x128xbf16>
    %c8_167 = arith.constant 8 : index
    %c0_168 = arith.constant 0 : index
    %c0_169 = arith.constant 0 : index
    %308 = vector.load %arg13[%c8_167, %c0_168, %c0_169] : memref<16x128x256xbf16, #tpu.memory_space<vmem>>, vector<1x128x256xbf16>
    %309 = vector.shape_cast %308 : vector<1x128x256xbf16> to vector<128x256xbf16>
    %cst_170 = arith.constant dense<0.000000e+00> : vector<24x256xf32>
    %310 = tpu.matmul %307, %309, %cst_170 {dimension_numbers = #tpu.dot_dimension_numbers<[1], [0], [0], [1], [0, 0, 1, 1], [], []>} : vector<24x128xbf16>, vector<128x256xbf16>, vector<24x256xf32> -> vector<24x256xf32>
    %311 = arith.addf %306, %310 : vector<24x256xf32>
    %312 = vector.extract_strided_slice %263 {offsets = [216, 0], sizes = [24, 128], strides = [1, 1]} : vector<384x128xbf16> to vector<24x128xbf16>
    %c9_171 = arith.constant 9 : index
    %c0_172 = arith.constant 0 : index
    %c0_173 = arith.constant 0 : index
    %313 = vector.load %arg13[%c9_171, %c0_172, %c0_173] : memref<16x128x256xbf16, #tpu.memory_space<vmem>>, vector<1x128x256xbf16>
    %314 = vector.shape_cast %313 : vector<1x128x256xbf16> to vector<128x256xbf16>
    %cst_174 = arith.constant dense<0.000000e+00> : vector<24x256xf32>
    %315 = tpu.matmul %312, %314, %cst_174 {dimension_numbers = #tpu.dot_dimension_numbers<[1], [0], [0], [1], [0, 0, 1, 1], [], []>} : vector<24x128xbf16>, vector<128x256xbf16>, vector<24x256xf32> -> vector<24x256xf32>
    %316 = arith.addf %311, %315 : vector<24x256xf32>
    %317 = vector.extract_strided_slice %263 {offsets = [240, 0], sizes = [24, 128], strides = [1, 1]} : vector<384x128xbf16> to vector<24x128xbf16>
    %c10_175 = arith.constant 10 : index
    %c0_176 = arith.constant 0 : index
    %c0_177 = arith.constant 0 : index
    %318 = vector.load %arg13[%c10_175, %c0_176, %c0_177] : memref<16x128x256xbf16, #tpu.memory_space<vmem>>, vector<1x128x256xbf16>
    %319 = vector.shape_cast %318 : vector<1x128x256xbf16> to vector<128x256xbf16>
    %cst_178 = arith.constant dense<0.000000e+00> : vector<24x256xf32>
    %320 = tpu.matmul %317, %319, %cst_178 {dimension_numbers = #tpu.dot_dimension_numbers<[1], [0], [0], [1], [0, 0, 1, 1], [], []>} : vector<24x128xbf16>, vector<128x256xbf16>, vector<24x256xf32> -> vector<24x256xf32>
    %321 = arith.addf %316, %320 : vector<24x256xf32>
    %322 = vector.extract_strided_slice %263 {offsets = [264, 0], sizes = [24, 128], strides = [1, 1]} : vector<384x128xbf16> to vector<24x128xbf16>
    %c11_179 = arith.constant 11 : index
    %c0_180 = arith.constant 0 : index
    %c0_181 = arith.constant 0 : index
    %323 = vector.load %arg13[%c11_179, %c0_180, %c0_181] : memref<16x128x256xbf16, #tpu.memory_space<vmem>>, vector<1x128x256xbf16>
    %324 = vector.shape_cast %323 : vector<1x128x256xbf16> to vector<128x256xbf16>
    %cst_182 = arith.constant dense<0.000000e+00> : vector<24x256xf32>
    %325 = tpu.matmul %322, %324, %cst_182 {dimension_numbers = #tpu.dot_dimension_numbers<[1], [0], [0], [1], [0, 0, 1, 1], [], []>} : vector<24x128xbf16>, vector<128x256xbf16>, vector<24x256xf32> -> vector<24x256xf32>
    %326 = arith.addf %321, %325 : vector<24x256xf32>
    %327 = vector.extract_strided_slice %263 {offsets = [288, 0], sizes = [24, 128], strides = [1, 1]} : vector<384x128xbf16> to vector<24x128xbf16>
    %c12_183 = arith.constant 12 : index
    %c0_184 = arith.constant 0 : index
    %c0_185 = arith.constant 0 : index
    %328 = vector.load %arg13[%c12_183, %c0_184, %c0_185] : memref<16x128x256xbf16, #tpu.memory_space<vmem>>, vector<1x128x256xbf16>
    %329 = vector.shape_cast %328 : vector<1x128x256xbf16> to vector<128x256xbf16>
    %cst_186 = arith.constant dense<0.000000e+00> : vector<24x256xf32>
    %330 = tpu.matmul %327, %329, %cst_186 {dimension_numbers = #tpu.dot_dimension_numbers<[1], [0], [0], [1], [0, 0, 1, 1], [], []>} : vector<24x128xbf16>, vector<128x256xbf16>, vector<24x256xf32> -> vector<24x256xf32>
    %331 = arith.addf %326, %330 : vector<24x256xf32>
    %332 = vector.extract_strided_slice %263 {offsets = [312, 0], sizes = [24, 128], strides = [1, 1]} : vector<384x128xbf16> to vector<24x128xbf16>
    %c13_187 = arith.constant 13 : index
    %c0_188 = arith.constant 0 : index
    %c0_189 = arith.constant 0 : index
    %333 = vector.load %arg13[%c13_187, %c0_188, %c0_189] : memref<16x128x256xbf16, #tpu.memory_space<vmem>>, vector<1x128x256xbf16>
    %334 = vector.shape_cast %333 : vector<1x128x256xbf16> to vector<128x256xbf16>
    %cst_190 = arith.constant dense<0.000000e+00> : vector<24x256xf32>
    %335 = tpu.matmul %332, %334, %cst_190 {dimension_numbers = #tpu.dot_dimension_numbers<[1], [0], [0], [1], [0, 0, 1, 1], [], []>} : vector<24x128xbf16>, vector<128x256xbf16>, vector<24x256xf32> -> vector<24x256xf32>
    %336 = arith.addf %331, %335 : vector<24x256xf32>
    %337 = vector.extract_strided_slice %263 {offsets = [336, 0], sizes = [24, 128], strides = [1, 1]} : vector<384x128xbf16> to vector<24x128xbf16>
    %c14_191 = arith.constant 14 : index
    %c0_192 = arith.constant 0 : index
    %c0_193 = arith.constant 0 : index
    %338 = vector.load %arg13[%c14_191, %c0_192, %c0_193] : memref<16x128x256xbf16, #tpu.memory_space<vmem>>, vector<1x128x256xbf16>
    %339 = vector.shape_cast %338 : vector<1x128x256xbf16> to vector<128x256xbf16>
    %cst_194 = arith.constant dense<0.000000e+00> : vector<24x256xf32>
    %340 = tpu.matmul %337, %339, %cst_194 {dimension_numbers = #tpu.dot_dimension_numbers<[1], [0], [0], [1], [0, 0, 1, 1], [], []>} : vector<24x128xbf16>, vector<128x256xbf16>, vector<24x256xf32> -> vector<24x256xf32>
    %341 = arith.addf %336, %340 : vector<24x256xf32>
    %342 = vector.extract_strided_slice %263 {offsets = [360, 0], sizes = [24, 128], strides = [1, 1]} : vector<384x128xbf16> to vector<24x128xbf16>
    %c15_195 = arith.constant 15 : index
    %c0_196 = arith.constant 0 : index
    %c0_197 = arith.constant 0 : index
    %343 = vector.load %arg13[%c15_195, %c0_196, %c0_197] : memref<16x128x256xbf16, #tpu.memory_space<vmem>>, vector<1x128x256xbf16>
    %344 = vector.shape_cast %343 : vector<1x128x256xbf16> to vector<128x256xbf16>
    %cst_198 = arith.constant dense<0.000000e+00> : vector<24x256xf32>
    %345 = tpu.matmul %342, %344, %cst_198 {dimension_numbers = #tpu.dot_dimension_numbers<[1], [0], [0], [1], [0, 0, 1, 1], [], []>} : vector<24x128xbf16>, vector<128x256xbf16>, vector<24x256xf32> -> vector<24x256xf32>
    %346 = arith.addf %341, %345 : vector<24x256xf32>
    %347 = vector.extract_strided_slice %6 {offsets = [6, 0], sizes = [1, 256], strides = [1, 1]} : vector<16x256xf32> to vector<1x256xf32>
    %348 = vector.extract_strided_slice %6 {offsets = [7, 0], sizes = [1, 256], strides = [1, 1]} : vector<16x256xf32> to vector<1x256xf32>
    %cst_199 = arith.constant dense<0.000000e+00> : vector<256xf32>
    %349 = vector.multi_reduction <add>, %346, %cst_199 [0] : vector<24x256xf32> to vector<256xf32>
    %350 = vector.shape_cast %349 : vector<256xf32> to vector<1x256xf32>
    %cst_200 = arith.constant 0.055555556 : f32
    %351 = vector.broadcast %cst_200 : f32 to vector<1x256xf32>
    %352 = arith.mulf %350, %351 : vector<1x256xf32>
    %353 = arith.mulf %346, %346 : vector<24x256xf32>
    %cst_201 = arith.constant dense<0.000000e+00> : vector<256xf32>
    %354 = vector.multi_reduction <add>, %353, %cst_201 [0] : vector<24x256xf32> to vector<256xf32>
    %355 = vector.shape_cast %354 : vector<256xf32> to vector<1x256xf32>
    %cst_202 = arith.constant 0.055555556 : f32
    %356 = vector.broadcast %cst_202 : f32 to vector<1x256xf32>
    %357 = arith.mulf %355, %356 : vector<1x256xf32>
    %358 = arith.mulf %352, %352 : vector<1x256xf32>
    %359 = arith.subf %357, %358 : vector<1x256xf32>
    %cst_203 = arith.constant 0.000000e+00 : f32
    %360 = vector.broadcast %cst_203 : f32 to vector<1x256xf32>
    %361 = arith.maximumf %359, %360 : vector<1x256xf32>
    %cst_204 = arith.constant 9.99999974E-6 : f32
    %362 = vector.broadcast %cst_204 : f32 to vector<1x256xf32>
    %363 = arith.addf %361, %362 : vector<1x256xf32>
    %364 = math.rsqrt %363 : vector<1x256xf32>
    %365 = arith.mulf %347, %364 : vector<1x256xf32>
    %366 = arith.mulf %352, %365 : vector<1x256xf32>
    %367 = arith.subf %348, %366 : vector<1x256xf32>
    %368 = vector.broadcast %365 : vector<1x256xf32> to vector<24x256xf32>
    %369 = arith.mulf %346, %368 : vector<24x256xf32>
    %370 = vector.broadcast %367 : vector<1x256xf32> to vector<24x256xf32>
    %371 = arith.addf %369, %370 : vector<24x256xf32>
    %cst_205 = arith.constant 0.000000e+00 : f32
    %372 = vector.broadcast %cst_205 : f32 to vector<24x256xf32>
    %373 = arith.cmpf ogt, %371, %372 : vector<24x256xf32>
    %cst_206 = arith.constant 2.000000e-01 : f32
    %374 = vector.broadcast %cst_206 : f32 to vector<24x256xf32>
    %375 = arith.mulf %374, %371 : vector<24x256xf32>
    %376 = arith.select %373, %371, %375 : vector<24x256xi1>, vector<24x256xf32>
    %c0_207 = arith.constant 0 : index
    %c0_208 = arith.constant 0 : index
    %377 = vector.load %arg6[%c0_207, %c0_208] : memref<24x256xf32, #tpu.memory_space<vmem>>, vector<24x256xf32>
    %378 = arith.mulf %376, %377 : vector<24x256xf32>
    %379 = tpu.iota {dimensions = array<i32: 1>} : vector<2x24xi32>
    %380 = tpu.iota {dimensions = array<i32: 0>} : vector<2x24xi32>
    %c9_i32 = arith.constant 9 : i32
    %381 = vector.broadcast %c9_i32 : i32 to vector<2x24xi32>
    %382 = arith.muli %380, %381 : vector<2x24xi32>
    %383 = arith.cmpi sge, %379, %382 : vector<2x24xi32>
    %c1_i32_209 = arith.constant 1 : i32
    %384 = vector.broadcast %c1_i32_209 : i32 to vector<2x24xi32>
    %385 = arith.addi %380, %384 : vector<2x24xi32>
    %c9_i32_210 = arith.constant 9 : i32
    %386 = vector.broadcast %c9_i32_210 : i32 to vector<2x24xi32>
    %387 = arith.muli %385, %386 : vector<2x24xi32>
    %388 = arith.cmpi slt, %379, %387 : vector<2x24xi32>
    %389 = arith.andi %383, %388 : vector<2x24xi1>
    %cst_211 = arith.constant 1.000000e+00 : f32
    %cst_212 = arith.constant 0.000000e+00 : f32
    %390 = vector.broadcast %cst_211 : f32 to vector<2x24xf32>
    %391 = vector.broadcast %cst_212 : f32 to vector<2x24xf32>
    %392 = arith.select %389, %390, %391 : vector<2x24xi1>, vector<2x24xf32>
    %cst_213 = arith.constant dense<0.000000e+00> : vector<2x256xf32>
    %393 = tpu.matmul %392, %378, %cst_213 {dimension_numbers = #tpu.dot_dimension_numbers<[1], [0], [0], [1], [0, 0, 1, 1], [], []>} : vector<2x24xf32>, vector<24x256xf32>, vector<2x256xf32> -> vector<2x256xf32>
    %cst_214 = arith.constant dense<0.000000e+00> : vector<2xf32>
    %394 = vector.multi_reduction <add>, %393, %cst_214 [1] : vector<2x256xf32> to vector<2xf32>
    %395 = vector.shape_cast %394 : vector<2xf32> to vector<2x1xf32>
    %396 = vector.extract_strided_slice %6 {offsets = [8, 0], sizes = [1, 1], strides = [1, 1]} : vector<16x256xf32> to vector<1x1xf32>
    %397 = vector.broadcast %396 : vector<1x1xf32> to vector<2x1xf32>
    %398 = arith.addf %395, %397 : vector<2x1xf32>
    %cst_215 = arith.constant 0.000000e+00 : f32
    %399 = vector.broadcast %cst_215 : f32 to vector<2x1xf32>
    %400 = arith.subf %399, %398 : vector<2x1xf32>
    %401 = math.exp %400 : vector<2x1xf32>
    %cst_216 = arith.constant 1.000000e+00 : f32
    %402 = vector.broadcast %cst_216 : f32 to vector<2x1xf32>
    %403 = arith.addf %402, %401 : vector<2x1xf32>
    %cst_217 = arith.constant 1.000000e+00 : f32
    %404 = vector.broadcast %cst_217 : f32 to vector<2x1xf32>
    %405 = arith.divf %404, %403 : vector<2x1xf32>
    %c0_218 = arith.constant 0 : index
    %c0_219 = arith.constant 0 : index
    %406 = vector.load %arg10[%c0_218, %c0_219] : memref<2x1xf32, #tpu.memory_space<vmem>>, vector<2x1xf32>
    tpu.vector_store %arg10[%c0_218, %c0_219], %405 {strides = array<i32>} : memref<2x1xf32, #tpu.memory_space<vmem>>, vector<2x1xf32>,
    return
  }
}

</mosaic_0001>

<llo_original>
// kernel: discriminator_forward.1
$region0: #{discriminator_forward.1}
  #allocation0 [shape = 'u32[]', space=smem, size = 0x4, offset = 0x4, fixed_abs, tag = 'smem constant byte address 0x4 - core index']
  #allocation1 [shape = 'u32[72,128]{1,0:T(1,128)}', space=vmem, size = 0x9000, scoped, tag = 'internal scratch']
  #allocation2 [shape = 'bf16[16,64,128]{2,1,0:T(8,128)(2,1)}', space=vmem, size = 0x40000, scoped, tag = 'scratch operand']
  #allocation3 [shape = 'bf16[9,128,128]{2,1,0:T(8,128)(2,1)}', space=vmem, size = 0x48000, scoped, tag = 'scratch operand']
  #allocation4 [shape = 'bf16[16,128,256]{2,1,0:T(8,128)(2,1)}', space=vmem, size = 0x100000, scoped, tag = 'scratch operand']
  #allocation5 [shape = 's32[3]{0}', space=sflag, size = 0xc, scoped, tag = 'scratch operand']
  #allocation6 [shape = 's32[]', space=sflag, size = 0x4, offset = 0, fixed_abs, tag = 'sflag constant byte address 0x0 - dummy sync flag']
  #allocation7 [shape = 's32[]', space=sflag, size = 0x4, offset = 0, fixed_abs, tag = 'sflag constant byte address 0x0 - dummy sync flag']
  #allocation8 [shape = 's32[]', space=sflag, size = 0x4, offset = 0, fixed_abs, tag = 'sflag constant byte address 0x0 - dummy sync flag']
  %s0 = inlined_call_operand.vmem [shape: bf16[288,32], index: 0, kind: input, shape index: {}]
  %s1 = inlined_call_operand.vmem [shape: bf16[32,64], index: 1, kind: input, shape index: {}]
  %s2 = inlined_call_operand.vmem [shape: s32[1152,1], index: 2, kind: input, shape index: {}]
  %s3 = inlined_call_operand.vmem [shape: s32[648,1], index: 3, kind: input, shape index: {}]
  %s4 = inlined_call_operand.vmem [shape: s32[384,1], index: 4, kind: input, shape index: {}]
  %s5 = inlined_call_operand.vmem [shape: f32[16,256], index: 5, kind: input, shape index: {}]
  %s6 = inlined_call_operand.vmem [shape: f32[24,256], index: 6, kind: input, shape index: {}]
  %s7 = inlined_call_operand.vmem [shape: bf16[16,64,128], index: 7, kind: input, shape index: {}]
  %s8 = inlined_call_operand.vmem [shape: bf16[9,128,128], index: 8, kind: input, shape index: {}]
  %s9 = inlined_call_operand.vmem [shape: bf16[16,128,256], index: 9, kind: input, shape index: {}]
  %s10 = inlined_call_operand.vmem [shape: f32[2,1], index: 10, kind: output, shape index: {}]
  %s11 = sld [smem:[#allocation0]]
  $region95: #{discriminator_forward.1} parent=0
    _
  %s13 = ssub.s32 1, %s11
  %s14 = scalar_select 0, %s13, %s11
  // Predicated region
  $region2: #{discriminator_forward.1} parent=0 // pred_check
    _
  $region3: #{discriminator_forward.1} parent=0 // pred_check_branch
    %16 = sbr.rel (0) target = $region5
  $region4: #{discriminator_forward.1} parent=0 // pred_region
    _
  $region5: #{discriminator_forward.1} parent=0 // pred_fallthru
    _
  // Predicated region
  $region6: #{discriminator_forward.1} parent=0 // pred_check
    _
  $region7: #{discriminator_forward.1} parent=0 // pred_check_branch
    %18 = sbr.rel (0) target = $region9
  $region8: #{discriminator_forward.1} parent=0 // pred_region
    _
  $region9: #{discriminator_forward.1} parent=0 // pred_fallthru
    _
  // Predicated region
  $region10: #{discriminator_forward.1} parent=0 // pred_check
    _
  $region11: #{discriminator_forward.1} parent=0 // pred_check_branch
    %20 = sbr.rel (0) target = $region13
  $region12: #{discriminator_forward.1} parent=0 // pred_region
    _
  $region13: #{discriminator_forward.1} parent=0 // pred_fallthru
    _
  // Predicated region
  $region14: #{discriminator_forward.1} parent=0 // pred_check
    _
  $region15: #{discriminator_forward.1} parent=0 // pred_check_branch
    %22 = sbr.rel (0) target = $region17
  $region16: #{discriminator_forward.1} parent=0 // pred_region
    _
  $region17: #{discriminator_forward.1} parent=0 // pred_fallthru
    _
  // Predicated region
  $region18: #{discriminator_forward.1} parent=0 // pred_check
    _
  $region19: #{discriminator_forward.1} parent=0 // pred_check_branch
    %24 = sbr.rel (0) target = $region21
  $region20: #{discriminator_forward.1} parent=0 // pred_region
    _
  $region21: #{discriminator_forward.1} parent=0 // pred_fallthru
    _
  // Predicated region
  $region22: #{discriminator_forward.1} parent=0 // pred_check
    _
  $region23: #{discriminator_forward.1} parent=0 // pred_check_branch
    %26 = sbr.rel (0) target = $region25
  $region24: #{discriminator_forward.1} parent=0 // pred_region
    _
  $region25: #{discriminator_forward.1} parent=0 // pred_fallthru
    _
  // Predicated region
  $region26: #{discriminator_forward.1} parent=0 // pred_check
    _
  $region27: #{discriminator_forward.1} parent=0 // pred_check_branch
    %28 = sbr.rel (0) target = $region29
  $region28: #{discriminator_forward.1} parent=0 // pred_region
    _
  $region29: #{discriminator_forward.1} parent=0 // pred_fallthru
    _
  // Predicated region
  $region30: #{discriminator_forward.1} parent=0 // pred_check
    _
  $region31: #{discriminator_forward.1} parent=0 // pred_check_branch
    %31 = sbr.rel (0) target = $region33
  $region32: #{discriminator_forward.1} parent=0 // pred_region
    loop: start=0, step=1, limit=1
    $region34: #{discriminator_forward.1} parent=32 // loop_pre_header
      _
    $region35: #{discriminator_forward.1} parent=32 // loop_header
      %s33 = sphi 0, %s37
      %p34 = scmp.ge.s32.totalorder %s33, 1
      %s38 = sphi %s7, %s7
      %s39 = sphi [#allocation2], [#allocation2]
    $region36: #{discriminator_forward.1} parent=32 // loop_header_branch
      %36 = sbr.rel (%p34) target = $region40
    $region37: #{discriminator_forward.1} parent=32 // loop_body
      %v40 = vld [vmem:[%s38] sm:$0xff]
      %41 = vst [vmem:[%s39] sm:$0xff] %v40
      %v42 = vld [vmem:[%s38 + $0x8] sm:$0xff]
      %43 = vst [vmem:[%s39 + $0x8] sm:$0xff] %v42
      %v44 = vld [vmem:[%s38 + $0x10] sm:$0xff]
      %45 = vst [vmem:[%s39 + $0x10] sm:$0xff] %v44
      %v46 = vld [vmem:[%s38 + $0x18] sm:$0xff]
      %47 = vst [vmem:[%s39 + $0x18] sm:$0xff] %v46
      %v48 = vld [vmem:[%s38 + $0x20] sm:$0xff]
      %49 = vst [vmem:[%s39 + $0x20] sm:$0xff] %v48
      %v50 = vld [vmem:[%s38 + $0x28] sm:$0xff]
      %51 = vst [vmem:[%s39 + $0x28] sm:$0xff] %v50
      %v52 = vld [vmem:[%s38 + $0x30] sm:$0xff]
      %53 = vst [vmem:[%s39 + $0x30] sm:$0xff] %v52
      %v54 = vld [vmem:[%s38 + $0x38] sm:$0xff]
      %55 = vst [vmem:[%s39 + $0x38] sm:$0xff] %v54
      %v56 = vld [vmem:[%s38 + $0x40] sm:$0xff]
      %57 = vst [vmem:[%s39 + $0x40] sm:$0xff] %v56
      %v58 = vld [vmem:[%s38 + $0x48] sm:$0xff]
      %59 = vst [vmem:[%s39 + $0x48] sm:$0xff] %v58
      %v60 = vld [vmem:[%s38 + $0x50] sm:$0xff]
      %61 = vst [vmem:[%s39 + $0x50] sm:$0xff] %v60
      %v62 = vld [vmem:[%s38 + $0x58] sm:$0xff]
      %63 = vst [vmem:[%s39 + $0x58] sm:$0xff] %v62
      %v64 = vld [vmem:[%s38 + $0x60] sm:$0xff]
      %65 = vst [vmem:[%s39 + $0x60] sm:$0xff] %v64
      %v66 = vld [vmem:[%s38 + $0x68] sm:$0xff]
      %67 = vst [vmem:[%s39 + $0x68] sm:$0xff] %v66
      %v68 = vld [vmem:[%s38 + $0x70] sm:$0xff]
      %69 = vst [vmem:[%s39 + $0x70] sm:$0xff] %v68
      %v70 = vld [vmem:[%s38 + $0x78] sm:$0xff]
      %71 = vst [vmem:[%s39 + $0x78] sm:$0xff] %v70
      %v72 = vld [vmem:[%s38 + $0x80] sm:$0xff]
      %73 = vst [vmem:[%s39 + $0x80] sm:$0xff] %v72
      %v74 = vld [vmem:[%s38 + $0x88] sm:$0xff]
      %75 = vst [vmem:[%s39 + $0x88] sm:$0xff] %v74
      %v76 = vld [vmem:[%s38 + $0x90] sm:$0xff]
      %77 = vst [vmem:[%s39 + $0x90] sm:$0xff] %v76
      %v78 = vld [vmem:[%s38 + $0x98] sm:$0xff]
      %79 = vst [vmem:[%s39 + $0x98] sm:$0xff] %v78
      %v80 = vld [vmem:[%s38 + $0xa0] sm:$0xff]
      %81 = vst [vmem:[%s39 + $0xa0] sm:$0xff] %v80
      %v82 = vld [vmem:[%s38 + $0xa8] sm:$0xff]
      %83 = vst [vmem:[%s39 + $0xa8] sm:$0xff] %v82
      %v84 = vld [vmem:[%s38 + $0xb0] sm:$0xff]
      %85 = vst [vmem:[%s39 + $0xb0] sm:$0xff] %v84
      %v86 = vld [vmem:[%s38 + $0xb8] sm:$0xff]
      %87 = vst [vmem:[%s39 + $0xb8] sm:$0xff] %v86
      %v88 = vld [vmem:[%s38 + $0xc0] sm:$0xff]
      %89 = vst [vmem:[%s39 + $0xc0] sm:$0xff] %v88
      %v90 = vld [vmem:[%s38 + $0xc8] sm:$0xff]
      %91 = vst [vmem:[%s39 + $0xc8] sm:$0xff] %v90
      %v92 = vld [vmem:[%s38 + $0xd0] sm:$0xff]
      %93 = vst [vmem:[%s39 + $0xd0] sm:$0xff] %v92
      %v94 = vld [vmem:[%s38 + $0xd8] sm:$0xff]
      %95 = vst [vmem:[%s39 + $0xd8] sm:$0xff] %v94
      %v96 = vld [vmem:[%s38 + $0xe0] sm:$0xff]
      %97 = vst [vmem:[%s39 + $0xe0] sm:$0xff] %v96
      %v98 = vld [vmem:[%s38 + $0xe8] sm:$0xff]
      %99 = vst [vmem:[%s39 + $0xe8] sm:$0xff] %v98
      %v100 = vld [vmem:[%s38 + $0xf0] sm:$0xff]
      %101 = vst [vmem:[%s39 + $0xf0] sm:$0xff] %v100
      %v102 = vld [vmem:[%s38 + $0xf8] sm:$0xff]
      %103 = vst [vmem:[%s39 + $0xf8] sm:$0xff] %v102
      %v104 = vld [vmem:[%s38 + $0x100] sm:$0xff]
      %105 = vst [vmem:[%s39 + $0x100] sm:$0xff] %v104
      %v106 = vld [vmem:[%s38 + $0x108] sm:$0xff]
      %107 = vst [vmem:[%s39 + $0x108] sm:$0xff] %v106
      %v108 = vld [vmem:[%s38 + $0x110] sm:$0xff]
      %109 = vst [vmem:[%s39 + $0x110] sm:$0xff] %v108
      %v110 = vld [vmem:[%s38 + $0x118] sm:$0xff]
      %111 = vst [vmem:[%s39 + $0x118] sm:$0xff] %v110
      %v112 = vld [vmem:[%s38 + $0x120] sm:$0xff]
      %113 = vst [vmem:[%s39 + $0x120] sm:$0xff] %v112
      %v114 = vld [vmem:[%s38 + $0x128] sm:$0xff]
      %115 = vst [vmem:[%s39 + $0x128] sm:$0xff] %v114
      %v116 = vld [vmem:[%s38 + $0x130] sm:$0xff]
      %117 = vst [vmem:[%s39 + $0x130] sm:$0xff] %v116
      %v118 = vld [vmem:[%s38 + $0x138] sm:$0xff]
      %119 = vst [vmem:[%s39 + $0x138] sm:$0xff] %v118
      %v120 = vld [vmem:[%s38 + $0x140] sm:$0xff]
      %121 = vst [vmem:[%s39 + $0x140] sm:$0xff] %v120
      %v122 = vld [vmem:[%s38 + $0x148] sm:$0xff]
      %123 = vst [vmem:[%s39 + $0x148] sm:$0xff] %v122
      %v124 = vld [vmem:[%s38 + $0x150] sm:$0xff]
      %125 = vst [vmem:[%s39 + $0x150] sm:$0xff] %v124
      %v126 = vld [vmem:[%s38 + $0x158] sm:$0xff]
      %127 = vst [vmem:[%s39 + $0x158] sm:$0xff] %v126
      %v128 = vld [vmem:[%s38 + $0x160] sm:$0xff]
      %129 = vst [vmem:[%s39 + $0x160] sm:$0xff] %v128
      %v130 = vld [vmem:[%s38 + $0x168] sm:$0xff]
      %131 = vst [vmem:[%s39 + $0x168] sm:$0xff] %v130
      %v132 = vld [vmem:[%s38 + $0x170] sm:$0xff]
      %133 = vst [vmem:[%s39 + $0x170] sm:$0xff] %v132
      %v134 = vld [vmem:[%s38 + $0x178] sm:$0xff]
      %135 = vst [vmem:[%s39 + $0x178] sm:$0xff] %v134
      %v136 = vld [vmem:[%s38 + $0x180] sm:$0xff]
      %137 = vst [vmem:[%s39 + $0x180] sm:$0xff] %v136
      %v138 = vld [vmem:[%s38 + $0x188] sm:$0xff]
      %139 = vst [vmem:[%s39 + $0x188] sm:$0xff] %v138
      %v140 = vld [vmem:[%s38 + $0x190] sm:$0xff]
      %141 = vst [vmem:[%s39 + $0x190] sm:$0xff] %v140
      %v142 = vld [vmem:[%s38 + $0x198] sm:$0xff]
      %143 = vst [vmem:[%s39 + $0x198] sm:$0xff] %v142
      %v144 = vld [vmem:[%s38 + $0x1a0] sm:$0xff]
      %145 = vst [vmem:[%s39 + $0x1a0] sm:$0xff] %v144
      %v146 = vld [vmem:[%s38 + $0x1a8] sm:$0xff]
      %147 = vst [vmem:[%s39 + $0x1a8] sm:$0xff] %v146
      %v148 = vld [vmem:[%s38 + $0x1b0] sm:$0xff]
      %149 = vst [vmem:[%s39 + $0x1b0] sm:$0xff] %v148
      %v150 = vld [vmem:[%s38 + $0x1b8] sm:$0xff]
      %151 = vst [vmem:[%s39 + $0x1b8] sm:$0xff] %v150
      %v152 = vld [vmem:[%s38 + $0x1c0] sm:$0xff]
      %153 = vst [vmem:[%s39 + $0x1c0] sm:$0xff] %v152
      %v154 = vld [vmem:[%s38 + $0x1c8] sm:$0xff]
      %155 = vst [vmem:[%s39 + $0x1c8] sm:$0xff] %v154
      %v156 = vld [vmem:[%s38 + $0x1d0] sm:$0xff]
      %157 = vst [vmem:[%s39 + $0x1d0] sm:$0xff] %v156
      %v158 = vld [vmem:[%s38 + $0x1d8] sm:$0xff]
      %159 = vst [vmem:[%s39 + $0x1d8] sm:$0xff] %v158
      %v160 = vld [vmem:[%s38 + $0x1e0] sm:$0xff]
      %161 = vst [vmem:[%s39 + $0x1e0] sm:$0xff] %v160
      %v162 = vld [vmem:[%s38 + $0x1e8] sm:$0xff]
      %163 = vst [vmem:[%s39 + $0x1e8] sm:$0xff] %v162
      %v164 = vld [vmem:[%s38 + $0x1f0] sm:$0xff]
      %165 = vst [vmem:[%s39 + $0x1f0] sm:$0xff] %v164
      %v166 = vld [vmem:[%s38 + $0x1f8] sm:$0xff]
      %167 = vst [vmem:[%s39 + $0x1f8] sm:$0xff] %v166
    $region38: #{discriminator_forward.1} parent=32 // loop_footer
      %s37 = sadd.s32 1, %s33
    $region39: #{discriminator_forward.1} parent=32 // loop_footer_branch
      %32 = sbr.rel target = $region35
    $region40: #{discriminator_forward.1} parent=32 // loop_exit
      _
  $region33: #{discriminator_forward.1} parent=0 // pred_fallthru
    _
  // Predicated region
  $region41: #{discriminator_forward.1} parent=0 // pred_check
    _
  $region42: #{discriminator_forward.1} parent=0 // pred_check_branch
    %169 = sbr.rel target = $region44
  $region43: #{discriminator_forward.1} parent=0 // pred_region
    _
  $region44: #{discriminator_forward.1} parent=0 // pred_fallthru
    _
  // Predicated region
  $region45: #{discriminator_forward.1} parent=0 // pred_check
    _
  $region46: #{discriminator_forward.1} parent=0 // pred_check_branch
    %172 = sbr.rel (0) target = $region48
  $region47: #{discriminator_forward.1} parent=0 // pred_region
    %173 = vsyncadd [#allocation5], 8192
  $region48: #{discriminator_forward.1} parent=0 // pred_fallthru
    _
  %s174 = scalar_lea.sflag [#allocation5], 1
  // Predicated region
  $region49: #{discriminator_forward.1} parent=0 // pred_check
    _
  $region50: #{discriminator_forward.1} parent=0 // pred_check_branch
    %176 = sbr.rel (0) target = $region52
  $region51: #{discriminator_forward.1} parent=0 // pred_region
    loop: start=0, step=1, limit=1
    $region53: #{discriminator_forward.1} parent=51 // loop_pre_header
      _
    $region54: #{discriminator_forward.1} parent=51 // loop_header
      %s178 = sphi 0, %s182
      %p179 = scmp.ge.s32.totalorder %s178, 1
      %s183 = sphi %s8, %s8
      %s184 = sphi [#allocation3], [#allocation3]
    $region55: #{discriminator_forward.1} parent=51 // loop_header_branch
      %181 = sbr.rel (%p179) target = $region59
    $region56: #{discriminator_forward.1} parent=51 // loop_body
      %v185 = vld [vmem:[%s183] sm:$0xff]
      %186 = vst [vmem:[%s184] sm:$0xff] %v185
      %v187 = vld [vmem:[%s183 + $0x8] sm:$0xff]
      %188 = vst [vmem:[%s184 + $0x8] sm:$0xff] %v187
      %v189 = vld [vmem:[%s183 + $0x10] sm:$0xff]
      %190 = vst [vmem:[%s184 + $0x10] sm:$0xff] %v189
      %v191 = vld [vmem:[%s183 + $0x18] sm:$0xff]
      %192 = vst [vmem:[%s184 + $0x18] sm:$0xff] %v191
      %v193 = vld [vmem:[%s183 + $0x20] sm:$0xff]
      %194 = vst [vmem:[%s184 + $0x20] sm:$0xff] %v193
      %v195 = vld [vmem:[%s183 + $0x28] sm:$0xff]
      %196 = vst [vmem:[%s184 + $0x28] sm:$0xff] %v195
      %v197 = vld [vmem:[%s183 + $0x30] sm:$0xff]
      %198 = vst [vmem:[%s184 + $0x30] sm:$0xff] %v197
      %v199 = vld [vmem:[%s183 + $0x38] sm:$0xff]
      %200 = vst [vmem:[%s184 + $0x38] sm:$0xff] %v199
      %v201 = vld [vmem:[%s183 + $0x40] sm:$0xff]
      %202 = vst [vmem:[%s184 + $0x40] sm:$0xff] %v201
      %v203 = vld [vmem:[%s183 + $0x48] sm:$0xff]
      %204 = vst [vmem:[%s184 + $0x48] sm:$0xff] %v203
      %v205 = vld [vmem:[%s183 + $0x50] sm:$0xff]
      %206 = vst [vmem:[%s184 + $0x50] sm:$0xff] %v205
      %v207 = vld [vmem:[%s183 + $0x58] sm:$0xff]
      %208 = vst [vmem:[%s184 + $0x58] sm:$0xff] %v207
      %v209 = vld [vmem:[%s183 + $0x60] sm:$0xff]
      %210 = vst [vmem:[%s184 + $0x60] sm:$0xff] %v209
      %v211 = vld [vmem:[%s183 + $0x68] sm:$0xff]
      %212 = vst [vmem:[%s184 + $0x68] sm:$0xff] %v211
      %v213 = vld [vmem:[%s183 + $0x70] sm:$0xff]
      %214 = vst [vmem:[%s184 + $0x70] sm:$0xff] %v213
      %v215 = vld [vmem:[%s183 + $0x78] sm:$0xff]
      %216 = vst [vmem:[%s184 + $0x78] sm:$0xff] %v215
      %v217 = vld [vmem:[%s183 + $0x80] sm:$0xff]
      %218 = vst [vmem:[%s184 + $0x80] sm:$0xff] %v217
      %v219 = vld [vmem:[%s183 + $0x88] sm:$0xff]
      %220 = vst [vmem:[%s184 + $0x88] sm:$0xff] %v219
      %v221 = vld [vmem:[%s183 + $0x90] sm:$0xff]
      %222 = vst [vmem:[%s184 + $0x90] sm:$0xff] %v221
      %v223 = vld [vmem:[%s183 + $0x98] sm:$0xff]
      %224 = vst [vmem:[%s184 + $0x98] sm:$0xff] %v223
      %v225 = vld [vmem:[%s183 + $0xa0] sm:$0xff]
      %226 = vst [vmem:[%s184 + $0xa0] sm:$0xff] %v225
      %v227 = vld [vmem:[%s183 + $0xa8] sm:$0xff]
      %228 = vst [vmem:[%s184 + $0xa8] sm:$0xff] %v227
      %v229 = vld [vmem:[%s183 + $0xb0] sm:$0xff]
      %230 = vst [vmem:[%s184 + $0xb0] sm:$0xff] %v229
      %v231 = vld [vmem:[%s183 + $0xb8] sm:$0xff]
      %232 = vst [vmem:[%s184 + $0xb8] sm:$0xff] %v231
      %v233 = vld [vmem:[%s183 + $0xc0] sm:$0xff]
      %234 = vst [vmem:[%s184 + $0xc0] sm:$0xff] %v233
      %v235 = vld [vmem:[%s183 + $0xc8] sm:$0xff]
      %236 = vst [vmem:[%s184 + $0xc8] sm:$0xff] %v235
      %v237 = vld [vmem:[%s183 + $0xd0] sm:$0xff]
      %238 = vst [vmem:[%s184 + $0xd0] sm:$0xff] %v237
      %v239 = vld [vmem:[%s183 + $0xd8] sm:$0xff]
      %240 = vst [vmem:[%s184 + $0xd8] sm:$0xff] %v239
      %v241 = vld [vmem:[%s183 + $0xe0] sm:$0xff]
      %242 = vst [vmem:[%s184 + $0xe0] sm:$0xff] %v241
      %v243 = vld [vmem:[%s183 + $0xe8] sm:$0xff]
      %244 = vst [vmem:[%s184 + $0xe8] sm:$0xff] %v243
      %v245 = vld [vmem:[%s183 + $0xf0] sm:$0xff]
      %246 = vst [vmem:[%s184 + $0xf0] sm:$0xff] %v245
      %v247 = vld [vmem:[%s183 + $0xf8] sm:$0xff]
      %248 = vst [vmem:[%s184 + $0xf8] sm:$0xff] %v247
      %v249 = vld [vmem:[%s183 + $0x100] sm:$0xff]
      %250 = vst [vmem:[%s184 + $0x100] sm:$0xff] %v249
      %v251 = vld [vmem:[%s183 + $0x108] sm:$0xff]
      %252 = vst [vmem:[%s184 + $0x108] sm:$0xff] %v251
      %v253 = vld [vmem:[%s183 + $0x110] sm:$0xff]
      %254 = vst [vmem:[%s184 + $0x110] sm:$0xff] %v253
      %v255 = vld [vmem:[%s183 + $0x118] sm:$0xff]
      %256 = vst [vmem:[%s184 + $0x118] sm:$0xff] %v255
      %v257 = vld [vmem:[%s183 + $0x120] sm:$0xff]
      %258 = vst [vmem:[%s184 + $0x120] sm:$0xff] %v257
      %v259 = vld [vmem:[%s183 + $0x128] sm:$0xff]
      %260 = vst [vmem:[%s184 + $0x128] sm:$0xff] %v259
      %v261 = vld [vmem:[%s183 + $0x130] sm:$0xff]
      %262 = vst [vmem:[%s184 + $0x130] sm:$0xff] %v261
      %v263 = vld [vmem:[%s183 + $0x138] sm:$0xff]
      %264 = vst [vmem:[%s184 + $0x138] sm:$0xff] %v263
      %v265 = vld [vmem:[%s183 + $0x140] sm:$0xff]
      %266 = vst [vmem:[%s184 + $0x140] sm:$0xff] %v265
      %v267 = vld [vmem:[%s183 + $0x148] sm:$0xff]
      %268 = vst [vmem:[%s184 + $0x148] sm:$0xff] %v267
      %v269 = vld [vmem:[%s183 + $0x150] sm:$0xff]
      %270 = vst [vmem:[%s184 + $0x150] sm:$0xff] %v269
      %v271 = vld [vmem:[%s183 + $0x158] sm:$0xff]
      %272 = vst [vmem:[%s184 + $0x158] sm:$0xff] %v271
      %v273 = vld [vmem:[%s183 + $0x160] sm:$0xff]
      %274 = vst [vmem:[%s184 + $0x160] sm:$0xff] %v273
      %v275 = vld [vmem:[%s183 + $0x168] sm:$0xff]
      %276 = vst [vmem:[%s184 + $0x168] sm:$0xff] %v275
      %v277 = vld [vmem:[%s183 + $0x170] sm:$0xff]
      %278 = vst [vmem:[%s184 + $0x170] sm:$0xff] %v277
      %v279 = vld [vmem:[%s183 + $0x178] sm:$0xff]
      %280 = vst [vmem:[%s184 + $0x178] sm:$0xff] %v279
      %v281 = vld [vmem:[%s183 + $0x180] sm:$0xff]
      %282 = vst [vmem:[%s184 + $0x180] sm:$0xff] %v281
      %v283 = vld [vmem:[%s183 + $0x188] sm:$0xff]
      %284 = vst [vmem:[%s184 + $0x188] sm:$0xff] %v283
      %v285 = vld [vmem:[%s183 + $0x190] sm:$0xff]
      %286 = vst [vmem:[%s184 + $0x190] sm:$0xff] %v285
      %v287 = vld [vmem:[%s183 + $0x198] sm:$0xff]
      %288 = vst [vmem:[%s184 + $0x198] sm:$0xff] %v287
      %v289 = vld [vmem:[%s183 + $0x1a0] sm:$0xff]
      %290 = vst [vmem:[%s184 + $0x1a0] sm:$0xff] %v289
      %v291 = vld [vmem:[%s183 + $0x1a8] sm:$0xff]
      %292 = vst [vmem:[%s184 + $0x1a8] sm:$0xff] %v291
      %v293 = vld [vmem:[%s183 + $0x1b0] sm:$0xff]
      %294 = vst [vmem:[%s184 + $0x1b0] sm:$0xff] %v293
      %v295 = vld [vmem:[%s183 + $0x1b8] sm:$0xff]
      %296 = vst [vmem:[%s184 + $0x1b8] sm:$0xff] %v295
      %v297 = vld [vmem:[%s183 + $0x1c0] sm:$0xff]
      %298 = vst [vmem:[%s184 + $0x1c0] sm:$0xff] %v297
      %v299 = vld [vmem:[%s183 + $0x1c8] sm:$0xff]
      %300 = vst [vmem:[%s184 + $0x1c8] sm:$0xff] %v299
      %v301 = vld [vmem:[%s183 + $0x1d0] sm:$0xff]
      %302 = vst [vmem:[%s184 + $0x1d0] sm:$0xff] %v301
      %v303 = vld [vmem:[%s183 + $0x1d8] sm:$0xff]
      %304 = vst [vmem:[%s184 + $0x1d8] sm:$0xff] %v303
      %v305 = vld [vmem:[%s183 + $0x1e0] sm:$0xff]
      %306 = vst [vmem:[%s184 + $0x1e0] sm:$0xff] %v305
      %v307 = vld [vmem:[%s183 + $0x1e8] sm:$0xff]
      %308 = vst [vmem:[%s184 + $0x1e8] sm:$0xff] %v307
      %v309 = vld [vmem:[%s183 + $0x1f0] sm:$0xff]
      %310 = vst [vmem:[%s184 + $0x1f0] sm:$0xff] %v309
      %v311 = vld [vmem:[%s183 + $0x1f8] sm:$0xff]
      %312 = vst [vmem:[%s184 + $0x1f8] sm:$0xff] %v311
      %v313 = vld [vmem:[%s183 + $0x200] sm:$0xff]
      %314 = vst [vmem:[%s184 + $0x200] sm:$0xff] %v313
      %v315 = vld [vmem:[%s183 + $0x208] sm:$0xff]
      %316 = vst [vmem:[%s184 + $0x208] sm:$0xff] %v315
      %v317 = vld [vmem:[%s183 + $0x210] sm:$0xff]
      %318 = vst [vmem:[%s184 + $0x210] sm:$0xff] %v317
      %v319 = vld [vmem:[%s183 + $0x218] sm:$0xff]
      %320 = vst [vmem:[%s184 + $0x218] sm:$0xff] %v319
      %v321 = vld [vmem:[%s183 + $0x220] sm:$0xff]
      %322 = vst [vmem:[%s184 + $0x220] sm:$0xff] %v321
      %v323 = vld [vmem:[%s183 + $0x228] sm:$0xff]
      %324 = vst [vmem:[%s184 + $0x228] sm:$0xff] %v323
      %v325 = vld [vmem:[%s183 + $0x230] sm:$0xff]
      %326 = vst [vmem:[%s184 + $0x230] sm:$0xff] %v325
      %v327 = vld [vmem:[%s183 + $0x238] sm:$0xff]
      %328 = vst [vmem:[%s184 + $0x238] sm:$0xff] %v327
    $region57: #{discriminator_forward.1} parent=51 // loop_footer
      %s182 = sadd.s32 1, %s178
    $region58: #{discriminator_forward.1} parent=51 // loop_footer_branch
      %177 = sbr.rel target = $region54
    $region59: #{discriminator_forward.1} parent=51 // loop_exit
      _
  $region52: #{discriminator_forward.1} parent=0 // pred_fallthru
    _
  // Predicated region
  $region60: #{discriminator_forward.1} parent=0 // pred_check
    _
  $region61: #{discriminator_forward.1} parent=0 // pred_check_branch
    %330 = sbr.rel target = $region63
  $region62: #{discriminator_forward.1} parent=0 // pred_region
    _
  $region63: #{discriminator_forward.1} parent=0 // pred_fallthru
    _
  // Predicated region
  $region64: #{discriminator_forward.1} parent=0 // pred_check
    _
  $region65: #{discriminator_forward.1} parent=0 // pred_check_branch
    %333 = sbr.rel (0) target = $region67
  $region66: #{discriminator_forward.1} parent=0 // pred_region
    %334 = vsyncadd %s174, 9216
  $region67: #{discriminator_forward.1} parent=0 // pred_fallthru
    _
  %s335 = scalar_lea.sflag [#allocation5], 2
  // Predicated region
  $region68: #{discriminator_forward.1} parent=0 // pred_check
    _
  $region69: #{discriminator_forward.1} parent=0 // pred_check_branch
    %337 = sbr.rel (0) target = $region71
  $region70: #{discriminator_forward.1} parent=0 // pred_region
    loop: start=0, step=1, limit=1
    $region72: #{discriminator_forward.1} parent=70 // loop_pre_header
      _
    $region73: #{discriminator_forward.1} parent=70 // loop_header
      %s339 = sphi 0, %s343
      %p340 = scmp.ge.s32.totalorder %s339, 1
      %s344 = sphi %s9, %s9
      %s345 = sphi [#allocation4], [#allocation4]
    $region74: #{discriminator_forward.1} parent=70 // loop_header_branch
      %342 = sbr.rel (%p340) target = $region78
    $region75: #{discriminator_forward.1} parent=70 // loop_body
      %v346 = vld [vmem:[%s344] sm:$0xff]
      %347 = vst [vmem:[%s345] sm:$0xff] %v346
      %v348 = vld [vmem:[%s344 + $0x8] sm:$0xff]
      %349 = vst [vmem:[%s345 + $0x8] sm:$0xff] %v348
      %v350 = vld [vmem:[%s344 + $0x10] sm:$0xff]
      %351 = vst [vmem:[%s345 + $0x10] sm:$0xff] %v350
      %v352 = vld [vmem:[%s344 + $0x18] sm:$0xff]
      %353 = vst [vmem:[%s345 + $0x18] sm:$0xff] %v352
      %v354 = vld [vmem:[%s344 + $0x20] sm:$0xff]
      %355 = vst [vmem:[%s345 + $0x20] sm:$0xff] %v354
      %v356 = vld [vmem:[%s344 + $0x28] sm:$0xff]
      %357 = vst [vmem:[%s345 + $0x28] sm:$0xff] %v356
      %v358 = vld [vmem:[%s344 + $0x30] sm:$0xff]
      %359 = vst [vmem:[%s345 + $0x30] sm:$0xff] %v358
      %v360 = vld [vmem:[%s344 + $0x38] sm:$0xff]
      %361 = vst [vmem:[%s345 + $0x38] sm:$0xff] %v360
      %v362 = vld [vmem:[%s344 + $0x40] sm:$0xff]
      %363 = vst [vmem:[%s345 + $0x40] sm:$0xff] %v362
      %v364 = vld [vmem:[%s344 + $0x48] sm:$0xff]
      %365 = vst [vmem:[%s345 + $0x48] sm:$0xff] %v364
      %v366 = vld [vmem:[%s344 + $0x50] sm:$0xff]
      %367 = vst [vmem:[%s345 + $0x50] sm:$0xff] %v366
      %v368 = vld [vmem:[%s344 + $0x58] sm:$0xff]
      %369 = vst [vmem:[%s345 + $0x58] sm:$0xff] %v368
      %v370 = vld [vmem:[%s344 + $0x60] sm:$0xff]
      %371 = vst [vmem:[%s345 + $0x60] sm:$0xff] %v370
      %v372 = vld [vmem:[%s344 + $0x68] sm:$0xff]
      %373 = vst [vmem:[%s345 + $0x68] sm:$0xff] %v372
      %v374 = vld [vmem:[%s344 + $0x70] sm:$0xff]
      %375 = vst [vmem:[%s345 + $0x70] sm:$0xff] %v374
      %v376 = vld [vmem:[%s344 + $0x78] sm:$0xff]
      %377 = vst [vmem:[%s345 + $0x78] sm:$0xff] %v376
      %v378 = vld [vmem:[%s344 + $0x80] sm:$0xff]
      %379 = vst [vmem:[%s345 + $0x80] sm:$0xff] %v378
      %v380 = vld [vmem:[%s344 + $0x88] sm:$0xff]
      %381 = vst [vmem:[%s345 + $0x88] sm:$0xff] %v380
      %v382 = vld [vmem:[%s344 + $0x90] sm:$0xff]
      %383 = vst [vmem:[%s345 + $0x90] sm:$0xff] %v382
      %v384 = vld [vmem:[%s344 + $0x98] sm:$0xff]
      %385 = vst [vmem:[%s345 + $0x98] sm:$0xff] %v384
      %v386 = vld [vmem:[%s344 + $0xa0] sm:$0xff]
      %387 = vst [vmem:[%s345 + $0xa0] sm:$0xff] %v386
      %v388 = vld [vmem:[%s344 + $0xa8] sm:$0xff]
      %389 = vst [vmem:[%s345 + $0xa8] sm:$0xff] %v388
      %v390 = vld [vmem:[%s344 + $0xb0] sm:$0xff]
      %391 = vst [vmem:[%s345 + $0xb0] sm:$0xff] %v390
      %v392 = vld [vmem:[%s344 + $0xb8] sm:$0xff]
      %393 = vst [vmem:[%s345 + $0xb8] sm:$0xff] %v392
      %v394 = vld [vmem:[%s344 + $0xc0] sm:$0xff]
      %395 = vst [vmem:[%s345 + $0xc0] sm:$0xff] %v394
      %v396 = vld [vmem:[%s344 + $0xc8] sm:$0xff]
      %397 = vst [vmem:[%s345 + $0xc8] sm:$0xff] %v396
      %v398 = vld [vmem:[%s344 + $0xd0] sm:$0xff]
      %399 = vst [vmem:[%s345 + $0xd0] sm:$0xff] %v398
      %v400 = vld [vmem:[%s344 + $0xd8] sm:$0xff]
      %401 = vst [vmem:[%s345 + $0xd8] sm:$0xff] %v400
      %v402 = vld [vmem:[%s344 + $0xe0] sm:$0xff]
      %403 = vst [vmem:[%s345 + $0xe0] sm:$0xff] %v402
      %v404 = vld [vmem:[%s344 + $0xe8] sm:$0xff]
      %405 = vst [vmem:[%s345 + $0xe8] sm:$0xff] %v404
      %v406 = vld [vmem:[%s344 + $0xf0] sm:$0xff]
      %407 = vst [vmem:[%s345 + $0xf0] sm:$0xff] %v406
      %v408 = vld [vmem:[%s344 + $0xf8] sm:$0xff]
      %409 = vst [vmem:[%s345 + $0xf8] sm:$0xff] %v408
      %v410 = vld [vmem:[%s344 + $0x100] sm:$0xff]
      %411 = vst [vmem:[%s345 + $0x100] sm:$0xff] %v410
      %v412 = vld [vmem:[%s344 + $0x108] sm:$0xff]
      %413 = vst [vmem:[%s345 + $0x108] sm:$0xff] %v412
      %v414 = vld [vmem:[%s344 + $0x110] sm:$0xff]
      %415 = vst [vmem:[%s345 + $0x110] sm:$0xff] %v414
      %v416 = vld [vmem:[%s344 + $0x118] sm:$0xff]
      %417 = vst [vmem:[%s345 + $0x118] sm:$0xff] %v416
      %v418 = vld [vmem:[%s344 + $0x120] sm:$0xff]
      %419 = vst [vmem:[%s345 + $0x120] sm:$0xff] %v418
      %v420 = vld [vmem:[%s344 + $0x128] sm:$0xff]
      %421 = vst [vmem:[%s345 + $0x128] sm:$0xff] %v420
      %v422 = vld [vmem:[%s344 + $0x130] sm:$0xff]
      %423 = vst [vmem:[%s345 + $0x130] sm:$0xff] %v422
      %v424 = vld [vmem:[%s344 + $0x138] sm:$0xff]
      %425 = vst [vmem:[%s345 + $0x138] sm:$0xff] %v424
      %v426 = vld [vmem:[%s344 + $0x140] sm:$0xff]
      %427 = vst [vmem:[%s345 + $0x140] sm:$0xff] %v426
      %v428 = vld [vmem:[%s344 + $0x148] sm:$0xff]
      %429 = vst [vmem:[%s345 + $0x148] sm:$0xff] %v428
      %v430 = vld [vmem:[%s344 + $0x150] sm:$0xff]
      %431 = vst [vmem:[%s345 + $0x150] sm:$0xff] %v430
      %v432 = vld [vmem:[%s344 + $0x158] sm:$0xff]
      %433 = vst [vmem:[%s345 + $0x158] sm:$0xff] %v432
      %v434 = vld [vmem:[%s344 + $0x160] sm:$0xff]
      %435 = vst [vmem:[%s345 + $0x160] sm:$0xff] %v434
      %v436 = vld [vmem:[%s344 + $0x168] sm:$0xff]
      %437 = vst [vmem:[%s345 + $0x168] sm:$0xff] %v436
      %v438 = vld [vmem:[%s344 + $0x170] sm:$0xff]
      %439 = vst [vmem:[%s345 + $0x170] sm:$0xff] %v438
      %v440 = vld [vmem:[%s344 + $0x178] sm:$0xff]
      %441 = vst [vmem:[%s345 + $0x178] sm:$0xff] %v440
      %v442 = vld [vmem:[%s344 + $0x180] sm:$0xff]
      %443 = vst [vmem:[%s345 + $0x180] sm:$0xff] %v442
      %v444 = vld [vmem:[%s344 + $0x188] sm:$0xff]
      %445 = vst [vmem:[%s345 + $0x188] sm:$0xff] %v444
      %v446 = vld [vmem:[%s344 + $0x190] sm:$0xff]
      %447 = vst [vmem:[%s345 + $0x190] sm:$0xff] %v446
      %v448 = vld [vmem:[%s344 + $0x198] sm:$0xff]
      %449 = vst [vmem:[%s345 + $0x198] sm:$0xff] %v448
      %v450 = vld [vmem:[%s344 + $0x1a0] sm:$0xff]
      %451 = vst [vmem:[%s345 + $0x1a0] sm:$0xff] %v450
      %v452 = vld [vmem:[%s344 + $0x1a8] sm:$0xff]
      %453 = vst [vmem:[%s345 + $0x1a8] sm:$0xff] %v452
      %v454 = vld [vmem:[%s344 + $0x1b0] sm:$0xff]
      %455 = vst [vmem:[%s345 + $0x1b0] sm:$0xff] %v454
      %v456 = vld [vmem:[%s344 + $0x1b8] sm:$0xff]
      %457 = vst [vmem:[%s345 + $0x1b8] sm:$0xff] %v456
      %v458 = vld [vmem:[%s344 + $0x1c0] sm:$0xff]
      %459 = vst [vmem:[%s345 + $0x1c0] sm:$0xff] %v458
      %v460 = vld [vmem:[%s344 + $0x1c8] sm:$0xff]
      %461 = vst [vmem:[%s345 + $0x1c8] sm:$0xff] %v460
      %v462 = vld [vmem:[%s344 + $0x1d0] sm:$0xff]
      %463 = vst [vmem:[%s345 + $0x1d0] sm:$0xff] %v462
      %v464 = vld [vmem:[%s344 + $0x1d8] sm:$0xff]
      %465 = vst [vmem:[%s345 + $0x1d8] sm:$0xff] %v464
      %v466 = vld [vmem:[%s344 + $0x1e0] sm:$0xff]
      %467 = vst [vmem:[%s345 + $0x1e0] sm:$0xff] %v466
      %v468 = vld [vmem:[%s344 + $0x1e8] sm:$0xff]
      %469 = vst [vmem:[%s345 + $0x1e8] sm:$0xff] %v468
      %v470 = vld [vmem:[%s344 + $0x1f0] sm:$0xff]
      %471 = vst [vmem:[%s345 + $0x1f0] sm:$0xff] %v470
      %v472 = vld [vmem:[%s344 + $0x1f8] sm:$0xff]
      %473 = vst [vmem:[%s345 + $0x1f8] sm:$0xff] %v472
      %v474 = vld [vmem:[%s344 + $0x200] sm:$0xff]
      %475 = vst [vmem:[%s345 + $0x200] sm:$0xff] %v474
      %v476 = vld [vmem:[%s344 + $0x208] sm:$0xff]
      %477 = vst [vmem:[%s345 + $0x208] sm:$0xff] %v476
      %v478 = vld [vmem:[%s344 + $0x210] sm:$0xff]
      %479 = vst [vmem:[%s345 + $0x210] sm:$0xff] %v478
      %v480 = vld [vmem:[%s344 + $0x218] sm:$0xff]
      %481 = vst [vmem:[%s345 + $0x218] sm:$0xff] %v480
      %v482 = vld [vmem:[%s344 + $0x220] sm:$0xff]
      %483 = vst [vmem:[%s345 + $0x220] sm:$0xff] %v482
      %v484 = vld [vmem:[%s344 + $0x228] sm:$0xff]
      %485 = vst [vmem:[%s345 + $0x228] sm:$0xff] %v484
      %v486 = vld [vmem:[%s344 + $0x230] sm:$0xff]
      %487 = vst [vmem:[%s345 + $0x230] sm:$0xff] %v486
      %v488 = vld [vmem:[%s344 + $0x238] sm:$0xff]
      %489 = vst [vmem:[%s345 + $0x238] sm:$0xff] %v488
      %v490 = vld [vmem:[%s344 + $0x240] sm:$0xff]
      %491 = vst [vmem:[%s345 + $0x240] sm:$0xff] %v490
      %v492 = vld [vmem:[%s344 + $0x248] sm:$0xff]
      %493 = vst [vmem:[%s345 + $0x248] sm:$0xff] %v492
      %v494 = vld [vmem:[%s344 + $0x250] sm:$0xff]
      %495 = vst [vmem:[%s345 + $0x250] sm:$0xff] %v494
      %v496 = vld [vmem:[%s344 + $0x258] sm:$0xff]
      %497 = vst [vmem:[%s345 + $0x258] sm:$0xff] %v496
      %v498 = vld [vmem:[%s344 + $0x260] sm:$0xff]
      %499 = vst [vmem:[%s345 + $0x260] sm:$0xff] %v498
      %v500 = vld [vmem:[%s344 + $0x268] sm:$0xff]
      %501 = vst [vmem:[%s345 + $0x268] sm:$0xff] %v500
      %v502 = vld [vmem:[%s344 + $0x270] sm:$0xff]
      %503 = vst [vmem:[%s345 + $0x270] sm:$0xff] %v502
      %v504 = vld [vmem:[%s344 + $0x278] sm:$0xff]
      %505 = vst [vmem:[%s345 + $0x278] sm:$0xff] %v504
      %v506 = vld [vmem:[%s344 + $0x280] sm:$0xff]
      %507 = vst [vmem:[%s345 + $0x280] sm:$0xff] %v506
      %v508 = vld [vmem:[%s344 + $0x288] sm:$0xff]
      %509 = vst [vmem:[%s345 + $0x288] sm:$0xff] %v508
      %v510 = vld [vmem:[%s344 + $0x290] sm:$0xff]
      %511 = vst [vmem:[%s345 + $0x290] sm:$0xff] %v510
      %v512 = vld [vmem:[%s344 + $0x298] sm:$0xff]
      %513 = vst [vmem:[%s345 + $0x298] sm:$0xff] %v512
      %v514 = vld [vmem:[%s344 + $0x2a0] sm:$0xff]
      %515 = vst [vmem:[%s345 + $0x2a0] sm:$0xff] %v514
      %v516 = vld [vmem:[%s344 + $0x2a8] sm:$0xff]
      %517 = vst [vmem:[%s345 + $0x2a8] sm:$0xff] %v516
      %v518 = vld [vmem:[%s344 + $0x2b0] sm:$0xff]
      %519 = vst [vmem:[%s345 + $0x2b0] sm:$0xff] %v518
      %v520 = vld [vmem:[%s344 + $0x2b8] sm:$0xff]
      %521 = vst [vmem:[%s345 + $0x2b8] sm:$0xff] %v520
      %v522 = vld [vmem:[%s344 + $0x2c0] sm:$0xff]
      %523 = vst [vmem:[%s345 + $0x2c0] sm:$0xff] %v522
      %v524 = vld [vmem:[%s344 + $0x2c8] sm:$0xff]
      %525 = vst [vmem:[%s345 + $0x2c8] sm:$0xff] %v524
      %v526 = vld [vmem:[%s344 + $0x2d0] sm:$0xff]
      %527 = vst [vmem:[%s345 + $0x2d0] sm:$0xff] %v526
      %v528 = vld [vmem:[%s344 + $0x2d8] sm:$0xff]
      %529 = vst [vmem:[%s345 + $0x2d8] sm:$0xff] %v528
      %v530 = vld [vmem:[%s344 + $0x2e0] sm:$0xff]
      %531 = vst [vmem:[%s345 + $0x2e0] sm:$0xff] %v530
      %v532 = vld [vmem:[%s344 + $0x2e8] sm:$0xff]
      %533 = vst [vmem:[%s345 + $0x2e8] sm:$0xff] %v532
      %v534 = vld [vmem:[%s344 + $0x2f0] sm:$0xff]
      %535 = vst [vmem:[%s345 + $0x2f0] sm:$0xff] %v534
      %v536 = vld [vmem:[%s344 + $0x2f8] sm:$0xff]
      %537 = vst [vmem:[%s345 + $0x2f8] sm:$0xff] %v536
      %v538 = vld [vmem:[%s344 + $0x300] sm:$0xff]
      %539 = vst [vmem:[%s345 + $0x300] sm:$0xff] %v538
      %v540 = vld [vmem:[%s344 + $0x308] sm:$0xff]
      %541 = vst [vmem:[%s345 + $0x308] sm:$0xff] %v540
      %v542 = vld [vmem:[%s344 + $0x310] sm:$0xff]
      %543 = vst [vmem:[%s345 + $0x310] sm:$0xff] %v542
      %v544 = vld [vmem:[%s344 + $0x318] sm:$0xff]
      %545 = vst [vmem:[%s345 + $0x318] sm:$0xff] %v544
      %v546 = vld [vmem:[%s344 + $0x320] sm:$0xff]
      %547 = vst [vmem:[%s345 + $0x320] sm:$0xff] %v546
      %v548 = vld [vmem:[%s344 + $0x328] sm:$0xff]
      %549 = vst [vmem:[%s345 + $0x328] sm:$0xff] %v548
      %v550 = vld [vmem:[%s344 + $0x330] sm:$0xff]
      %551 = vst [vmem:[%s345 + $0x330] sm:$0xff] %v550
      %v552 = vld [vmem:[%s344 + $0x338] sm:$0xff]
      %553 = vst [vmem:[%s345 + $0x338] sm:$0xff] %v552
      %v554 = vld [vmem:[%s344 + $0x340] sm:$0xff]
      %555 = vst [vmem:[%s345 + $0x340] sm:$0xff] %v554
      %v556 = vld [vmem:[%s344 + $0x348] sm:$0xff]
      %557 = vst [vmem:[%s345 + $0x348] sm:$0xff] %v556
      %v558 = vld [vmem:[%s344 + $0x350] sm:$0xff]
      %559 = vst [vmem:[%s345 + $0x350] sm:$0xff] %v558
      %v560 = vld [vmem:[%s344 + $0x358] sm:$0xff]
      %561 = vst [vmem:[%s345 + $0x358] sm:$0xff] %v560
      %v562 = vld [vmem:[%s344 + $0x360] sm:$0xff]
      %563 = vst [vmem:[%s345 + $0x360] sm:$0xff] %v562
      %v564 = vld [vmem:[%s344 + $0x368] sm:$0xff]
      %565 = vst [vmem:[%s345 + $0x368] sm:$0xff] %v564
      %v566 = vld [vmem:[%s344 + $0x370] sm:$0xff]
      %567 = vst [vmem:[%s345 + $0x370] sm:$0xff] %v566
      %v568 = vld [vmem:[%s344 + $0x378] sm:$0xff]
      %569 = vst [vmem:[%s345 + $0x378] sm:$0xff] %v568
      %v570 = vld [vmem:[%s344 + $0x380] sm:$0xff]
      %571 = vst [vmem:[%s345 + $0x380] sm:$0xff] %v570
      %v572 = vld [vmem:[%s344 + $0x388] sm:$0xff]
      %573 = vst [vmem:[%s345 + $0x388] sm:$0xff] %v572
      %v574 = vld [vmem:[%s344 + $0x390] sm:$0xff]
      %575 = vst [vmem:[%s345 + $0x390] sm:$0xff] %v574
      %v576 = vld [vmem:[%s344 + $0x398] sm:$0xff]
      %577 = vst [vmem:[%s345 + $0x398] sm:$0xff] %v576
      %v578 = vld [vmem:[%s344 + $0x3a0] sm:$0xff]
      %579 = vst [vmem:[%s345 + $0x3a0] sm:$0xff] %v578
      %v580 = vld [vmem:[%s344 + $0x3a8] sm:$0xff]
      %581 = vst [vmem:[%s345 + $0x3a8] sm:$0xff] %v580
      %v582 = vld [vmem:[%s344 + $0x3b0] sm:$0xff]
      %583 = vst [vmem:[%s345 + $0x3b0] sm:$0xff] %v582
      %v584 = vld [vmem:[%s344 + $0x3b8] sm:$0xff]
      %585 = vst [vmem:[%s345 + $0x3b8] sm:$0xff] %v584
      %v586 = vld [vmem:[%s344 + $0x3c0] sm:$0xff]
      %587 = vst [vmem:[%s345 + $0x3c0] sm:$0xff] %v586
      %v588 = vld [vmem:[%s344 + $0x3c8] sm:$0xff]
      %589 = vst [vmem:[%s345 + $0x3c8] sm:$0xff] %v588
      %v590 = vld [vmem:[%s344 + $0x3d0] sm:$0xff]
      %591 = vst [vmem:[%s345 + $0x3d0] sm:$0xff] %v590
      %v592 = vld [vmem:[%s344 + $0x3d8] sm:$0xff]
      %593 = vst [vmem:[%s345 + $0x3d8] sm:$0xff] %v592
      %v594 = vld [vmem:[%s344 + $0x3e0] sm:$0xff]
      %595 = vst [vmem:[%s345 + $0x3e0] sm:$0xff] %v594
      %v596 = vld [vmem:[%s344 + $0x3e8] sm:$0xff]
      %597 = vst [vmem:[%s345 + $0x3e8] sm:$0xff] %v596
      %v598 = vld [vmem:[%s344 + $0x3f0] sm:$0xff]
      %599 = vst [vmem:[%s345 + $0x3f0] sm:$0xff] %v598
      %v600 = vld [vmem:[%s344 + $0x3f8] sm:$0xff]
      %601 = vst [vmem:[%s345 + $0x3f8] sm:$0xff] %v600
      %v602 = vld [vmem:[%s344 + $0x400] sm:$0xff]
      %603 = vst [vmem:[%s345 + $0x400] sm:$0xff] %v602
      %v604 = vld [vmem:[%s344 + $0x408] sm:$0xff]
      %605 = vst [vmem:[%s345 + $0x408] sm:$0xff] %v604
      %v606 = vld [vmem:[%s344 + $0x410] sm:$0xff]
      %607 = vst [vmem:[%s345 + $0x410] sm:$0xff] %v606
      %v608 = vld [vmem:[%s344 + $0x418] sm:$0xff]
      %609 = vst [vmem:[%s345 + $0x418] sm:$0xff] %v608
      %v610 = vld [vmem:[%s344 + $0x420] sm:$0xff]
      %611 = vst [vmem:[%s345 + $0x420] sm:$0xff] %v610
      %v612 = vld [vmem:[%s344 + $0x428] sm:$0xff]
      %613 = vst [vmem:[%s345 + $0x428] sm:$0xff] %v612
      %v614 = vld [vmem:[%s344 + $0x430] sm:$0xff]
      %615 = vst [vmem:[%s345 + $0x430] sm:$0xff] %v614
      %v616 = vld [vmem:[%s344 + $0x438] sm:$0xff]
      %617 = vst [vmem:[%s345 + $0x438] sm:$0xff] %v616
      %v618 = vld [vmem:[%s344 + $0x440] sm:$0xff]
      %619 = vst [vmem:[%s345 + $0x440] sm:$0xff] %v618
      %v620 = vld [vmem:[%s344 + $0x448] sm:$0xff]
      %621 = vst [vmem:[%s345 + $0x448] sm:$0xff] %v620
      %v622 = vld [vmem:[%s344 + $0x450] sm:$0xff]
      %623 = vst [vmem:[%s345 + $0x450] sm:$0xff] %v622
      %v624 = vld [vmem:[%s344 + $0x458] sm:$0xff]
      %625 = vst [vmem:[%s345 + $0x458] sm:$0xff] %v624
      %v626 = vld [vmem:[%s344 + $0x460] sm:$0xff]
      %627 = vst [vmem:[%s345 + $0x460] sm:$0xff] %v626
      %v628 = vld [vmem:[%s344 + $0x468] sm:$0xff]
      %629 = vst [vmem:[%s345 + $0x468] sm:$0xff] %v628
      %v630 = vld [vmem:[%s344 + $0x470] sm:$0xff]
      %631 = vst [vmem:[%s345 + $0x470] sm:$0xff] %v630
      %v632 = vld [vmem:[%s344 + $0x478] sm:$0xff]
      %633 = vst [vmem:[%s345 + $0x478] sm:$0xff] %v632
      %v634 = vld [vmem:[%s344 + $0x480] sm:$0xff]
      %635 = vst [vmem:[%s345 + $0x480] sm:$0xff] %v634
      %v636 = vld [vmem:[%s344 + $0x488] sm:$0xff]
      %637 = vst [vmem:[%s345 + $0x488] sm:$0xff] %v636
      %v638 = vld [vmem:[%s344 + $0x490] sm:$0xff]
      %639 = vst [vmem:[%s345 + $0x490] sm:$0xff] %v638
      %v640 = vld [vmem:[%s344 + $0x498] sm:$0xff]
      %641 = vst [vmem:[%s345 + $0x498] sm:$0xff] %v640
      %v642 = vld [vmem:[%s344 + $0x4a0] sm:$0xff]
      %643 = vst [vmem:[%s345 + $0x4a0] sm:$0xff] %v642
      %v644 = vld [vmem:[%s344 + $0x4a8] sm:$0xff]
      %645 = vst [vmem:[%s345 + $0x4a8] sm:$0xff] %v644
      %v646 = vld [vmem:[%s344 + $0x4b0] sm:$0xff]
      %647 = vst [vmem:[%s345 + $0x4b0] sm:$0xff] %v646
      %v648 = vld [vmem:[%s344 + $0x4b8] sm:$0xff]
      %649 = vst [vmem:[%s345 + $0x4b8] sm:$0xff] %v648
      %v650 = vld [vmem:[%s344 + $0x4c0] sm:$0xff]
      %651 = vst [vmem:[%s345 + $0x4c0] sm:$0xff] %v650
      %v652 = vld [vmem:[%s344 + $0x4c8] sm:$0xff]
      %653 = vst [vmem:[%s345 + $0x4c8] sm:$0xff] %v652
      %v654 = vld [vmem:[%s344 + $0x4d0] sm:$0xff]
      %655 = vst [vmem:[%s345 + $0x4d0] sm:$0xff] %v654
      %v656 = vld [vmem:[%s344 + $0x4d8] sm:$0xff]
      %657 = vst [vmem:[%s345 + $0x4d8] sm:$0xff] %v656
      %v658 = vld [vmem:[%s344 + $0x4e0] sm:$0xff]
      %659 = vst [vmem:[%s345 + $0x4e0] sm:$0xff] %v658
      %v660 = vld [vmem:[%s344 + $0x4e8] sm:$0xff]
      %661 = vst [vmem:[%s345 + $0x4e8] sm:$0xff] %v660
      %v662 = vld [vmem:[%s344 + $0x4f0] sm:$0xff]
      %663 = vst [vmem:[%s345 + $0x4f0] sm:$0xff] %v662
      %v664 = vld [vmem:[%s344 + $0x4f8] sm:$0xff]
      %665 = vst [vmem:[%s345 + $0x4f8] sm:$0xff] %v664
      %v666 = vld [vmem:[%s344 + $0x500] sm:$0xff]
      %667 = vst [vmem:[%s345 + $0x500] sm:$0xff] %v666
      %v668 = vld [vmem:[%s344 + $0x508] sm:$0xff]
      %669 = vst [vmem:[%s345 + $0x508] sm:$0xff] %v668
      %v670 = vld [vmem:[%s344 + $0x510] sm:$0xff]
      %671 = vst [vmem:[%s345 + $0x510] sm:$0xff] %v670
      %v672 = vld [vmem:[%s344 + $0x518] sm:$0xff]
      %673 = vst [vmem:[%s345 + $0x518] sm:$0xff] %v672
      %v674 = vld [vmem:[%s344 + $0x520] sm:$0xff]
      %675 = vst [vmem:[%s345 + $0x520] sm:$0xff] %v674
      %v676 = vld [vmem:[%s344 + $0x528] sm:$0xff]
      %677 = vst [vmem:[%s345 + $0x528] sm:$0xff] %v676
      %v678 = vld [vmem:[%s344 + $0x530] sm:$0xff]
      %679 = vst [vmem:[%s345 + $0x530] sm:$0xff] %v678
      %v680 = vld [vmem:[%s344 + $0x538] sm:$0xff]
      %681 = vst [vmem:[%s345 + $0x538] sm:$0xff] %v680
      %v682 = vld [vmem:[%s344 + $0x540] sm:$0xff]
      %683 = vst [vmem:[%s345 + $0x540] sm:$0xff] %v682
      %v684 = vld [vmem:[%s344 + $0x548] sm:$0xff]
      %685 = vst [vmem:[%s345 + $0x548] sm:$0xff] %v684
      %v686 = vld [vmem:[%s344 + $0x550] sm:$0xff]
      %687 = vst [vmem:[%s345 + $0x550] sm:$0xff] %v686
      %v688 = vld [vmem:[%s344 + $0x558] sm:$0xff]
      %689 = vst [vmem:[%s345 + $0x558] sm:$0xff] %v688
      %v690 = vld [vmem:[%s344 + $0x560] sm:$0xff]
      %691 = vst [vmem:[%s345 + $0x560] sm:$0xff] %v690
      %v692 = vld [vmem:[%s344 + $0x568] sm:$0xff]
      %693 = vst [vmem:[%s345 + $0x568] sm:$0xff] %v692
      %v694 = vld [vmem:[%s344 + $0x570] sm:$0xff]
      %695 = vst [vmem:[%s345 + $0x570] sm:$0xff] %v694
      %v696 = vld [vmem:[%s344 + $0x578] sm:$0xff]
      %697 = vst [vmem:[%s345 + $0x578] sm:$0xff] %v696
      %v698 = vld [vmem:[%s344 + $0x580] sm:$0xff]
      %699 = vst [vmem:[%s345 + $0x580] sm:$0xff] %v698
      %v700 = vld [vmem:[%s344 + $0x588] sm:$0xff]
      %701 = vst [vmem:[%s345 + $0x588] sm:$0xff] %v700
      %v702 = vld [vmem:[%s344 + $0x590] sm:$0xff]
      %703 = vst [vmem:[%s345 + $0x590] sm:$0xff] %v702
      %v704 = vld [vmem:[%s344 + $0x598] sm:$0xff]
      %705 = vst [vmem:[%s345 + $0x598] sm:$0xff] %v704
      %v706 = vld [vmem:[%s344 + $0x5a0] sm:$0xff]
      %707 = vst [vmem:[%s345 + $0x5a0] sm:$0xff] %v706
      %v708 = vld [vmem:[%s344 + $0x5a8] sm:$0xff]
      %709 = vst [vmem:[%s345 + $0x5a8] sm:$0xff] %v708
      %v710 = vld [vmem:[%s344 + $0x5b0] sm:$0xff]
      %711 = vst [vmem:[%s345 + $0x5b0] sm:$0xff] %v710
      %v712 = vld [vmem:[%s344 + $0x5b8] sm:$0xff]
      %713 = vst [vmem:[%s345 + $0x5b8] sm:$0xff] %v712
      %v714 = vld [vmem:[%s344 + $0x5c0] sm:$0xff]
      %715 = vst [vmem:[%s345 + $0x5c0] sm:$0xff] %v714
      %v716 = vld [vmem:[%s344 + $0x5c8] sm:$0xff]
      %717 = vst [vmem:[%s345 + $0x5c8] sm:$0xff] %v716
      %v718 = vld [vmem:[%s344 + $0x5d0] sm:$0xff]
      %719 = vst [vmem:[%s345 + $0x5d0] sm:$0xff] %v718
      %v720 = vld [vmem:[%s344 + $0x5d8] sm:$0xff]
      %721 = vst [vmem:[%s345 + $0x5d8] sm:$0xff] %v720
      %v722 = vld [vmem:[%s344 + $0x5e0] sm:$0xff]
      %723 = vst [vmem:[%s345 + $0x5e0] sm:$0xff] %v722
      %v724 = vld [vmem:[%s344 + $0x5e8] sm:$0xff]
      %725 = vst [vmem:[%s345 + $0x5e8] sm:$0xff] %v724
      %v726 = vld [vmem:[%s344 + $0x5f0] sm:$0xff]
      %727 = vst [vmem:[%s345 + $0x5f0] sm:$0xff] %v726
      %v728 = vld [vmem:[%s344 + $0x5f8] sm:$0xff]
      %729 = vst [vmem:[%s345 + $0x5f8] sm:$0xff] %v728
      %v730 = vld [vmem:[%s344 + $0x600] sm:$0xff]
      %731 = vst [vmem:[%s345 + $0x600] sm:$0xff] %v730
      %v732 = vld [vmem:[%s344 + $0x608] sm:$0xff]
      %733 = vst [vmem:[%s345 + $0x608] sm:$0xff] %v732
      %v734 = vld [vmem:[%s344 + $0x610] sm:$0xff]
      %735 = vst [vmem:[%s345 + $0x610] sm:$0xff] %v734
      %v736 = vld [vmem:[%s344 + $0x618] sm:$0xff]
      %737 = vst [vmem:[%s345 + $0x618] sm:$0xff] %v736
      %v738 = vld [vmem:[%s344 + $0x620] sm:$0xff]
      %739 = vst [vmem:[%s345 + $0x620] sm:$0xff] %v738
      %v740 = vld [vmem:[%s344 + $0x628] sm:$0xff]
      %741 = vst [vmem:[%s345 + $0x628] sm:$0xff] %v740
      %v742 = vld [vmem:[%s344 + $0x630] sm:$0xff]
      %743 = vst [vmem:[%s345 + $0x630] sm:$0xff] %v742
      %v744 = vld [vmem:[%s344 + $0x638] sm:$0xff]
      %745 = vst [vmem:[%s345 + $0x638] sm:$0xff] %v744
      %v746 = vld [vmem:[%s344 + $0x640] sm:$0xff]
      %747 = vst [vmem:[%s345 + $0x640] sm:$0xff] %v746
      %v748 = vld [vmem:[%s344 + $0x648] sm:$0xff]
      %749 = vst [vmem:[%s345 + $0x648] sm:$0xff] %v748
      %v750 = vld [vmem:[%s344 + $0x650] sm:$0xff]
      %751 = vst [vmem:[%s345 + $0x650] sm:$0xff] %v750
      %v752 = vld [vmem:[%s344 + $0x658] sm:$0xff]
      %753 = vst [vmem:[%s345 + $0x658] sm:$0xff] %v752
      %v754 = vld [vmem:[%s344 + $0x660] sm:$0xff]
      %755 = vst [vmem:[%s345 + $0x660] sm:$0xff] %v754
      %v756 = vld [vmem:[%s344 + $0x668] sm:$0xff]
      %757 = vst [vmem:[%s345 + $0x668] sm:$0xff] %v756
      %v758 = vld [vmem:[%s344 + $0x670] sm:$0xff]
      %759 = vst [vmem:[%s345 + $0x670] sm:$0xff] %v758
      %v760 = vld [vmem:[%s344 + $0x678] sm:$0xff]
      %761 = vst [vmem:[%s345 + $0x678] sm:$0xff] %v760
      %v762 = vld [vmem:[%s344 + $0x680] sm:$0xff]
      %763 = vst [vmem:[%s345 + $0x680] sm:$0xff] %v762
      %v764 = vld [vmem:[%s344 + $0x688] sm:$0xff]
      %765 = vst [vmem:[%s345 + $0x688] sm:$0xff] %v764
      %v766 = vld [vmem:[%s344 + $0x690] sm:$0xff]
      %767 = vst [vmem:[%s345 + $0x690] sm:$0xff] %v766
      %v768 = vld [vmem:[%s344 + $0x698] sm:$0xff]
      %769 = vst [vmem:[%s345 + $0x698] sm:$0xff] %v768
      %v770 = vld [vmem:[%s344 + $0x6a0] sm:$0xff]
      %771 = vst [vmem:[%s345 + $0x6a0] sm:$0xff] %v770
      %v772 = vld [vmem:[%s344 + $0x6a8] sm:$0xff]
      %773 = vst [vmem:[%s345 + $0x6a8] sm:$0xff] %v772
      %v774 = vld [vmem:[%s344 + $0x6b0] sm:$0xff]
      %775 = vst [vmem:[%s345 + $0x6b0] sm:$0xff] %v774
      %v776 = vld [vmem:[%s344 + $0x6b8] sm:$0xff]
      %777 = vst [vmem:[%s345 + $0x6b8] sm:$0xff] %v776
      %v778 = vld [vmem:[%s344 + $0x6c0] sm:$0xff]
      %779 = vst [vmem:[%s345 + $0x6c0] sm:$0xff] %v778
      %v780 = vld [vmem:[%s344 + $0x6c8] sm:$0xff]
      %781 = vst [vmem:[%s345 + $0x6c8] sm:$0xff] %v780
      %v782 = vld [vmem:[%s344 + $0x6d0] sm:$0xff]
      %783 = vst [vmem:[%s345 + $0x6d0] sm:$0xff] %v782
      %v784 = vld [vmem:[%s344 + $0x6d8] sm:$0xff]
      %785 = vst [vmem:[%s345 + $0x6d8] sm:$0xff] %v784
      %v786 = vld [vmem:[%s344 + $0x6e0] sm:$0xff]
      %787 = vst [vmem:[%s345 + $0x6e0] sm:$0xff] %v786
      %v788 = vld [vmem:[%s344 + $0x6e8] sm:$0xff]
      %789 = vst [vmem:[%s345 + $0x6e8] sm:$0xff] %v788
      %v790 = vld [vmem:[%s344 + $0x6f0] sm:$0xff]
      %791 = vst [vmem:[%s345 + $0x6f0] sm:$0xff] %v790
      %v792 = vld [vmem:[%s344 + $0x6f8] sm:$0xff]
      %793 = vst [vmem:[%s345 + $0x6f8] sm:$0xff] %v792
      %v794 = vld [vmem:[%s344 + $0x700] sm:$0xff]
      %795 = vst [vmem:[%s345 + $0x700] sm:$0xff] %v794
      %v796 = vld [vmem:[%s344 + $0x708] sm:$0xff]
      %797 = vst [vmem:[%s345 + $0x708] sm:$0xff] %v796
      %v798 = vld [vmem:[%s344 + $0x710] sm:$0xff]
      %799 = vst [vmem:[%s345 + $0x710] sm:$0xff] %v798
      %v800 = vld [vmem:[%s344 + $0x718] sm:$0xff]
      %801 = vst [vmem:[%s345 + $0x718] sm:$0xff] %v800
      %v802 = vld [vmem:[%s344 + $0x720] sm:$0xff]
      %803 = vst [vmem:[%s345 + $0x720] sm:$0xff] %v802
      %v804 = vld [vmem:[%s344 + $0x728] sm:$0xff]
      %805 = vst [vmem:[%s345 + $0x728] sm:$0xff] %v804
      %v806 = vld [vmem:[%s344 + $0x730] sm:$0xff]
      %807 = vst [vmem:[%s345 + $0x730] sm:$0xff] %v806
      %v808 = vld [vmem:[%s344 + $0x738] sm:$0xff]
      %809 = vst [vmem:[%s345 + $0x738] sm:$0xff] %v808
      %v810 = vld [vmem:[%s344 + $0x740] sm:$0xff]
      %811 = vst [vmem:[%s345 + $0x740] sm:$0xff] %v810
      %v812 = vld [vmem:[%s344 + $0x748] sm:$0xff]
      %813 = vst [vmem:[%s345 + $0x748] sm:$0xff] %v812
      %v814 = vld [vmem:[%s344 + $0x750] sm:$0xff]
      %815 = vst [vmem:[%s345 + $0x750] sm:$0xff] %v814
      %v816 = vld [vmem:[%s344 + $0x758] sm:$0xff]
      %817 = vst [vmem:[%s345 + $0x758] sm:$0xff] %v816
      %v818 = vld [vmem:[%s344 + $0x760] sm:$0xff]
      %819 = vst [vmem:[%s345 + $0x760] sm:$0xff] %v818
      %v820 = vld [vmem:[%s344 + $0x768] sm:$0xff]
      %821 = vst [vmem:[%s345 + $0x768] sm:$0xff] %v820
      %v822 = vld [vmem:[%s344 + $0x770] sm:$0xff]
      %823 = vst [vmem:[%s345 + $0x770] sm:$0xff] %v822
      %v824 = vld [vmem:[%s344 + $0x778] sm:$0xff]
      %825 = vst [vmem:[%s345 + $0x778] sm:$0xff] %v824
      %v826 = vld [vmem:[%s344 + $0x780] sm:$0xff]
      %827 = vst [vmem:[%s345 + $0x780] sm:$0xff] %v826
      %v828 = vld [vmem:[%s344 + $0x788] sm:$0xff]
      %829 = vst [vmem:[%s345 + $0x788] sm:$0xff] %v828
      %v830 = vld [vmem:[%s344 + $0x790] sm:$0xff]
      %831 = vst [vmem:[%s345 + $0x790] sm:$0xff] %v830
      %v832 = vld [vmem:[%s344 + $0x798] sm:$0xff]
      %833 = vst [vmem:[%s345 + $0x798] sm:$0xff] %v832
      %v834 = vld [vmem:[%s344 + $0x7a0] sm:$0xff]
      %835 = vst [vmem:[%s345 + $0x7a0] sm:$0xff] %v834
      %v836 = vld [vmem:[%s344 + $0x7a8] sm:$0xff]
      %837 = vst [vmem:[%s345 + $0x7a8] sm:$0xff] %v836
      %v838 = vld [vmem:[%s344 + $0x7b0] sm:$0xff]
      %839 = vst [vmem:[%s345 + $0x7b0] sm:$0xff] %v838
      %v840 = vld [vmem:[%s344 + $0x7b8] sm:$0xff]
      %841 = vst [vmem:[%s345 + $0x7b8] sm:$0xff] %v840
      %v842 = vld [vmem:[%s344 + $0x7c0] sm:$0xff]
      %843 = vst [vmem:[%s345 + $0x7c0] sm:$0xff] %v842
      %v844 = vld [vmem:[%s344 + $0x7c8] sm:$0xff]
      %845 = vst [vmem:[%s345 + $0x7c8] sm:$0xff] %v844
      %v846 = vld [vmem:[%s344 + $0x7d0] sm:$0xff]
      %847 = vst [vmem:[%s345 + $0x7d0] sm:$0xff] %v846
      %v848 = vld [vmem:[%s344 + $0x7d8] sm:$0xff]
      %849 = vst [vmem:[%s345 + $0x7d8] sm:$0xff] %v848
      %v850 = vld [vmem:[%s344 + $0x7e0] sm:$0xff]
      %851 = vst [vmem:[%s345 + $0x7e0] sm:$0xff] %v850
      %v852 = vld [vmem:[%s344 + $0x7e8] sm:$0xff]
      %853 = vst [vmem:[%s345 + $0x7e8] sm:$0xff] %v852
      %v854 = vld [vmem:[%s344 + $0x7f0] sm:$0xff]
      %855 = vst [vmem:[%s345 + $0x7f0] sm:$0xff] %v854
      %v856 = vld [vmem:[%s344 + $0x7f8] sm:$0xff]
      %857 = vst [vmem:[%s345 + $0x7f8] sm:$0xff] %v856
    $region76: #{discriminator_forward.1} parent=70 // loop_footer
      %s343 = sadd.s32 1, %s339
    $region77: #{discriminator_forward.1} parent=70 // loop_footer_branch
      %338 = sbr.rel target = $region73
    $region78: #{discriminator_forward.1} parent=70 // loop_exit
      _
  $region71: #{discriminator_forward.1} parent=0 // pred_fallthru
    _
  // Predicated region
  $region79: #{discriminator_forward.1} parent=0 // pred_check
    _
  $region80: #{discriminator_forward.1} parent=0 // pred_check_branch
    %859 = sbr.rel target = $region82
  $region81: #{discriminator_forward.1} parent=0 // pred_region
    _
  $region82: #{discriminator_forward.1} parent=0 // pred_fallthru
    _
  // Predicated region
  $region83: #{discriminator_forward.1} parent=0 // pred_check
    _
  $region84: #{discriminator_forward.1} parent=0 // pred_check_branch
    %862 = sbr.rel (0) target = $region86
  $region85: #{discriminator_forward.1} parent=0 // pred_region
    %863 = vsyncadd %s335, 32768
  $region86: #{discriminator_forward.1} parent=0 // pred_fallthru
    _
  %v864 = vld [vmem:[%s5] sm:$0xff]
  %v865 = vld [vmem:[%s5 + $0x8] sm:$0xff]
  %v866 = vld [vmem:[%s5 + $0x10] sm:$0xff]
  %v867 = vld [vmem:[%s0] sm:$0xf]
  %v868 = vld [vmem:[%s0 + $0x4] sm:$0xf]
  %v869 = vld [vmem:[%s0 + $0x8] sm:$0xf]
  %v870 = vld [vmem:[%s0 + $0xc] sm:$0xf]
  %v871 = vld [vmem:[%s0 + $0x10] sm:$0xf]
  %v872 = vld [vmem:[%s0 + $0x14] sm:$0xf]
  %v873 = vld [vmem:[%s0 + $0x18] sm:$0xf]
  %v874 = vld [vmem:[%s0 + $0x1c] sm:$0xf]
  %v875 = vld [vmem:[%s0 + $0x20] sm:$0xf]
  %v876 = vld [vmem:[%s0 + $0x24] sm:$0xf]
  %v877 = vld [vmem:[%s0 + $0x28] sm:$0xf]
  %v878 = vld [vmem:[%s0 + $0x2c] sm:$0xf]
  %v879 = vld [vmem:[%s0 + $0x30] sm:$0xf]
  %v880 = vld [vmem:[%s0 + $0x34] sm:$0xf]
  %v881 = vld [vmem:[%s0 + $0x38] sm:$0xf]
  %v882 = vld [vmem:[%s0 + $0x3c] sm:$0xf]
  %v883 = vld [vmem:[%s0 + $0x40] sm:$0xf]
  %v884 = vld [vmem:[%s0 + $0x44] sm:$0xf]
  %v885 = vld [vmem:[%s0 + $0x48] sm:$0xf]
  %v886 = vld [vmem:[%s0 + $0x4c] sm:$0xf]
  %v887 = vld [vmem:[%s0 + $0x50] sm:$0xf]
  %v888 = vld [vmem:[%s0 + $0x54] sm:$0xf]
  %v889 = vld [vmem:[%s0 + $0x58] sm:$0xf]
  %v890 = vld [vmem:[%s0 + $0x5c] sm:$0xf]
  %v891 = vld [vmem:[%s0 + $0x60] sm:$0xf]
  %v892 = vld [vmem:[%s0 + $0x64] sm:$0xf]
  %v893 = vld [vmem:[%s0 + $0x68] sm:$0xf]
  %v894 = vld [vmem:[%s0 + $0x6c] sm:$0xf]
  %v895 = vld [vmem:[%s0 + $0x70] sm:$0xf]
  %v896 = vld [vmem:[%s0 + $0x74] sm:$0xf]
  %v897 = vld [vmem:[%s0 + $0x78] sm:$0xf]
  %v898 = vld [vmem:[%s0 + $0x7c] sm:$0xf]
  %v899 = vld [vmem:[%s0 + $0x80] sm:$0xf]
  %v900 = vld [vmem:[%s0 + $0x84] sm:$0xf]
  %v901 = vld [vmem:[%s0 + $0x88] sm:$0xf]
  %v902 = vld [vmem:[%s0 + $0x8c] sm:$0xf]
  %v903 = vld [vmem:[%s1] sm:$0xf]
  %v904 = vld [vmem:[%s1 + $0x4] sm:$0xf]
  %v905 = vld [vmem:[%s1 + $0x8] sm:$0xf]
  %v906 = vld [vmem:[%s1 + $0xc] sm:$0xf]
  %v943 = vunpack.c.l.b16 %v867
  %v944 = vunpack.c.l.b16 %v868
  %v945 = vunpack.c.l.b16 %v869
  %v946 = vunpack.c.l.b16 %v870
  %v947 = vunpack.c.l.b16 %v871
  %v948 = vunpack.c.l.b16 %v872
  %v949 = vunpack.c.l.b16 %v873
  %v950 = vunpack.c.l.b16 %v874
  %v951 = vunpack.c.l.b16 %v875
  %v952 = vunpack.c.l.b16 %v876
  %v953 = vunpack.c.l.b16 %v877
  %v954 = vunpack.c.l.b16 %v878
  %v955 = vunpack.c.l.b16 %v879
  %v956 = vunpack.c.l.b16 %v880
  %v957 = vunpack.c.l.b16 %v881
  %v958 = vunpack.c.l.b16 %v882
  %v959 = vunpack.c.l.b16 %v883
  %v960 = vunpack.c.l.b16 %v884
  %v961 = vunpack.c.l.b16 %v885
  %v962 = vunpack.c.l.b16 %v886
  %v963 = vunpack.c.l.b16 %v887
  %v964 = vunpack.c.l.b16 %v888
  %v965 = vunpack.c.l.b16 %v889
  %v966 = vunpack.c.l.b16 %v890
  %v967 = vunpack.c.l.b16 %v891
  %v968 = vunpack.c.l.b16 %v892
  %v969 = vunpack.c.l.b16 %v893
  %v970 = vunpack.c.l.b16 %v894
  %v971 = vunpack.c.l.b16 %v895
  %v972 = vunpack.c.l.b16 %v896
  %v973 = vunpack.c.l.b16 %v897
  %v974 = vunpack.c.l.b16 %v898
  %v975 = vunpack.c.l.b16 %v899
  %v976 = vunpack.c.l.b16 %v900
  %v977 = vunpack.c.l.b16 %v901
  %v978 = vunpack.c.l.b16 %v902
  %v979 = vpack.c.b16 %v944, %v943
  %v980 = vpack.c.b16 %v946, %v945
  %v981 = vpack.c.b16 %v948, %v947
  %v982 = vpack.c.b16 %v950, %v949
  %v983 = vpack.c.b16 %v952, %v951
  %v984 = vpack.c.b16 %v954, %v953
  %v985 = vpack.c.b16 %v956, %v955
  %v986 = vpack.c.b16 %v958, %v957
  %v987 = vpack.c.b16 %v960, %v959
  %v988 = vpack.c.b16 %v962, %v961
  %v989 = vpack.c.b16 %v964, %v963
  %v990 = vpack.c.b16 %v966, %v965
  %v991 = vpack.c.b16 %v968, %v967
  %v992 = vpack.c.b16 %v970, %v969
  %v993 = vpack.c.b16 %v972, %v971
  %v994 = vpack.c.b16 %v974, %v973
  %v995 = vpack.c.b16 %v976, %v975
  %v996 = vpack.c.b16 %v978, %v977
  %v1001 = vunpack.c.l.b16 %v903
  %v1002 = vunpack.c.l.b16 %v904
  %v1003 = vunpack.c.l.b16 %v905
  %v1004 = vunpack.c.l.b16 %v906
  %v1005 = vpack.c.b16 %v1002, %v1001
  %v1006 = vpack.c.b16 %v1004, %v1003
  %vm1009 = vcmask 261120
  %v1011 = vsel %vm1009, %v979, 0
  %v1014 = vsel %vm1009, %v980, 0
  %v1017 = vsel %vm1009, %v981, 0
  %v1020 = vsel %vm1009, %v982, 0
  %v1023 = vsel %vm1009, %v983, 0
  %v1026 = vsel %vm1009, %v984, 0
  %v1029 = vsel %vm1009, %v985, 0
  %v1032 = vsel %vm1009, %v986, 0
  %v1035 = vsel %vm1009, %v987, 0
  %v1038 = vsel %vm1009, %v988, 0
  %v1041 = vsel %vm1009, %v989, 0
  %v1044 = vsel %vm1009, %v990, 0
  %v1047 = vsel %vm1009, %v991, 0
  %v1050 = vsel %vm1009, %v992, 0
  %v1053 = vsel %vm1009, %v993, 0
  %v1056 = vsel %vm1009, %v994, 0
  %v1059 = vsel %vm1009, %v995, 0
  %v1062 = vsel %vm1009, %v996, 0
  %1064 = vmatpush.bf16.msra.mxu0 0
  %1065 = vmatpush.bf16.msra.mxu0 0
  %1066 = vmatpush.bf16.msra.mxu0 0
  %1067 = vmatpush.bf16.msra.mxu0 0
  %1068 = vmatpush.bf16.msra.mxu0 0
  %1069 = vmatpush.bf16.msra.mxu0 0
  %1070 = vmatpush.bf16.msra.mxu0 %v1006
  %1071 = vmatpush.bf16.msra.mxu0 %v1005
  %1072 = vmatmul.bf16.gmra.mxu0 %v1011
  %v1073 = vpop.f32.mrf.mxu0
  %v1074 = vadd.f32 0.0, %v1073
  %v1075 = vpop.f32.mrf.mxu0
  %v1076 = vadd.f32 0.0, %v1075
  %1077 = vmatmul.bf16.gmra.mxu0 %v1014
  %v1078 = vpop.f32.mrf.mxu0
  %v1079 = vadd.f32 0.0, %v1078
  %v1080 = vpop.f32.mrf.mxu0
  %v1081 = vadd.f32 0.0, %v1080
  %1082 = vmatmul.bf16.gmra.mxu0 %v1017
  %v1083 = vpop.f32.mrf.mxu0
  %v1084 = vadd.f32 0.0, %v1083
  %v1085 = vpop.f32.mrf.mxu0
  %v1086 = vadd.f32 0.0, %v1085
  %1087 = vmatmul.bf16.gmra.mxu0 %v1020
  %v1088 = vpop.f32.mrf.mxu0
  %v1089 = vadd.f32 0.0, %v1088
  %v1090 = vpop.f32.mrf.mxu0
  %v1091 = vadd.f32 0.0, %v1090
  %1092 = vmatmul.bf16.gmra.mxu0 %v1023
  %v1093 = vpop.f32.mrf.mxu0
  %v1094 = vadd.f32 0.0, %v1093
  %v1095 = vpop.f32.mrf.mxu0
  %v1096 = vadd.f32 0.0, %v1095
  %1097 = vmatmul.bf16.gmra.mxu0 %v1026
  %v1098 = vpop.f32.mrf.mxu0
  %v1099 = vadd.f32 0.0, %v1098
  %v1100 = vpop.f32.mrf.mxu0
  %v1101 = vadd.f32 0.0, %v1100
  %1102 = vmatmul.bf16.gmra.mxu0 %v1029
  %v1103 = vpop.f32.mrf.mxu0
  %v1104 = vadd.f32 0.0, %v1103
  %v1105 = vpop.f32.mrf.mxu0
  %v1106 = vadd.f32 0.0, %v1105
  %1107 = vmatmul.bf16.gmra.mxu0 %v1032
  %v1108 = vpop.f32.mrf.mxu0
  %v1109 = vadd.f32 0.0, %v1108
  %v1110 = vpop.f32.mrf.mxu0
  %v1111 = vadd.f32 0.0, %v1110
  %1112 = vmatmul.bf16.gmra.mxu0 %v1035
  %v1113 = vpop.f32.mrf.mxu0
  %v1114 = vadd.f32 0.0, %v1113
  %v1115 = vpop.f32.mrf.mxu0
  %v1116 = vadd.f32 0.0, %v1115
  %1117 = vmatmul.bf16.gmra.mxu0 %v1038
  %v1118 = vpop.f32.mrf.mxu0
  %v1119 = vadd.f32 0.0, %v1118
  %v1120 = vpop.f32.mrf.mxu0
  %v1121 = vadd.f32 0.0, %v1120
  %1122 = vmatmul.bf16.gmra.mxu0 %v1041
  %v1123 = vpop.f32.mrf.mxu0
  %v1124 = vadd.f32 0.0, %v1123
  %v1125 = vpop.f32.mrf.mxu0
  %v1126 = vadd.f32 0.0, %v1125
  %1127 = vmatmul.bf16.gmra.mxu0 %v1044
  %v1128 = vpop.f32.mrf.mxu0
  %v1129 = vadd.f32 0.0, %v1128
  %v1130 = vpop.f32.mrf.mxu0
  %v1131 = vadd.f32 0.0, %v1130
  %1132 = vmatmul.bf16.gmra.mxu0 %v1047
  %v1133 = vpop.f32.mrf.mxu0
  %v1134 = vadd.f32 0.0, %v1133
  %v1135 = vpop.f32.mrf.mxu0
  %v1136 = vadd.f32 0.0, %v1135
  %1137 = vmatmul.bf16.gmra.mxu0 %v1050
  %v1138 = vpop.f32.mrf.mxu0
  %v1139 = vadd.f32 0.0, %v1138
  %v1140 = vpop.f32.mrf.mxu0
  %v1141 = vadd.f32 0.0, %v1140
  %1142 = vmatmul.bf16.gmra.mxu0 %v1053
  %v1143 = vpop.f32.mrf.mxu0
  %v1144 = vadd.f32 0.0, %v1143
  %v1145 = vpop.f32.mrf.mxu0
  %v1146 = vadd.f32 0.0, %v1145
  %1147 = vmatmul.bf16.gmra.mxu0 %v1056
  %v1148 = vpop.f32.mrf.mxu0
  %v1149 = vadd.f32 0.0, %v1148
  %v1150 = vpop.f32.mrf.mxu0
  %v1151 = vadd.f32 0.0, %v1150
  %1152 = vmatmul.bf16.gmra.mxu0 %v1059
  %v1153 = vpop.f32.mrf.mxu0
  %v1154 = vadd.f32 0.0, %v1153
  %v1155 = vpop.f32.mrf.mxu0
  %v1156 = vadd.f32 0.0, %v1155
  %1157 = vmatmul.bf16.gmra.mxu0 %v1062
  %v1158 = vpop.f32.mrf.mxu0
  %v1159 = vadd.f32 0.0, %v1158
  %v1160 = vpop.f32.mrf.mxu0
  %v1161 = vadd.f32 0.0, %v1160
  %1162 = vdwg.mxu0
  %vm1163 = vcmask 523264
  %v1164 = vsel %vm1163, %v1074, 0.0
  %v1165 = vsel %vm1163, %v1076, 0.0
  %v1166 = vadd.f32 %v1164, %v1165
  %v1167 = vsel %vm1163, %v1079, 0.0
  %v1168 = vadd.f32 %v1166, %v1167
  %v1169 = vsel %vm1163, %v1081, 0.0
  %v1170 = vadd.f32 %v1168, %v1169
  %v1171 = vsel %vm1163, %v1084, 0.0
  %v1172 = vadd.f32 %v1170, %v1171
  %v1173 = vsel %vm1163, %v1086, 0.0
  %v1174 = vadd.f32 %v1172, %v1173
  %v1175 = vsel %vm1163, %v1089, 0.0
  %v1176 = vadd.f32 %v1174, %v1175
  %v1177 = vsel %vm1163, %v1091, 0.0
  %v1178 = vadd.f32 %v1176, %v1177
  %v1179 = vsel %vm1163, %v1094, 0.0
  %v1180 = vadd.f32 %v1178, %v1179
  %v1181 = vsel %vm1163, %v1096, 0.0
  %v1182 = vadd.f32 %v1180, %v1181
  %v1183 = vsel %vm1163, %v1099, 0.0
  %v1184 = vadd.f32 %v1182, %v1183
  %v1185 = vsel %vm1163, %v1101, 0.0
  %v1186 = vadd.f32 %v1184, %v1185
  %v1187 = vsel %vm1163, %v1104, 0.0
  %v1188 = vadd.f32 %v1186, %v1187
  %v1189 = vsel %vm1163, %v1106, 0.0
  %v1190 = vadd.f32 %v1188, %v1189
  %v1191 = vsel %vm1163, %v1109, 0.0
  %v1192 = vadd.f32 %v1190, %v1191
  %v1193 = vsel %vm1163, %v1111, 0.0
  %v1194 = vadd.f32 %v1192, %v1193
  %v1195 = vsel %vm1163, %v1114, 0.0
  %v1196 = vadd.f32 %v1194, %v1195
  %v1197 = vsel %vm1163, %v1116, 0.0
  %v1198 = vadd.f32 %v1196, %v1197
  %v1199 = vsel %vm1163, %v1119, 0.0
  %v1200 = vadd.f32 %v1198, %v1199
  %v1201 = vsel %vm1163, %v1121, 0.0
  %v1202 = vadd.f32 %v1200, %v1201
  %v1203 = vsel %vm1163, %v1124, 0.0
  %v1204 = vadd.f32 %v1202, %v1203
  %v1205 = vsel %vm1163, %v1126, 0.0
  %v1206 = vadd.f32 %v1204, %v1205
  %v1207 = vsel %vm1163, %v1129, 0.0
  %v1208 = vadd.f32 %v1206, %v1207
  %v1209 = vsel %vm1163, %v1131, 0.0
  %v1210 = vadd.f32 %v1208, %v1209
  %v1211 = vsel %vm1163, %v1134, 0.0
  %v1212 = vadd.f32 %v1210, %v1211
  %v1213 = vsel %vm1163, %v1136, 0.0
  %v1214 = vadd.f32 %v1212, %v1213
  %v1215 = vsel %vm1163, %v1139, 0.0
  %v1216 = vadd.f32 %v1214, %v1215
  %v1217 = vsel %vm1163, %v1141, 0.0
  %v1218 = vadd.f32 %v1216, %v1217
  %v1219 = vsel %vm1163, %v1144, 0.0
  %v1220 = vadd.f32 %v1218, %v1219
  %v1221 = vsel %vm1163, %v1146, 0.0
  %v1222 = vadd.f32 %v1220, %v1221
  %v1223 = vsel %vm1163, %v1149, 0.0
  %v1224 = vadd.f32 %v1222, %v1223
  %v1225 = vsel %vm1163, %v1151, 0.0
  %v1226 = vadd.f32 %v1224, %v1225
  %v1227 = vsel %vm1163, %v1154, 0.0
  %v1228 = vadd.f32 %v1226, %v1227
  %v1229 = vsel %vm1163, %v1156, 0.0
  %v1230 = vadd.f32 %v1228, %v1229
  %v1231 = vsel %vm1163, %v1159, 0.0
  %v1232 = vadd.f32 %v1230, %v1231
  %v1233 = vsel %vm1163, %v1161, 0.0
  %v1234 = vadd.f32 %v1232, %v1233
  %v1235 = vrot.slane %v1234, 4
  %v1236 = vadd.f32 %v1234, %v1235
  %v1237 = vrot.slane %v1236, 2
  %v1238 = vadd.f32 %v1236, %v1237
  %v1239 = vrot.slane %v1238, 1
  %v1240 = vadd.f32 %v1238, %v1239
  %v1241 = vmul.f32 %v1240, 0.0034722222
  %v1242 = vmul.f32 %v1074, %v1074
  %v1243 = vmul.f32 %v1076, %v1076
  %v1244 = vmul.f32 %v1079, %v1079
  %v1245 = vmul.f32 %v1081, %v1081
  %v1246 = vmul.f32 %v1084, %v1084
  %v1247 = vmul.f32 %v1086, %v1086
  %v1248 = vmul.f32 %v1089, %v1089
  %v1249 = vmul.f32 %v1091, %v1091
  %v1250 = vmul.f32 %v1094, %v1094
  %v1251 = vmul.f32 %v1096, %v1096
  %v1252 = vmul.f32 %v1099, %v1099
  %v1253 = vmul.f32 %v1101, %v1101
  %v1254 = vmul.f32 %v1104, %v1104
  %v1255 = vmul.f32 %v1106, %v1106
  %v1256 = vmul.f32 %v1109, %v1109
  %v1257 = vmul.f32 %v1111, %v1111
  %v1258 = vmul.f32 %v1114, %v1114
  %v1259 = vmul.f32 %v1116, %v1116
  %v1260 = vmul.f32 %v1119, %v1119
  %v1261 = vmul.f32 %v1121, %v1121
  %v1262 = vmul.f32 %v1124, %v1124
  %v1263 = vmul.f32 %v1126, %v1126
  %v1264 = vmul.f32 %v1129, %v1129
  %v1265 = vmul.f32 %v1131, %v1131
  %v1266 = vmul.f32 %v1134, %v1134
  %v1267 = vmul.f32 %v1136, %v1136
  %v1268 = vmul.f32 %v1139, %v1139
  %v1269 = vmul.f32 %v1141, %v1141
  %v1270 = vmul.f32 %v1144, %v1144
  %v1271 = vmul.f32 %v1146, %v1146
  %v1272 = vmul.f32 %v1149, %v1149
  %v1273 = vmul.f32 %v1151, %v1151
  %v1274 = vmul.f32 %v1154, %v1154
  %v1275 = vmul.f32 %v1156, %v1156
  %v1276 = vmul.f32 %v1159, %v1159
  %v1277 = vmul.f32 %v1161, %v1161
  %v1278 = vsel %vm1163, %v1242, 0.0
  %v1279 = vsel %vm1163, %v1243, 0.0
  %v1280 = vadd.f32 %v1278, %v1279
  %v1281 = vsel %vm1163, %v1244, 0.0
  %v1282 = vadd.f32 %v1280, %v1281
  %v1283 = vsel %vm1163, %v1245, 0.0
  %v1284 = vadd.f32 %v1282, %v1283
  %v1285 = vsel %vm1163, %v1246, 0.0
  %v1286 = vadd.f32 %v1284, %v1285
  %v1287 = vsel %vm1163, %v1247, 0.0
  %v1288 = vadd.f32 %v1286, %v1287
  %v1289 = vsel %vm1163, %v1248, 0.0
  %v1290 = vadd.f32 %v1288, %v1289
  %v1291 = vsel %vm1163, %v1249, 0.0
  %v1292 = vadd.f32 %v1290, %v1291
  %v1293 = vsel %vm1163, %v1250, 0.0
  %v1294 = vadd.f32 %v1292, %v1293
  %v1295 = vsel %vm1163, %v1251, 0.0
  %v1296 = vadd.f32 %v1294, %v1295
  %v1297 = vsel %vm1163, %v1252, 0.0
  %v1298 = vadd.f32 %v1296, %v1297
  %v1299 = vsel %vm1163, %v1253, 0.0
  %v1300 = vadd.f32 %v1298, %v1299
  %v1301 = vsel %vm1163, %v1254, 0.0
  %v1302 = vadd.f32 %v1300, %v1301
  %v1303 = vsel %vm1163, %v1255, 0.0
  %v1304 = vadd.f32 %v1302, %v1303
  %v1305 = vsel %vm1163, %v1256, 0.0
  %v1306 = vadd.f32 %v1304, %v1305
  %v1307 = vsel %vm1163, %v1257, 0.0
  %v1308 = vadd.f32 %v1306, %v1307
  %v1309 = vsel %vm1163, %v1258, 0.0
  %v1310 = vadd.f32 %v1308, %v1309
  %v1311 = vsel %vm1163, %v1259, 0.0
  %v1312 = vadd.f32 %v1310, %v1311
  %v1313 = vsel %vm1163, %v1260, 0.0
  %v1314 = vadd.f32 %v1312, %v1313
  %v1315 = vsel %vm1163, %v1261, 0.0
  %v1316 = vadd.f32 %v1314, %v1315
  %v1317 = vsel %vm1163, %v1262, 0.0
  %v1318 = vadd.f32 %v1316, %v1317
  %v1319 = vsel %vm1163, %v1263, 0.0
  %v1320 = vadd.f32 %v1318, %v1319
  %v1321 = vsel %vm1163, %v1264, 0.0
  %v1322 = vadd.f32 %v1320, %v1321
  %v1323 = vsel %vm1163, %v1265, 0.0
  %v1324 = vadd.f32 %v1322, %v1323
  %v1325 = vsel %vm1163, %v1266, 0.0
  %v1326 = vadd.f32 %v1324, %v1325
  %v1327 = vsel %vm1163, %v1267, 0.0
  %v1328 = vadd.f32 %v1326, %v1327
  %v1329 = vsel %vm1163, %v1268, 0.0
  %v1330 = vadd.f32 %v1328, %v1329
  %v1331 = vsel %vm1163, %v1269, 0.0
  %v1332 = vadd.f32 %v1330, %v1331
  %v1333 = vsel %vm1163, %v1270, 0.0
  %v1334 = vadd.f32 %v1332, %v1333
  %v1335 = vsel %vm1163, %v1271, 0.0
  %v1336 = vadd.f32 %v1334, %v1335
  %v1337 = vsel %vm1163, %v1272, 0.0
  %v1338 = vadd.f32 %v1336, %v1337
  %v1339 = vsel %vm1163, %v1273, 0.0
  %v1340 = vadd.f32 %v1338, %v1339
  %v1341 = vsel %vm1163, %v1274, 0.0
  %v1342 = vadd.f32 %v1340, %v1341
  %v1343 = vsel %vm1163, %v1275, 0.0
  %v1344 = vadd.f32 %v1342, %v1343
  %v1345 = vsel %vm1163, %v1276, 0.0
  %v1346 = vadd.f32 %v1344, %v1345
  %v1347 = vsel %vm1163, %v1277, 0.0
  %v1348 = vadd.f32 %v1346, %v1347
  %v1349 = vrot.slane %v1348, 4
  %v1350 = vadd.f32 %v1348, %v1349
  %v1351 = vrot.slane %v1350, 2
  %v1352 = vadd.f32 %v1350, %v1351
  %v1353 = vrot.slane %v1352, 1
  %v1354 = vadd.f32 %v1352, %v1353
  %v1355 = vmul.f32 %v1354, 0.0034722222
  %v1356 = vmul.f32 %v1241, %v1241
  %v1357 = vsub.f32 %v1355, %v1356
  %v1358 = vmax.f32 %v1357, 0.0
  %v1359 = vadd.f32 %v1358, 1e-05
  %v1360 = vrsqrt.pop %v1359
  %v1361 = vmul.f32 %v1360, %v1359
  %v1362 = vmul.f32 %v1361, %v1360
  %v1363 = vmul.f32 0.5, %v1362
  %v1364 = vsub.f32 1.5, %v1363
  %v1365 = vmul.f32 %v1360, %v1364
  %vm1366 = vweird.f32 %v1359
  %vm1367 = vweird.f32 %v1360
  %vm1368 = vmor %vm1366, %vm1367
  %v1369 = vsel %vm1368, %v1360, %v1365
  %v1370 = vmul.f32 %v864, %v1369
  %v1371 = vmul.f32 %v1241, %v1370
  %v1373 = vrot.slane %v1371, 7
  %v1375 = vsub.f32 %v864, %v1373
  %v1376 = vperm.slane %v1370, 0
  %v1377 = vmul.f32 %v1074, %v1376
  %v1378 = vmul.f32 %v1076, %v1376
  %v1379 = vmul.f32 %v1079, %v1376
  %v1380 = vmul.f32 %v1081, %v1376
  %v1381 = vmul.f32 %v1084, %v1376
  %v1382 = vmul.f32 %v1086, %v1376
  %v1383 = vmul.f32 %v1089, %v1376
  %v1384 = vmul.f32 %v1091, %v1376
  %v1385 = vmul.f32 %v1094, %v1376
  %v1386 = vmul.f32 %v1096, %v1376
  %v1387 = vmul.f32 %v1099, %v1376
  %v1388 = vmul.f32 %v1101, %v1376
  %v1389 = vmul.f32 %v1104, %v1376
  %v1390 = vmul.f32 %v1106, %v1376
  %v1391 = vmul.f32 %v1109, %v1376
  %v1392 = vmul.f32 %v1111, %v1376
  %v1393 = vmul.f32 %v1114, %v1376
  %v1394 = vmul.f32 %v1116, %v1376
  %v1395 = vmul.f32 %v1119, %v1376
  %v1396 = vmul.f32 %v1121, %v1376
  %v1397 = vmul.f32 %v1124, %v1376
  %v1398 = vmul.f32 %v1126, %v1376
  %v1399 = vmul.f32 %v1129, %v1376
  %v1400 = vmul.f32 %v1131, %v1376
  %v1401 = vmul.f32 %v1134, %v1376
  %v1402 = vmul.f32 %v1136, %v1376
  %v1403 = vmul.f32 %v1139, %v1376
  %v1404 = vmul.f32 %v1141, %v1376
  %v1405 = vmul.f32 %v1144, %v1376
  %v1406 = vmul.f32 %v1146, %v1376
  %v1407 = vmul.f32 %v1149, %v1376
  %v1408 = vmul.f32 %v1151, %v1376
  %v1409 = vmul.f32 %v1154, %v1376
  %v1410 = vmul.f32 %v1156, %v1376
  %v1411 = vmul.f32 %v1159, %v1376
  %v1412 = vmul.f32 %v1161, %v1376
  %v1413 = vperm.slane %v1375, 1
  %v1414 = vadd.f32 %v1377, %v1413
  %v1415 = vadd.f32 %v1378, %v1413
  %v1416 = vadd.f32 %v1379, %v1413
  %v1417 = vadd.f32 %v1380, %v1413
  %v1418 = vadd.f32 %v1381, %v1413
  %v1419 = vadd.f32 %v1382, %v1413
  %v1420 = vadd.f32 %v1383, %v1413
  %v1421 = vadd.f32 %v1384, %v1413
  %v1422 = vadd.f32 %v1385, %v1413
  %v1423 = vadd.f32 %v1386, %v1413
  %v1424 = vadd.f32 %v1387, %v1413
  %v1425 = vadd.f32 %v1388, %v1413
  %v1426 = vadd.f32 %v1389, %v1413
  %v1427 = vadd.f32 %v1390, %v1413
  %v1428 = vadd.f32 %v1391, %v1413
  %v1429 = vadd.f32 %v1392, %v1413
  %v1430 = vadd.f32 %v1393, %v1413
  %v1431 = vadd.f32 %v1394, %v1413
  %v1432 = vadd.f32 %v1395, %v1413
  %v1433 = vadd.f32 %v1396, %v1413
  %v1434 = vadd.f32 %v1397, %v1413
  %v1435 = vadd.f32 %v1398, %v1413
  %v1436 = vadd.f32 %v1399, %v1413
  %v1437 = vadd.f32 %v1400, %v1413
  %v1438 = vadd.f32 %v1401, %v1413
  %v1439 = vadd.f32 %v1402, %v1413
  %v1440 = vadd.f32 %v1403, %v1413
  %v1441 = vadd.f32 %v1404, %v1413
  %v1442 = vadd.f32 %v1405, %v1413
  %v1443 = vadd.f32 %v1406, %v1413
  %v1444 = vadd.f32 %v1407, %v1413
  %v1445 = vadd.f32 %v1408, %v1413
  %v1446 = vadd.f32 %v1409, %v1413
  %v1447 = vadd.f32 %v1410, %v1413
  %v1448 = vadd.f32 %v1411, %v1413
  %v1449 = vadd.f32 %v1412, %v1413
  %vm1450 = vcmp.gt.f32.partialorder %v1414, 0.0
  %vm1451 = vcmp.gt.f32.partialorder %v1415, 0.0
  %vm1452 = vcmp.gt.f32.partialorder %v1416, 0.0
  %vm1453 = vcmp.gt.f32.partialorder %v1417, 0.0
  %vm1454 = vcmp.gt.f32.partialorder %v1418, 0.0
  %vm1455 = vcmp.gt.f32.partialorder %v1419, 0.0
  %vm1456 = vcmp.gt.f32.partialorder %v1420, 0.0
  %vm1457 = vcmp.gt.f32.partialorder %v1421, 0.0
  %vm1458 = vcmp.gt.f32.partialorder %v1422, 0.0
  %vm1459 = vcmp.gt.f32.partialorder %v1423, 0.0
  %vm1460 = vcmp.gt.f32.partialorder %v1424, 0.0
  %vm1461 = vcmp.gt.f32.partialorder %v1425, 0.0
  %vm1462 = vcmp.gt.f32.partialorder %v1426, 0.0
  %vm1463 = vcmp.gt.f32.partialorder %v1427, 0.0
  %vm1464 = vcmp.gt.f32.partialorder %v1428, 0.0
  %vm1465 = vcmp.gt.f32.partialorder %v1429, 0.0
  %vm1466 = vcmp.gt.f32.partialorder %v1430, 0.0
  %vm1467 = vcmp.gt.f32.partialorder %v1431, 0.0
  %vm1468 = vcmp.gt.f32.partialorder %v1432, 0.0
  %vm1469 = vcmp.gt.f32.partialorder %v1433, 0.0
  %vm1470 = vcmp.gt.f32.partialorder %v1434, 0.0
  %vm1471 = vcmp.gt.f32.partialorder %v1435, 0.0
  %vm1472 = vcmp.gt.f32.partialorder %v1436, 0.0
  %vm1473 = vcmp.gt.f32.partialorder %v1437, 0.0
  %vm1474 = vcmp.gt.f32.partialorder %v1438, 0.0
  %vm1475 = vcmp.gt.f32.partialorder %v1439, 0.0
  %vm1476 = vcmp.gt.f32.partialorder %v1440, 0.0
  %vm1477 = vcmp.gt.f32.partialorder %v1441, 0.0
  %vm1478 = vcmp.gt.f32.partialorder %v1442, 0.0
  %vm1479 = vcmp.gt.f32.partialorder %v1443, 0.0
  %vm1480 = vcmp.gt.f32.partialorder %v1444, 0.0
  %vm1481 = vcmp.gt.f32.partialorder %v1445, 0.0
  %vm1482 = vcmp.gt.f32.partialorder %v1446, 0.0
  %vm1483 = vcmp.gt.f32.partialorder %v1447, 0.0
  %vm1484 = vcmp.gt.f32.partialorder %v1448, 0.0
  %vm1485 = vcmp.gt.f32.partialorder %v1449, 0.0
  %v1486 = vmul.f32 %v1414, 0.2
  %v1487 = vmul.f32 %v1415, 0.2
  %v1488 = vmul.f32 %v1416, 0.2
  %v1489 = vmul.f32 %v1417, 0.2
  %v1490 = vmul.f32 %v1418, 0.2
  %v1491 = vmul.f32 %v1419, 0.2
  %v1492 = vmul.f32 %v1420, 0.2
  %v1493 = vmul.f32 %v1421, 0.2
  %v1494 = vmul.f32 %v1422, 0.2
  %v1495 = vmul.f32 %v1423, 0.2
  %v1496 = vmul.f32 %v1424, 0.2
  %v1497 = vmul.f32 %v1425, 0.2
  %v1498 = vmul.f32 %v1426, 0.2
  %v1499 = vmul.f32 %v1427, 0.2
  %v1500 = vmul.f32 %v1428, 0.2
  %v1501 = vmul.f32 %v1429, 0.2
  %v1502 = vmul.f32 %v1430, 0.2
  %v1503 = vmul.f32 %v1431, 0.2
  %v1504 = vmul.f32 %v1432, 0.2
  %v1505 = vmul.f32 %v1433, 0.2
  %v1506 = vmul.f32 %v1434, 0.2
  %v1507 = vmul.f32 %v1435, 0.2
  %v1508 = vmul.f32 %v1436, 0.2
  %v1509 = vmul.f32 %v1437, 0.2
  %v1510 = vmul.f32 %v1438, 0.2
  %v1511 = vmul.f32 %v1439, 0.2
  %v1512 = vmul.f32 %v1440, 0.2
  %v1513 = vmul.f32 %v1441, 0.2
  %v1514 = vmul.f32 %v1442, 0.2
  %v1515 = vmul.f32 %v1443, 0.2
  %v1516 = vmul.f32 %v1444, 0.2
  %v1517 = vmul.f32 %v1445, 0.2
  %v1518 = vmul.f32 %v1446, 0.2
  %v1519 = vmul.f32 %v1447, 0.2
  %v1520 = vmul.f32 %v1448, 0.2
  %v1521 = vmul.f32 %v1449, 0.2
  %v1522 = vsel %vm1450, %v1414, %v1486
  %v1523 = vsel %vm1451, %v1415, %v1487
  %v1524 = vsel %vm1452, %v1416, %v1488
  %v1525 = vsel %vm1453, %v1417, %v1489
  %v1526 = vsel %vm1454, %v1418, %v1490
  %v1527 = vsel %vm1455, %v1419, %v1491
  %v1528 = vsel %vm1456, %v1420, %v1492
  %v1529 = vsel %vm1457, %v1421, %v1493
  %v1530 = vsel %vm1458, %v1422, %v1494
  %v1531 = vsel %vm1459, %v1423, %v1495
  %v1532 = vsel %vm1460, %v1424, %v1496
  %v1533 = vsel %vm1461, %v1425, %v1497
  %v1534 = vsel %vm1462, %v1426, %v1498
  %v1535 = vsel %vm1463, %v1427, %v1499
  %v1536 = vsel %vm1464, %v1428, %v1500
  %v1537 = vsel %vm1465, %v1429, %v1501
  %v1538 = vsel %vm1466, %v1430, %v1502
  %v1539 = vsel %vm1467, %v1431, %v1503
  %v1540 = vsel %vm1468, %v1432, %v1504
  %v1541 = vsel %vm1469, %v1433, %v1505
  %v1542 = vsel %vm1470, %v1434, %v1506
  %v1543 = vsel %vm1471, %v1435, %v1507
  %v1544 = vsel %vm1472, %v1436, %v1508
  %v1545 = vsel %vm1473, %v1437, %v1509
  %v1546 = vsel %vm1474, %v1438, %v1510
  %v1547 = vsel %vm1475, %v1439, %v1511
  %v1548 = vsel %vm1476, %v1440, %v1512
  %v1549 = vsel %vm1477, %v1441, %v1513
  %v1550 = vsel %vm1478, %v1442, %v1514
  %v1551 = vsel %vm1479, %v1443, %v1515
  %v1552 = vsel %vm1480, %v1444, %v1516
  %v1553 = vsel %vm1481, %v1445, %v1517
  %v1554 = vsel %vm1482, %v1446, %v1518
  %v1555 = vsel %vm1483, %v1447, %v1519
  %v1556 = vsel %vm1484, %v1448, %v1520
  %v1557 = vsel %vm1485, %v1449, %v1521
  %v1558 = vpack.c.bf16 %v1523, %v1522
  %v1559 = vpack.c.bf16 %v1525, %v1524
  %v1560 = vpack.c.bf16 %v1527, %v1526
  %v1561 = vpack.c.bf16 %v1529, %v1528
  %v1562 = vpack.c.bf16 %v1531, %v1530
  %v1563 = vpack.c.bf16 %v1533, %v1532
  %v1564 = vpack.c.bf16 %v1535, %v1534
  %v1565 = vpack.c.bf16 %v1537, %v1536
  %v1566 = vpack.c.bf16 %v1539, %v1538
  %v1567 = vpack.c.bf16 %v1541, %v1540
  %v1568 = vpack.c.bf16 %v1543, %v1542
  %v1569 = vpack.c.bf16 %v1545, %v1544
  %v1570 = vpack.c.bf16 %v1547, %v1546
  %v1571 = vpack.c.bf16 %v1549, %v1548
  %v1572 = vpack.c.bf16 %v1551, %v1550
  %v1573 = vpack.c.bf16 %v1553, %v1552
  %v1574 = vpack.c.bf16 %v1555, %v1554
  %v1575 = vpack.c.bf16 %v1557, %v1556
  %v1576 = vlaneseq
  %v1577 = vand.u32 %v1576, 127
  %v1578 = vadd.s32 %v1577, 128
  %v1579 = vadd.s32 %v1577, 256
  %v1580 = vld [vmem:[%s2] sm:$0xff]
  %v1581 = vld [vmem:[%s2 + $0x8] sm:$0xff]
  %v1582 = vld [vmem:[%s2 + $0x10] sm:$0xff]
  %v1583 = vld [vmem:[%s2 + $0x18] sm:$0xff]
  %v1584 = vld [vmem:[%s2 + $0x20] sm:$0xff]
  %v1585 = vld [vmem:[%s2 + $0x28] sm:$0xff]
  %v1586 = vld [vmem:[%s2 + $0x30] sm:$0xff]
  %v1587 = vld [vmem:[%s2 + $0x38] sm:$0xff]
  %v1588 = vld [vmem:[%s2 + $0x40] sm:$0xff]
  %v1589 = vld [vmem:[%s2 + $0x48] sm:$0xff]
  %v1590 = vld [vmem:[%s2 + $0x50] sm:$0xff]
  %v1591 = vld [vmem:[%s2 + $0x58] sm:$0xff]
  %v1592 = vld [vmem:[%s2 + $0x60] sm:$0xff]
  %v1593 = vld [vmem:[%s2 + $0x68] sm:$0xff]
  %v1594 = vld [vmem:[%s2 + $0x70] sm:$0xff]
  %v1595 = vld [vmem:[%s2 + $0x78] sm:$0xff]
  %v1596 = vld [vmem:[%s2 + $0x80] sm:$0xff]
  %v1597 = vld [vmem:[%s2 + $0x88] sm:$0xff]
  %v1598 = vld [vmem:[%s2 + $0x90] sm:$0xff]
  %v1599 = vld [vmem:[%s2 + $0x98] sm:$0xff]
  %v1600 = vld [vmem:[%s2 + $0xa0] sm:$0xff]
  %v1601 = vld [vmem:[%s2 + $0xa8] sm:$0xff]
  %v1602 = vld [vmem:[%s2 + $0xb0] sm:$0xff]
  %v1603 = vld [vmem:[%s2 + $0xb8] sm:$0xff]
  %v1604 = vld [vmem:[%s2 + $0xc0] sm:$0xff]
  %v1605 = vld [vmem:[%s2 + $0xc8] sm:$0xff]
  %v1606 = vld [vmem:[%s2 + $0xd0] sm:$0xff]
  %v1607 = vld [vmem:[%s2 + $0xd8] sm:$0xff]
  %v1608 = vld [vmem:[%s2 + $0xe0] sm:$0xff]
  %v1609 = vld [vmem:[%s2 + $0xe8] sm:$0xff]
  %v1610 = vld [vmem:[%s2 + $0xf0] sm:$0xff]
  %v1611 = vld [vmem:[%s2 + $0xf8] sm:$0xff]
  %v1612 = vld [vmem:[%s2 + $0x100] sm:$0xff]
  %v1613 = vld [vmem:[%s2 + $0x108] sm:$0xff]
  %v1614 = vld [vmem:[%s2 + $0x110] sm:$0xff]
  %v1615 = vld [vmem:[%s2 + $0x118] sm:$0xff]
  %v1616 = vld [vmem:[%s2 + $0x120] sm:$0xff]
  %v1617 = vld [vmem:[%s2 + $0x128] sm:$0xff]
  %v1618 = vld [vmem:[%s2 + $0x130] sm:$0xff]
  %v1619 = vld [vmem:[%s2 + $0x138] sm:$0xff]
  %v1620 = vld [vmem:[%s2 + $0x140] sm:$0xff]
  %v1621 = vld [vmem:[%s2 + $0x148] sm:$0xff]
  %v1622 = vld [vmem:[%s2 + $0x150] sm:$0xff]
  %v1623 = vld [vmem:[%s2 + $0x158] sm:$0xff]
  %v1624 = vld [vmem:[%s2 + $0x160] sm:$0xff]
  %v1625 = vld [vmem:[%s2 + $0x168] sm:$0xff]
  %v1626 = vld [vmem:[%s2 + $0x170] sm:$0xff]
  %v1627 = vld [vmem:[%s2 + $0x178] sm:$0xff]
  %v1628 = vld [vmem:[%s2 + $0x180] sm:$0xff]
  %v1629 = vld [vmem:[%s2 + $0x188] sm:$0xff]
  %v1630 = vld [vmem:[%s2 + $0x190] sm:$0xff]
  %v1631 = vld [vmem:[%s2 + $0x198] sm:$0xff]
  %v1632 = vld [vmem:[%s2 + $0x1a0] sm:$0xff]
  %v1633 = vld [vmem:[%s2 + $0x1a8] sm:$0xff]
  %v1634 = vld [vmem:[%s2 + $0x1b0] sm:$0xff]
  %v1635 = vld [vmem:[%s2 + $0x1b8] sm:$0xff]
  %v1636 = vld [vmem:[%s2 + $0x1c0] sm:$0xff]
  %v1637 = vld [vmem:[%s2 + $0x1c8] sm:$0xff]
  %v1638 = vld [vmem:[%s2 + $0x1d0] sm:$0xff]
  %v1639 = vld [vmem:[%s2 + $0x1d8] sm:$0xff]
  %v1640 = vld [vmem:[%s2 + $0x1e0] sm:$0xff]
  %v1641 = vld [vmem:[%s2 + $0x1e8] sm:$0xff]
  %v1642 = vld [vmem:[%s2 + $0x1f0] sm:$0xff]
  %v1643 = vld [vmem:[%s2 + $0x1f8] sm:$0xff]
  %v1644 = vld [vmem:[%s2 + $0x200] sm:$0xff]
  %v1645 = vld [vmem:[%s2 + $0x208] sm:$0xff]
  %v1646 = vld [vmem:[%s2 + $0x210] sm:$0xff]
  %v1647 = vld [vmem:[%s2 + $0x218] sm:$0xff]
  %v1648 = vld [vmem:[%s2 + $0x220] sm:$0xff]
  %v1649 = vld [vmem:[%s2 + $0x228] sm:$0xff]
  %v1650 = vld [vmem:[%s2 + $0x230] sm:$0xff]
  %v1651 = vld [vmem:[%s2 + $0x238] sm:$0xff]
  %v1652 = vld [vmem:[%s2 + $0x240] sm:$0xff]
  %v1653 = vld [vmem:[%s2 + $0x248] sm:$0xff]
  %v1654 = vld [vmem:[%s2 + $0x250] sm:$0xff]
  %v1655 = vld [vmem:[%s2 + $0x258] sm:$0xff]
  %v1656 = vld [vmem:[%s2 + $0x260] sm:$0xff]
  %v1657 = vld [vmem:[%s2 + $0x268] sm:$0xff]
  %v1658 = vld [vmem:[%s2 + $0x270] sm:$0xff]
  %v1659 = vld [vmem:[%s2 + $0x278] sm:$0xff]
  %v1660 = vld [vmem:[%s2 + $0x280] sm:$0xff]
  %v1661 = vld [vmem:[%s2 + $0x288] sm:$0xff]
  %v1662 = vld [vmem:[%s2 + $0x290] sm:$0xff]
  %v1663 = vld [vmem:[%s2 + $0x298] sm:$0xff]
  %v1664 = vld [vmem:[%s2 + $0x2a0] sm:$0xff]
  %v1665 = vld [vmem:[%s2 + $0x2a8] sm:$0xff]
  %v1666 = vld [vmem:[%s2 + $0x2b0] sm:$0xff]
  %v1667 = vld [vmem:[%s2 + $0x2b8] sm:$0xff]
  %v1668 = vld [vmem:[%s2 + $0x2c0] sm:$0xff]
  %v1669 = vld [vmem:[%s2 + $0x2c8] sm:$0xff]
  %v1670 = vld [vmem:[%s2 + $0x2d0] sm:$0xff]
  %v1671 = vld [vmem:[%s2 + $0x2d8] sm:$0xff]
  %v1672 = vld [vmem:[%s2 + $0x2e0] sm:$0xff]
  %v1673 = vld [vmem:[%s2 + $0x2e8] sm:$0xff]
  %v1674 = vld [vmem:[%s2 + $0x2f0] sm:$0xff]
  %v1675 = vld [vmem:[%s2 + $0x2f8] sm:$0xff]
  %v1676 = vld [vmem:[%s2 + $0x300] sm:$0xff]
  %v1677 = vld [vmem:[%s2 + $0x308] sm:$0xff]
  %v1678 = vld [vmem:[%s2 + $0x310] sm:$0xff]
  %v1679 = vld [vmem:[%s2 + $0x318] sm:$0xff]
  %v1680 = vld [vmem:[%s2 + $0x320] sm:$0xff]
  %v1681 = vld [vmem:[%s2 + $0x328] sm:$0xff]
  %v1682 = vld [vmem:[%s2 + $0x330] sm:$0xff]
  %v1683 = vld [vmem:[%s2 + $0x338] sm:$0xff]
  %v1684 = vld [vmem:[%s2 + $0x340] sm:$0xff]
  %v1685 = vld [vmem:[%s2 + $0x348] sm:$0xff]
  %v1686 = vld [vmem:[%s2 + $0x350] sm:$0xff]
  %v1687 = vld [vmem:[%s2 + $0x358] sm:$0xff]
  %v1688 = vld [vmem:[%s2 + $0x360] sm:$0xff]
  %v1689 = vld [vmem:[%s2 + $0x368] sm:$0xff]
  %v1690 = vld [vmem:[%s2 + $0x370] sm:$0xff]
  %v1691 = vld [vmem:[%s2 + $0x378] sm:$0xff]
  %v1692 = vld [vmem:[%s2 + $0x380] sm:$0xff]
  %v1693 = vld [vmem:[%s2 + $0x388] sm:$0xff]
  %v1694 = vld [vmem:[%s2 + $0x390] sm:$0xff]
  %v1695 = vld [vmem:[%s2 + $0x398] sm:$0xff]
  %v1696 = vld [vmem:[%s2 + $0x3a0] sm:$0xff]
  %v1697 = vld [vmem:[%s2 + $0x3a8] sm:$0xff]
  %v1698 = vld [vmem:[%s2 + $0x3b0] sm:$0xff]
  %v1699 = vld [vmem:[%s2 + $0x3b8] sm:$0xff]
  %v1700 = vld [vmem:[%s2 + $0x3c0] sm:$0xff]
  %v1701 = vld [vmem:[%s2 + $0x3c8] sm:$0xff]
  %v1702 = vld [vmem:[%s2 + $0x3d0] sm:$0xff]
  %v1703 = vld [vmem:[%s2 + $0x3d8] sm:$0xff]
  %v1704 = vld [vmem:[%s2 + $0x3e0] sm:$0xff]
  %v1705 = vld [vmem:[%s2 + $0x3e8] sm:$0xff]
  %v1706 = vld [vmem:[%s2 + $0x3f0] sm:$0xff]
  %v1707 = vld [vmem:[%s2 + $0x3f8] sm:$0xff]
  %v1708 = vld [vmem:[%s2 + $0x400] sm:$0xff]
  %v1709 = vld [vmem:[%s2 + $0x408] sm:$0xff]
  %v1710 = vld [vmem:[%s2 + $0x410] sm:$0xff]
  %v1711 = vld [vmem:[%s2 + $0x418] sm:$0xff]
  %v1712 = vld [vmem:[%s2 + $0x420] sm:$0xff]
  %v1713 = vld [vmem:[%s2 + $0x428] sm:$0xff]
  %v1714 = vld [vmem:[%s2 + $0x430] sm:$0xff]
  %v1715 = vld [vmem:[%s2 + $0x438] sm:$0xff]
  %v1716 = vld [vmem:[%s2 + $0x440] sm:$0xff]
  %v1717 = vld [vmem:[%s2 + $0x448] sm:$0xff]
  %v1718 = vld [vmem:[%s2 + $0x450] sm:$0xff]
  %v1719 = vld [vmem:[%s2 + $0x458] sm:$0xff]
  %v1720 = vld [vmem:[%s2 + $0x460] sm:$0xff]
  %v1721 = vld [vmem:[%s2 + $0x468] sm:$0xff]
  %v1722 = vld [vmem:[%s2 + $0x470] sm:$0xff]
  %v1723 = vld [vmem:[%s2 + $0x478] sm:$0xff]
  %1724 = vset.pattern.permute.xlu0 0
  %1725 = vperm.xlu0 %1724, %v1580
  %v1726 = vpop.permute.xlu0 %1725
  %1727 = vset.pattern.permute.xlu0 0
  %1728 = vperm.xlu0 %1727, %v1581
  %v1729 = vpop.permute.xlu0 %1728
  %1730 = vset.pattern.permute.xlu0 0
  %1731 = vperm.xlu0 %1730, %v1582
  %v1732 = vpop.permute.xlu0 %1731
  %1733 = vset.pattern.permute.xlu0 0
  %1734 = vperm.xlu0 %1733, %v1583
  %v1735 = vpop.permute.xlu0 %1734
  %1736 = vset.pattern.permute.xlu0 0
  %1737 = vperm.xlu0 %1736, %v1584
  %v1738 = vpop.permute.xlu0 %1737
  %1739 = vset.pattern.permute.xlu0 0
  %1740 = vperm.xlu0 %1739, %v1585
  %v1741 = vpop.permute.xlu0 %1740
  %1742 = vset.pattern.permute.xlu0 0
  %1743 = vperm.xlu0 %1742, %v1586
  %v1744 = vpop.permute.xlu0 %1743
  %1745 = vset.pattern.permute.xlu0 0
  %1746 = vperm.xlu0 %1745, %v1587
  %v1747 = vpop.permute.xlu0 %1746
  %1748 = vset.pattern.permute.xlu0 0
  %1749 = vperm.xlu0 %1748, %v1588
  %v1750 = vpop.permute.xlu0 %1749
  %1751 = vset.pattern.permute.xlu0 0
  %1752 = vperm.xlu0 %1751, %v1589
  %v1753 = vpop.permute.xlu0 %1752
  %1754 = vset.pattern.permute.xlu0 0
  %1755 = vperm.xlu0 %1754, %v1590
  %v1756 = vpop.permute.xlu0 %1755
  %1757 = vset.pattern.permute.xlu0 0
  %1758 = vperm.xlu0 %1757, %v1591
  %v1759 = vpop.permute.xlu0 %1758
  %1760 = vset.pattern.permute.xlu0 0
  %1761 = vperm.xlu0 %1760, %v1592
  %v1762 = vpop.permute.xlu0 %1761
  %1763 = vset.pattern.permute.xlu0 0
  %1764 = vperm.xlu0 %1763, %v1593
  %v1765 = vpop.permute.xlu0 %1764
  %1766 = vset.pattern.permute.xlu0 0
  %1767 = vperm.xlu0 %1766, %v1594
  %v1768 = vpop.permute.xlu0 %1767
  %1769 = vset.pattern.permute.xlu0 0
  %1770 = vperm.xlu0 %1769, %v1595
  %v1771 = vpop.permute.xlu0 %1770
  %1772 = vset.pattern.permute.xlu0 0
  %1773 = vperm.xlu0 %1772, %v1596
  %v1774 = vpop.permute.xlu0 %1773
  %1775 = vset.pattern.permute.xlu0 0
  %1776 = vperm.xlu0 %1775, %v1597
  %v1777 = vpop.permute.xlu0 %1776
  %1778 = vset.pattern.permute.xlu0 0
  %1779 = vperm.xlu0 %1778, %v1598
  %v1780 = vpop.permute.xlu0 %1779
  %1781 = vset.pattern.permute.xlu0 0
  %1782 = vperm.xlu0 %1781, %v1599
  %v1783 = vpop.permute.xlu0 %1782
  %1784 = vset.pattern.permute.xlu0 0
  %1785 = vperm.xlu0 %1784, %v1600
  %v1786 = vpop.permute.xlu0 %1785
  %1787 = vset.pattern.permute.xlu0 0
  %1788 = vperm.xlu0 %1787, %v1601
  %v1789 = vpop.permute.xlu0 %1788
  %1790 = vset.pattern.permute.xlu0 0
  %1791 = vperm.xlu0 %1790, %v1602
  %v1792 = vpop.permute.xlu0 %1791
  %1793 = vset.pattern.permute.xlu0 0
  %1794 = vperm.xlu0 %1793, %v1603
  %v1795 = vpop.permute.xlu0 %1794
  %1796 = vset.pattern.permute.xlu0 0
  %1797 = vperm.xlu0 %1796, %v1604
  %v1798 = vpop.permute.xlu0 %1797
  %1799 = vset.pattern.permute.xlu0 0
  %1800 = vperm.xlu0 %1799, %v1605
  %v1801 = vpop.permute.xlu0 %1800
  %1802 = vset.pattern.permute.xlu0 0
  %1803 = vperm.xlu0 %1802, %v1606
  %v1804 = vpop.permute.xlu0 %1803
  %1805 = vset.pattern.permute.xlu0 0
  %1806 = vperm.xlu0 %1805, %v1607
  %v1807 = vpop.permute.xlu0 %1806
  %1808 = vset.pattern.permute.xlu0 0
  %1809 = vperm.xlu0 %1808, %v1608
  %v1810 = vpop.permute.xlu0 %1809
  %1811 = vset.pattern.permute.xlu0 0
  %1812 = vperm.xlu0 %1811, %v1609
  %v1813 = vpop.permute.xlu0 %1812
  %1814 = vset.pattern.permute.xlu0 0
  %1815 = vperm.xlu0 %1814, %v1610
  %v1816 = vpop.permute.xlu0 %1815
  %1817 = vset.pattern.permute.xlu0 0
  %1818 = vperm.xlu0 %1817, %v1611
  %v1819 = vpop.permute.xlu0 %1818
  %1820 = vset.pattern.permute.xlu0 0
  %1821 = vperm.xlu0 %1820, %v1612
  %v1822 = vpop.permute.xlu0 %1821
  %1823 = vset.pattern.permute.xlu0 0
  %1824 = vperm.xlu0 %1823, %v1613
  %v1825 = vpop.permute.xlu0 %1824
  %1826 = vset.pattern.permute.xlu0 0
  %1827 = vperm.xlu0 %1826, %v1614
  %v1828 = vpop.permute.xlu0 %1827
  %1829 = vset.pattern.permute.xlu0 0
  %1830 = vperm.xlu0 %1829, %v1615
  %v1831 = vpop.permute.xlu0 %1830
  %1832 = vset.pattern.permute.xlu0 0
  %1833 = vperm.xlu0 %1832, %v1616
  %v1834 = vpop.permute.xlu0 %1833
  %1835 = vset.pattern.permute.xlu0 0
  %1836 = vperm.xlu0 %1835, %v1617
  %v1837 = vpop.permute.xlu0 %1836
  %1838 = vset.pattern.permute.xlu0 0
  %1839 = vperm.xlu0 %1838, %v1618
  %v1840 = vpop.permute.xlu0 %1839
  %1841 = vset.pattern.permute.xlu0 0
  %1842 = vperm.xlu0 %1841, %v1619
  %v1843 = vpop.permute.xlu0 %1842
  %1844 = vset.pattern.permute.xlu0 0
  %1845 = vperm.xlu0 %1844, %v1620
  %v1846 = vpop.permute.xlu0 %1845
  %1847 = vset.pattern.permute.xlu0 0
  %1848 = vperm.xlu0 %1847, %v1621
  %v1849 = vpop.permute.xlu0 %1848
  %1850 = vset.pattern.permute.xlu0 0
  %1851 = vperm.xlu0 %1850, %v1622
  %v1852 = vpop.permute.xlu0 %1851
  %1853 = vset.pattern.permute.xlu0 0
  %1854 = vperm.xlu0 %1853, %v1623
  %v1855 = vpop.permute.xlu0 %1854
  %1856 = vset.pattern.permute.xlu0 0
  %1857 = vperm.xlu0 %1856, %v1624
  %v1858 = vpop.permute.xlu0 %1857
  %1859 = vset.pattern.permute.xlu0 0
  %1860 = vperm.xlu0 %1859, %v1625
  %v1861 = vpop.permute.xlu0 %1860
  %1862 = vset.pattern.permute.xlu0 0
  %1863 = vperm.xlu0 %1862, %v1626
  %v1864 = vpop.permute.xlu0 %1863
  %1865 = vset.pattern.permute.xlu0 0
  %1866 = vperm.xlu0 %1865, %v1627
  %v1867 = vpop.permute.xlu0 %1866
  %1868 = vset.pattern.permute.xlu0 0
  %1869 = vperm.xlu0 %1868, %v1628
  %v1870 = vpop.permute.xlu0 %1869
  %1871 = vset.pattern.permute.xlu0 0
  %1872 = vperm.xlu0 %1871, %v1629
  %v1873 = vpop.permute.xlu0 %1872
  %1874 = vset.pattern.permute.xlu0 0
  %1875 = vperm.xlu0 %1874, %v1630
  %v1876 = vpop.permute.xlu0 %1875
  %1877 = vset.pattern.permute.xlu0 0
  %1878 = vperm.xlu0 %1877, %v1631
  %v1879 = vpop.permute.xlu0 %1878
  %1880 = vset.pattern.permute.xlu0 0
  %1881 = vperm.xlu0 %1880, %v1632
  %v1882 = vpop.permute.xlu0 %1881
  %1883 = vset.pattern.permute.xlu0 0
  %1884 = vperm.xlu0 %1883, %v1633
  %v1885 = vpop.permute.xlu0 %1884
  %1886 = vset.pattern.permute.xlu0 0
  %1887 = vperm.xlu0 %1886, %v1634
  %v1888 = vpop.permute.xlu0 %1887
  %1889 = vset.pattern.permute.xlu0 0
  %1890 = vperm.xlu0 %1889, %v1635
  %v1891 = vpop.permute.xlu0 %1890
  %1892 = vset.pattern.permute.xlu0 0
  %1893 = vperm.xlu0 %1892, %v1636
  %v1894 = vpop.permute.xlu0 %1893
  %1895 = vset.pattern.permute.xlu0 0
  %1896 = vperm.xlu0 %1895, %v1637
  %v1897 = vpop.permute.xlu0 %1896
  %1898 = vset.pattern.permute.xlu0 0
  %1899 = vperm.xlu0 %1898, %v1638
  %v1900 = vpop.permute.xlu0 %1899
  %1901 = vset.pattern.permute.xlu0 0
  %1902 = vperm.xlu0 %1901, %v1639
  %v1903 = vpop.permute.xlu0 %1902
  %1904 = vset.pattern.permute.xlu0 0
  %1905 = vperm.xlu0 %1904, %v1640
  %v1906 = vpop.permute.xlu0 %1905
  %1907 = vset.pattern.permute.xlu0 0
  %1908 = vperm.xlu0 %1907, %v1641
  %v1909 = vpop.permute.xlu0 %1908
  %1910 = vset.pattern.permute.xlu0 0
  %1911 = vperm.xlu0 %1910, %v1642
  %v1912 = vpop.permute.xlu0 %1911
  %1913 = vset.pattern.permute.xlu0 0
  %1914 = vperm.xlu0 %1913, %v1643
  %v1915 = vpop.permute.xlu0 %1914
  %1916 = vset.pattern.permute.xlu0 0
  %1917 = vperm.xlu0 %1916, %v1644
  %v1918 = vpop.permute.xlu0 %1917
  %1919 = vset.pattern.permute.xlu0 0
  %1920 = vperm.xlu0 %1919, %v1645
  %v1921 = vpop.permute.xlu0 %1920
  %1922 = vset.pattern.permute.xlu0 0
  %1923 = vperm.xlu0 %1922, %v1646
  %v1924 = vpop.permute.xlu0 %1923
  %1925 = vset.pattern.permute.xlu0 0
  %1926 = vperm.xlu0 %1925, %v1647
  %v1927 = vpop.permute.xlu0 %1926
  %1928 = vset.pattern.permute.xlu0 0
  %1929 = vperm.xlu0 %1928, %v1648
  %v1930 = vpop.permute.xlu0 %1929
  %1931 = vset.pattern.permute.xlu0 0
  %1932 = vperm.xlu0 %1931, %v1649
  %v1933 = vpop.permute.xlu0 %1932
  %1934 = vset.pattern.permute.xlu0 0
  %1935 = vperm.xlu0 %1934, %v1650
  %v1936 = vpop.permute.xlu0 %1935
  %1937 = vset.pattern.permute.xlu0 0
  %1938 = vperm.xlu0 %1937, %v1651
  %v1939 = vpop.permute.xlu0 %1938
  %1940 = vset.pattern.permute.xlu0 0
  %1941 = vperm.xlu0 %1940, %v1652
  %v1942 = vpop.permute.xlu0 %1941
  %1943 = vset.pattern.permute.xlu0 0
  %1944 = vperm.xlu0 %1943, %v1653
  %v1945 = vpop.permute.xlu0 %1944
  %1946 = vset.pattern.permute.xlu0 0
  %1947 = vperm.xlu0 %1946, %v1654
  %v1948 = vpop.permute.xlu0 %1947
  %1949 = vset.pattern.permute.xlu0 0
  %1950 = vperm.xlu0 %1949, %v1655
  %v1951 = vpop.permute.xlu0 %1950
  %1952 = vset.pattern.permute.xlu0 0
  %1953 = vperm.xlu0 %1952, %v1656
  %v1954 = vpop.permute.xlu0 %1953
  %1955 = vset.pattern.permute.xlu0 0
  %1956 = vperm.xlu0 %1955, %v1657
  %v1957 = vpop.permute.xlu0 %1956
  %1958 = vset.pattern.permute.xlu0 0
  %1959 = vperm.xlu0 %1958, %v1658
  %v1960 = vpop.permute.xlu0 %1959
  %1961 = vset.pattern.permute.xlu0 0
  %1962 = vperm.xlu0 %1961, %v1659
  %v1963 = vpop.permute.xlu0 %1962
  %1964 = vset.pattern.permute.xlu0 0
  %1965 = vperm.xlu0 %1964, %v1660
  %v1966 = vpop.permute.xlu0 %1965
  %1967 = vset.pattern.permute.xlu0 0
  %1968 = vperm.xlu0 %1967, %v1661
  %v1969 = vpop.permute.xlu0 %1968
  %1970 = vset.pattern.permute.xlu0 0
  %1971 = vperm.xlu0 %1970, %v1662
  %v1972 = vpop.permute.xlu0 %1971
  %1973 = vset.pattern.permute.xlu0 0
  %1974 = vperm.xlu0 %1973, %v1663
  %v1975 = vpop.permute.xlu0 %1974
  %1976 = vset.pattern.permute.xlu0 0
  %1977 = vperm.xlu0 %1976, %v1664
  %v1978 = vpop.permute.xlu0 %1977
  %1979 = vset.pattern.permute.xlu0 0
  %1980 = vperm.xlu0 %1979, %v1665
  %v1981 = vpop.permute.xlu0 %1980
  %1982 = vset.pattern.permute.xlu0 0
  %1983 = vperm.xlu0 %1982, %v1666
  %v1984 = vpop.permute.xlu0 %1983
  %1985 = vset.pattern.permute.xlu0 0
  %1986 = vperm.xlu0 %1985, %v1667
  %v1987 = vpop.permute.xlu0 %1986
  %1988 = vset.pattern.permute.xlu0 0
  %1989 = vperm.xlu0 %1988, %v1668
  %v1990 = vpop.permute.xlu0 %1989
  %1991 = vset.pattern.permute.xlu0 0
  %1992 = vperm.xlu0 %1991, %v1669
  %v1993 = vpop.permute.xlu0 %1992
  %1994 = vset.pattern.permute.xlu0 0
  %1995 = vperm.xlu0 %1994, %v1670
  %v1996 = vpop.permute.xlu0 %1995
  %1997 = vset.pattern.permute.xlu0 0
  %1998 = vperm.xlu0 %1997, %v1671
  %v1999 = vpop.permute.xlu0 %1998
  %2000 = vset.pattern.permute.xlu0 0
  %2001 = vperm.xlu0 %2000, %v1672
  %v2002 = vpop.permute.xlu0 %2001
  %2003 = vset.pattern.permute.xlu0 0
  %2004 = vperm.xlu0 %2003, %v1673
  %v2005 = vpop.permute.xlu0 %2004
  %2006 = vset.pattern.permute.xlu0 0
  %2007 = vperm.xlu0 %2006, %v1674
  %v2008 = vpop.permute.xlu0 %2007
  %2009 = vset.pattern.permute.xlu0 0
  %2010 = vperm.xlu0 %2009, %v1675
  %v2011 = vpop.permute.xlu0 %2010
  %2012 = vset.pattern.permute.xlu0 0
  %2013 = vperm.xlu0 %2012, %v1676
  %v2014 = vpop.permute.xlu0 %2013
  %2015 = vset.pattern.permute.xlu0 0
  %2016 = vperm.xlu0 %2015, %v1677
  %v2017 = vpop.permute.xlu0 %2016
  %2018 = vset.pattern.permute.xlu0 0
  %2019 = vperm.xlu0 %2018, %v1678
  %v2020 = vpop.permute.xlu0 %2019
  %2021 = vset.pattern.permute.xlu0 0
  %2022 = vperm.xlu0 %2021, %v1679
  %v2023 = vpop.permute.xlu0 %2022
  %2024 = vset.pattern.permute.xlu0 0
  %2025 = vperm.xlu0 %2024, %v1680
  %v2026 = vpop.permute.xlu0 %2025
  %2027 = vset.pattern.permute.xlu0 0
  %2028 = vperm.xlu0 %2027, %v1681
  %v2029 = vpop.permute.xlu0 %2028
  %2030 = vset.pattern.permute.xlu0 0
  %2031 = vperm.xlu0 %2030, %v1682
  %v2032 = vpop.permute.xlu0 %2031
  %2033 = vset.pattern.permute.xlu0 0
  %2034 = vperm.xlu0 %2033, %v1683
  %v2035 = vpop.permute.xlu0 %2034
  %2036 = vset.pattern.permute.xlu0 0
  %2037 = vperm.xlu0 %2036, %v1684
  %v2038 = vpop.permute.xlu0 %2037
  %2039 = vset.pattern.permute.xlu0 0
  %2040 = vperm.xlu0 %2039, %v1685
  %v2041 = vpop.permute.xlu0 %2040
  %2042 = vset.pattern.permute.xlu0 0
  %2043 = vperm.xlu0 %2042, %v1686
  %v2044 = vpop.permute.xlu0 %2043
  %2045 = vset.pattern.permute.xlu0 0
  %2046 = vperm.xlu0 %2045, %v1687
  %v2047 = vpop.permute.xlu0 %2046
  %2048 = vset.pattern.permute.xlu0 0
  %2049 = vperm.xlu0 %2048, %v1688
  %v2050 = vpop.permute.xlu0 %2049
  %2051 = vset.pattern.permute.xlu0 0
  %2052 = vperm.xlu0 %2051, %v1689
  %v2053 = vpop.permute.xlu0 %2052
  %2054 = vset.pattern.permute.xlu0 0
  %2055 = vperm.xlu0 %2054, %v1690
  %v2056 = vpop.permute.xlu0 %2055
  %2057 = vset.pattern.permute.xlu0 0
  %2058 = vperm.xlu0 %2057, %v1691
  %v2059 = vpop.permute.xlu0 %2058
  %2060 = vset.pattern.permute.xlu0 0
  %2061 = vperm.xlu0 %2060, %v1692
  %v2062 = vpop.permute.xlu0 %2061
  %2063 = vset.pattern.permute.xlu0 0
  %2064 = vperm.xlu0 %2063, %v1693
  %v2065 = vpop.permute.xlu0 %2064
  %2066 = vset.pattern.permute.xlu0 0
  %2067 = vperm.xlu0 %2066, %v1694
  %v2068 = vpop.permute.xlu0 %2067
  %2069 = vset.pattern.permute.xlu0 0
  %2070 = vperm.xlu0 %2069, %v1695
  %v2071 = vpop.permute.xlu0 %2070
  %2072 = vset.pattern.permute.xlu0 0
  %2073 = vperm.xlu0 %2072, %v1696
  %v2074 = vpop.permute.xlu0 %2073
  %2075 = vset.pattern.permute.xlu0 0
  %2076 = vperm.xlu0 %2075, %v1697
  %v2077 = vpop.permute.xlu0 %2076
  %2078 = vset.pattern.permute.xlu0 0
  %2079 = vperm.xlu0 %2078, %v1698
  %v2080 = vpop.permute.xlu0 %2079
  %2081 = vset.pattern.permute.xlu0 0
  %2082 = vperm.xlu0 %2081, %v1699
  %v2083 = vpop.permute.xlu0 %2082
  %2084 = vset.pattern.permute.xlu0 0
  %2085 = vperm.xlu0 %2084, %v1700
  %v2086 = vpop.permute.xlu0 %2085
  %2087 = vset.pattern.permute.xlu0 0
  %2088 = vperm.xlu0 %2087, %v1701
  %v2089 = vpop.permute.xlu0 %2088
  %2090 = vset.pattern.permute.xlu0 0
  %2091 = vperm.xlu0 %2090, %v1702
  %v2092 = vpop.permute.xlu0 %2091
  %2093 = vset.pattern.permute.xlu0 0
  %2094 = vperm.xlu0 %2093, %v1703
  %v2095 = vpop.permute.xlu0 %2094
  %2096 = vset.pattern.permute.xlu0 0
  %2097 = vperm.xlu0 %2096, %v1704
  %v2098 = vpop.permute.xlu0 %2097
  %2099 = vset.pattern.permute.xlu0 0
  %2100 = vperm.xlu0 %2099, %v1705
  %v2101 = vpop.permute.xlu0 %2100
  %2102 = vset.pattern.permute.xlu0 0
  %2103 = vperm.xlu0 %2102, %v1706
  %v2104 = vpop.permute.xlu0 %2103
  %2105 = vset.pattern.permute.xlu0 0
  %2106 = vperm.xlu0 %2105, %v1707
  %v2107 = vpop.permute.xlu0 %2106
  %2108 = vset.pattern.permute.xlu0 0
  %2109 = vperm.xlu0 %2108, %v1708
  %v2110 = vpop.permute.xlu0 %2109
  %2111 = vset.pattern.permute.xlu0 0
  %2112 = vperm.xlu0 %2111, %v1709
  %v2113 = vpop.permute.xlu0 %2112
  %2114 = vset.pattern.permute.xlu0 0
  %2115 = vperm.xlu0 %2114, %v1710
  %v2116 = vpop.permute.xlu0 %2115
  %2117 = vset.pattern.permute.xlu0 0
  %2118 = vperm.xlu0 %2117, %v1711
  %v2119 = vpop.permute.xlu0 %2118
  %2120 = vset.pattern.permute.xlu0 0
  %2121 = vperm.xlu0 %2120, %v1712
  %v2122 = vpop.permute.xlu0 %2121
  %2123 = vset.pattern.permute.xlu0 0
  %2124 = vperm.xlu0 %2123, %v1713
  %v2125 = vpop.permute.xlu0 %2124
  %2126 = vset.pattern.permute.xlu0 0
  %2127 = vperm.xlu0 %2126, %v1714
  %v2128 = vpop.permute.xlu0 %2127
  %2129 = vset.pattern.permute.xlu0 0
  %2130 = vperm.xlu0 %2129, %v1715
  %v2131 = vpop.permute.xlu0 %2130
  %2132 = vset.pattern.permute.xlu0 0
  %2133 = vperm.xlu0 %2132, %v1716
  %v2134 = vpop.permute.xlu0 %2133
  %2135 = vset.pattern.permute.xlu0 0
  %2136 = vperm.xlu0 %2135, %v1717
  %v2137 = vpop.permute.xlu0 %2136
  %2138 = vset.pattern.permute.xlu0 0
  %2139 = vperm.xlu0 %2138, %v1718
  %v2140 = vpop.permute.xlu0 %2139
  %2141 = vset.pattern.permute.xlu0 0
  %2142 = vperm.xlu0 %2141, %v1719
  %v2143 = vpop.permute.xlu0 %2142
  %2144 = vset.pattern.permute.xlu0 0
  %2145 = vperm.xlu0 %2144, %v1720
  %v2146 = vpop.permute.xlu0 %2145
  %2147 = vset.pattern.permute.xlu0 0
  %2148 = vperm.xlu0 %2147, %v1721
  %v2149 = vpop.permute.xlu0 %2148
  %2150 = vset.pattern.permute.xlu0 0
  %2151 = vperm.xlu0 %2150, %v1722
  %v2152 = vpop.permute.xlu0 %2151
  %2153 = vset.pattern.permute.xlu0 0
  %2154 = vperm.xlu0 %2153, %v1723
  %v2155 = vpop.permute.xlu0 %2154
  %vm2156 = vcmp.eq.s32.totalorder %v1577, %v1726
  %vm2157 = vcmp.eq.s32.totalorder %v1578, %v1726
  %vm2158 = vcmp.eq.s32.totalorder %v1579, %v1726
  %vm2159 = vcmp.eq.s32.totalorder %v1577, %v1729
  %vm2160 = vcmp.eq.s32.totalorder %v1578, %v1729
  %vm2161 = vcmp.eq.s32.totalorder %v1579, %v1729
  %vm2162 = vcmp.eq.s32.totalorder %v1577, %v1732
  %vm2163 = vcmp.eq.s32.totalorder %v1578, %v1732
  %vm2164 = vcmp.eq.s32.totalorder %v1579, %v1732
  %vm2165 = vcmp.eq.s32.totalorder %v1577, %v1735
  %vm2166 = vcmp.eq.s32.totalorder %v1578, %v1735
  %vm2167 = vcmp.eq.s32.totalorder %v1579, %v1735
  %vm2168 = vcmp.eq.s32.totalorder %v1577, %v1738
  %vm2169 = vcmp.eq.s32.totalorder %v1578, %v1738
  %vm2170 = vcmp.eq.s32.totalorder %v1579, %v1738
  %vm2171 = vcmp.eq.s32.totalorder %v1577, %v1741
  %vm2172 = vcmp.eq.s32.totalorder %v1578, %v1741
  %vm2173 = vcmp.eq.s32.totalorder %v1579, %v1741
  %vm2174 = vcmp.eq.s32.totalorder %v1577, %v1744
  %vm2175 = vcmp.eq.s32.totalorder %v1578, %v1744
  %vm2176 = vcmp.eq.s32.totalorder %v1579, %v1744
  %vm2177 = vcmp.eq.s32.totalorder %v1577, %v1747
  %vm2178 = vcmp.eq.s32.totalorder %v1578, %v1747
  %vm2179 = vcmp.eq.s32.totalorder %v1579, %v1747
  %vm2180 = vcmp.eq.s32.totalorder %v1577, %v1750
  %vm2181 = vcmp.eq.s32.totalorder %v1578, %v1750
  %vm2182 = vcmp.eq.s32.totalorder %v1579, %v1750
  %vm2183 = vcmp.eq.s32.totalorder %v1577, %v1753
  %vm2184 = vcmp.eq.s32.totalorder %v1578, %v1753
  %vm2185 = vcmp.eq.s32.totalorder %v1579, %v1753
  %vm2186 = vcmp.eq.s32.totalorder %v1577, %v1756
  %vm2187 = vcmp.eq.s32.totalorder %v1578, %v1756
  %vm2188 = vcmp.eq.s32.totalorder %v1579, %v1756
  %vm2189 = vcmp.eq.s32.totalorder %v1577, %v1759
  %vm2190 = vcmp.eq.s32.totalorder %v1578, %v1759
  %vm2191 = vcmp.eq.s32.totalorder %v1579, %v1759
  %vm2192 = vcmp.eq.s32.totalorder %v1577, %v1762
  %vm2193 = vcmp.eq.s32.totalorder %v1578, %v1762
  %vm2194 = vcmp.eq.s32.totalorder %v1579, %v1762
  %vm2195 = vcmp.eq.s32.totalorder %v1577, %v1765
  %vm2196 = vcmp.eq.s32.totalorder %v1578, %v1765
  %vm2197 = vcmp.eq.s32.totalorder %v1579, %v1765
  %vm2198 = vcmp.eq.s32.totalorder %v1577, %v1768
  %vm2199 = vcmp.eq.s32.totalorder %v1578, %v1768
  %vm2200 = vcmp.eq.s32.totalorder %v1579, %v1768
  %vm2201 = vcmp.eq.s32.totalorder %v1577, %v1771
  %vm2202 = vcmp.eq.s32.totalorder %v1578, %v1771
  %vm2203 = vcmp.eq.s32.totalorder %v1579, %v1771
  %vm2204 = vcmp.eq.s32.totalorder %v1577, %v1774
  %vm2205 = vcmp.eq.s32.totalorder %v1578, %v1774
  %vm2206 = vcmp.eq.s32.totalorder %v1579, %v1774
  %vm2207 = vcmp.eq.s32.totalorder %v1577, %v1777
  %vm2208 = vcmp.eq.s32.totalorder %v1578, %v1777
  %vm2209 = vcmp.eq.s32.totalorder %v1579, %v1777
  %vm2210 = vcmp.eq.s32.totalorder %v1577, %v1780
  %vm2211 = vcmp.eq.s32.totalorder %v1578, %v1780
  %vm2212 = vcmp.eq.s32.totalorder %v1579, %v1780
  %vm2213 = vcmp.eq.s32.totalorder %v1577, %v1783
  %vm2214 = vcmp.eq.s32.totalorder %v1578, %v1783
  %vm2215 = vcmp.eq.s32.totalorder %v1579, %v1783
  %vm2216 = vcmp.eq.s32.totalorder %v1577, %v1786
  %vm2217 = vcmp.eq.s32.totalorder %v1578, %v1786
  %vm2218 = vcmp.eq.s32.totalorder %v1579, %v1786
  %vm2219 = vcmp.eq.s32.totalorder %v1577, %v1789
  %vm2220 = vcmp.eq.s32.totalorder %v1578, %v1789
  %vm2221 = vcmp.eq.s32.totalorder %v1579, %v1789
  %vm2222 = vcmp.eq.s32.totalorder %v1577, %v1792
  %vm2223 = vcmp.eq.s32.totalorder %v1578, %v1792
  %vm2224 = vcmp.eq.s32.totalorder %v1579, %v1792
  %vm2225 = vcmp.eq.s32.totalorder %v1577, %v1795
  %vm2226 = vcmp.eq.s32.totalorder %v1578, %v1795
  %vm2227 = vcmp.eq.s32.totalorder %v1579, %v1795
  %vm2228 = vcmp.eq.s32.totalorder %v1577, %v1798
  %vm2229 = vcmp.eq.s32.totalorder %v1578, %v1798
  %vm2230 = vcmp.eq.s32.totalorder %v1579, %v1798
  %vm2231 = vcmp.eq.s32.totalorder %v1577, %v1801
  %vm2232 = vcmp.eq.s32.totalorder %v1578, %v1801
  %vm2233 = vcmp.eq.s32.totalorder %v1579, %v1801
  %vm2234 = vcmp.eq.s32.totalorder %v1577, %v1804
  %vm2235 = vcmp.eq.s32.totalorder %v1578, %v1804
  %vm2236 = vcmp.eq.s32.totalorder %v1579, %v1804
  %vm2237 = vcmp.eq.s32.totalorder %v1577, %v1807
  %vm2238 = vcmp.eq.s32.totalorder %v1578, %v1807
  %vm2239 = vcmp.eq.s32.totalorder %v1579, %v1807
  %vm2240 = vcmp.eq.s32.totalorder %v1577, %v1810
  %vm2241 = vcmp.eq.s32.totalorder %v1578, %v1810
  %vm2242 = vcmp.eq.s32.totalorder %v1579, %v1810
  %vm2243 = vcmp.eq.s32.totalorder %v1577, %v1813
  %vm2244 = vcmp.eq.s32.totalorder %v1578, %v1813
  %vm2245 = vcmp.eq.s32.totalorder %v1579, %v1813
  %vm2246 = vcmp.eq.s32.totalorder %v1577, %v1816
  %vm2247 = vcmp.eq.s32.totalorder %v1578, %v1816
  %vm2248 = vcmp.eq.s32.totalorder %v1579, %v1816
  %vm2249 = vcmp.eq.s32.totalorder %v1577, %v1819
  %vm2250 = vcmp.eq.s32.totalorder %v1578, %v1819
  %vm2251 = vcmp.eq.s32.totalorder %v1579, %v1819
  %vm2252 = vcmp.eq.s32.totalorder %v1577, %v1822
  %vm2253 = vcmp.eq.s32.totalorder %v1578, %v1822
  %vm2254 = vcmp.eq.s32.totalorder %v1579, %v1822
  %vm2255 = vcmp.eq.s32.totalorder %v1577, %v1825
  %vm2256 = vcmp.eq.s32.totalorder %v1578, %v1825
  %vm2257 = vcmp.eq.s32.totalorder %v1579, %v1825
  %vm2258 = vcmp.eq.s32.totalorder %v1577, %v1828
  %vm2259 = vcmp.eq.s32.totalorder %v1578, %v1828
  %vm2260 = vcmp.eq.s32.totalorder %v1579, %v1828
  %vm2261 = vcmp.eq.s32.totalorder %v1577, %v1831
  %vm2262 = vcmp.eq.s32.totalorder %v1578, %v1831
  %vm2263 = vcmp.eq.s32.totalorder %v1579, %v1831
  %vm2264 = vcmp.eq.s32.totalorder %v1577, %v1834
  %vm2265 = vcmp.eq.s32.totalorder %v1578, %v1834
  %vm2266 = vcmp.eq.s32.totalorder %v1579, %v1834
  %vm2267 = vcmp.eq.s32.totalorder %v1577, %v1837
  %vm2268 = vcmp.eq.s32.totalorder %v1578, %v1837
  %vm2269 = vcmp.eq.s32.totalorder %v1579, %v1837
  %vm2270 = vcmp.eq.s32.totalorder %v1577, %v1840
  %vm2271 = vcmp.eq.s32.totalorder %v1578, %v1840
  %vm2272 = vcmp.eq.s32.totalorder %v1579, %v1840
  %vm2273 = vcmp.eq.s32.totalorder %v1577, %v1843
  %vm2274 = vcmp.eq.s32.totalorder %v1578, %v1843
  %vm2275 = vcmp.eq.s32.totalorder %v1579, %v1843
  %vm2276 = vcmp.eq.s32.totalorder %v1577, %v1846
  %vm2277 = vcmp.eq.s32.totalorder %v1578, %v1846
  %vm2278 = vcmp.eq.s32.totalorder %v1579, %v1846
  %vm2279 = vcmp.eq.s32.totalorder %v1577, %v1849
  %vm2280 = vcmp.eq.s32.totalorder %v1578, %v1849
  %vm2281 = vcmp.eq.s32.totalorder %v1579, %v1849
  %vm2282 = vcmp.eq.s32.totalorder %v1577, %v1852
  %vm2283 = vcmp.eq.s32.totalorder %v1578, %v1852
  %vm2284 = vcmp.eq.s32.totalorder %v1579, %v1852
  %vm2285 = vcmp.eq.s32.totalorder %v1577, %v1855
  %vm2286 = vcmp.eq.s32.totalorder %v1578, %v1855
  %vm2287 = vcmp.eq.s32.totalorder %v1579, %v1855
  %vm2288 = vcmp.eq.s32.totalorder %v1577, %v1858
  %vm2289 = vcmp.eq.s32.totalorder %v1578, %v1858
  %vm2290 = vcmp.eq.s32.totalorder %v1579, %v1858
  %vm2291 = vcmp.eq.s32.totalorder %v1577, %v1861
  %vm2292 = vcmp.eq.s32.totalorder %v1578, %v1861
  %vm2293 = vcmp.eq.s32.totalorder %v1579, %v1861
  %vm2294 = vcmp.eq.s32.totalorder %v1577, %v1864
  %vm2295 = vcmp.eq.s32.totalorder %v1578, %v1864
  %vm2296 = vcmp.eq.s32.totalorder %v1579, %v1864
  %vm2297 = vcmp.eq.s32.totalorder %v1577, %v1867
  %vm2298 = vcmp.eq.s32.totalorder %v1578, %v1867
  %vm2299 = vcmp.eq.s32.totalorder %v1579, %v1867
  %vm2300 = vcmp.eq.s32.totalorder %v1577, %v1870
  %vm2301 = vcmp.eq.s32.totalorder %v1578, %v1870
  %vm2302 = vcmp.eq.s32.totalorder %v1579, %v1870
  %vm2303 = vcmp.eq.s32.totalorder %v1577, %v1873
  %vm2304 = vcmp.eq.s32.totalorder %v1578, %v1873
  %vm2305 = vcmp.eq.s32.totalorder %v1579, %v1873
  %vm2306 = vcmp.eq.s32.totalorder %v1577, %v1876
  %vm2307 = vcmp.eq.s32.totalorder %v1578, %v1876
  %vm2308 = vcmp.eq.s32.totalorder %v1579, %v1876
  %vm2309 = vcmp.eq.s32.totalorder %v1577, %v1879
  %vm2310 = vcmp.eq.s32.totalorder %v1578, %v1879
  %vm2311 = vcmp.eq.s32.totalorder %v1579, %v1879
  %vm2312 = vcmp.eq.s32.totalorder %v1577, %v1882
  %vm2313 = vcmp.eq.s32.totalorder %v1578, %v1882
  %vm2314 = vcmp.eq.s32.totalorder %v1579, %v1882
  %vm2315 = vcmp.eq.s32.totalorder %v1577, %v1885
  %vm2316 = vcmp.eq.s32.totalorder %v1578, %v1885
  %vm2317 = vcmp.eq.s32.totalorder %v1579, %v1885
  %vm2318 = vcmp.eq.s32.totalorder %v1577, %v1888
  %vm2319 = vcmp.eq.s32.totalorder %v1578, %v1888
  %vm2320 = vcmp.eq.s32.totalorder %v1579, %v1888
  %vm2321 = vcmp.eq.s32.totalorder %v1577, %v1891
  %vm2322 = vcmp.eq.s32.totalorder %v1578, %v1891
  %vm2323 = vcmp.eq.s32.totalorder %v1579, %v1891
  %vm2324 = vcmp.eq.s32.totalorder %v1577, %v1894
  %vm2325 = vcmp.eq.s32.totalorder %v1578, %v1894
  %vm2326 = vcmp.eq.s32.totalorder %v1579, %v1894
  %vm2327 = vcmp.eq.s32.totalorder %v1577, %v1897
  %vm2328 = vcmp.eq.s32.totalorder %v1578, %v1897
  %vm2329 = vcmp.eq.s32.totalorder %v1579, %v1897
  %vm2330 = vcmp.eq.s32.totalorder %v1577, %v1900
  %vm2331 = vcmp.eq.s32.totalorder %v1578, %v1900
  %vm2332 = vcmp.eq.s32.totalorder %v1579, %v1900
  %vm2333 = vcmp.eq.s32.totalorder %v1577, %v1903
  %vm2334 = vcmp.eq.s32.totalorder %v1578, %v1903
  %vm2335 = vcmp.eq.s32.totalorder %v1579, %v1903
  %vm2336 = vcmp.eq.s32.totalorder %v1577, %v1906
  %vm2337 = vcmp.eq.s32.totalorder %v1578, %v1906
  %vm2338 = vcmp.eq.s32.totalorder %v1579, %v1906
  %vm2339 = vcmp.eq.s32.totalorder %v1577, %v1909
  %vm2340 = vcmp.eq.s32.totalorder %v1578, %v1909
  %vm2341 = vcmp.eq.s32.totalorder %v1579, %v1909
  %vm2342 = vcmp.eq.s32.totalorder %v1577, %v1912
  %vm2343 = vcmp.eq.s32.totalorder %v1578, %v1912
  %vm2344 = vcmp.eq.s32.totalorder %v1579, %v1912
  %vm2345 = vcmp.eq.s32.totalorder %v1577, %v1915
  %vm2346 = vcmp.eq.s32.totalorder %v1578, %v1915
  %vm2347 = vcmp.eq.s32.totalorder %v1579, %v1915
  %vm2348 = vcmp.eq.s32.totalorder %v1577, %v1918
  %vm2349 = vcmp.eq.s32.totalorder %v1578, %v1918
  %vm2350 = vcmp.eq.s32.totalorder %v1579, %v1918
  %vm2351 = vcmp.eq.s32.totalorder %v1577, %v1921
  %vm2352 = vcmp.eq.s32.totalorder %v1578, %v1921
  %vm2353 = vcmp.eq.s32.totalorder %v1579, %v1921
  %vm2354 = vcmp.eq.s32.totalorder %v1577, %v1924
  %vm2355 = vcmp.eq.s32.totalorder %v1578, %v1924
  %vm2356 = vcmp.eq.s32.totalorder %v1579, %v1924
  %vm2357 = vcmp.eq.s32.totalorder %v1577, %v1927
  %vm2358 = vcmp.eq.s32.totalorder %v1578, %v1927
  %vm2359 = vcmp.eq.s32.totalorder %v1579, %v1927
  %vm2360 = vcmp.eq.s32.totalorder %v1577, %v1930
  %vm2361 = vcmp.eq.s32.totalorder %v1578, %v1930
  %vm2362 = vcmp.eq.s32.totalorder %v1579, %v1930
  %vm2363 = vcmp.eq.s32.totalorder %v1577, %v1933
  %vm2364 = vcmp.eq.s32.totalorder %v1578, %v1933
  %vm2365 = vcmp.eq.s32.totalorder %v1579, %v1933
  %vm2366 = vcmp.eq.s32.totalorder %v1577, %v1936
  %vm2367 = vcmp.eq.s32.totalorder %v1578, %v1936
  %vm2368 = vcmp.eq.s32.totalorder %v1579, %v1936
  %vm2369 = vcmp.eq.s32.totalorder %v1577, %v1939
  %vm2370 = vcmp.eq.s32.totalorder %v1578, %v1939
  %vm2371 = vcmp.eq.s32.totalorder %v1579, %v1939
  %vm2372 = vcmp.eq.s32.totalorder %v1577, %v1942
  %vm2373 = vcmp.eq.s32.totalorder %v1578, %v1942
  %vm2374 = vcmp.eq.s32.totalorder %v1579, %v1942
  %vm2375 = vcmp.eq.s32.totalorder %v1577, %v1945
  %vm2376 = vcmp.eq.s32.totalorder %v1578, %v1945
  %vm2377 = vcmp.eq.s32.totalorder %v1579, %v1945
  %vm2378 = vcmp.eq.s32.totalorder %v1577, %v1948
  %vm2379 = vcmp.eq.s32.totalorder %v1578, %v1948
  %vm2380 = vcmp.eq.s32.totalorder %v1579, %v1948
  %vm2381 = vcmp.eq.s32.totalorder %v1577, %v1951
  %vm2382 = vcmp.eq.s32.totalorder %v1578, %v1951
  %vm2383 = vcmp.eq.s32.totalorder %v1579, %v1951
  %vm2384 = vcmp.eq.s32.totalorder %v1577, %v1954
  %vm2385 = vcmp.eq.s32.totalorder %v1578, %v1954
  %vm2386 = vcmp.eq.s32.totalorder %v1579, %v1954
  %vm2387 = vcmp.eq.s32.totalorder %v1577, %v1957
  %vm2388 = vcmp.eq.s32.totalorder %v1578, %v1957
  %vm2389 = vcmp.eq.s32.totalorder %v1579, %v1957
  %vm2390 = vcmp.eq.s32.totalorder %v1577, %v1960
  %vm2391 = vcmp.eq.s32.totalorder %v1578, %v1960
  %vm2392 = vcmp.eq.s32.totalorder %v1579, %v1960
  %vm2393 = vcmp.eq.s32.totalorder %v1577, %v1963
  %vm2394 = vcmp.eq.s32.totalorder %v1578, %v1963
  %vm2395 = vcmp.eq.s32.totalorder %v1579, %v1963
  %vm2396 = vcmp.eq.s32.totalorder %v1577, %v1966
  %vm2397 = vcmp.eq.s32.totalorder %v1578, %v1966
  %vm2398 = vcmp.eq.s32.totalorder %v1579, %v1966
  %vm2399 = vcmp.eq.s32.totalorder %v1577, %v1969
  %vm2400 = vcmp.eq.s32.totalorder %v1578, %v1969
  %vm2401 = vcmp.eq.s32.totalorder %v1579, %v1969
  %vm2402 = vcmp.eq.s32.totalorder %v1577, %v1972
  %vm2403 = vcmp.eq.s32.totalorder %v1578, %v1972
  %vm2404 = vcmp.eq.s32.totalorder %v1579, %v1972
  %vm2405 = vcmp.eq.s32.totalorder %v1577, %v1975
  %vm2406 = vcmp.eq.s32.totalorder %v1578, %v1975
  %vm2407 = vcmp.eq.s32.totalorder %v1579, %v1975
  %vm2408 = vcmp.eq.s32.totalorder %v1577, %v1978
  %vm2409 = vcmp.eq.s32.totalorder %v1578, %v1978
  %vm2410 = vcmp.eq.s32.totalorder %v1579, %v1978
  %vm2411 = vcmp.eq.s32.totalorder %v1577, %v1981
  %vm2412 = vcmp.eq.s32.totalorder %v1578, %v1981
  %vm2413 = vcmp.eq.s32.totalorder %v1579, %v1981
  %vm2414 = vcmp.eq.s32.totalorder %v1577, %v1984
  %vm2415 = vcmp.eq.s32.totalorder %v1578, %v1984
  %vm2416 = vcmp.eq.s32.totalorder %v1579, %v1984
  %vm2417 = vcmp.eq.s32.totalorder %v1577, %v1987
  %vm2418 = vcmp.eq.s32.totalorder %v1578, %v1987
  %vm2419 = vcmp.eq.s32.totalorder %v1579, %v1987
  %vm2420 = vcmp.eq.s32.totalorder %v1577, %v1990
  %vm2421 = vcmp.eq.s32.totalorder %v1578, %v1990
  %vm2422 = vcmp.eq.s32.totalorder %v1579, %v1990
  %vm2423 = vcmp.eq.s32.totalorder %v1577, %v1993
  %vm2424 = vcmp.eq.s32.totalorder %v1578, %v1993
  %vm2425 = vcmp.eq.s32.totalorder %v1579, %v1993
  %vm2426 = vcmp.eq.s32.totalorder %v1577, %v1996
  %vm2427 = vcmp.eq.s32.totalorder %v1578, %v1996
  %vm2428 = vcmp.eq.s32.totalorder %v1579, %v1996
  %vm2429 = vcmp.eq.s32.totalorder %v1577, %v1999
  %vm2430 = vcmp.eq.s32.totalorder %v1578, %v1999
  %vm2431 = vcmp.eq.s32.totalorder %v1579, %v1999
  %vm2432 = vcmp.eq.s32.totalorder %v1577, %v2002
  %vm2433 = vcmp.eq.s32.totalorder %v1578, %v2002
  %vm2434 = vcmp.eq.s32.totalorder %v1579, %v2002
  %vm2435 = vcmp.eq.s32.totalorder %v1577, %v2005
  %vm2436 = vcmp.eq.s32.totalorder %v1578, %v2005
  %vm2437 = vcmp.eq.s32.totalorder %v1579, %v2005
  %vm2438 = vcmp.eq.s32.totalorder %v1577, %v2008
  %vm2439 = vcmp.eq.s32.totalorder %v1578, %v2008
  %vm2440 = vcmp.eq.s32.totalorder %v1579, %v2008
  %vm2441 = vcmp.eq.s32.totalorder %v1577, %v2011
  %vm2442 = vcmp.eq.s32.totalorder %v1578, %v2011
  %vm2443 = vcmp.eq.s32.totalorder %v1579, %v2011
  %vm2444 = vcmp.eq.s32.totalorder %v1577, %v2014
  %vm2445 = vcmp.eq.s32.totalorder %v1578, %v2014
  %vm2446 = vcmp.eq.s32.totalorder %v1579, %v2014
  %vm2447 = vcmp.eq.s32.totalorder %v1577, %v2017
  %vm2448 = vcmp.eq.s32.totalorder %v1578, %v2017
  %vm2449 = vcmp.eq.s32.totalorder %v1579, %v2017
  %vm2450 = vcmp.eq.s32.totalorder %v1577, %v2020
  %vm2451 = vcmp.eq.s32.totalorder %v1578, %v2020
  %vm2452 = vcmp.eq.s32.totalorder %v1579, %v2020
  %vm2453 = vcmp.eq.s32.totalorder %v1577, %v2023
  %vm2454 = vcmp.eq.s32.totalorder %v1578, %v2023
  %vm2455 = vcmp.eq.s32.totalorder %v1579, %v2023
  %vm2456 = vcmp.eq.s32.totalorder %v1577, %v2026
  %vm2457 = vcmp.eq.s32.totalorder %v1578, %v2026
  %vm2458 = vcmp.eq.s32.totalorder %v1579, %v2026
  %vm2459 = vcmp.eq.s32.totalorder %v1577, %v2029
  %vm2460 = vcmp.eq.s32.totalorder %v1578, %v2029
  %vm2461 = vcmp.eq.s32.totalorder %v1579, %v2029
  %vm2462 = vcmp.eq.s32.totalorder %v1577, %v2032
  %vm2463 = vcmp.eq.s32.totalorder %v1578, %v2032
  %vm2464 = vcmp.eq.s32.totalorder %v1579, %v2032
  %vm2465 = vcmp.eq.s32.totalorder %v1577, %v2035
  %vm2466 = vcmp.eq.s32.totalorder %v1578, %v2035
  %vm2467 = vcmp.eq.s32.totalorder %v1579, %v2035
  %vm2468 = vcmp.eq.s32.totalorder %v1577, %v2038
  %vm2469 = vcmp.eq.s32.totalorder %v1578, %v2038
  %vm2470 = vcmp.eq.s32.totalorder %v1579, %v2038
  %vm2471 = vcmp.eq.s32.totalorder %v1577, %v2041
  %vm2472 = vcmp.eq.s32.totalorder %v1578, %v2041
  %vm2473 = vcmp.eq.s32.totalorder %v1579, %v2041
  %vm2474 = vcmp.eq.s32.totalorder %v1577, %v2044
  %vm2475 = vcmp.eq.s32.totalorder %v1578, %v2044
  %vm2476 = vcmp.eq.s32.totalorder %v1579, %v2044
  %vm2477 = vcmp.eq.s32.totalorder %v1577, %v2047
  %vm2478 = vcmp.eq.s32.totalorder %v1578, %v2047
  %vm2479 = vcmp.eq.s32.totalorder %v1579, %v2047
  %vm2480 = vcmp.eq.s32.totalorder %v1577, %v2050
  %vm2481 = vcmp.eq.s32.totalorder %v1578, %v2050
  %vm2482 = vcmp.eq.s32.totalorder %v1579, %v2050
  %vm2483 = vcmp.eq.s32.totalorder %v1577, %v2053
  %vm2484 = vcmp.eq.s32.totalorder %v1578, %v2053
  %vm2485 = vcmp.eq.s32.totalorder %v1579, %v2053
  %vm2486 = vcmp.eq.s32.totalorder %v1577, %v2056
  %vm2487 = vcmp.eq.s32.totalorder %v1578, %v2056
  %vm2488 = vcmp.eq.s32.totalorder %v1579, %v2056
  %vm2489 = vcmp.eq.s32.totalorder %v1577, %v2059
  %vm2490 = vcmp.eq.s32.totalorder %v1578, %v2059
  %vm2491 = vcmp.eq.s32.totalorder %v1579, %v2059
  %vm2492 = vcmp.eq.s32.totalorder %v1577, %v2062
  %vm2493 = vcmp.eq.s32.totalorder %v1578, %v2062
  %vm2494 = vcmp.eq.s32.totalorder %v1579, %v2062
  %vm2495 = vcmp.eq.s32.totalorder %v1577, %v2065
  %vm2496 = vcmp.eq.s32.totalorder %v1578, %v2065
  %vm2497 = vcmp.eq.s32.totalorder %v1579, %v2065
  %vm2498 = vcmp.eq.s32.totalorder %v1577, %v2068
  %vm2499 = vcmp.eq.s32.totalorder %v1578, %v2068
  %vm2500 = vcmp.eq.s32.totalorder %v1579, %v2068
  %vm2501 = vcmp.eq.s32.totalorder %v1577, %v2071
  %vm2502 = vcmp.eq.s32.totalorder %v1578, %v2071
  %vm2503 = vcmp.eq.s32.totalorder %v1579, %v2071
  %vm2504 = vcmp.eq.s32.totalorder %v1577, %v2074
  %vm2505 = vcmp.eq.s32.totalorder %v1578, %v2074
  %vm2506 = vcmp.eq.s32.totalorder %v1579, %v2074
  %vm2507 = vcmp.eq.s32.totalorder %v1577, %v2077
  %vm2508 = vcmp.eq.s32.totalorder %v1578, %v2077
  %vm2509 = vcmp.eq.s32.totalorder %v1579, %v2077
  %vm2510 = vcmp.eq.s32.totalorder %v1577, %v2080
  %vm2511 = vcmp.eq.s32.totalorder %v1578, %v2080
  %vm2512 = vcmp.eq.s32.totalorder %v1579, %v2080
  %vm2513 = vcmp.eq.s32.totalorder %v1577, %v2083
  %vm2514 = vcmp.eq.s32.totalorder %v1578, %v2083
  %vm2515 = vcmp.eq.s32.totalorder %v1579, %v2083
  %vm2516 = vcmp.eq.s32.totalorder %v1577, %v2086
  %vm2517 = vcmp.eq.s32.totalorder %v1578, %v2086
  %vm2518 = vcmp.eq.s32.totalorder %v1579, %v2086
  %vm2519 = vcmp.eq.s32.totalorder %v1577, %v2089
  %vm2520 = vcmp.eq.s32.totalorder %v1578, %v2089
  %vm2521 = vcmp.eq.s32.totalorder %v1579, %v2089
  %vm2522 = vcmp.eq.s32.totalorder %v1577, %v2092
  %vm2523 = vcmp.eq.s32.totalorder %v1578, %v2092
  %vm2524 = vcmp.eq.s32.totalorder %v1579, %v2092
  %vm2525 = vcmp.eq.s32.totalorder %v1577, %v2095
  %vm2526 = vcmp.eq.s32.totalorder %v1578, %v2095
  %vm2527 = vcmp.eq.s32.totalorder %v1579, %v2095
  %vm2528 = vcmp.eq.s32.totalorder %v1577, %v2098
  %vm2529 = vcmp.eq.s32.totalorder %v1578, %v2098
  %vm2530 = vcmp.eq.s32.totalorder %v1579, %v2098
  %vm2531 = vcmp.eq.s32.totalorder %v1577, %v2101
  %vm2532 = vcmp.eq.s32.totalorder %v1578, %v2101
  %vm2533 = vcmp.eq.s32.totalorder %v1579, %v2101
  %vm2534 = vcmp.eq.s32.totalorder %v1577, %v2104
  %vm2535 = vcmp.eq.s32.totalorder %v1578, %v2104
  %vm2536 = vcmp.eq.s32.totalorder %v1579, %v2104
  %vm2537 = vcmp.eq.s32.totalorder %v1577, %v2107
  %vm2538 = vcmp.eq.s32.totalorder %v1578, %v2107
  %vm2539 = vcmp.eq.s32.totalorder %v1579, %v2107
  %vm2540 = vcmp.eq.s32.totalorder %v1577, %v2110
  %vm2541 = vcmp.eq.s32.totalorder %v1578, %v2110
  %vm2542 = vcmp.eq.s32.totalorder %v1579, %v2110
  %vm2543 = vcmp.eq.s32.totalorder %v1577, %v2113
  %vm2544 = vcmp.eq.s32.totalorder %v1578, %v2113
  %vm2545 = vcmp.eq.s32.totalorder %v1579, %v2113
  %vm2546 = vcmp.eq.s32.totalorder %v1577, %v2116
  %vm2547 = vcmp.eq.s32.totalorder %v1578, %v2116
  %vm2548 = vcmp.eq.s32.totalorder %v1579, %v2116
  %vm2549 = vcmp.eq.s32.totalorder %v1577, %v2119
  %vm2550 = vcmp.eq.s32.totalorder %v1578, %v2119
  %vm2551 = vcmp.eq.s32.totalorder %v1579, %v2119
  %vm2552 = vcmp.eq.s32.totalorder %v1577, %v2122
  %vm2553 = vcmp.eq.s32.totalorder %v1578, %v2122
  %vm2554 = vcmp.eq.s32.totalorder %v1579, %v2122
  %vm2555 = vcmp.eq.s32.totalorder %v1577, %v2125
  %vm2556 = vcmp.eq.s32.totalorder %v1578, %v2125
  %vm2557 = vcmp.eq.s32.totalorder %v1579, %v2125
  %vm2558 = vcmp.eq.s32.totalorder %v1577, %v2128
  %vm2559 = vcmp.eq.s32.totalorder %v1578, %v2128
  %vm2560 = vcmp.eq.s32.totalorder %v1579, %v2128
  %vm2561 = vcmp.eq.s32.totalorder %v1577, %v2131
  %vm2562 = vcmp.eq.s32.totalorder %v1578, %v2131
  %vm2563 = vcmp.eq.s32.totalorder %v1579, %v2131
  %vm2564 = vcmp.eq.s32.totalorder %v1577, %v2134
  %vm2565 = vcmp.eq.s32.totalorder %v1578, %v2134
  %vm2566 = vcmp.eq.s32.totalorder %v1579, %v2134
  %vm2567 = vcmp.eq.s32.totalorder %v1577, %v2137
  %vm2568 = vcmp.eq.s32.totalorder %v1578, %v2137
  %vm2569 = vcmp.eq.s32.totalorder %v1579, %v2137
  %vm2570 = vcmp.eq.s32.totalorder %v1577, %v2140
  %vm2571 = vcmp.eq.s32.totalorder %v1578, %v2140
  %vm2572 = vcmp.eq.s32.totalorder %v1579, %v2140
  %vm2573 = vcmp.eq.s32.totalorder %v1577, %v2143
  %vm2574 = vcmp.eq.s32.totalorder %v1578, %v2143
  %vm2575 = vcmp.eq.s32.totalorder %v1579, %v2143
  %vm2576 = vcmp.eq.s32.totalorder %v1577, %v2146
  %vm2577 = vcmp.eq.s32.totalorder %v1578, %v2146
  %vm2578 = vcmp.eq.s32.totalorder %v1579, %v2146
  %vm2579 = vcmp.eq.s32.totalorder %v1577, %v2149
  %vm2580 = vcmp.eq.s32.totalorder %v1578, %v2149
  %vm2581 = vcmp.eq.s32.totalorder %v1579, %v2149
  %vm2582 = vcmp.eq.s32.totalorder %v1577, %v2152
  %vm2583 = vcmp.eq.s32.totalorder %v1578, %v2152
  %vm2584 = vcmp.eq.s32.totalorder %v1579, %v2152
  %vm2585 = vcmp.eq.s32.totalorder %v1577, %v2155
  %vm2586 = vcmp.eq.s32.totalorder %v1578, %v2155
  %vm2587 = vcmp.eq.s32.totalorder %v1579, %v2155
  %v2588 = vsel %vm2156, 1.0, 0.0
  %v2589 = vsel %vm2157, 1.0, 0.0
  %v2590 = vsel %vm2158, 1.0, 0.0
  %v2591 = vsel %vm2159, 1.0, 0.0
  %v2592 = vsel %vm2160, 1.0, 0.0
  %v2593 = vsel %vm2161, 1.0, 0.0
  %v2594 = vsel %vm2162, 1.0, 0.0
  %v2595 = vsel %vm2163, 1.0, 0.0
  %v2596 = vsel %vm2164, 1.0, 0.0
  %v2597 = vsel %vm2165, 1.0, 0.0
  %v2598 = vsel %vm2166, 1.0, 0.0
  %v2599 = vsel %vm2167, 1.0, 0.0
  %v2600 = vsel %vm2168, 1.0, 0.0
  %v2601 = vsel %vm2169, 1.0, 0.0
  %v2602 = vsel %vm2170, 1.0, 0.0
  %v2603 = vsel %vm2171, 1.0, 0.0
  %v2604 = vsel %vm2172, 1.0, 0.0
  %v2605 = vsel %vm2173, 1.0, 0.0
  %v2606 = vsel %vm2174, 1.0, 0.0
  %v2607 = vsel %vm2175, 1.0, 0.0
  %v2608 = vsel %vm2176, 1.0, 0.0
  %v2609 = vsel %vm2177, 1.0, 0.0
  %v2610 = vsel %vm2178, 1.0, 0.0
  %v2611 = vsel %vm2179, 1.0, 0.0
  %v2612 = vsel %vm2180, 1.0, 0.0
  %v2613 = vsel %vm2181, 1.0, 0.0
  %v2614 = vsel %vm2182, 1.0, 0.0
  %v2615 = vsel %vm2183, 1.0, 0.0
  %v2616 = vsel %vm2184, 1.0, 0.0
  %v2617 = vsel %vm2185, 1.0, 0.0
  %v2618 = vsel %vm2186, 1.0, 0.0
  %v2619 = vsel %vm2187, 1.0, 0.0
  %v2620 = vsel %vm2188, 1.0, 0.0
  %v2621 = vsel %vm2189, 1.0, 0.0
  %v2622 = vsel %vm2190, 1.0, 0.0
  %v2623 = vsel %vm2191, 1.0, 0.0
  %v2624 = vsel %vm2192, 1.0, 0.0
  %v2625 = vsel %vm2193, 1.0, 0.0
  %v2626 = vsel %vm2194, 1.0, 0.0
  %v2627 = vsel %vm2195, 1.0, 0.0
  %v2628 = vsel %vm2196, 1.0, 0.0
  %v2629 = vsel %vm2197, 1.0, 0.0
  %v2630 = vsel %vm2198, 1.0, 0.0
  %v2631 = vsel %vm2199, 1.0, 0.0
  %v2632 = vsel %vm2200, 1.0, 0.0
  %v2633 = vsel %vm2201, 1.0, 0.0
  %v2634 = vsel %vm2202, 1.0, 0.0
  %v2635 = vsel %vm2203, 1.0, 0.0
  %v2636 = vsel %vm2204, 1.0, 0.0
  %v2637 = vsel %vm2205, 1.0, 0.0
  %v2638 = vsel %vm2206, 1.0, 0.0
  %v2639 = vsel %vm2207, 1.0, 0.0
  %v2640 = vsel %vm2208, 1.0, 0.0
  %v2641 = vsel %vm2209, 1.0, 0.0
  %v2642 = vsel %vm2210, 1.0, 0.0
  %v2643 = vsel %vm2211, 1.0, 0.0
  %v2644 = vsel %vm2212, 1.0, 0.0
  %v2645 = vsel %vm2213, 1.0, 0.0
  %v2646 = vsel %vm2214, 1.0, 0.0
  %v2647 = vsel %vm2215, 1.0, 0.0
  %v2648 = vsel %vm2216, 1.0, 0.0
  %v2649 = vsel %vm2217, 1.0, 0.0
  %v2650 = vsel %vm2218, 1.0, 0.0
  %v2651 = vsel %vm2219, 1.0, 0.0
  %v2652 = vsel %vm2220, 1.0, 0.0
  %v2653 = vsel %vm2221, 1.0, 0.0
  %v2654 = vsel %vm2222, 1.0, 0.0
  %v2655 = vsel %vm2223, 1.0, 0.0
  %v2656 = vsel %vm2224, 1.0, 0.0
  %v2657 = vsel %vm2225, 1.0, 0.0
  %v2658 = vsel %vm2226, 1.0, 0.0
  %v2659 = vsel %vm2227, 1.0, 0.0
  %v2660 = vsel %vm2228, 1.0, 0.0
  %v2661 = vsel %vm2229, 1.0, 0.0
  %v2662 = vsel %vm2230, 1.0, 0.0
  %v2663 = vsel %vm2231, 1.0, 0.0
  %v2664 = vsel %vm2232, 1.0, 0.0
  %v2665 = vsel %vm2233, 1.0, 0.0
  %v2666 = vsel %vm2234, 1.0, 0.0
  %v2667 = vsel %vm2235, 1.0, 0.0
  %v2668 = vsel %vm2236, 1.0, 0.0
  %v2669 = vsel %vm2237, 1.0, 0.0
  %v2670 = vsel %vm2238, 1.0, 0.0
  %v2671 = vsel %vm2239, 1.0, 0.0
  %v2672 = vsel %vm2240, 1.0, 0.0
  %v2673 = vsel %vm2241, 1.0, 0.0
  %v2674 = vsel %vm2242, 1.0, 0.0
  %v2675 = vsel %vm2243, 1.0, 0.0
  %v2676 = vsel %vm2244, 1.0, 0.0
  %v2677 = vsel %vm2245, 1.0, 0.0
  %v2678 = vsel %vm2246, 1.0, 0.0
  %v2679 = vsel %vm2247, 1.0, 0.0
  %v2680 = vsel %vm2248, 1.0, 0.0
  %v2681 = vsel %vm2249, 1.0, 0.0
  %v2682 = vsel %vm2250, 1.0, 0.0
  %v2683 = vsel %vm2251, 1.0, 0.0
  %v2684 = vsel %vm2252, 1.0, 0.0
  %v2685 = vsel %vm2253, 1.0, 0.0
  %v2686 = vsel %vm2254, 1.0, 0.0
  %v2687 = vsel %vm2255, 1.0, 0.0
  %v2688 = vsel %vm2256, 1.0, 0.0
  %v2689 = vsel %vm2257, 1.0, 0.0
  %v2690 = vsel %vm2258, 1.0, 0.0
  %v2691 = vsel %vm2259, 1.0, 0.0
  %v2692 = vsel %vm2260, 1.0, 0.0
  %v2693 = vsel %vm2261, 1.0, 0.0
  %v2694 = vsel %vm2262, 1.0, 0.0
  %v2695 = vsel %vm2263, 1.0, 0.0
  %v2696 = vsel %vm2264, 1.0, 0.0
  %v2697 = vsel %vm2265, 1.0, 0.0
  %v2698 = vsel %vm2266, 1.0, 0.0
  %v2699 = vsel %vm2267, 1.0, 0.0
  %v2700 = vsel %vm2268, 1.0, 0.0
  %v2701 = vsel %vm2269, 1.0, 0.0
  %v2702 = vsel %vm2270, 1.0, 0.0
  %v2703 = vsel %vm2271, 1.0, 0.0
  %v2704 = vsel %vm2272, 1.0, 0.0
  %v2705 = vsel %vm2273, 1.0, 0.0
  %v2706 = vsel %vm2274, 1.0, 0.0
  %v2707 = vsel %vm2275, 1.0, 0.0
  %v2708 = vsel %vm2276, 1.0, 0.0
  %v2709 = vsel %vm2277, 1.0, 0.0
  %v2710 = vsel %vm2278, 1.0, 0.0
  %v2711 = vsel %vm2279, 1.0, 0.0
  %v2712 = vsel %vm2280, 1.0, 0.0
  %v2713 = vsel %vm2281, 1.0, 0.0
  %v2714 = vsel %vm2282, 1.0, 0.0
  %v2715 = vsel %vm2283, 1.0, 0.0
  %v2716 = vsel %vm2284, 1.0, 0.0
  %v2717 = vsel %vm2285, 1.0, 0.0
  %v2718 = vsel %vm2286, 1.0, 0.0
  %v2719 = vsel %vm2287, 1.0, 0.0
  %v2720 = vsel %vm2288, 1.0, 0.0
  %v2721 = vsel %vm2289, 1.0, 0.0
  %v2722 = vsel %vm2290, 1.0, 0.0
  %v2723 = vsel %vm2291, 1.0, 0.0
  %v2724 = vsel %vm2292, 1.0, 0.0
  %v2725 = vsel %vm2293, 1.0, 0.0
  %v2726 = vsel %vm2294, 1.0, 0.0
  %v2727 = vsel %vm2295, 1.0, 0.0
  %v2728 = vsel %vm2296, 1.0, 0.0
  %v2729 = vsel %vm2297, 1.0, 0.0
  %v2730 = vsel %vm2298, 1.0, 0.0
  %v2731 = vsel %vm2299, 1.0, 0.0
  %v2732 = vsel %vm2300, 1.0, 0.0
  %v2733 = vsel %vm2301, 1.0, 0.0
  %v2734 = vsel %vm2302, 1.0, 0.0
  %v2735 = vsel %vm2303, 1.0, 0.0
  %v2736 = vsel %vm2304, 1.0, 0.0
  %v2737 = vsel %vm2305, 1.0, 0.0
  %v2738 = vsel %vm2306, 1.0, 0.0
  %v2739 = vsel %vm2307, 1.0, 0.0
  %v2740 = vsel %vm2308, 1.0, 0.0
  %v2741 = vsel %vm2309, 1.0, 0.0
  %v2742 = vsel %vm2310, 1.0, 0.0
  %v2743 = vsel %vm2311, 1.0, 0.0
  %v2744 = vsel %vm2312, 1.0, 0.0
  %v2745 = vsel %vm2313, 1.0, 0.0
  %v2746 = vsel %vm2314, 1.0, 0.0
  %v2747 = vsel %vm2315, 1.0, 0.0
  %v2748 = vsel %vm2316, 1.0, 0.0
  %v2749 = vsel %vm2317, 1.0, 0.0
  %v2750 = vsel %vm2318, 1.0, 0.0
  %v2751 = vsel %vm2319, 1.0, 0.0
  %v2752 = vsel %vm2320, 1.0, 0.0
  %v2753 = vsel %vm2321, 1.0, 0.0
  %v2754 = vsel %vm2322, 1.0, 0.0
  %v2755 = vsel %vm2323, 1.0, 0.0
  %v2756 = vsel %vm2324, 1.0, 0.0
  %v2757 = vsel %vm2325, 1.0, 0.0
  %v2758 = vsel %vm2326, 1.0, 0.0
  %v2759 = vsel %vm2327, 1.0, 0.0
  %v2760 = vsel %vm2328, 1.0, 0.0
  %v2761 = vsel %vm2329, 1.0, 0.0
  %v2762 = vsel %vm2330, 1.0, 0.0
  %v2763 = vsel %vm2331, 1.0, 0.0
  %v2764 = vsel %vm2332, 1.0, 0.0
  %v2765 = vsel %vm2333, 1.0, 0.0
  %v2766 = vsel %vm2334, 1.0, 0.0
  %v2767 = vsel %vm2335, 1.0, 0.0
  %v2768 = vsel %vm2336, 1.0, 0.0
  %v2769 = vsel %vm2337, 1.0, 0.0
  %v2770 = vsel %vm2338, 1.0, 0.0
  %v2771 = vsel %vm2339, 1.0, 0.0
  %v2772 = vsel %vm2340, 1.0, 0.0
  %v2773 = vsel %vm2341, 1.0, 0.0
  %v2774 = vsel %vm2342, 1.0, 0.0
  %v2775 = vsel %vm2343, 1.0, 0.0
  %v2776 = vsel %vm2344, 1.0, 0.0
  %v2777 = vsel %vm2345, 1.0, 0.0
  %v2778 = vsel %vm2346, 1.0, 0.0
  %v2779 = vsel %vm2347, 1.0, 0.0
  %v2780 = vsel %vm2348, 1.0, 0.0
  %v2781 = vsel %vm2349, 1.0, 0.0
  %v2782 = vsel %vm2350, 1.0, 0.0
  %v2783 = vsel %vm2351, 1.0, 0.0
  %v2784 = vsel %vm2352, 1.0, 0.0
  %v2785 = vsel %vm2353, 1.0, 0.0
  %v2786 = vsel %vm2354, 1.0, 0.0
  %v2787 = vsel %vm2355, 1.0, 0.0
  %v2788 = vsel %vm2356, 1.0, 0.0
  %v2789 = vsel %vm2357, 1.0, 0.0
  %v2790 = vsel %vm2358, 1.0, 0.0
  %v2791 = vsel %vm2359, 1.0, 0.0
  %v2792 = vsel %vm2360, 1.0, 0.0
  %v2793 = vsel %vm2361, 1.0, 0.0
  %v2794 = vsel %vm2362, 1.0, 0.0
  %v2795 = vsel %vm2363, 1.0, 0.0
  %v2796 = vsel %vm2364, 1.0, 0.0
  %v2797 = vsel %vm2365, 1.0, 0.0
  %v2798 = vsel %vm2366, 1.0, 0.0
  %v2799 = vsel %vm2367, 1.0, 0.0
  %v2800 = vsel %vm2368, 1.0, 0.0
  %v2801 = vsel %vm2369, 1.0, 0.0
  %v2802 = vsel %vm2370, 1.0, 0.0
  %v2803 = vsel %vm2371, 1.0, 0.0
  %v2804 = vsel %vm2372, 1.0, 0.0
  %v2805 = vsel %vm2373, 1.0, 0.0
  %v2806 = vsel %vm2374, 1.0, 0.0
  %v2807 = vsel %vm2375, 1.0, 0.0
  %v2808 = vsel %vm2376, 1.0, 0.0
  %v2809 = vsel %vm2377, 1.0, 0.0
  %v2810 = vsel %vm2378, 1.0, 0.0
  %v2811 = vsel %vm2379, 1.0, 0.0
  %v2812 = vsel %vm2380, 1.0, 0.0
  %v2813 = vsel %vm2381, 1.0, 0.0
  %v2814 = vsel %vm2382, 1.0, 0.0
  %v2815 = vsel %vm2383, 1.0, 0.0
  %v2816 = vsel %vm2384, 1.0, 0.0
  %v2817 = vsel %vm2385, 1.0, 0.0
  %v2818 = vsel %vm2386, 1.0, 0.0
  %v2819 = vsel %vm2387, 1.0, 0.0
  %v2820 = vsel %vm2388, 1.0, 0.0
  %v2821 = vsel %vm2389, 1.0, 0.0
  %v2822 = vsel %vm2390, 1.0, 0.0
  %v2823 = vsel %vm2391, 1.0, 0.0
  %v2824 = vsel %vm2392, 1.0, 0.0
  %v2825 = vsel %vm2393, 1.0, 0.0
  %v2826 = vsel %vm2394, 1.0, 0.0
  %v2827 = vsel %vm2395, 1.0, 0.0
  %v2828 = vsel %vm2396, 1.0, 0.0
  %v2829 = vsel %vm2397, 1.0, 0.0
  %v2830 = vsel %vm2398, 1.0, 0.0
  %v2831 = vsel %vm2399, 1.0, 0.0
  %v2832 = vsel %vm2400, 1.0, 0.0
  %v2833 = vsel %vm2401, 1.0, 0.0
  %v2834 = vsel %vm2402, 1.0, 0.0
  %v2835 = vsel %vm2403, 1.0, 0.0
  %v2836 = vsel %vm2404, 1.0, 0.0
  %v2837 = vsel %vm2405, 1.0, 0.0
  %v2838 = vsel %vm2406, 1.0, 0.0
  %v2839 = vsel %vm2407, 1.0, 0.0
  %v2840 = vsel %vm2408, 1.0, 0.0
  %v2841 = vsel %vm2409, 1.0, 0.0
  %v2842 = vsel %vm2410, 1.0, 0.0
  %v2843 = vsel %vm2411, 1.0, 0.0
  %v2844 = vsel %vm2412, 1.0, 0.0
  %v2845 = vsel %vm2413, 1.0, 0.0
  %v2846 = vsel %vm2414, 1.0, 0.0
  %v2847 = vsel %vm2415, 1.0, 0.0
  %v2848 = vsel %vm2416, 1.0, 0.0
  %v2849 = vsel %vm2417, 1.0, 0.0
  %v2850 = vsel %vm2418, 1.0, 0.0
  %v2851 = vsel %vm2419, 1.0, 0.0
  %v2852 = vsel %vm2420, 1.0, 0.0
  %v2853 = vsel %vm2421, 1.0, 0.0
  %v2854 = vsel %vm2422, 1.0, 0.0
  %v2855 = vsel %vm2423, 1.0, 0.0
  %v2856 = vsel %vm2424, 1.0, 0.0
  %v2857 = vsel %vm2425, 1.0, 0.0
  %v2858 = vsel %vm2426, 1.0, 0.0
  %v2859 = vsel %vm2427, 1.0, 0.0
  %v2860 = vsel %vm2428, 1.0, 0.0
  %v2861 = vsel %vm2429, 1.0, 0.0
  %v2862 = vsel %vm2430, 1.0, 0.0
  %v2863 = vsel %vm2431, 1.0, 0.0
  %v2864 = vsel %vm2432, 1.0, 0.0
  %v2865 = vsel %vm2433, 1.0, 0.0
  %v2866 = vsel %vm2434, 1.0, 0.0
  %v2867 = vsel %vm2435, 1.0, 0.0
  %v2868 = vsel %vm2436, 1.0, 0.0
  %v2869 = vsel %vm2437, 1.0, 0.0
  %v2870 = vsel %vm2438, 1.0, 0.0
  %v2871 = vsel %vm2439, 1.0, 0.0
  %v2872 = vsel %vm2440, 1.0, 0.0
  %v2873 = vsel %vm2441, 1.0, 0.0
  %v2874 = vsel %vm2442, 1.0, 0.0
  %v2875 = vsel %vm2443, 1.0, 0.0
  %v2876 = vsel %vm2444, 1.0, 0.0
  %v2877 = vsel %vm2445, 1.0, 0.0
  %v2878 = vsel %vm2446, 1.0, 0.0
  %v2879 = vsel %vm2447, 1.0, 0.0
  %v2880 = vsel %vm2448, 1.0, 0.0
  %v2881 = vsel %vm2449, 1.0, 0.0
  %v2882 = vsel %vm2450, 1.0, 0.0
  %v2883 = vsel %vm2451, 1.0, 0.0
  %v2884 = vsel %vm2452, 1.0, 0.0
  %v2885 = vsel %vm2453, 1.0, 0.0
  %v2886 = vsel %vm2454, 1.0, 0.0
  %v2887 = vsel %vm2455, 1.0, 0.0
  %v2888 = vsel %vm2456, 1.0, 0.0
  %v2889 = vsel %vm2457, 1.0, 0.0
  %v2890 = vsel %vm2458, 1.0, 0.0
  %v2891 = vsel %vm2459, 1.0, 0.0
  %v2892 = vsel %vm2460, 1.0, 0.0
  %v2893 = vsel %vm2461, 1.0, 0.0
  %v2894 = vsel %vm2462, 1.0, 0.0
  %v2895 = vsel %vm2463, 1.0, 0.0
  %v2896 = vsel %vm2464, 1.0, 0.0
  %v2897 = vsel %vm2465, 1.0, 0.0
  %v2898 = vsel %vm2466, 1.0, 0.0
  %v2899 = vsel %vm2467, 1.0, 0.0
  %v2900 = vsel %vm2468, 1.0, 0.0
  %v2901 = vsel %vm2469, 1.0, 0.0
  %v2902 = vsel %vm2470, 1.0, 0.0
  %v2903 = vsel %vm2471, 1.0, 0.0
  %v2904 = vsel %vm2472, 1.0, 0.0
  %v2905 = vsel %vm2473, 1.0, 0.0
  %v2906 = vsel %vm2474, 1.0, 0.0
  %v2907 = vsel %vm2475, 1.0, 0.0
  %v2908 = vsel %vm2476, 1.0, 0.0
  %v2909 = vsel %vm2477, 1.0, 0.0
  %v2910 = vsel %vm2478, 1.0, 0.0
  %v2911 = vsel %vm2479, 1.0, 0.0
  %v2912 = vsel %vm2480, 1.0, 0.0
  %v2913 = vsel %vm2481, 1.0, 0.0
  %v2914 = vsel %vm2482, 1.0, 0.0
  %v2915 = vsel %vm2483, 1.0, 0.0
  %v2916 = vsel %vm2484, 1.0, 0.0
  %v2917 = vsel %vm2485, 1.0, 0.0
  %v2918 = vsel %vm2486, 1.0, 0.0
  %v2919 = vsel %vm2487, 1.0, 0.0
  %v2920 = vsel %vm2488, 1.0, 0.0
  %v2921 = vsel %vm2489, 1.0, 0.0
  %v2922 = vsel %vm2490, 1.0, 0.0
  %v2923 = vsel %vm2491, 1.0, 0.0
  %v2924 = vsel %vm2492, 1.0, 0.0
  %v2925 = vsel %vm2493, 1.0, 0.0
  %v2926 = vsel %vm2494, 1.0, 0.0
  %v2927 = vsel %vm2495, 1.0, 0.0
  %v2928 = vsel %vm2496, 1.0, 0.0
  %v2929 = vsel %vm2497, 1.0, 0.0
  %v2930 = vsel %vm2498, 1.0, 0.0
  %v2931 = vsel %vm2499, 1.0, 0.0
  %v2932 = vsel %vm2500, 1.0, 0.0
  %v2933 = vsel %vm2501, 1.0, 0.0
  %v2934 = vsel %vm2502, 1.0, 0.0
  %v2935 = vsel %vm2503, 1.0, 0.0
  %v2936 = vsel %vm2504, 1.0, 0.0
  %v2937 = vsel %vm2505, 1.0, 0.0
  %v2938 = vsel %vm2506, 1.0, 0.0
  %v2939 = vsel %vm2507, 1.0, 0.0
  %v2940 = vsel %vm2508, 1.0, 0.0
  %v2941 = vsel %vm2509, 1.0, 0.0
  %v2942 = vsel %vm2510, 1.0, 0.0
  %v2943 = vsel %vm2511, 1.0, 0.0
  %v2944 = vsel %vm2512, 1.0, 0.0
  %v2945 = vsel %vm2513, 1.0, 0.0
  %v2946 = vsel %vm2514, 1.0, 0.0
  %v2947 = vsel %vm2515, 1.0, 0.0
  %v2948 = vsel %vm2516, 1.0, 0.0
  %v2949 = vsel %vm2517, 1.0, 0.0
  %v2950 = vsel %vm2518, 1.0, 0.0
  %v2951 = vsel %vm2519, 1.0, 0.0
  %v2952 = vsel %vm2520, 1.0, 0.0
  %v2953 = vsel %vm2521, 1.0, 0.0
  %v2954 = vsel %vm2522, 1.0, 0.0
  %v2955 = vsel %vm2523, 1.0, 0.0
  %v2956 = vsel %vm2524, 1.0, 0.0
  %v2957 = vsel %vm2525, 1.0, 0.0
  %v2958 = vsel %vm2526, 1.0, 0.0
  %v2959 = vsel %vm2527, 1.0, 0.0
  %v2960 = vsel %vm2528, 1.0, 0.0
  %v2961 = vsel %vm2529, 1.0, 0.0
  %v2962 = vsel %vm2530, 1.0, 0.0
  %v2963 = vsel %vm2531, 1.0, 0.0
  %v2964 = vsel %vm2532, 1.0, 0.0
  %v2965 = vsel %vm2533, 1.0, 0.0
  %v2966 = vsel %vm2534, 1.0, 0.0
  %v2967 = vsel %vm2535, 1.0, 0.0
  %v2968 = vsel %vm2536, 1.0, 0.0
  %v2969 = vsel %vm2537, 1.0, 0.0
  %v2970 = vsel %vm2538, 1.0, 0.0
  %v2971 = vsel %vm2539, 1.0, 0.0
  %v2972 = vsel %vm2540, 1.0, 0.0
  %v2973 = vsel %vm2541, 1.0, 0.0
  %v2974 = vsel %vm2542, 1.0, 0.0
  %v2975 = vsel %vm2543, 1.0, 0.0
  %v2976 = vsel %vm2544, 1.0, 0.0
  %v2977 = vsel %vm2545, 1.0, 0.0
  %v2978 = vsel %vm2546, 1.0, 0.0
  %v2979 = vsel %vm2547, 1.0, 0.0
  %v2980 = vsel %vm2548, 1.0, 0.0
  %v2981 = vsel %vm2549, 1.0, 0.0
  %v2982 = vsel %vm2550, 1.0, 0.0
  %v2983 = vsel %vm2551, 1.0, 0.0
  %v2984 = vsel %vm2552, 1.0, 0.0
  %v2985 = vsel %vm2553, 1.0, 0.0
  %v2986 = vsel %vm2554, 1.0, 0.0
  %v2987 = vsel %vm2555, 1.0, 0.0
  %v2988 = vsel %vm2556, 1.0, 0.0
  %v2989 = vsel %vm2557, 1.0, 0.0
  %v2990 = vsel %vm2558, 1.0, 0.0
  %v2991 = vsel %vm2559, 1.0, 0.0
  %v2992 = vsel %vm2560, 1.0, 0.0
  %v2993 = vsel %vm2561, 1.0, 0.0
  %v2994 = vsel %vm2562, 1.0, 0.0
  %v2995 = vsel %vm2563, 1.0, 0.0
  %v2996 = vsel %vm2564, 1.0, 0.0
  %v2997 = vsel %vm2565, 1.0, 0.0
  %v2998 = vsel %vm2566, 1.0, 0.0
  %v2999 = vsel %vm2567, 1.0, 0.0
  %v3000 = vsel %vm2568, 1.0, 0.0
  %v3001 = vsel %vm2569, 1.0, 0.0
  %v3002 = vsel %vm2570, 1.0, 0.0
  %v3003 = vsel %vm2571, 1.0, 0.0
  %v3004 = vsel %vm2572, 1.0, 0.0
  %v3005 = vsel %vm2573, 1.0, 0.0
  %v3006 = vsel %vm2574, 1.0, 0.0
  %v3007 = vsel %vm2575, 1.0, 0.0
  %v3008 = vsel %vm2576, 1.0, 0.0
  %v3009 = vsel %vm2577, 1.0, 0.0
  %v3010 = vsel %vm2578, 1.0, 0.0
  %v3011 = vsel %vm2579, 1.0, 0.0
  %v3012 = vsel %vm2580, 1.0, 0.0
  %v3013 = vsel %vm2581, 1.0, 0.0
  %v3014 = vsel %vm2582, 1.0, 0.0
  %v3015 = vsel %vm2583, 1.0, 0.0
  %v3016 = vsel %vm2584, 1.0, 0.0
  %v3017 = vsel %vm2585, 1.0, 0.0
  %v3018 = vsel %vm2586, 1.0, 0.0
  %v3019 = vsel %vm2587, 1.0, 0.0
  %v3020 = vpack.c.bf16 %v2591, %v2588
  %v3021 = vpack.c.bf16 %v2592, %v2589
  %v3022 = vpack.c.bf16 %v2593, %v2590
  %v3023 = vpack.c.bf16 %v2597, %v2594
  %v3024 = vpack.c.bf16 %v2598, %v2595
  %v3025 = vpack.c.bf16 %v2599, %v2596
  %v3026 = vpack.c.bf16 %v2603, %v2600
  %v3027 = vpack.c.bf16 %v2604, %v2601
  %v3028 = vpack.c.bf16 %v2605, %v2602
  %v3029 = vpack.c.bf16 %v2609, %v2606
  %v3030 = vpack.c.bf16 %v2610, %v2607
  %v3031 = vpack.c.bf16 %v2611, %v2608
  %v3032 = vpack.c.bf16 %v2615, %v2612
  %v3033 = vpack.c.bf16 %v2616, %v2613
  %v3034 = vpack.c.bf16 %v2617, %v2614
  %v3035 = vpack.c.bf16 %v2621, %v2618
  %v3036 = vpack.c.bf16 %v2622, %v2619
  %v3037 = vpack.c.bf16 %v2623, %v2620
  %v3038 = vpack.c.bf16 %v2627, %v2624
  %v3039 = vpack.c.bf16 %v2628, %v2625
  %v3040 = vpack.c.bf16 %v2629, %v2626
  %v3041 = vpack.c.bf16 %v2633, %v2630
  %v3042 = vpack.c.bf16 %v2634, %v2631
  %v3043 = vpack.c.bf16 %v2635, %v2632
  %v3044 = vpack.c.bf16 %v2639, %v2636
  %v3045 = vpack.c.bf16 %v2640, %v2637
  %v3046 = vpack.c.bf16 %v2641, %v2638
  %v3047 = vpack.c.bf16 %v2645, %v2642
  %v3048 = vpack.c.bf16 %v2646, %v2643
  %v3049 = vpack.c.bf16 %v2647, %v2644
  %v3050 = vpack.c.bf16 %v2651, %v2648
  %v3051 = vpack.c.bf16 %v2652, %v2649
  %v3052 = vpack.c.bf16 %v2653, %v2650
  %v3053 = vpack.c.bf16 %v2657, %v2654
  %v3054 = vpack.c.bf16 %v2658, %v2655
  %v3055 = vpack.c.bf16 %v2659, %v2656
  %v3056 = vpack.c.bf16 %v2663, %v2660
  %v3057 = vpack.c.bf16 %v2664, %v2661
  %v3058 = vpack.c.bf16 %v2665, %v2662
  %v3059 = vpack.c.bf16 %v2669, %v2666
  %v3060 = vpack.c.bf16 %v2670, %v2667
  %v3061 = vpack.c.bf16 %v2671, %v2668
  %v3062 = vpack.c.bf16 %v2675, %v2672
  %v3063 = vpack.c.bf16 %v2676, %v2673
  %v3064 = vpack.c.bf16 %v2677, %v2674
  %v3065 = vpack.c.bf16 %v2681, %v2678
  %v3066 = vpack.c.bf16 %v2682, %v2679
  %v3067 = vpack.c.bf16 %v2683, %v2680
  %v3068 = vpack.c.bf16 %v2687, %v2684
  %v3069 = vpack.c.bf16 %v2688, %v2685
  %v3070 = vpack.c.bf16 %v2689, %v2686
  %v3071 = vpack.c.bf16 %v2693, %v2690
  %v3072 = vpack.c.bf16 %v2694, %v2691
  %v3073 = vpack.c.bf16 %v2695, %v2692
  %v3074 = vpack.c.bf16 %v2699, %v2696
  %v3075 = vpack.c.bf16 %v2700, %v2697
  %v3076 = vpack.c.bf16 %v2701, %v2698
  %v3077 = vpack.c.bf16 %v2705, %v2702
  %v3078 = vpack.c.bf16 %v2706, %v2703
  %v3079 = vpack.c.bf16 %v2707, %v2704
  %v3080 = vpack.c.bf16 %v2711, %v2708
  %v3081 = vpack.c.bf16 %v2712, %v2709
  %v3082 = vpack.c.bf16 %v2713, %v2710
  %v3083 = vpack.c.bf16 %v2717, %v2714
  %v3084 = vpack.c.bf16 %v2718, %v2715
  %v3085 = vpack.c.bf16 %v2719, %v2716
  %v3086 = vpack.c.bf16 %v2723, %v2720
  %v3087 = vpack.c.bf16 %v2724, %v2721
  %v3088 = vpack.c.bf16 %v2725, %v2722
  %v3089 = vpack.c.bf16 %v2729, %v2726
  %v3090 = vpack.c.bf16 %v2730, %v2727
  %v3091 = vpack.c.bf16 %v2731, %v2728
  %v3092 = vpack.c.bf16 %v2735, %v2732
  %v3093 = vpack.c.bf16 %v2736, %v2733
  %v3094 = vpack.c.bf16 %v2737, %v2734
  %v3095 = vpack.c.bf16 %v2741, %v2738
  %v3096 = vpack.c.bf16 %v2742, %v2739
  %v3097 = vpack.c.bf16 %v2743, %v2740
  %v3098 = vpack.c.bf16 %v2747, %v2744
  %v3099 = vpack.c.bf16 %v2748, %v2745
  %v3100 = vpack.c.bf16 %v2749, %v2746
  %v3101 = vpack.c.bf16 %v2753, %v2750
  %v3102 = vpack.c.bf16 %v2754, %v2751
  %v3103 = vpack.c.bf16 %v2755, %v2752
  %v3104 = vpack.c.bf16 %v2759, %v2756
  %v3105 = vpack.c.bf16 %v2760, %v2757
  %v3106 = vpack.c.bf16 %v2761, %v2758
  %v3107 = vpack.c.bf16 %v2765, %v2762
  %v3108 = vpack.c.bf16 %v2766, %v2763
  %v3109 = vpack.c.bf16 %v2767, %v2764
  %v3110 = vpack.c.bf16 %v2771, %v2768
  %v3111 = vpack.c.bf16 %v2772, %v2769
  %v3112 = vpack.c.bf16 %v2773, %v2770
  %v3113 = vpack.c.bf16 %v2777, %v2774
  %v3114 = vpack.c.bf16 %v2778, %v2775
  %v3115 = vpack.c.bf16 %v2779, %v2776
  %v3116 = vpack.c.bf16 %v2783, %v2780
  %v3117 = vpack.c.bf16 %v2784, %v2781
  %v3118 = vpack.c.bf16 %v2785, %v2782
  %v3119 = vpack.c.bf16 %v2789, %v2786
  %v3120 = vpack.c.bf16 %v2790, %v2787
  %v3121 = vpack.c.bf16 %v2791, %v2788
  %v3122 = vpack.c.bf16 %v2795, %v2792
  %v3123 = vpack.c.bf16 %v2796, %v2793
  %v3124 = vpack.c.bf16 %v2797, %v2794
  %v3125 = vpack.c.bf16 %v2801, %v2798
  %v3126 = vpack.c.bf16 %v2802, %v2799
  %v3127 = vpack.c.bf16 %v2803, %v2800
  %v3128 = vpack.c.bf16 %v2807, %v2804
  %v3129 = vpack.c.bf16 %v2808, %v2805
  %v3130 = vpack.c.bf16 %v2809, %v2806
  %v3131 = vpack.c.bf16 %v2813, %v2810
  %v3132 = vpack.c.bf16 %v2814, %v2811
  %v3133 = vpack.c.bf16 %v2815, %v2812
  %v3134 = vpack.c.bf16 %v2819, %v2816
  %v3135 = vpack.c.bf16 %v2820, %v2817
  %v3136 = vpack.c.bf16 %v2821, %v2818
  %v3137 = vpack.c.bf16 %v2825, %v2822
  %v3138 = vpack.c.bf16 %v2826, %v2823
  %v3139 = vpack.c.bf16 %v2827, %v2824
  %v3140 = vpack.c.bf16 %v2831, %v2828
  %v3141 = vpack.c.bf16 %v2832, %v2829
  %v3142 = vpack.c.bf16 %v2833, %v2830
  %v3143 = vpack.c.bf16 %v2837, %v2834
  %v3144 = vpack.c.bf16 %v2838, %v2835
  %v3145 = vpack.c.bf16 %v2839, %v2836
  %v3146 = vpack.c.bf16 %v2843, %v2840
  %v3147 = vpack.c.bf16 %v2844, %v2841
  %v3148 = vpack.c.bf16 %v2845, %v2842
  %v3149 = vpack.c.bf16 %v2849, %v2846
  %v3150 = vpack.c.bf16 %v2850, %v2847
  %v3151 = vpack.c.bf16 %v2851, %v2848
  %v3152 = vpack.c.bf16 %v2855, %v2852
  %v3153 = vpack.c.bf16 %v2856, %v2853
  %v3154 = vpack.c.bf16 %v2857, %v2854
  %v3155 = vpack.c.bf16 %v2861, %v2858
  %v3156 = vpack.c.bf16 %v2862, %v2859
  %v3157 = vpack.c.bf16 %v2863, %v2860
  %v3158 = vpack.c.bf16 %v2867, %v2864
  %v3159 = vpack.c.bf16 %v2868, %v2865
  %v3160 = vpack.c.bf16 %v2869, %v2866
  %v3161 = vpack.c.bf16 %v2873, %v2870
  %v3162 = vpack.c.bf16 %v2874, %v2871
  %v3163 = vpack.c.bf16 %v2875, %v2872
  %v3164 = vpack.c.bf16 %v2879, %v2876
  %v3165 = vpack.c.bf16 %v2880, %v2877
  %v3166 = vpack.c.bf16 %v2881, %v2878
  %v3167 = vpack.c.bf16 %v2885, %v2882
  %v3168 = vpack.c.bf16 %v2886, %v2883
  %v3169 = vpack.c.bf16 %v2887, %v2884
  %v3170 = vpack.c.bf16 %v2891, %v2888
  %v3171 = vpack.c.bf16 %v2892, %v2889
  %v3172 = vpack.c.bf16 %v2893, %v2890
  %v3173 = vpack.c.bf16 %v2897, %v2894
  %v3174 = vpack.c.bf16 %v2898, %v2895
  %v3175 = vpack.c.bf16 %v2899, %v2896
  %v3176 = vpack.c.bf16 %v2903, %v2900
  %v3177 = vpack.c.bf16 %v2904, %v2901
  %v3178 = vpack.c.bf16 %v2905, %v2902
  %v3179 = vpack.c.bf16 %v2909, %v2906
  %v3180 = vpack.c.bf16 %v2910, %v2907
  %v3181 = vpack.c.bf16 %v2911, %v2908
  %v3182 = vpack.c.bf16 %v2915, %v2912
  %v3183 = vpack.c.bf16 %v2916, %v2913
  %v3184 = vpack.c.bf16 %v2917, %v2914
  %v3185 = vpack.c.bf16 %v2921, %v2918
  %v3186 = vpack.c.bf16 %v2922, %v2919
  %v3187 = vpack.c.bf16 %v2923, %v2920
  %v3188 = vpack.c.bf16 %v2927, %v2924
  %v3189 = vpack.c.bf16 %v2928, %v2925
  %v3190 = vpack.c.bf16 %v2929, %v2926
  %v3191 = vpack.c.bf16 %v2933, %v2930
  %v3192 = vpack.c.bf16 %v2934, %v2931
  %v3193 = vpack.c.bf16 %v2935, %v2932
  %v3194 = vpack.c.bf16 %v2939, %v2936
  %v3195 = vpack.c.bf16 %v2940, %v2937
  %v3196 = vpack.c.bf16 %v2941, %v2938
  %v3197 = vpack.c.bf16 %v2945, %v2942
  %v3198 = vpack.c.bf16 %v2946, %v2943
  %v3199 = vpack.c.bf16 %v2947, %v2944
  %v3200 = vpack.c.bf16 %v2951, %v2948
  %v3201 = vpack.c.bf16 %v2952, %v2949
  %v3202 = vpack.c.bf16 %v2953, %v2950
  %v3203 = vpack.c.bf16 %v2957, %v2954
  %v3204 = vpack.c.bf16 %v2958, %v2955
  %v3205 = vpack.c.bf16 %v2959, %v2956
  %v3206 = vpack.c.bf16 %v2963, %v2960
  %v3207 = vpack.c.bf16 %v2964, %v2961
  %v3208 = vpack.c.bf16 %v2965, %v2962
  %v3209 = vpack.c.bf16 %v2969, %v2966
  %v3210 = vpack.c.bf16 %v2970, %v2967
  %v3211 = vpack.c.bf16 %v2971, %v2968
  %v3212 = vpack.c.bf16 %v2975, %v2972
  %v3213 = vpack.c.bf16 %v2976, %v2973
  %v3214 = vpack.c.bf16 %v2977, %v2974
  %v3215 = vpack.c.bf16 %v2981, %v2978
  %v3216 = vpack.c.bf16 %v2982, %v2979
  %v3217 = vpack.c.bf16 %v2983, %v2980
  %v3218 = vpack.c.bf16 %v2987, %v2984
  %v3219 = vpack.c.bf16 %v2988, %v2985
  %v3220 = vpack.c.bf16 %v2989, %v2986
  %v3221 = vpack.c.bf16 %v2993, %v2990
  %v3222 = vpack.c.bf16 %v2994, %v2991
  %v3223 = vpack.c.bf16 %v2995, %v2992
  %v3224 = vpack.c.bf16 %v2999, %v2996
  %v3225 = vpack.c.bf16 %v3000, %v2997
  %v3226 = vpack.c.bf16 %v3001, %v2998
  %v3227 = vpack.c.bf16 %v3005, %v3002
  %v3228 = vpack.c.bf16 %v3006, %v3003
  %v3229 = vpack.c.bf16 %v3007, %v3004
  %v3230 = vpack.c.bf16 %v3011, %v3008
  %v3231 = vpack.c.bf16 %v3012, %v3009
  %v3232 = vpack.c.bf16 %v3013, %v3010
  %v3233 = vpack.c.bf16 %v3017, %v3014
  %v3234 = vpack.c.bf16 %v3018, %v3015
  %v3235 = vpack.c.bf16 %v3019, %v3016
  %v3237 = vsel %vm1009, %v3022, 0
  %v3240 = vsel %vm1009, %v3025, 0
  %v3243 = vsel %vm1009, %v3028, 0
  %v3246 = vsel %vm1009, %v3031, 0
  %v3249 = vsel %vm1009, %v3034, 0
  %v3252 = vsel %vm1009, %v3037, 0
  %v3255 = vsel %vm1009, %v3040, 0
  %v3258 = vsel %vm1009, %v3043, 0
  %v3261 = vsel %vm1009, %v3046, 0
  %v3264 = vsel %vm1009, %v3049, 0
  %v3267 = vsel %vm1009, %v3052, 0
  %v3270 = vsel %vm1009, %v3055, 0
  %v3273 = vsel %vm1009, %v3058, 0
  %v3276 = vsel %vm1009, %v3061, 0
  %v3279 = vsel %vm1009, %v3064, 0
  %v3282 = vsel %vm1009, %v3067, 0
  %v3285 = vsel %vm1009, %v3070, 0
  %v3288 = vsel %vm1009, %v3073, 0
  %v3291 = vsel %vm1009, %v3076, 0
  %v3294 = vsel %vm1009, %v3079, 0
  %v3297 = vsel %vm1009, %v3082, 0
  %v3300 = vsel %vm1009, %v3085, 0
  %v3303 = vsel %vm1009, %v3088, 0
  %v3306 = vsel %vm1009, %v3091, 0
  %v3309 = vsel %vm1009, %v3094, 0
  %v3312 = vsel %vm1009, %v3097, 0
  %v3315 = vsel %vm1009, %v3100, 0
  %v3318 = vsel %vm1009, %v3103, 0
  %v3321 = vsel %vm1009, %v3106, 0
  %v3324 = vsel %vm1009, %v3109, 0
  %v3327 = vsel %vm1009, %v3112, 0
  %v3330 = vsel %vm1009, %v3115, 0
  %v3333 = vsel %vm1009, %v3118, 0
  %v3336 = vsel %vm1009, %v3121, 0
  %v3339 = vsel %vm1009, %v3124, 0
  %v3342 = vsel %vm1009, %v3127, 0
  %v3345 = vsel %vm1009, %v3130, 0
  %v3348 = vsel %vm1009, %v3133, 0
  %v3351 = vsel %vm1009, %v3136, 0
  %v3354 = vsel %vm1009, %v3139, 0
  %v3357 = vsel %vm1009, %v3142, 0
  %v3360 = vsel %vm1009, %v3145, 0
  %v3363 = vsel %vm1009, %v3148, 0
  %v3366 = vsel %vm1009, %v3151, 0
  %v3369 = vsel %vm1009, %v3154, 0
  %v3372 = vsel %vm1009, %v3157, 0
  %v3375 = vsel %vm1009, %v3160, 0
  %v3378 = vsel %vm1009, %v3163, 0
  %v3381 = vsel %vm1009, %v3166, 0
  %v3384 = vsel %vm1009, %v3169, 0
  %v3387 = vsel %vm1009, %v3172, 0
  %v3390 = vsel %vm1009, %v3175, 0
  %v3393 = vsel %vm1009, %v3178, 0
  %v3396 = vsel %vm1009, %v3181, 0
  %v3399 = vsel %vm1009, %v3184, 0
  %v3402 = vsel %vm1009, %v3187, 0
  %v3405 = vsel %vm1009, %v3190, 0
  %v3408 = vsel %vm1009, %v3193, 0
  %v3411 = vsel %vm1009, %v3196, 0
  %v3414 = vsel %vm1009, %v3199, 0
  %v3417 = vsel %vm1009, %v3202, 0
  %v3420 = vsel %vm1009, %v3205, 0
  %v3423 = vsel %vm1009, %v3208, 0
  %v3426 = vsel %vm1009, %v3211, 0
  %v3429 = vsel %vm1009, %v3214, 0
  %v3432 = vsel %vm1009, %v3217, 0
  %v3435 = vsel %vm1009, %v3220, 0
  %v3438 = vsel %vm1009, %v3223, 0
  %v3441 = vsel %vm1009, %v3226, 0
  %v3444 = vsel %vm1009, %v3229, 0
  %v3447 = vsel %vm1009, %v3232, 0
  %v3450 = vsel %vm1009, %v3235, 0
  %3452 = vmatpush.bf16.msra.mxu0 %v1565
  %3453 = vmatpush.bf16.msra.mxu0 %v1564
  %3454 = vmatpush.bf16.msra.mxu0 %v1563
  %3455 = vmatpush.bf16.msra.mxu0 %v1562
  %3456 = vmatpush.bf16.msra.mxu0 %v1561
  %3457 = vmatpush.bf16.msra.mxu0 %v1560
  %3458 = vmatpush.bf16.msra.mxu0 %v1559
  %3459 = vmatpush.bf16.msra.mxu0 %v1558
  %3460 = vmatmul.bf16.gmra.mxu0 %v3020
  %v3461 = vpop.f32.mrf.mxu0
  %v3462 = vadd.f32 0.0, %v3461
  %v3463 = vpop.f32.mrf.mxu0
  %v3464 = vadd.f32 0.0, %v3463
  %3465 = vmatmul.bf16.gmra.mxu0 %v3023
  %v3466 = vpop.f32.mrf.mxu0
  %v3467 = vadd.f32 0.0, %v3466
  %v3468 = vpop.f32.mrf.mxu0
  %v3469 = vadd.f32 0.0, %v3468
  %3470 = vmatmul.bf16.gmra.mxu0 %v3026
  %v3471 = vpop.f32.mrf.mxu0
  %v3472 = vadd.f32 0.0, %v3471
  %v3473 = vpop.f32.mrf.mxu0
  %v3474 = vadd.f32 0.0, %v3473
  %3475 = vmatmul.bf16.gmra.mxu0 %v3029
  %v3476 = vpop.f32.mrf.mxu0
  %v3477 = vadd.f32 0.0, %v3476
  %v3478 = vpop.f32.mrf.mxu0
  %v3479 = vadd.f32 0.0, %v3478
  %3480 = vmatmul.bf16.gmra.mxu0 %v3032
  %v3481 = vpop.f32.mrf.mxu0
  %v3482 = vadd.f32 0.0, %v3481
  %v3483 = vpop.f32.mrf.mxu0
  %v3484 = vadd.f32 0.0, %v3483
  %3485 = vmatmul.bf16.gmra.mxu0 %v3035
  %v3486 = vpop.f32.mrf.mxu0
  %v3487 = vadd.f32 0.0, %v3486
  %v3488 = vpop.f32.mrf.mxu0
  %v3489 = vadd.f32 0.0, %v3488
  %3490 = vmatmul.bf16.gmra.mxu0 %v3038
  %v3491 = vpop.f32.mrf.mxu0
  %v3492 = vadd.f32 0.0, %v3491
  %v3493 = vpop.f32.mrf.mxu0
  %v3494 = vadd.f32 0.0, %v3493
  %3495 = vmatmul.bf16.gmra.mxu0 %v3041
  %v3496 = vpop.f32.mrf.mxu0
  %v3497 = vadd.f32 0.0, %v3496
  %v3498 = vpop.f32.mrf.mxu0
  %v3499 = vadd.f32 0.0, %v3498
  %3500 = vmatmul.bf16.gmra.mxu0 %v3044
  %v3501 = vpop.f32.mrf.mxu0
  %v3502 = vadd.f32 0.0, %v3501
  %v3503 = vpop.f32.mrf.mxu0
  %v3504 = vadd.f32 0.0, %v3503
  %3505 = vmatmul.bf16.gmra.mxu0 %v3047
  %v3506 = vpop.f32.mrf.mxu0
  %v3507 = vadd.f32 0.0, %v3506
  %v3508 = vpop.f32.mrf.mxu0
  %v3509 = vadd.f32 0.0, %v3508
  %3510 = vmatmul.bf16.gmra.mxu0 %v3050
  %v3511 = vpop.f32.mrf.mxu0
  %v3512 = vadd.f32 0.0, %v3511
  %v3513 = vpop.f32.mrf.mxu0
  %v3514 = vadd.f32 0.0, %v3513
  %3515 = vmatmul.bf16.gmra.mxu0 %v3053
  %v3516 = vpop.f32.mrf.mxu0
  %v3517 = vadd.f32 0.0, %v3516
  %v3518 = vpop.f32.mrf.mxu0
  %v3519 = vadd.f32 0.0, %v3518
  %3520 = vmatmul.bf16.gmra.mxu0 %v3056
  %v3521 = vpop.f32.mrf.mxu0
  %v3522 = vadd.f32 0.0, %v3521
  %v3523 = vpop.f32.mrf.mxu0
  %v3524 = vadd.f32 0.0, %v3523
  %3525 = vmatmul.bf16.gmra.mxu0 %v3059
  %v3526 = vpop.f32.mrf.mxu0
  %v3527 = vadd.f32 0.0, %v3526
  %v3528 = vpop.f32.mrf.mxu0
  %v3529 = vadd.f32 0.0, %v3528
  %3530 = vmatmul.bf16.gmra.mxu0 %v3062
  %v3531 = vpop.f32.mrf.mxu0
  %v3532 = vadd.f32 0.0, %v3531
  %v3533 = vpop.f32.mrf.mxu0
  %v3534 = vadd.f32 0.0, %v3533
  %3535 = vmatmul.bf16.gmra.mxu0 %v3065
  %v3536 = vpop.f32.mrf.mxu0
  %v3537 = vadd.f32 0.0, %v3536
  %v3538 = vpop.f32.mrf.mxu0
  %v3539 = vadd.f32 0.0, %v3538
  %3540 = vmatmul.bf16.gmra.mxu0 %v3068
  %v3541 = vpop.f32.mrf.mxu0
  %v3542 = vadd.f32 0.0, %v3541
  %v3543 = vpop.f32.mrf.mxu0
  %v3544 = vadd.f32 0.0, %v3543
  %3545 = vmatmul.bf16.gmra.mxu0 %v3071
  %v3546 = vpop.f32.mrf.mxu0
  %v3547 = vadd.f32 0.0, %v3546
  %v3548 = vpop.f32.mrf.mxu0
  %v3549 = vadd.f32 0.0, %v3548
  %3550 = vmatmul.bf16.gmra.mxu0 %v3074
  %v3551 = vpop.f32.mrf.mxu0
  %v3552 = vadd.f32 0.0, %v3551
  %v3553 = vpop.f32.mrf.mxu0
  %v3554 = vadd.f32 0.0, %v3553
  %3555 = vmatmul.bf16.gmra.mxu0 %v3077
  %v3556 = vpop.f32.mrf.mxu0
  %v3557 = vadd.f32 0.0, %v3556
  %v3558 = vpop.f32.mrf.mxu0
  %v3559 = vadd.f32 0.0, %v3558
  %3560 = vmatmul.bf16.gmra.mxu0 %v3080
  %v3561 = vpop.f32.mrf.mxu0
  %v3562 = vadd.f32 0.0, %v3561
  %v3563 = vpop.f32.mrf.mxu0
  %v3564 = vadd.f32 0.0, %v3563
  %3565 = vmatmul.bf16.gmra.mxu0 %v3083
  %v3566 = vpop.f32.mrf.mxu0
  %v3567 = vadd.f32 0.0, %v3566
  %v3568 = vpop.f32.mrf.mxu0
  %v3569 = vadd.f32 0.0, %v3568
  %3570 = vmatmul.bf16.gmra.mxu0 %v3086
  %v3571 = vpop.f32.mrf.mxu0
  %v3572 = vadd.f32 0.0, %v3571
  %v3573 = vpop.f32.mrf.mxu0
  %v3574 = vadd.f32 0.0, %v3573
  %3575 = vmatmul.bf16.gmra.mxu0 %v3089
  %v3576 = vpop.f32.mrf.mxu0
  %v3577 = vadd.f32 0.0, %v3576
  %v3578 = vpop.f32.mrf.mxu0
  %v3579 = vadd.f32 0.0, %v3578
  %3580 = vmatmul.bf16.gmra.mxu0 %v3092
  %v3581 = vpop.f32.mrf.mxu0
  %v3582 = vadd.f32 0.0, %v3581
  %v3583 = vpop.f32.mrf.mxu0
  %v3584 = vadd.f32 0.0, %v3583
  %3585 = vmatmul.bf16.gmra.mxu0 %v3095
  %v3586 = vpop.f32.mrf.mxu0
  %v3587 = vadd.f32 0.0, %v3586
  %v3588 = vpop.f32.mrf.mxu0
  %v3589 = vadd.f32 0.0, %v3588
  %3590 = vmatmul.bf16.gmra.mxu0 %v3098
  %v3591 = vpop.f32.mrf.mxu0
  %v3592 = vadd.f32 0.0, %v3591
  %v3593 = vpop.f32.mrf.mxu0
  %v3594 = vadd.f32 0.0, %v3593
  %3595 = vmatmul.bf16.gmra.mxu0 %v3101
  %v3596 = vpop.f32.mrf.mxu0
  %v3597 = vadd.f32 0.0, %v3596
  %v3598 = vpop.f32.mrf.mxu0
  %v3599 = vadd.f32 0.0, %v3598
  %3600 = vmatmul.bf16.gmra.mxu0 %v3104
  %v3601 = vpop.f32.mrf.mxu0
  %v3602 = vadd.f32 0.0, %v3601
  %v3603 = vpop.f32.mrf.mxu0
  %v3604 = vadd.f32 0.0, %v3603
  %3605 = vmatmul.bf16.gmra.mxu0 %v3107
  %v3606 = vpop.f32.mrf.mxu0
  %v3607 = vadd.f32 0.0, %v3606
  %v3608 = vpop.f32.mrf.mxu0
  %v3609 = vadd.f32 0.0, %v3608
  %3610 = vmatmul.bf16.gmra.mxu0 %v3110
  %v3611 = vpop.f32.mrf.mxu0
  %v3612 = vadd.f32 0.0, %v3611
  %v3613 = vpop.f32.mrf.mxu0
  %v3614 = vadd.f32 0.0, %v3613
  %3615 = vmatmul.bf16.gmra.mxu0 %v3113
  %v3616 = vpop.f32.mrf.mxu0
  %v3617 = vadd.f32 0.0, %v3616
  %v3618 = vpop.f32.mrf.mxu0
  %v3619 = vadd.f32 0.0, %v3618
  %3620 = vmatmul.bf16.gmra.mxu0 %v3116
  %v3621 = vpop.f32.mrf.mxu0
  %v3622 = vadd.f32 0.0, %v3621
  %v3623 = vpop.f32.mrf.mxu0
  %v3624 = vadd.f32 0.0, %v3623
  %3625 = vmatmul.bf16.gmra.mxu0 %v3119
  %v3626 = vpop.f32.mrf.mxu0
  %v3627 = vadd.f32 0.0, %v3626
  %v3628 = vpop.f32.mrf.mxu0
  %v3629 = vadd.f32 0.0, %v3628
  %3630 = vmatmul.bf16.gmra.mxu0 %v3122
  %v3631 = vpop.f32.mrf.mxu0
  %v3632 = vadd.f32 0.0, %v3631
  %v3633 = vpop.f32.mrf.mxu0
  %v3634 = vadd.f32 0.0, %v3633
  %3635 = vmatmul.bf16.gmra.mxu0 %v3125
  %v3636 = vpop.f32.mrf.mxu0
  %v3637 = vadd.f32 0.0, %v3636
  %v3638 = vpop.f32.mrf.mxu0
  %v3639 = vadd.f32 0.0, %v3638
  %3640 = vmatmul.bf16.gmra.mxu0 %v3128
  %v3641 = vpop.f32.mrf.mxu0
  %v3642 = vadd.f32 0.0, %v3641
  %v3643 = vpop.f32.mrf.mxu0
  %v3644 = vadd.f32 0.0, %v3643
  %3645 = vmatmul.bf16.gmra.mxu0 %v3131
  %v3646 = vpop.f32.mrf.mxu0
  %v3647 = vadd.f32 0.0, %v3646
  %v3648 = vpop.f32.mrf.mxu0
  %v3649 = vadd.f32 0.0, %v3648
  %3650 = vmatmul.bf16.gmra.mxu0 %v3134
  %v3651 = vpop.f32.mrf.mxu0
  %v3652 = vadd.f32 0.0, %v3651
  %v3653 = vpop.f32.mrf.mxu0
  %v3654 = vadd.f32 0.0, %v3653
  %3655 = vmatmul.bf16.gmra.mxu0 %v3137
  %v3656 = vpop.f32.mrf.mxu0
  %v3657 = vadd.f32 0.0, %v3656
  %v3658 = vpop.f32.mrf.mxu0
  %v3659 = vadd.f32 0.0, %v3658
  %3660 = vmatmul.bf16.gmra.mxu0 %v3140
  %v3661 = vpop.f32.mrf.mxu0
  %v3662 = vadd.f32 0.0, %v3661
  %v3663 = vpop.f32.mrf.mxu0
  %v3664 = vadd.f32 0.0, %v3663
  %3665 = vmatmul.bf16.gmra.mxu0 %v3143
  %v3666 = vpop.f32.mrf.mxu0
  %v3667 = vadd.f32 0.0, %v3666
  %v3668 = vpop.f32.mrf.mxu0
  %v3669 = vadd.f32 0.0, %v3668
  %3670 = vmatmul.bf16.gmra.mxu0 %v3146
  %v3671 = vpop.f32.mrf.mxu0
  %v3672 = vadd.f32 0.0, %v3671
  %v3673 = vpop.f32.mrf.mxu0
  %v3674 = vadd.f32 0.0, %v3673
  %3675 = vmatmul.bf16.gmra.mxu0 %v3149
  %v3676 = vpop.f32.mrf.mxu0
  %v3677 = vadd.f32 0.0, %v3676
  %v3678 = vpop.f32.mrf.mxu0
  %v3679 = vadd.f32 0.0, %v3678
  %3680 = vmatmul.bf16.gmra.mxu0 %v3152
  %v3681 = vpop.f32.mrf.mxu0
  %v3682 = vadd.f32 0.0, %v3681
  %v3683 = vpop.f32.mrf.mxu0
  %v3684 = vadd.f32 0.0, %v3683
  %3685 = vmatmul.bf16.gmra.mxu0 %v3155
  %v3686 = vpop.f32.mrf.mxu0
  %v3687 = vadd.f32 0.0, %v3686
  %v3688 = vpop.f32.mrf.mxu0
  %v3689 = vadd.f32 0.0, %v3688
  %3690 = vmatmul.bf16.gmra.mxu0 %v3158
  %v3691 = vpop.f32.mrf.mxu0
  %v3692 = vadd.f32 0.0, %v3691
  %v3693 = vpop.f32.mrf.mxu0
  %v3694 = vadd.f32 0.0, %v3693
  %3695 = vmatmul.bf16.gmra.mxu0 %v3161
  %v3696 = vpop.f32.mrf.mxu0
  %v3697 = vadd.f32 0.0, %v3696
  %v3698 = vpop.f32.mrf.mxu0
  %v3699 = vadd.f32 0.0, %v3698
  %3700 = vmatmul.bf16.gmra.mxu0 %v3164
  %v3701 = vpop.f32.mrf.mxu0
  %v3702 = vadd.f32 0.0, %v3701
  %v3703 = vpop.f32.mrf.mxu0
  %v3704 = vadd.f32 0.0, %v3703
  %3705 = vmatmul.bf16.gmra.mxu0 %v3167
  %v3706 = vpop.f32.mrf.mxu0
  %v3707 = vadd.f32 0.0, %v3706
  %v3708 = vpop.f32.mrf.mxu0
  %v3709 = vadd.f32 0.0, %v3708
  %3710 = vmatmul.bf16.gmra.mxu0 %v3170
  %v3711 = vpop.f32.mrf.mxu0
  %v3712 = vadd.f32 0.0, %v3711
  %v3713 = vpop.f32.mrf.mxu0
  %v3714 = vadd.f32 0.0, %v3713
  %3715 = vmatmul.bf16.gmra.mxu0 %v3173
  %v3716 = vpop.f32.mrf.mxu0
  %v3717 = vadd.f32 0.0, %v3716
  %v3718 = vpop.f32.mrf.mxu0
  %v3719 = vadd.f32 0.0, %v3718
  %3720 = vmatmul.bf16.gmra.mxu0 %v3176
  %v3721 = vpop.f32.mrf.mxu0
  %v3722 = vadd.f32 0.0, %v3721
  %v3723 = vpop.f32.mrf.mxu0
  %v3724 = vadd.f32 0.0, %v3723
  %3725 = vmatmul.bf16.gmra.mxu0 %v3179
  %v3726 = vpop.f32.mrf.mxu0
  %v3727 = vadd.f32 0.0, %v3726
  %v3728 = vpop.f32.mrf.mxu0
  %v3729 = vadd.f32 0.0, %v3728
  %3730 = vmatmul.bf16.gmra.mxu0 %v3182
  %v3731 = vpop.f32.mrf.mxu0
  %v3732 = vadd.f32 0.0, %v3731
  %v3733 = vpop.f32.mrf.mxu0
  %v3734 = vadd.f32 0.0, %v3733
  %3735 = vmatmul.bf16.gmra.mxu0 %v3185
  %v3736 = vpop.f32.mrf.mxu0
  %v3737 = vadd.f32 0.0, %v3736
  %v3738 = vpop.f32.mrf.mxu0
  %v3739 = vadd.f32 0.0, %v3738
  %3740 = vmatmul.bf16.gmra.mxu0 %v3188
  %v3741 = vpop.f32.mrf.mxu0
  %v3742 = vadd.f32 0.0, %v3741
  %v3743 = vpop.f32.mrf.mxu0
  %v3744 = vadd.f32 0.0, %v3743
  %3745 = vmatmul.bf16.gmra.mxu0 %v3191
  %v3746 = vpop.f32.mrf.mxu0
  %v3747 = vadd.f32 0.0, %v3746
  %v3748 = vpop.f32.mrf.mxu0
  %v3749 = vadd.f32 0.0, %v3748
  %3750 = vmatmul.bf16.gmra.mxu0 %v3194
  %v3751 = vpop.f32.mrf.mxu0
  %v3752 = vadd.f32 0.0, %v3751
  %v3753 = vpop.f32.mrf.mxu0
  %v3754 = vadd.f32 0.0, %v3753
  %3755 = vmatmul.bf16.gmra.mxu0 %v3197
  %v3756 = vpop.f32.mrf.mxu0
  %v3757 = vadd.f32 0.0, %v3756
  %v3758 = vpop.f32.mrf.mxu0
  %v3759 = vadd.f32 0.0, %v3758
  %3760 = vmatmul.bf16.gmra.mxu0 %v3200
  %v3761 = vpop.f32.mrf.mxu0
  %v3762 = vadd.f32 0.0, %v3761
  %v3763 = vpop.f32.mrf.mxu0
  %v3764 = vadd.f32 0.0, %v3763
  %3765 = vmatmul.bf16.gmra.mxu0 %v3203
  %v3766 = vpop.f32.mrf.mxu0
  %v3767 = vadd.f32 0.0, %v3766
  %v3768 = vpop.f32.mrf.mxu0
  %v3769 = vadd.f32 0.0, %v3768
  %3770 = vmatmul.bf16.gmra.mxu0 %v3206
  %v3771 = vpop.f32.mrf.mxu0
  %v3772 = vadd.f32 0.0, %v3771
  %v3773 = vpop.f32.mrf.mxu0
  %v3774 = vadd.f32 0.0, %v3773
  %3775 = vmatmul.bf16.gmra.mxu0 %v3209
  %v3776 = vpop.f32.mrf.mxu0
  %v3777 = vadd.f32 0.0, %v3776
  %v3778 = vpop.f32.mrf.mxu0
  %v3779 = vadd.f32 0.0, %v3778
  %3780 = vmatmul.bf16.gmra.mxu0 %v3212
  %v3781 = vpop.f32.mrf.mxu0
  %v3782 = vadd.f32 0.0, %v3781
  %v3783 = vpop.f32.mrf.mxu0
  %v3784 = vadd.f32 0.0, %v3783
  %3785 = vmatmul.bf16.gmra.mxu0 %v3215
  %v3786 = vpop.f32.mrf.mxu0
  %v3787 = vadd.f32 0.0, %v3786
  %v3788 = vpop.f32.mrf.mxu0
  %v3789 = vadd.f32 0.0, %v3788
  %3790 = vmatmul.bf16.gmra.mxu0 %v3218
  %v3791 = vpop.f32.mrf.mxu0
  %v3792 = vadd.f32 0.0, %v3791
  %v3793 = vpop.f32.mrf.mxu0
  %v3794 = vadd.f32 0.0, %v3793
  %3795 = vmatmul.bf16.gmra.mxu0 %v3221
  %v3796 = vpop.f32.mrf.mxu0
  %v3797 = vadd.f32 0.0, %v3796
  %v3798 = vpop.f32.mrf.mxu0
  %v3799 = vadd.f32 0.0, %v3798
  %3800 = vmatmul.bf16.gmra.mxu0 %v3224
  %v3801 = vpop.f32.mrf.mxu0
  %v3802 = vadd.f32 0.0, %v3801
  %v3803 = vpop.f32.mrf.mxu0
  %v3804 = vadd.f32 0.0, %v3803
  %3805 = vmatmul.bf16.gmra.mxu0 %v3227
  %v3806 = vpop.f32.mrf.mxu0
  %v3807 = vadd.f32 0.0, %v3806
  %v3808 = vpop.f32.mrf.mxu0
  %v3809 = vadd.f32 0.0, %v3808
  %3810 = vmatmul.bf16.gmra.mxu0 %v3230
  %v3811 = vpop.f32.mrf.mxu0
  %v3812 = vadd.f32 0.0, %v3811
  %v3813 = vpop.f32.mrf.mxu0
  %v3814 = vadd.f32 0.0, %v3813
  %3815 = vmatmul.bf16.gmra.mxu0 %v3233
  %v3816 = vpop.f32.mrf.mxu0
  %v3817 = vadd.f32 0.0, %v3816
  %v3818 = vpop.f32.mrf.mxu0
  %v3819 = vadd.f32 0.0, %v3818
  %3820 = vdwg.mxu0
  %3821 = vmatpush.bf16.msra.mxu0 %v1573
  %3822 = vmatpush.bf16.msra.mxu0 %v1572
  %3823 = vmatpush.bf16.msra.mxu0 %v1571
  %3824 = vmatpush.bf16.msra.mxu0 %v1570
  %3825 = vmatpush.bf16.msra.mxu0 %v1569
  %3826 = vmatpush.bf16.msra.mxu0 %v1568
  %3827 = vmatpush.bf16.msra.mxu0 %v1567
  %3828 = vmatpush.bf16.msra.mxu0 %v1566
  %3829 = vmatmul.bf16.gmra.mxu0 %v3021
  %v3830 = vpop.f32.mrf.mxu0
  %v3831 = vadd.f32 %v3462, %v3830
  %v3832 = vpop.f32.mrf.mxu0
  %v3833 = vadd.f32 %v3464, %v3832
  %3834 = vmatmul.bf16.gmra.mxu0 %v3024
  %v3835 = vpop.f32.mrf.mxu0
  %v3836 = vadd.f32 %v3467, %v3835
  %v3837 = vpop.f32.mrf.mxu0
  %v3838 = vadd.f32 %v3469, %v3837
  %3839 = vmatmul.bf16.gmra.mxu0 %v3027
  %v3840 = vpop.f32.mrf.mxu0
  %v3841 = vadd.f32 %v3472, %v3840
  %v3842 = vpop.f32.mrf.mxu0
  %v3843 = vadd.f32 %v3474, %v3842
  %3844 = vmatmul.bf16.gmra.mxu0 %v3030
  %v3845 = vpop.f32.mrf.mxu0
  %v3846 = vadd.f32 %v3477, %v3845
  %v3847 = vpop.f32.mrf.mxu0
  %v3848 = vadd.f32 %v3479, %v3847
  %3849 = vmatmul.bf16.gmra.mxu0 %v3033
  %v3850 = vpop.f32.mrf.mxu0
  %v3851 = vadd.f32 %v3482, %v3850
  %v3852 = vpop.f32.mrf.mxu0
  %v3853 = vadd.f32 %v3484, %v3852
  %3854 = vmatmul.bf16.gmra.mxu0 %v3036
  %v3855 = vpop.f32.mrf.mxu0
  %v3856 = vadd.f32 %v3487, %v3855
  %v3857 = vpop.f32.mrf.mxu0
  %v3858 = vadd.f32 %v3489, %v3857
  %3859 = vmatmul.bf16.gmra.mxu0 %v3039
  %v3860 = vpop.f32.mrf.mxu0
  %v3861 = vadd.f32 %v3492, %v3860
  %v3862 = vpop.f32.mrf.mxu0
  %v3863 = vadd.f32 %v3494, %v3862
  %3864 = vmatmul.bf16.gmra.mxu0 %v3042
  %v3865 = vpop.f32.mrf.mxu0
  %v3866 = vadd.f32 %v3497, %v3865
  %v3867 = vpop.f32.mrf.mxu0
  %v3868 = vadd.f32 %v3499, %v3867
  %3869 = vmatmul.bf16.gmra.mxu0 %v3045
  %v3870 = vpop.f32.mrf.mxu0
  %v3871 = vadd.f32 %v3502, %v3870
  %v3872 = vpop.f32.mrf.mxu0
  %v3873 = vadd.f32 %v3504, %v3872
  %3874 = vmatmul.bf16.gmra.mxu0 %v3048
  %v3875 = vpop.f32.mrf.mxu0
  %v3876 = vadd.f32 %v3507, %v3875
  %v3877 = vpop.f32.mrf.mxu0
  %v3878 = vadd.f32 %v3509, %v3877
  %3879 = vmatmul.bf16.gmra.mxu0 %v3051
  %v3880 = vpop.f32.mrf.mxu0
  %v3881 = vadd.f32 %v3512, %v3880
  %v3882 = vpop.f32.mrf.mxu0
  %v3883 = vadd.f32 %v3514, %v3882
  %3884 = vmatmul.bf16.gmra.mxu0 %v3054
  %v3885 = vpop.f32.mrf.mxu0
  %v3886 = vadd.f32 %v3517, %v3885
  %v3887 = vpop.f32.mrf.mxu0
  %v3888 = vadd.f32 %v3519, %v3887
  %3889 = vmatmul.bf16.gmra.mxu0 %v3057
  %v3890 = vpop.f32.mrf.mxu0
  %v3891 = vadd.f32 %v3522, %v3890
  %v3892 = vpop.f32.mrf.mxu0
  %v3893 = vadd.f32 %v3524, %v3892
  %3894 = vmatmul.bf16.gmra.mxu0 %v3060
  %v3895 = vpop.f32.mrf.mxu0
  %v3896 = vadd.f32 %v3527, %v3895
  %v3897 = vpop.f32.mrf.mxu0
  %v3898 = vadd.f32 %v3529, %v3897
  %3899 = vmatmul.bf16.gmra.mxu0 %v3063
  %v3900 = vpop.f32.mrf.mxu0
  %v3901 = vadd.f32 %v3532, %v3900
  %v3902 = vpop.f32.mrf.mxu0
  %v3903 = vadd.f32 %v3534, %v3902
  %3904 = vmatmul.bf16.gmra.mxu0 %v3066
  %v3905 = vpop.f32.mrf.mxu0
  %v3906 = vadd.f32 %v3537, %v3905
  %v3907 = vpop.f32.mrf.mxu0
  %v3908 = vadd.f32 %v3539, %v3907
  %3909 = vmatmul.bf16.gmra.mxu0 %v3069
  %v3910 = vpop.f32.mrf.mxu0
  %v3911 = vadd.f32 %v3542, %v3910
  %v3912 = vpop.f32.mrf.mxu0
  %v3913 = vadd.f32 %v3544, %v3912
  %3914 = vmatmul.bf16.gmra.mxu0 %v3072
  %v3915 = vpop.f32.mrf.mxu0
  %v3916 = vadd.f32 %v3547, %v3915
  %v3917 = vpop.f32.mrf.mxu0
  %v3918 = vadd.f32 %v3549, %v3917
  %3919 = vmatmul.bf16.gmra.mxu0 %v3075
  %v3920 = vpop.f32.mrf.mxu0
  %v3921 = vadd.f32 %v3552, %v3920
  %v3922 = vpop.f32.mrf.mxu0
  %v3923 = vadd.f32 %v3554, %v3922
  %3924 = vmatmul.bf16.gmra.mxu0 %v3078
  %v3925 = vpop.f32.mrf.mxu0
  %v3926 = vadd.f32 %v3557, %v3925
  %v3927 = vpop.f32.mrf.mxu0
  %v3928 = vadd.f32 %v3559, %v3927
  %3929 = vmatmul.bf16.gmra.mxu0 %v3081
  %v3930 = vpop.f32.mrf.mxu0
  %v3931 = vadd.f32 %v3562, %v3930
  %v3932 = vpop.f32.mrf.mxu0
  %v3933 = vadd.f32 %v3564, %v3932
  %3934 = vmatmul.bf16.gmra.mxu0 %v3084
  %v3935 = vpop.f32.mrf.mxu0
  %v3936 = vadd.f32 %v3567, %v3935
  %v3937 = vpop.f32.mrf.mxu0
  %v3938 = vadd.f32 %v3569, %v3937
  %3939 = vmatmul.bf16.gmra.mxu0 %v3087
  %v3940 = vpop.f32.mrf.mxu0
  %v3941 = vadd.f32 %v3572, %v3940
  %v3942 = vpop.f32.mrf.mxu0
  %v3943 = vadd.f32 %v3574, %v3942
  %3944 = vmatmul.bf16.gmra.mxu0 %v3090
  %v3945 = vpop.f32.mrf.mxu0
  %v3946 = vadd.f32 %v3577, %v3945
  %v3947 = vpop.f32.mrf.mxu0
  %v3948 = vadd.f32 %v3579, %v3947
  %3949 = vmatmul.bf16.gmra.mxu0 %v3093
  %v3950 = vpop.f32.mrf.mxu0
  %v3951 = vadd.f32 %v3582, %v3950
  %v3952 = vpop.f32.mrf.mxu0
  %v3953 = vadd.f32 %v3584, %v3952
  %3954 = vmatmul.bf16.gmra.mxu0 %v3096
  %v3955 = vpop.f32.mrf.mxu0
  %v3956 = vadd.f32 %v3587, %v3955
  %v3957 = vpop.f32.mrf.mxu0
  %v3958 = vadd.f32 %v3589, %v3957
  %3959 = vmatmul.bf16.gmra.mxu0 %v3099
  %v3960 = vpop.f32.mrf.mxu0
  %v3961 = vadd.f32 %v3592, %v3960
  %v3962 = vpop.f32.mrf.mxu0
  %v3963 = vadd.f32 %v3594, %v3962
  %3964 = vmatmul.bf16.gmra.mxu0 %v3102
  %v3965 = vpop.f32.mrf.mxu0
  %v3966 = vadd.f32 %v3597, %v3965
  %v3967 = vpop.f32.mrf.mxu0
  %v3968 = vadd.f32 %v3599, %v3967
  %3969 = vmatmul.bf16.gmra.mxu0 %v3105
  %v3970 = vpop.f32.mrf.mxu0
  %v3971 = vadd.f32 %v3602, %v3970
  %v3972 = vpop.f32.mrf.mxu0
  %v3973 = vadd.f32 %v3604, %v3972
  %3974 = vmatmul.bf16.gmra.mxu0 %v3108
  %v3975 = vpop.f32.mrf.mxu0
  %v3976 = vadd.f32 %v3607, %v3975
  %v3977 = vpop.f32.mrf.mxu0
  %v3978 = vadd.f32 %v3609, %v3977
  %3979 = vmatmul.bf16.gmra.mxu0 %v3111
  %v3980 = vpop.f32.mrf.mxu0
  %v3981 = vadd.f32 %v3612, %v3980
  %v3982 = vpop.f32.mrf.mxu0
  %v3983 = vadd.f32 %v3614, %v3982
  %3984 = vmatmul.bf16.gmra.mxu0 %v3114
  %v3985 = vpop.f32.mrf.mxu0
  %v3986 = vadd.f32 %v3617, %v3985
  %v3987 = vpop.f32.mrf.mxu0
  %v3988 = vadd.f32 %v3619, %v3987
  %3989 = vmatmul.bf16.gmra.mxu0 %v3117
  %v3990 = vpop.f32.mrf.mxu0
  %v3991 = vadd.f32 %v3622, %v3990
  %v3992 = vpop.f32.mrf.mxu0
  %v3993 = vadd.f32 %v3624, %v3992
  %3994 = vmatmul.bf16.gmra.mxu0 %v3120
  %v3995 = vpop.f32.mrf.mxu0
  %v3996 = vadd.f32 %v3627, %v3995
  %v3997 = vpop.f32.mrf.mxu0
  %v3998 = vadd.f32 %v3629, %v3997
  %3999 = vmatmul.bf16.gmra.mxu0 %v3123
  %v4000 = vpop.f32.mrf.mxu0
  %v4001 = vadd.f32 %v3632, %v4000
  %v4002 = vpop.f32.mrf.mxu0
  %v4003 = vadd.f32 %v3634, %v4002
  %4004 = vmatmul.bf16.gmra.mxu0 %v3126
  %v4005 = vpop.f32.mrf.mxu0
  %v4006 = vadd.f32 %v3637, %v4005
  %v4007 = vpop.f32.mrf.mxu0
  %v4008 = vadd.f32 %v3639, %v4007
  %4009 = vmatmul.bf16.gmra.mxu0 %v3129
  %v4010 = vpop.f32.mrf.mxu0
  %v4011 = vadd.f32 %v3642, %v4010
  %v4012 = vpop.f32.mrf.mxu0
  %v4013 = vadd.f32 %v3644, %v4012
  %4014 = vmatmul.bf16.gmra.mxu0 %v3132
  %v4015 = vpop.f32.mrf.mxu0
  %v4016 = vadd.f32 %v3647, %v4015
  %v4017 = vpop.f32.mrf.mxu0
  %v4018 = vadd.f32 %v3649, %v4017
  %4019 = vmatmul.bf16.gmra.mxu0 %v3135
  %v4020 = vpop.f32.mrf.mxu0
  %v4021 = vadd.f32 %v3652, %v4020
  %v4022 = vpop.f32.mrf.mxu0
  %v4023 = vadd.f32 %v3654, %v4022
  %4024 = vmatmul.bf16.gmra.mxu0 %v3138
  %v4025 = vpop.f32.mrf.mxu0
  %v4026 = vadd.f32 %v3657, %v4025
  %v4027 = vpop.f32.mrf.mxu0
  %v4028 = vadd.f32 %v3659, %v4027
  %4029 = vmatmul.bf16.gmra.mxu0 %v3141
  %v4030 = vpop.f32.mrf.mxu0
  %v4031 = vadd.f32 %v3662, %v4030
  %v4032 = vpop.f32.mrf.mxu0
  %v4033 = vadd.f32 %v3664, %v4032
  %4034 = vmatmul.bf16.gmra.mxu0 %v3144
  %v4035 = vpop.f32.mrf.mxu0
  %v4036 = vadd.f32 %v3667, %v4035
  %v4037 = vpop.f32.mrf.mxu0
  %v4038 = vadd.f32 %v3669, %v4037
  %4039 = vmatmul.bf16.gmra.mxu0 %v3147
  %v4040 = vpop.f32.mrf.mxu0
  %v4041 = vadd.f32 %v3672, %v4040
  %v4042 = vpop.f32.mrf.mxu0
  %v4043 = vadd.f32 %v3674, %v4042
  %4044 = vmatmul.bf16.gmra.mxu0 %v3150
  %v4045 = vpop.f32.mrf.mxu0
  %v4046 = vadd.f32 %v3677, %v4045
  %v4047 = vpop.f32.mrf.mxu0
  %v4048 = vadd.f32 %v3679, %v4047
  %4049 = vmatmul.bf16.gmra.mxu0 %v3153
  %v4050 = vpop.f32.mrf.mxu0
  %v4051 = vadd.f32 %v3682, %v4050
  %v4052 = vpop.f32.mrf.mxu0
  %v4053 = vadd.f32 %v3684, %v4052
  %4054 = vmatmul.bf16.gmra.mxu0 %v3156
  %v4055 = vpop.f32.mrf.mxu0
  %v4056 = vadd.f32 %v3687, %v4055
  %v4057 = vpop.f32.mrf.mxu0
  %v4058 = vadd.f32 %v3689, %v4057
  %4059 = vmatmul.bf16.gmra.mxu0 %v3159
  %v4060 = vpop.f32.mrf.mxu0
  %v4061 = vadd.f32 %v3692, %v4060
  %v4062 = vpop.f32.mrf.mxu0
  %v4063 = vadd.f32 %v3694, %v4062
  %4064 = vmatmul.bf16.gmra.mxu0 %v3162
  %v4065 = vpop.f32.mrf.mxu0
  %v4066 = vadd.f32 %v3697, %v4065
  %v4067 = vpop.f32.mrf.mxu0
  %v4068 = vadd.f32 %v3699, %v4067
  %4069 = vmatmul.bf16.gmra.mxu0 %v3165
  %v4070 = vpop.f32.mrf.mxu0
  %v4071 = vadd.f32 %v3702, %v4070
  %v4072 = vpop.f32.mrf.mxu0
  %v4073 = vadd.f32 %v3704, %v4072
  %4074 = vmatmul.bf16.gmra.mxu0 %v3168
  %v4075 = vpop.f32.mrf.mxu0
  %v4076 = vadd.f32 %v3707, %v4075
  %v4077 = vpop.f32.mrf.mxu0
  %v4078 = vadd.f32 %v3709, %v4077
  %4079 = vmatmul.bf16.gmra.mxu0 %v3171
  %v4080 = vpop.f32.mrf.mxu0
  %v4081 = vadd.f32 %v3712, %v4080
  %v4082 = vpop.f32.mrf.mxu0
  %v4083 = vadd.f32 %v3714, %v4082
  %4084 = vmatmul.bf16.gmra.mxu0 %v3174
  %v4085 = vpop.f32.mrf.mxu0
  %v4086 = vadd.f32 %v3717, %v4085
  %v4087 = vpop.f32.mrf.mxu0
  %v4088 = vadd.f32 %v3719, %v4087
  %4089 = vmatmul.bf16.gmra.mxu0 %v3177
  %v4090 = vpop.f32.mrf.mxu0
  %v4091 = vadd.f32 %v3722, %v4090
  %v4092 = vpop.f32.mrf.mxu0
  %v4093 = vadd.f32 %v3724, %v4092
  %4094 = vmatmul.bf16.gmra.mxu0 %v3180
  %v4095 = vpop.f32.mrf.mxu0
  %v4096 = vadd.f32 %v3727, %v4095
  %v4097 = vpop.f32.mrf.mxu0
  %v4098 = vadd.f32 %v3729, %v4097
  %4099 = vmatmul.bf16.gmra.mxu0 %v3183
  %v4100 = vpop.f32.mrf.mxu0
  %v4101 = vadd.f32 %v3732, %v4100
  %v4102 = vpop.f32.mrf.mxu0
  %v4103 = vadd.f32 %v3734, %v4102
  %4104 = vmatmul.bf16.gmra.mxu0 %v3186
  %v4105 = vpop.f32.mrf.mxu0
  %v4106 = vadd.f32 %v3737, %v4105
  %v4107 = vpop.f32.mrf.mxu0
  %v4108 = vadd.f32 %v3739, %v4107
  %4109 = vmatmul.bf16.gmra.mxu0 %v3189
  %v4110 = vpop.f32.mrf.mxu0
  %v4111 = vadd.f32 %v3742, %v4110
  %v4112 = vpop.f32.mrf.mxu0
  %v4113 = vadd.f32 %v3744, %v4112
  %4114 = vmatmul.bf16.gmra.mxu0 %v3192
  %v4115 = vpop.f32.mrf.mxu0
  %v4116 = vadd.f32 %v3747, %v4115
  %v4117 = vpop.f32.mrf.mxu0
  %v4118 = vadd.f32 %v3749, %v4117
  %4119 = vmatmul.bf16.gmra.mxu0 %v3195
  %v4120 = vpop.f32.mrf.mxu0
  %v4121 = vadd.f32 %v3752, %v4120
  %v4122 = vpop.f32.mrf.mxu0
  %v4123 = vadd.f32 %v3754, %v4122
  %4124 = vmatmul.bf16.gmra.mxu0 %v3198
  %v4125 = vpop.f32.mrf.mxu0
  %v4126 = vadd.f32 %v3757, %v4125
  %v4127 = vpop.f32.mrf.mxu0
  %v4128 = vadd.f32 %v3759, %v4127
  %4129 = vmatmul.bf16.gmra.mxu0 %v3201
  %v4130 = vpop.f32.mrf.mxu0
  %v4131 = vadd.f32 %v3762, %v4130
  %v4132 = vpop.f32.mrf.mxu0
  %v4133 = vadd.f32 %v3764, %v4132
  %4134 = vmatmul.bf16.gmra.mxu0 %v3204
  %v4135 = vpop.f32.mrf.mxu0
  %v4136 = vadd.f32 %v3767, %v4135
  %v4137 = vpop.f32.mrf.mxu0
  %v4138 = vadd.f32 %v3769, %v4137
  %4139 = vmatmul.bf16.gmra.mxu0 %v3207
  %v4140 = vpop.f32.mrf.mxu0
  %v4141 = vadd.f32 %v3772, %v4140
  %v4142 = vpop.f32.mrf.mxu0
  %v4143 = vadd.f32 %v3774, %v4142
  %4144 = vmatmul.bf16.gmra.mxu0 %v3210
  %v4145 = vpop.f32.mrf.mxu0
  %v4146 = vadd.f32 %v3777, %v4145
  %v4147 = vpop.f32.mrf.mxu0
  %v4148 = vadd.f32 %v3779, %v4147
  %4149 = vmatmul.bf16.gmra.mxu0 %v3213
  %v4150 = vpop.f32.mrf.mxu0
  %v4151 = vadd.f32 %v3782, %v4150
  %v4152 = vpop.f32.mrf.mxu0
  %v4153 = vadd.f32 %v3784, %v4152
  %4154 = vmatmul.bf16.gmra.mxu0 %v3216
  %v4155 = vpop.f32.mrf.mxu0
  %v4156 = vadd.f32 %v3787, %v4155
  %v4157 = vpop.f32.mrf.mxu0
  %v4158 = vadd.f32 %v3789, %v4157
  %4159 = vmatmul.bf16.gmra.mxu0 %v3219
  %v4160 = vpop.f32.mrf.mxu0
  %v4161 = vadd.f32 %v3792, %v4160
  %v4162 = vpop.f32.mrf.mxu0
  %v4163 = vadd.f32 %v3794, %v4162
  %4164 = vmatmul.bf16.gmra.mxu0 %v3222
  %v4165 = vpop.f32.mrf.mxu0
  %v4166 = vadd.f32 %v3797, %v4165
  %v4167 = vpop.f32.mrf.mxu0
  %v4168 = vadd.f32 %v3799, %v4167
  %4169 = vmatmul.bf16.gmra.mxu0 %v3225
  %v4170 = vpop.f32.mrf.mxu0
  %v4171 = vadd.f32 %v3802, %v4170
  %v4172 = vpop.f32.mrf.mxu0
  %v4173 = vadd.f32 %v3804, %v4172
  %4174 = vmatmul.bf16.gmra.mxu0 %v3228
  %v4175 = vpop.f32.mrf.mxu0
  %v4176 = vadd.f32 %v3807, %v4175
  %v4177 = vpop.f32.mrf.mxu0
  %v4178 = vadd.f32 %v3809, %v4177
  %4179 = vmatmul.bf16.gmra.mxu0 %v3231
  %v4180 = vpop.f32.mrf.mxu0
  %v4181 = vadd.f32 %v3812, %v4180
  %v4182 = vpop.f32.mrf.mxu0
  %v4183 = vadd.f32 %v3814, %v4182
  %4184 = vmatmul.bf16.gmra.mxu0 %v3234
  %v4185 = vpop.f32.mrf.mxu0
  %v4186 = vadd.f32 %v3817, %v4185
  %v4187 = vpop.f32.mrf.mxu0
  %v4188 = vadd.f32 %v3819, %v4187
  %4189 = vdwg.mxu0
  %4190 = vmatpush.bf16.msra.mxu0 0
  %4191 = vmatpush.bf16.msra.mxu0 0
  %4192 = vmatpush.bf16.msra.mxu0 0
  %4193 = vmatpush.bf16.msra.mxu0 0
  %4194 = vmatpush.bf16.msra.mxu0 0
  %4195 = vmatpush.bf16.msra.mxu0 0
  %4196 = vmatpush.bf16.msra.mxu0 %v1575
  %4197 = vmatpush.bf16.msra.mxu0 %v1574
  %4198 = vmatmul.bf16.gmra.mxu0 %v3237
  %v4199 = vpop.f32.mrf.mxu0
  %v4200 = vadd.f32 %v3831, %v4199
  %v4201 = vpop.f32.mrf.mxu0
  %v4202 = vadd.f32 %v3833, %v4201
  %4203 = vmatmul.bf16.gmra.mxu0 %v3240
  %v4204 = vpop.f32.mrf.mxu0
  %v4205 = vadd.f32 %v3836, %v4204
  %v4206 = vpop.f32.mrf.mxu0
  %v4207 = vadd.f32 %v3838, %v4206
  %4208 = vmatmul.bf16.gmra.mxu0 %v3243
  %v4209 = vpop.f32.mrf.mxu0
  %v4210 = vadd.f32 %v3841, %v4209
  %v4211 = vpop.f32.mrf.mxu0
  %v4212 = vadd.f32 %v3843, %v4211
  %4213 = vmatmul.bf16.gmra.mxu0 %v3246
  %v4214 = vpop.f32.mrf.mxu0
  %v4215 = vadd.f32 %v3846, %v4214
  %v4216 = vpop.f32.mrf.mxu0
  %v4217 = vadd.f32 %v3848, %v4216
  %4218 = vmatmul.bf16.gmra.mxu0 %v3249
  %v4219 = vpop.f32.mrf.mxu0
  %v4220 = vadd.f32 %v3851, %v4219
  %v4221 = vpop.f32.mrf.mxu0
  %v4222 = vadd.f32 %v3853, %v4221
  %4223 = vmatmul.bf16.gmra.mxu0 %v3252
  %v4224 = vpop.f32.mrf.mxu0
  %v4225 = vadd.f32 %v3856, %v4224
  %v4226 = vpop.f32.mrf.mxu0
  %v4227 = vadd.f32 %v3858, %v4226
  %4228 = vmatmul.bf16.gmra.mxu0 %v3255
  %v4229 = vpop.f32.mrf.mxu0
  %v4230 = vadd.f32 %v3861, %v4229
  %v4231 = vpop.f32.mrf.mxu0
  %v4232 = vadd.f32 %v3863, %v4231
  %4233 = vmatmul.bf16.gmra.mxu0 %v3258
  %v4234 = vpop.f32.mrf.mxu0
  %v4235 = vadd.f32 %v3866, %v4234
  %v4236 = vpop.f32.mrf.mxu0
  %v4237 = vadd.f32 %v3868, %v4236
  %4238 = vmatmul.bf16.gmra.mxu0 %v3261
  %v4239 = vpop.f32.mrf.mxu0
  %v4240 = vadd.f32 %v3871, %v4239
  %v4241 = vpop.f32.mrf.mxu0
  %v4242 = vadd.f32 %v3873, %v4241
  %4243 = vmatmul.bf16.gmra.mxu0 %v3264
  %v4244 = vpop.f32.mrf.mxu0
  %v4245 = vadd.f32 %v3876, %v4244
  %v4246 = vpop.f32.mrf.mxu0
  %v4247 = vadd.f32 %v3878, %v4246
  %4248 = vmatmul.bf16.gmra.mxu0 %v3267
  %v4249 = vpop.f32.mrf.mxu0
  %v4250 = vadd.f32 %v3881, %v4249
  %v4251 = vpop.f32.mrf.mxu0
  %v4252 = vadd.f32 %v3883, %v4251
  %4253 = vmatmul.bf16.gmra.mxu0 %v3270
  %v4254 = vpop.f32.mrf.mxu0
  %v4255 = vadd.f32 %v3886, %v4254
  %v4256 = vpop.f32.mrf.mxu0
  %v4257 = vadd.f32 %v3888, %v4256
  %4258 = vmatmul.bf16.gmra.mxu0 %v3273
  %v4259 = vpop.f32.mrf.mxu0
  %v4260 = vadd.f32 %v3891, %v4259
  %v4261 = vpop.f32.mrf.mxu0
  %v4262 = vadd.f32 %v3893, %v4261
  %4263 = vmatmul.bf16.gmra.mxu0 %v3276
  %v4264 = vpop.f32.mrf.mxu0
  %v4265 = vadd.f32 %v3896, %v4264
  %v4266 = vpop.f32.mrf.mxu0
  %v4267 = vadd.f32 %v3898, %v4266
  %4268 = vmatmul.bf16.gmra.mxu0 %v3279
  %v4269 = vpop.f32.mrf.mxu0
  %v4270 = vadd.f32 %v3901, %v4269
  %v4271 = vpop.f32.mrf.mxu0
  %v4272 = vadd.f32 %v3903, %v4271
  %4273 = vmatmul.bf16.gmra.mxu0 %v3282
  %v4274 = vpop.f32.mrf.mxu0
  %v4275 = vadd.f32 %v3906, %v4274
  %v4276 = vpop.f32.mrf.mxu0
  %v4277 = vadd.f32 %v3908, %v4276
  %4278 = vmatmul.bf16.gmra.mxu0 %v3285
  %v4279 = vpop.f32.mrf.mxu0
  %v4280 = vadd.f32 %v3911, %v4279
  %v4281 = vpop.f32.mrf.mxu0
  %v4282 = vadd.f32 %v3913, %v4281
  %4283 = vmatmul.bf16.gmra.mxu0 %v3288
  %v4284 = vpop.f32.mrf.mxu0
  %v4285 = vadd.f32 %v3916, %v4284
  %v4286 = vpop.f32.mrf.mxu0
  %v4287 = vadd.f32 %v3918, %v4286
  %4288 = vmatmul.bf16.gmra.mxu0 %v3291
  %v4289 = vpop.f32.mrf.mxu0
  %v4290 = vadd.f32 %v3921, %v4289
  %v4291 = vpop.f32.mrf.mxu0
  %v4292 = vadd.f32 %v3923, %v4291
  %4293 = vmatmul.bf16.gmra.mxu0 %v3294
  %v4294 = vpop.f32.mrf.mxu0
  %v4295 = vadd.f32 %v3926, %v4294
  %v4296 = vpop.f32.mrf.mxu0
  %v4297 = vadd.f32 %v3928, %v4296
  %4298 = vmatmul.bf16.gmra.mxu0 %v3297
  %v4299 = vpop.f32.mrf.mxu0
  %v4300 = vadd.f32 %v3931, %v4299
  %v4301 = vpop.f32.mrf.mxu0
  %v4302 = vadd.f32 %v3933, %v4301
  %4303 = vmatmul.bf16.gmra.mxu0 %v3300
  %v4304 = vpop.f32.mrf.mxu0
  %v4305 = vadd.f32 %v3936, %v4304
  %v4306 = vpop.f32.mrf.mxu0
  %v4307 = vadd.f32 %v3938, %v4306
  %4308 = vmatmul.bf16.gmra.mxu0 %v3303
  %v4309 = vpop.f32.mrf.mxu0
  %v4310 = vadd.f32 %v3941, %v4309
  %v4311 = vpop.f32.mrf.mxu0
  %v4312 = vadd.f32 %v3943, %v4311
  %4313 = vmatmul.bf16.gmra.mxu0 %v3306
  %v4314 = vpop.f32.mrf.mxu0
  %v4315 = vadd.f32 %v3946, %v4314
  %v4316 = vpop.f32.mrf.mxu0
  %v4317 = vadd.f32 %v3948, %v4316
  %4318 = vmatmul.bf16.gmra.mxu0 %v3309
  %v4319 = vpop.f32.mrf.mxu0
  %v4320 = vadd.f32 %v3951, %v4319
  %v4321 = vpop.f32.mrf.mxu0
  %v4322 = vadd.f32 %v3953, %v4321
  %4323 = vmatmul.bf16.gmra.mxu0 %v3312
  %v4324 = vpop.f32.mrf.mxu0
  %v4325 = vadd.f32 %v3956, %v4324
  %v4326 = vpop.f32.mrf.mxu0
  %v4327 = vadd.f32 %v3958, %v4326
  %4328 = vmatmul.bf16.gmra.mxu0 %v3315
  %v4329 = vpop.f32.mrf.mxu0
  %v4330 = vadd.f32 %v3961, %v4329
  %v4331 = vpop.f32.mrf.mxu0
  %v4332 = vadd.f32 %v3963, %v4331
  %4333 = vmatmul.bf16.gmra.mxu0 %v3318
  %v4334 = vpop.f32.mrf.mxu0
  %v4335 = vadd.f32 %v3966, %v4334
  %v4336 = vpop.f32.mrf.mxu0
  %v4337 = vadd.f32 %v3968, %v4336
  %4338 = vmatmul.bf16.gmra.mxu0 %v3321
  %v4339 = vpop.f32.mrf.mxu0
  %v4340 = vadd.f32 %v3971, %v4339
  %v4341 = vpop.f32.mrf.mxu0
  %v4342 = vadd.f32 %v3973, %v4341
  %4343 = vmatmul.bf16.gmra.mxu0 %v3324
  %v4344 = vpop.f32.mrf.mxu0
  %v4345 = vadd.f32 %v3976, %v4344
  %v4346 = vpop.f32.mrf.mxu0
  %v4347 = vadd.f32 %v3978, %v4346
  %4348 = vmatmul.bf16.gmra.mxu0 %v3327
  %v4349 = vpop.f32.mrf.mxu0
  %v4350 = vadd.f32 %v3981, %v4349
  %v4351 = vpop.f32.mrf.mxu0
  %v4352 = vadd.f32 %v3983, %v4351
  %4353 = vmatmul.bf16.gmra.mxu0 %v3330
  %v4354 = vpop.f32.mrf.mxu0
  %v4355 = vadd.f32 %v3986, %v4354
  %v4356 = vpop.f32.mrf.mxu0
  %v4357 = vadd.f32 %v3988, %v4356
  %4358 = vmatmul.bf16.gmra.mxu0 %v3333
  %v4359 = vpop.f32.mrf.mxu0
  %v4360 = vadd.f32 %v3991, %v4359
  %v4361 = vpop.f32.mrf.mxu0
  %v4362 = vadd.f32 %v3993, %v4361
  %4363 = vmatmul.bf16.gmra.mxu0 %v3336
  %v4364 = vpop.f32.mrf.mxu0
  %v4365 = vadd.f32 %v3996, %v4364
  %v4366 = vpop.f32.mrf.mxu0
  %v4367 = vadd.f32 %v3998, %v4366
  %4368 = vmatmul.bf16.gmra.mxu0 %v3339
  %v4369 = vpop.f32.mrf.mxu0
  %v4370 = vadd.f32 %v4001, %v4369
  %v4371 = vpop.f32.mrf.mxu0
  %v4372 = vadd.f32 %v4003, %v4371
  %4373 = vmatmul.bf16.gmra.mxu0 %v3342
  %v4374 = vpop.f32.mrf.mxu0
  %v4375 = vadd.f32 %v4006, %v4374
  %v4376 = vpop.f32.mrf.mxu0
  %v4377 = vadd.f32 %v4008, %v4376
  %4378 = vmatmul.bf16.gmra.mxu0 %v3345
  %v4379 = vpop.f32.mrf.mxu0
  %v4380 = vadd.f32 %v4011, %v4379
  %v4381 = vpop.f32.mrf.mxu0
  %v4382 = vadd.f32 %v4013, %v4381
  %4383 = vmatmul.bf16.gmra.mxu0 %v3348
  %v4384 = vpop.f32.mrf.mxu0
  %v4385 = vadd.f32 %v4016, %v4384
  %v4386 = vpop.f32.mrf.mxu0
  %v4387 = vadd.f32 %v4018, %v4386
  %4388 = vmatmul.bf16.gmra.mxu0 %v3351
  %v4389 = vpop.f32.mrf.mxu0
  %v4390 = vadd.f32 %v4021, %v4389
  %v4391 = vpop.f32.mrf.mxu0
  %v4392 = vadd.f32 %v4023, %v4391
  %4393 = vmatmul.bf16.gmra.mxu0 %v3354
  %v4394 = vpop.f32.mrf.mxu0
  %v4395 = vadd.f32 %v4026, %v4394
  %v4396 = vpop.f32.mrf.mxu0
  %v4397 = vadd.f32 %v4028, %v4396
  %4398 = vmatmul.bf16.gmra.mxu0 %v3357
  %v4399 = vpop.f32.mrf.mxu0
  %v4400 = vadd.f32 %v4031, %v4399
  %v4401 = vpop.f32.mrf.mxu0
  %v4402 = vadd.f32 %v4033, %v4401
  %4403 = vmatmul.bf16.gmra.mxu0 %v3360
  %v4404 = vpop.f32.mrf.mxu0
  %v4405 = vadd.f32 %v4036, %v4404
  %v4406 = vpop.f32.mrf.mxu0
  %v4407 = vadd.f32 %v4038, %v4406
  %4408 = vmatmul.bf16.gmra.mxu0 %v3363
  %v4409 = vpop.f32.mrf.mxu0
  %v4410 = vadd.f32 %v4041, %v4409
  %v4411 = vpop.f32.mrf.mxu0
  %v4412 = vadd.f32 %v4043, %v4411
  %4413 = vmatmul.bf16.gmra.mxu0 %v3366
  %v4414 = vpop.f32.mrf.mxu0
  %v4415 = vadd.f32 %v4046, %v4414
  %v4416 = vpop.f32.mrf.mxu0
  %v4417 = vadd.f32 %v4048, %v4416
  %4418 = vmatmul.bf16.gmra.mxu0 %v3369
  %v4419 = vpop.f32.mrf.mxu0
  %v4420 = vadd.f32 %v4051, %v4419
  %v4421 = vpop.f32.mrf.mxu0
  %v4422 = vadd.f32 %v4053, %v4421
  %4423 = vmatmul.bf16.gmra.mxu0 %v3372
  %v4424 = vpop.f32.mrf.mxu0
  %v4425 = vadd.f32 %v4056, %v4424
  %v4426 = vpop.f32.mrf.mxu0
  %v4427 = vadd.f32 %v4058, %v4426
  %4428 = vmatmul.bf16.gmra.mxu0 %v3375
  %v4429 = vpop.f32.mrf.mxu0
  %v4430 = vadd.f32 %v4061, %v4429
  %v4431 = vpop.f32.mrf.mxu0
  %v4432 = vadd.f32 %v4063, %v4431
  %4433 = vmatmul.bf16.gmra.mxu0 %v3378
  %v4434 = vpop.f32.mrf.mxu0
  %v4435 = vadd.f32 %v4066, %v4434
  %v4436 = vpop.f32.mrf.mxu0
  %v4437 = vadd.f32 %v4068, %v4436
  %4438 = vmatmul.bf16.gmra.mxu0 %v3381
  %v4439 = vpop.f32.mrf.mxu0
  %v4440 = vadd.f32 %v4071, %v4439
  %v4441 = vpop.f32.mrf.mxu0
  %v4442 = vadd.f32 %v4073, %v4441
  %4443 = vmatmul.bf16.gmra.mxu0 %v3384
  %v4444 = vpop.f32.mrf.mxu0
  %v4445 = vadd.f32 %v4076, %v4444
  %v4446 = vpop.f32.mrf.mxu0
  %v4447 = vadd.f32 %v4078, %v4446
  %4448 = vmatmul.bf16.gmra.mxu0 %v3387
  %v4449 = vpop.f32.mrf.mxu0
  %v4450 = vadd.f32 %v4081, %v4449
  %v4451 = vpop.f32.mrf.mxu0
  %v4452 = vadd.f32 %v4083, %v4451
  %4453 = vmatmul.bf16.gmra.mxu0 %v3390
  %v4454 = vpop.f32.mrf.mxu0
  %v4455 = vadd.f32 %v4086, %v4454
  %v4456 = vpop.f32.mrf.mxu0
  %v4457 = vadd.f32 %v4088, %v4456
  %4458 = vmatmul.bf16.gmra.mxu0 %v3393
  %v4459 = vpop.f32.mrf.mxu0
  %v4460 = vadd.f32 %v4091, %v4459
  %v4461 = vpop.f32.mrf.mxu0
  %v4462 = vadd.f32 %v4093, %v4461
  %4463 = vmatmul.bf16.gmra.mxu0 %v3396
  %v4464 = vpop.f32.mrf.mxu0
  %v4465 = vadd.f32 %v4096, %v4464
  %v4466 = vpop.f32.mrf.mxu0
  %v4467 = vadd.f32 %v4098, %v4466
  %4468 = vmatmul.bf16.gmra.mxu0 %v3399
  %v4469 = vpop.f32.mrf.mxu0
  %v4470 = vadd.f32 %v4101, %v4469
  %v4471 = vpop.f32.mrf.mxu0
  %v4472 = vadd.f32 %v4103, %v4471
  %4473 = vmatmul.bf16.gmra.mxu0 %v3402
  %v4474 = vpop.f32.mrf.mxu0
  %v4475 = vadd.f32 %v4106, %v4474
  %v4476 = vpop.f32.mrf.mxu0
  %v4477 = vadd.f32 %v4108, %v4476
  %4478 = vmatmul.bf16.gmra.mxu0 %v3405
  %v4479 = vpop.f32.mrf.mxu0
  %v4480 = vadd.f32 %v4111, %v4479
  %v4481 = vpop.f32.mrf.mxu0
  %v4482 = vadd.f32 %v4113, %v4481
  %4483 = vmatmul.bf16.gmra.mxu0 %v3408
  %v4484 = vpop.f32.mrf.mxu0
  %v4485 = vadd.f32 %v4116, %v4484
  %v4486 = vpop.f32.mrf.mxu0
  %v4487 = vadd.f32 %v4118, %v4486
  %4488 = vmatmul.bf16.gmra.mxu0 %v3411
  %v4489 = vpop.f32.mrf.mxu0
  %v4490 = vadd.f32 %v4121, %v4489
  %v4491 = vpop.f32.mrf.mxu0
  %v4492 = vadd.f32 %v4123, %v4491
  %4493 = vmatmul.bf16.gmra.mxu0 %v3414
  %v4494 = vpop.f32.mrf.mxu0
  %v4495 = vadd.f32 %v4126, %v4494
  %v4496 = vpop.f32.mrf.mxu0
  %v4497 = vadd.f32 %v4128, %v4496
  %4498 = vmatmul.bf16.gmra.mxu0 %v3417
  %v4499 = vpop.f32.mrf.mxu0
  %v4500 = vadd.f32 %v4131, %v4499
  %v4501 = vpop.f32.mrf.mxu0
  %v4502 = vadd.f32 %v4133, %v4501
  %4503 = vmatmul.bf16.gmra.mxu0 %v3420
  %v4504 = vpop.f32.mrf.mxu0
  %v4505 = vadd.f32 %v4136, %v4504
  %v4506 = vpop.f32.mrf.mxu0
  %v4507 = vadd.f32 %v4138, %v4506
  %4508 = vmatmul.bf16.gmra.mxu0 %v3423
  %v4509 = vpop.f32.mrf.mxu0
  %v4510 = vadd.f32 %v4141, %v4509
  %v4511 = vpop.f32.mrf.mxu0
  %v4512 = vadd.f32 %v4143, %v4511
  %4513 = vmatmul.bf16.gmra.mxu0 %v3426
  %v4514 = vpop.f32.mrf.mxu0
  %v4515 = vadd.f32 %v4146, %v4514
  %v4516 = vpop.f32.mrf.mxu0
  %v4517 = vadd.f32 %v4148, %v4516
  %4518 = vmatmul.bf16.gmra.mxu0 %v3429
  %v4519 = vpop.f32.mrf.mxu0
  %v4520 = vadd.f32 %v4151, %v4519
  %v4521 = vpop.f32.mrf.mxu0
  %v4522 = vadd.f32 %v4153, %v4521
  %4523 = vmatmul.bf16.gmra.mxu0 %v3432
  %v4524 = vpop.f32.mrf.mxu0
  %v4525 = vadd.f32 %v4156, %v4524
  %v4526 = vpop.f32.mrf.mxu0
  %v4527 = vadd.f32 %v4158, %v4526
  %4528 = vmatmul.bf16.gmra.mxu0 %v3435
  %v4529 = vpop.f32.mrf.mxu0
  %v4530 = vadd.f32 %v4161, %v4529
  %v4531 = vpop.f32.mrf.mxu0
  %v4532 = vadd.f32 %v4163, %v4531
  %4533 = vmatmul.bf16.gmra.mxu0 %v3438
  %v4534 = vpop.f32.mrf.mxu0
  %v4535 = vadd.f32 %v4166, %v4534
  %v4536 = vpop.f32.mrf.mxu0
  %v4537 = vadd.f32 %v4168, %v4536
  %4538 = vmatmul.bf16.gmra.mxu0 %v3441
  %v4539 = vpop.f32.mrf.mxu0
  %v4540 = vadd.f32 %v4171, %v4539
  %v4541 = vpop.f32.mrf.mxu0
  %v4542 = vadd.f32 %v4173, %v4541
  %4543 = vmatmul.bf16.gmra.mxu0 %v3444
  %v4544 = vpop.f32.mrf.mxu0
  %v4545 = vadd.f32 %v4176, %v4544
  %v4546 = vpop.f32.mrf.mxu0
  %v4547 = vadd.f32 %v4178, %v4546
  %4548 = vmatmul.bf16.gmra.mxu0 %v3447
  %v4549 = vpop.f32.mrf.mxu0
  %v4550 = vadd.f32 %v4181, %v4549
  %v4551 = vpop.f32.mrf.mxu0
  %v4552 = vadd.f32 %v4183, %v4551
  %4553 = vmatmul.bf16.gmra.mxu0 %v3450
  %v4554 = vpop.f32.mrf.mxu0
  %v4555 = vadd.f32 %v4186, %v4554
  %v4556 = vpop.f32.mrf.mxu0
  %v4557 = vadd.f32 %v4188, %v4556
  %4558 = vdwg.mxu0
  %v4559 = vpack.c.bf16 %v4200, %v4200
  %v4560 = vpack.c.bf16 %v4202, %v4202
  %v4561 = vpack.c.bf16 %v4205, %v4205
  %v4562 = vpack.c.bf16 %v4207, %v4207
  %v4563 = vpack.c.bf16 %v4210, %v4210
  %v4564 = vpack.c.bf16 %v4212, %v4212
  %v4565 = vpack.c.bf16 %v4215, %v4215
  %v4566 = vpack.c.bf16 %v4217, %v4217
  %v4567 = vpack.c.bf16 %v4220, %v4220
  %v4568 = vpack.c.bf16 %v4222, %v4222
  %v4569 = vpack.c.bf16 %v4225, %v4225
  %v4570 = vpack.c.bf16 %v4227, %v4227
  %v4571 = vpack.c.bf16 %v4230, %v4230
  %v4572 = vpack.c.bf16 %v4232, %v4232
  %v4573 = vpack.c.bf16 %v4235, %v4235
  %v4574 = vpack.c.bf16 %v4237, %v4237
  %v4575 = vpack.c.bf16 %v4240, %v4240
  %v4576 = vpack.c.bf16 %v4242, %v4242
  %v4577 = vpack.c.bf16 %v4245, %v4245
  %v4578 = vpack.c.bf16 %v4247, %v4247
  %v4579 = vpack.c.bf16 %v4250, %v4250
  %v4580 = vpack.c.bf16 %v4252, %v4252
  %v4581 = vpack.c.bf16 %v4255, %v4255
  %v4582 = vpack.c.bf16 %v4257, %v4257
  %v4583 = vpack.c.bf16 %v4260, %v4260
  %v4584 = vpack.c.bf16 %v4262, %v4262
  %v4585 = vpack.c.bf16 %v4265, %v4265
  %v4586 = vpack.c.bf16 %v4267, %v4267
  %v4587 = vpack.c.bf16 %v4270, %v4270
  %v4588 = vpack.c.bf16 %v4272, %v4272
  %v4589 = vpack.c.bf16 %v4275, %v4275
  %v4590 = vpack.c.bf16 %v4277, %v4277
  %v4591 = vpack.c.bf16 %v4280, %v4280
  %v4592 = vpack.c.bf16 %v4282, %v4282
  %v4593 = vpack.c.bf16 %v4285, %v4285
  %v4594 = vpack.c.bf16 %v4287, %v4287
  %v4595 = vpack.c.bf16 %v4290, %v4290
  %v4596 = vpack.c.bf16 %v4292, %v4292
  %v4597 = vpack.c.bf16 %v4295, %v4295
  %v4598 = vpack.c.bf16 %v4297, %v4297
  %v4599 = vpack.c.bf16 %v4300, %v4300
  %v4600 = vpack.c.bf16 %v4302, %v4302
  %v4601 = vpack.c.bf16 %v4305, %v4305
  %v4602 = vpack.c.bf16 %v4307, %v4307
  %v4603 = vpack.c.bf16 %v4310, %v4310
  %v4604 = vpack.c.bf16 %v4312, %v4312
  %v4605 = vpack.c.bf16 %v4315, %v4315
  %v4606 = vpack.c.bf16 %v4317, %v4317
  %v4607 = vpack.c.bf16 %v4320, %v4320
  %v4608 = vpack.c.bf16 %v4322, %v4322
  %v4609 = vpack.c.bf16 %v4325, %v4325
  %v4610 = vpack.c.bf16 %v4327, %v4327
  %v4611 = vpack.c.bf16 %v4330, %v4330
  %v4612 = vpack.c.bf16 %v4332, %v4332
  %v4613 = vpack.c.bf16 %v4335, %v4335
  %v4614 = vpack.c.bf16 %v4337, %v4337
  %v4615 = vpack.c.bf16 %v4340, %v4340
  %v4616 = vpack.c.bf16 %v4342, %v4342
  %v4617 = vpack.c.bf16 %v4345, %v4345
  %v4618 = vpack.c.bf16 %v4347, %v4347
  %v4619 = vpack.c.bf16 %v4350, %v4350
  %v4620 = vpack.c.bf16 %v4352, %v4352
  %v4621 = vpack.c.bf16 %v4355, %v4355
  %v4622 = vpack.c.bf16 %v4357, %v4357
  %v4623 = vpack.c.bf16 %v4360, %v4360
  %v4624 = vpack.c.bf16 %v4362, %v4362
  %v4625 = vpack.c.bf16 %v4365, %v4365
  %v4626 = vpack.c.bf16 %v4367, %v4367
  %v4627 = vpack.c.bf16 %v4370, %v4370
  %v4628 = vpack.c.bf16 %v4372, %v4372
  %v4629 = vpack.c.bf16 %v4375, %v4375
  %v4630 = vpack.c.bf16 %v4377, %v4377
  %v4631 = vpack.c.bf16 %v4380, %v4380
  %v4632 = vpack.c.bf16 %v4382, %v4382
  %v4633 = vpack.c.bf16 %v4385, %v4385
  %v4634 = vpack.c.bf16 %v4387, %v4387
  %v4635 = vpack.c.bf16 %v4390, %v4390
  %v4636 = vpack.c.bf16 %v4392, %v4392
  %v4637 = vpack.c.bf16 %v4395, %v4395
  %v4638 = vpack.c.bf16 %v4397, %v4397
  %v4639 = vpack.c.bf16 %v4400, %v4400
  %v4640 = vpack.c.bf16 %v4402, %v4402
  %v4641 = vpack.c.bf16 %v4405, %v4405
  %v4642 = vpack.c.bf16 %v4407, %v4407
  %v4643 = vpack.c.bf16 %v4410, %v4410
  %v4644 = vpack.c.bf16 %v4412, %v4412
  %v4645 = vpack.c.bf16 %v4415, %v4415
  %v4646 = vpack.c.bf16 %v4417, %v4417
  %v4647 = vpack.c.bf16 %v4420, %v4420
  %v4648 = vpack.c.bf16 %v4422, %v4422
  %v4649 = vpack.c.bf16 %v4425, %v4425
  %v4650 = vpack.c.bf16 %v4427, %v4427
  %v4651 = vpack.c.bf16 %v4430, %v4430
  %v4652 = vpack.c.bf16 %v4432, %v4432
  %v4653 = vpack.c.bf16 %v4435, %v4435
  %v4654 = vpack.c.bf16 %v4437, %v4437
  %v4655 = vpack.c.bf16 %v4440, %v4440
  %v4656 = vpack.c.bf16 %v4442, %v4442
  %v4657 = vpack.c.bf16 %v4445, %v4445
  %v4658 = vpack.c.bf16 %v4447, %v4447
  %v4659 = vpack.c.bf16 %v4450, %v4450
  %v4660 = vpack.c.bf16 %v4452, %v4452
  %v4661 = vpack.c.bf16 %v4455, %v4455
  %v4662 = vpack.c.bf16 %v4457, %v4457
  %v4663 = vpack.c.bf16 %v4460, %v4460
  %v4664 = vpack.c.bf16 %v4462, %v4462
  %v4665 = vpack.c.bf16 %v4465, %v4465
  %v4666 = vpack.c.bf16 %v4467, %v4467
  %v4667 = vpack.c.bf16 %v4470, %v4470
  %v4668 = vpack.c.bf16 %v4472, %v4472
  %v4669 = vpack.c.bf16 %v4475, %v4475
  %v4670 = vpack.c.bf16 %v4477, %v4477
  %v4671 = vpack.c.bf16 %v4480, %v4480
  %v4672 = vpack.c.bf16 %v4482, %v4482
  %v4673 = vpack.c.bf16 %v4485, %v4485
  %v4674 = vpack.c.bf16 %v4487, %v4487
  %v4675 = vpack.c.bf16 %v4490, %v4490
  %v4676 = vpack.c.bf16 %v4492, %v4492
  %v4677 = vpack.c.bf16 %v4495, %v4495
  %v4678 = vpack.c.bf16 %v4497, %v4497
  %v4679 = vpack.c.bf16 %v4500, %v4500
  %v4680 = vpack.c.bf16 %v4502, %v4502
  %v4681 = vpack.c.bf16 %v4505, %v4505
  %v4682 = vpack.c.bf16 %v4507, %v4507
  %v4683 = vpack.c.bf16 %v4510, %v4510
  %v4684 = vpack.c.bf16 %v4512, %v4512
  %v4685 = vpack.c.bf16 %v4515, %v4515
  %v4686 = vpack.c.bf16 %v4517, %v4517
  %v4687 = vpack.c.bf16 %v4520, %v4520
  %v4688 = vpack.c.bf16 %v4522, %v4522
  %v4689 = vpack.c.bf16 %v4525, %v4525
  %v4690 = vpack.c.bf16 %v4527, %v4527
  %v4691 = vpack.c.bf16 %v4530, %v4530
  %v4692 = vpack.c.bf16 %v4532, %v4532
  %v4693 = vpack.c.bf16 %v4535, %v4535
  %v4694 = vpack.c.bf16 %v4537, %v4537
  %v4695 = vpack.c.bf16 %v4540, %v4540
  %v4696 = vpack.c.bf16 %v4542, %v4542
  %v4697 = vpack.c.bf16 %v4545, %v4545
  %v4698 = vpack.c.bf16 %v4547, %v4547
  %v4699 = vpack.c.bf16 %v4550, %v4550
  %v4700 = vpack.c.bf16 %v4552, %v4552
  %v4701 = vpack.c.bf16 %v4555, %v4555
  %v4702 = vpack.c.bf16 %v4557, %v4557
  %s4703 = smul.u32 4, 16
  %s4704 = smul.u32 %s4703, 8
  %s4705 = smul.u32 %s4704, 1
  %s4706 = sshll.u32 %s4705, 4
  %4707 = dma.done [#allocation5], %s4706
  %v4708 = vld [vmem:[#allocation2] sm:$0xf]
  %v4709 = vld [vmem:[#allocation2 + $0x4] sm:$0xf]
  %v4710 = vld [vmem:[#allocation2 + $0x8] sm:$0xf]
  %v4711 = vld [vmem:[#allocation2 + $0xc] sm:$0xf]
  %v4712 = vld [vmem:[#allocation2 + $0x10] sm:$0xf]
  %v4713 = vld [vmem:[#allocation2 + $0x14] sm:$0xf]
  %v4714 = vld [vmem:[#allocation2 + $0x18] sm:$0xf]
  %v4715 = vld [vmem:[#allocation2 + $0x1c] sm:$0xf]
  %s4716 = scalar_lea.vmem [#allocation2], 32
  %v4717 = vld [vmem:[%s4716] sm:$0xf]
  %v4718 = vld [vmem:[%s4716 + $0x4] sm:$0xf]
  %v4719 = vld [vmem:[%s4716 + $0x8] sm:$0xf]
  %v4720 = vld [vmem:[%s4716 + $0xc] sm:$0xf]
  %v4721 = vld [vmem:[%s4716 + $0x10] sm:$0xf]
  %v4722 = vld [vmem:[%s4716 + $0x14] sm:$0xf]
  %v4723 = vld [vmem:[%s4716 + $0x18] sm:$0xf]
  %v4724 = vld [vmem:[%s4716 + $0x1c] sm:$0xf]
  %v4734 = vunpack.c.l.b16 %v4568
  %v4735 = vunpack.c.l.b16 %v4569
  %v4736 = vunpack.c.l.b16 %v4570
  %v4737 = vunpack.c.l.b16 %v4571
  %v4738 = vunpack.c.l.b16 %v4572
  %v4739 = vunpack.c.l.b16 %v4573
  %v4740 = vunpack.c.l.b16 %v4574
  %v4741 = vunpack.c.l.b16 %v4575
  %v4742 = vunpack.c.l.b16 %v4576
  %v4743 = vpack.c.b16 %v4735, %v4734
  %v4744 = vpack.c.b16 %v4737, %v4736
  %v4745 = vpack.c.b16 %v4739, %v4738
  %v4746 = vpack.c.b16 %v4741, %v4740
  %v4747 = vpack.c.b16 %v4742, %v4742
  %v4756 = vunpack.c.l.b16 %v4717
  %v4757 = vunpack.c.l.b16 %v4718
  %v4758 = vunpack.c.l.b16 %v4719
  %v4759 = vunpack.c.l.b16 %v4720
  %v4760 = vunpack.c.l.b16 %v4721
  %v4761 = vunpack.c.l.b16 %v4722
  %v4762 = vunpack.c.l.b16 %v4723
  %v4763 = vunpack.c.l.b16 %v4724
  %v4764 = vpack.c.b16 %v4757, %v4756
  %v4765 = vpack.c.b16 %v4759, %v4758
  %v4766 = vpack.c.b16 %v4761, %v4760
  %v4767 = vpack.c.b16 %v4763, %v4762
  %v4773 = vsel %vm1163, %v4743, 0
  %v4776 = vsel %vm1163, %v4744, 0
  %v4779 = vsel %vm1163, %v4745, 0
  %v4782 = vsel %vm1163, %v4746, 0
  %v4785 = vsel %vm1163, %v4747, 0
  %4787 = vmatpush.bf16.msra.mxu0 0
  %4788 = vmatpush.bf16.msra.mxu0 0
  %4789 = vmatpush.bf16.msra.mxu0 0
  %4790 = vmatpush.bf16.msra.mxu0 0
  %4791 = vmatpush.bf16.msra.mxu0 %v4767
  %4792 = vmatpush.bf16.msra.mxu0 %v4766
  %4793 = vmatpush.bf16.msra.mxu0 %v4765
  %4794 = vmatpush.bf16.msra.mxu0 %v4764
  %4795 = vmatmul.bf16.gmra.mxu0 %v4773
  %v4796 = vpop.f32.mrf.mxu0
  %v4797 = vadd.f32 0.0, %v4796
  %v4798 = vpop.f32.mrf.mxu0
  %v4799 = vadd.f32 0.0, %v4798
  %4800 = vmatmul.bf16.gmra.mxu0 %v4776
  %v4801 = vpop.f32.mrf.mxu0
  %v4802 = vadd.f32 0.0, %v4801
  %v4803 = vpop.f32.mrf.mxu0
  %v4804 = vadd.f32 0.0, %v4803
  %4805 = vmatmul.bf16.gmra.mxu0 %v4779
  %v4806 = vpop.f32.mrf.mxu0
  %v4807 = vadd.f32 0.0, %v4806
  %v4808 = vpop.f32.mrf.mxu0
  %v4809 = vadd.f32 0.0, %v4808
  %4810 = vmatmul.bf16.gmra.mxu0 %v4782
  %v4811 = vpop.f32.mrf.mxu0
  %v4812 = vadd.f32 0.0, %v4811
  %v4813 = vpop.f32.mrf.mxu0
  %v4814 = vadd.f32 0.0, %v4813
  %4815 = vmatmul.bf16.gmra.mxu0 %v4785
  %v4816 = vpop.f32.mrf.mxu0
  %v4817 = vadd.f32 0.0, %v4816
  %v4818 = vpop.f32.mrf.mxu0
  %4819 = vdwg.mxu0
  %v4829 = vunpack.c.l.b16 %v4559
  %v4830 = vunpack.c.l.b16 %v4560
  %v4831 = vunpack.c.l.b16 %v4561
  %v4832 = vunpack.c.l.b16 %v4562
  %v4833 = vunpack.c.l.b16 %v4563
  %v4834 = vunpack.c.l.b16 %v4564
  %v4835 = vunpack.c.l.b16 %v4565
  %v4836 = vunpack.c.l.b16 %v4566
  %v4837 = vunpack.c.l.b16 %v4567
  %v4838 = vpack.c.b16 %v4830, %v4829
  %v4839 = vpack.c.b16 %v4832, %v4831
  %v4840 = vpack.c.b16 %v4834, %v4833
  %v4841 = vpack.c.b16 %v4836, %v4835
  %v4842 = vpack.c.b16 %v4837, %v4837
  %v4851 = vunpack.c.l.b16 %v4708
  %v4852 = vunpack.c.l.b16 %v4709
  %v4853 = vunpack.c.l.b16 %v4710
  %v4854 = vunpack.c.l.b16 %v4711
  %v4855 = vunpack.c.l.b16 %v4712
  %v4856 = vunpack.c.l.b16 %v4713
  %v4857 = vunpack.c.l.b16 %v4714
  %v4858 = vunpack.c.l.b16 %v4715
  %v4859 = vpack.c.b16 %v4852, %v4851
  %v4860 = vpack.c.b16 %v4854, %v4853
  %v4861 = vpack.c.b16 %v4856, %v4855
  %v4862 = vpack.c.b16 %v4858, %v4857
  %v4868 = vsel %vm1163, %v4838, 0
  %v4871 = vsel %vm1163, %v4839, 0
  %v4874 = vsel %vm1163, %v4840, 0
  %v4877 = vsel %vm1163, %v4841, 0
  %v4880 = vsel %vm1163, %v4842, 0
  %4882 = vmatpush.bf16.msra.mxu0 0
  %4883 = vmatpush.bf16.msra.mxu0 0
  %4884 = vmatpush.bf16.msra.mxu0 0
  %4885 = vmatpush.bf16.msra.mxu0 0
  %4886 = vmatpush.bf16.msra.mxu0 %v4862
  %4887 = vmatpush.bf16.msra.mxu0 %v4861
  %4888 = vmatpush.bf16.msra.mxu0 %v4860
  %4889 = vmatpush.bf16.msra.mxu0 %v4859
  %4890 = vmatmul.bf16.gmra.mxu0 %v4868
  %v4891 = vpop.f32.mrf.mxu0
  %v4892 = vadd.f32 %v4797, %v4891
  %v4893 = vpop.f32.mrf.mxu0
  %v4894 = vadd.f32 %v4799, %v4893
  %4895 = vmatmul.bf16.gmra.mxu0 %v4871
  %v4896 = vpop.f32.mrf.mxu0
  %v4897 = vadd.f32 %v4802, %v4896
  %v4898 = vpop.f32.mrf.mxu0
  %v4899 = vadd.f32 %v4804, %v4898
  %4900 = vmatmul.bf16.gmra.mxu0 %v4874
  %v4901 = vpop.f32.mrf.mxu0
  %v4902 = vadd.f32 %v4807, %v4901
  %v4903 = vpop.f32.mrf.mxu0
  %v4904 = vadd.f32 %v4809, %v4903
  %4905 = vmatmul.bf16.gmra.mxu0 %v4877
  %v4906 = vpop.f32.mrf.mxu0
  %v4907 = vadd.f32 %v4812, %v4906
  %v4908 = vpop.f32.mrf.mxu0
  %v4909 = vadd.f32 %v4814, %v4908
  %4910 = vmatmul.bf16.gmra.mxu0 %v4880
  %v4911 = vpop.f32.mrf.mxu0
  %v4912 = vadd.f32 %v4817, %v4911
  %v4913 = vpop.f32.mrf.mxu0
  %4914 = vdwg.mxu0
  %s4915 = scalar_lea.vmem [#allocation2], 64
  %v4916 = vld [vmem:[%s4915] sm:$0xf]
  %v4917 = vld [vmem:[%s4915 + $0x4] sm:$0xf]
  %v4918 = vld [vmem:[%s4915 + $0x8] sm:$0xf]
  %v4919 = vld [vmem:[%s4915 + $0xc] sm:$0xf]
  %v4920 = vld [vmem:[%s4915 + $0x10] sm:$0xf]
  %v4921 = vld [vmem:[%s4915 + $0x14] sm:$0xf]
  %v4922 = vld [vmem:[%s4915 + $0x18] sm:$0xf]
  %v4923 = vld [vmem:[%s4915 + $0x1c] sm:$0xf]
  %v4933 = vunpack.c.l.b16 %v4577
  %v4934 = vunpack.c.l.b16 %v4578
  %v4935 = vunpack.c.l.b16 %v4579
  %v4936 = vunpack.c.l.b16 %v4580
  %v4937 = vunpack.c.l.b16 %v4581
  %v4938 = vunpack.c.l.b16 %v4582
  %v4939 = vunpack.c.l.b16 %v4583
  %v4940 = vunpack.c.l.b16 %v4584
  %v4941 = vunpack.c.l.b16 %v4585
  %v4942 = vpack.c.b16 %v4934, %v4933
  %v4943 = vpack.c.b16 %v4936, %v4935
  %v4944 = vpack.c.b16 %v4938, %v4937
  %v4945 = vpack.c.b16 %v4940, %v4939
  %v4946 = vpack.c.b16 %v4941, %v4941
  %v4955 = vunpack.c.l.b16 %v4916
  %v4956 = vunpack.c.l.b16 %v4917
  %v4957 = vunpack.c.l.b16 %v4918
  %v4958 = vunpack.c.l.b16 %v4919
  %v4959 = vunpack.c.l.b16 %v4920
  %v4960 = vunpack.c.l.b16 %v4921
  %v4961 = vunpack.c.l.b16 %v4922
  %v4962 = vunpack.c.l.b16 %v4923
  %v4963 = vpack.c.b16 %v4956, %v4955
  %v4964 = vpack.c.b16 %v4958, %v4957
  %v4965 = vpack.c.b16 %v4960, %v4959
  %v4966 = vpack.c.b16 %v4962, %v4961
  %v4972 = vsel %vm1163, %v4942, 0
  %v4975 = vsel %vm1163, %v4943, 0
  %v4978 = vsel %vm1163, %v4944, 0
  %v4981 = vsel %vm1163, %v4945, 0
  %v4984 = vsel %vm1163, %v4946, 0
  %4986 = vmatpush.bf16.msra.mxu0 0
  %4987 = vmatpush.bf16.msra.mxu0 0
  %4988 = vmatpush.bf16.msra.mxu0 0
  %4989 = vmatpush.bf16.msra.mxu0 0
  %4990 = vmatpush.bf16.msra.mxu0 %v4966
  %4991 = vmatpush.bf16.msra.mxu0 %v4965
  %4992 = vmatpush.bf16.msra.mxu0 %v4964
  %4993 = vmatpush.bf16.msra.mxu0 %v4963
  %4994 = vmatmul.bf16.gmra.mxu0 %v4972
  %v4995 = vpop.f32.mrf.mxu0
  %v4996 = vadd.f32 0.0, %v4995
  %v4997 = vpop.f32.mrf.mxu0
  %v4998 = vadd.f32 0.0, %v4997
  %4999 = vmatmul.bf16.gmra.mxu0 %v4975
  %v5000 = vpop.f32.mrf.mxu0
  %v5001 = vadd.f32 0.0, %v5000
  %v5002 = vpop.f32.mrf.mxu0
  %v5003 = vadd.f32 0.0, %v5002
  %5004 = vmatmul.bf16.gmra.mxu0 %v4978
  %v5005 = vpop.f32.mrf.mxu0
  %v5006 = vadd.f32 0.0, %v5005
  %v5007 = vpop.f32.mrf.mxu0
  %v5008 = vadd.f32 0.0, %v5007
  %5009 = vmatmul.bf16.gmra.mxu0 %v4981
  %v5010 = vpop.f32.mrf.mxu0
  %v5011 = vadd.f32 0.0, %v5010
  %v5012 = vpop.f32.mrf.mxu0
  %v5013 = vadd.f32 0.0, %v5012
  %5014 = vmatmul.bf16.gmra.mxu0 %v4984
  %v5015 = vpop.f32.mrf.mxu0
  %v5016 = vadd.f32 0.0, %v5015
  %v5017 = vpop.f32.mrf.mxu0
  %5018 = vdwg.mxu0
  %v5019 = vadd.f32 %v4892, %v4996
  %v5020 = vadd.f32 %v4894, %v4998
  %v5021 = vadd.f32 %v4897, %v5001
  %v5022 = vadd.f32 %v4899, %v5003
  %v5023 = vadd.f32 %v4902, %v5006
  %v5024 = vadd.f32 %v4904, %v5008
  %v5025 = vadd.f32 %v4907, %v5011
  %v5026 = vadd.f32 %v4909, %v5013
  %v5027 = vadd.f32 %v4912, %v5016
  %s5028 = scalar_lea.vmem [#allocation2], 96
  %v5029 = vld [vmem:[%s5028] sm:$0xf]
  %v5030 = vld [vmem:[%s5028 + $0x4] sm:$0xf]
  %v5031 = vld [vmem:[%s5028 + $0x8] sm:$0xf]
  %v5032 = vld [vmem:[%s5028 + $0xc] sm:$0xf]
  %v5033 = vld [vmem:[%s5028 + $0x10] sm:$0xf]
  %v5034 = vld [vmem:[%s5028 + $0x14] sm:$0xf]
  %v5035 = vld [vmem:[%s5028 + $0x18] sm:$0xf]
  %v5036 = vld [vmem:[%s5028 + $0x1c] sm:$0xf]
  %v5046 = vunpack.c.l.b16 %v4586
  %v5047 = vunpack.c.l.b16 %v4587
  %v5048 = vunpack.c.l.b16 %v4588
  %v5049 = vunpack.c.l.b16 %v4589
  %v5050 = vunpack.c.l.b16 %v4590
  %v5051 = vunpack.c.l.b16 %v4591
  %v5052 = vunpack.c.l.b16 %v4592
  %v5053 = vunpack.c.l.b16 %v4593
  %v5054 = vunpack.c.l.b16 %v4594
  %v5055 = vpack.c.b16 %v5047, %v5046
  %v5056 = vpack.c.b16 %v5049, %v5048
  %v5057 = vpack.c.b16 %v5051, %v5050
  %v5058 = vpack.c.b16 %v5053, %v5052
  %v5059 = vpack.c.b16 %v5054, %v5054
  %v5068 = vunpack.c.l.b16 %v5029
  %v5069 = vunpack.c.l.b16 %v5030
  %v5070 = vunpack.c.l.b16 %v5031
  %v5071 = vunpack.c.l.b16 %v5032
  %v5072 = vunpack.c.l.b16 %v5033
  %v5073 = vunpack.c.l.b16 %v5034
  %v5074 = vunpack.c.l.b16 %v5035
  %v5075 = vunpack.c.l.b16 %v5036
  %v5076 = vpack.c.b16 %v5069, %v5068
  %v5077 = vpack.c.b16 %v5071, %v5070
  %v5078 = vpack.c.b16 %v5073, %v5072
  %v5079 = vpack.c.b16 %v5075, %v5074
  %v5085 = vsel %vm1163, %v5055, 0
  %v5088 = vsel %vm1163, %v5056, 0
  %v5091 = vsel %vm1163, %v5057, 0
  %v5094 = vsel %vm1163, %v5058, 0
  %v5097 = vsel %vm1163, %v5059, 0
  %5099 = vmatpush.bf16.msra.mxu0 0
  %5100 = vmatpush.bf16.msra.mxu0 0
  %5101 = vmatpush.bf16.msra.mxu0 0
  %5102 = vmatpush.bf16.msra.mxu0 0
  %5103 = vmatpush.bf16.msra.mxu0 %v5079
  %5104 = vmatpush.bf16.msra.mxu0 %v5078
  %5105 = vmatpush.bf16.msra.mxu0 %v5077
  %5106 = vmatpush.bf16.msra.mxu0 %v5076
  %5107 = vmatmul.bf16.gmra.mxu0 %v5085
  %v5108 = vpop.f32.mrf.mxu0
  %v5109 = vadd.f32 0.0, %v5108
  %v5110 = vpop.f32.mrf.mxu0
  %v5111 = vadd.f32 0.0, %v5110
  %5112 = vmatmul.bf16.gmra.mxu0 %v5088
  %v5113 = vpop.f32.mrf.mxu0
  %v5114 = vadd.f32 0.0, %v5113
  %v5115 = vpop.f32.mrf.mxu0
  %v5116 = vadd.f32 0.0, %v5115
  %5117 = vmatmul.bf16.gmra.mxu0 %v5091
  %v5118 = vpop.f32.mrf.mxu0
  %v5119 = vadd.f32 0.0, %v5118
  %v5120 = vpop.f32.mrf.mxu0
  %v5121 = vadd.f32 0.0, %v5120
  %5122 = vmatmul.bf16.gmra.mxu0 %v5094
  %v5123 = vpop.f32.mrf.mxu0
  %v5124 = vadd.f32 0.0, %v5123
  %v5125 = vpop.f32.mrf.mxu0
  %v5126 = vadd.f32 0.0, %v5125
  %5127 = vmatmul.bf16.gmra.mxu0 %v5097
  %v5128 = vpop.f32.mrf.mxu0
  %v5129 = vadd.f32 0.0, %v5128
  %v5130 = vpop.f32.mrf.mxu0
  %5131 = vdwg.mxu0
  %v5132 = vadd.f32 %v5019, %v5109
  %v5133 = vadd.f32 %v5020, %v5111
  %v5134 = vadd.f32 %v5021, %v5114
  %v5135 = vadd.f32 %v5022, %v5116
  %v5136 = vadd.f32 %v5023, %v5119
  %v5137 = vadd.f32 %v5024, %v5121
  %v5138 = vadd.f32 %v5025, %v5124
  %v5139 = vadd.f32 %v5026, %v5126
  %v5140 = vadd.f32 %v5027, %v5129
  %s5141 = scalar_lea.vmem [#allocation2], 128
  %v5142 = vld [vmem:[%s5141] sm:$0xf]
  %v5143 = vld [vmem:[%s5141 + $0x4] sm:$0xf]
  %v5144 = vld [vmem:[%s5141 + $0x8] sm:$0xf]
  %v5145 = vld [vmem:[%s5141 + $0xc] sm:$0xf]
  %v5146 = vld [vmem:[%s5141 + $0x10] sm:$0xf]
  %v5147 = vld [vmem:[%s5141 + $0x14] sm:$0xf]
  %v5148 = vld [vmem:[%s5141 + $0x18] sm:$0xf]
  %v5149 = vld [vmem:[%s5141 + $0x1c] sm:$0xf]
  %v5159 = vunpack.c.l.b16 %v4595
  %v5160 = vunpack.c.l.b16 %v4596
  %v5161 = vunpack.c.l.b16 %v4597
  %v5162 = vunpack.c.l.b16 %v4598
  %v5163 = vunpack.c.l.b16 %v4599
  %v5164 = vunpack.c.l.b16 %v4600
  %v5165 = vunpack.c.l.b16 %v4601
  %v5166 = vunpack.c.l.b16 %v4602
  %v5167 = vunpack.c.l.b16 %v4603
  %v5168 = vpack.c.b16 %v5160, %v5159
  %v5169 = vpack.c.b16 %v5162, %v5161
  %v5170 = vpack.c.b16 %v5164, %v5163
  %v5171 = vpack.c.b16 %v5166, %v5165
  %v5172 = vpack.c.b16 %v5167, %v5167
  %v5181 = vunpack.c.l.b16 %v5142
  %v5182 = vunpack.c.l.b16 %v5143
  %v5183 = vunpack.c.l.b16 %v5144
  %v5184 = vunpack.c.l.b16 %v5145
  %v5185 = vunpack.c.l.b16 %v5146
  %v5186 = vunpack.c.l.b16 %v5147
  %v5187 = vunpack.c.l.b16 %v5148
  %v5188 = vunpack.c.l.b16 %v5149
  %v5189 = vpack.c.b16 %v5182, %v5181
  %v5190 = vpack.c.b16 %v5184, %v5183
  %v5191 = vpack.c.b16 %v5186, %v5185
  %v5192 = vpack.c.b16 %v5188, %v5187
  %v5198 = vsel %vm1163, %v5168, 0
  %v5201 = vsel %vm1163, %v5169, 0
  %v5204 = vsel %vm1163, %v5170, 0
  %v5207 = vsel %vm1163, %v5171, 0
  %v5210 = vsel %vm1163, %v5172, 0
  %5212 = vmatpush.bf16.msra.mxu0 0
  %5213 = vmatpush.bf16.msra.mxu0 0
  %5214 = vmatpush.bf16.msra.mxu0 0
  %5215 = vmatpush.bf16.msra.mxu0 0
  %5216 = vmatpush.bf16.msra.mxu0 %v5192
  %5217 = vmatpush.bf16.msra.mxu0 %v5191
  %5218 = vmatpush.bf16.msra.mxu0 %v5190
  %5219 = vmatpush.bf16.msra.mxu0 %v5189
  %5220 = vmatmul.bf16.gmra.mxu0 %v5198
  %v5221 = vpop.f32.mrf.mxu0
  %v5222 = vadd.f32 0.0, %v5221
  %v5223 = vpop.f32.mrf.mxu0
  %v5224 = vadd.f32 0.0, %v5223
  %5225 = vmatmul.bf16.gmra.mxu0 %v5201
  %v5226 = vpop.f32.mrf.mxu0
  %v5227 = vadd.f32 0.0, %v5226
  %v5228 = vpop.f32.mrf.mxu0
  %v5229 = vadd.f32 0.0, %v5228
  %5230 = vmatmul.bf16.gmra.mxu0 %v5204
  %v5231 = vpop.f32.mrf.mxu0
  %v5232 = vadd.f32 0.0, %v5231
  %v5233 = vpop.f32.mrf.mxu0
  %v5234 = vadd.f32 0.0, %v5233
  %5235 = vmatmul.bf16.gmra.mxu0 %v5207
  %v5236 = vpop.f32.mrf.mxu0
  %v5237 = vadd.f32 0.0, %v5236
  %v5238 = vpop.f32.mrf.mxu0
  %v5239 = vadd.f32 0.0, %v5238
  %5240 = vmatmul.bf16.gmra.mxu0 %v5210
  %v5241 = vpop.f32.mrf.mxu0
  %v5242 = vadd.f32 0.0, %v5241
  %v5243 = vpop.f32.mrf.mxu0
  %5244 = vdwg.mxu0
  %v5245 = vadd.f32 %v5132, %v5222
  %v5246 = vadd.f32 %v5133, %v5224
  %v5247 = vadd.f32 %v5134, %v5227
  %v5248 = vadd.f32 %v5135, %v5229
  %v5249 = vadd.f32 %v5136, %v5232
  %v5250 = vadd.f32 %v5137, %v5234
  %v5251 = vadd.f32 %v5138, %v5237
  %v5252 = vadd.f32 %v5139, %v5239
  %v5253 = vadd.f32 %v5140, %v5242
  %s5254 = scalar_lea.vmem [#allocation2], 160
  %v5255 = vld [vmem:[%s5254] sm:$0xf]
  %v5256 = vld [vmem:[%s5254 + $0x4] sm:$0xf]
  %v5257 = vld [vmem:[%s5254 + $0x8] sm:$0xf]
  %v5258 = vld [vmem:[%s5254 + $0xc] sm:$0xf]
  %v5259 = vld [vmem:[%s5254 + $0x10] sm:$0xf]
  %v5260 = vld [vmem:[%s5254 + $0x14] sm:$0xf]
  %v5261 = vld [vmem:[%s5254 + $0x18] sm:$0xf]
  %v5262 = vld [vmem:[%s5254 + $0x1c] sm:$0xf]
  %v5272 = vunpack.c.l.b16 %v4604
  %v5273 = vunpack.c.l.b16 %v4605
  %v5274 = vunpack.c.l.b16 %v4606
  %v5275 = vunpack.c.l.b16 %v4607
  %v5276 = vunpack.c.l.b16 %v4608
  %v5277 = vunpack.c.l.b16 %v4609
  %v5278 = vunpack.c.l.b16 %v4610
  %v5279 = vunpack.c.l.b16 %v4611
  %v5280 = vunpack.c.l.b16 %v4612
  %v5281 = vpack.c.b16 %v5273, %v5272
  %v5282 = vpack.c.b16 %v5275, %v5274
  %v5283 = vpack.c.b16 %v5277, %v5276
  %v5284 = vpack.c.b16 %v5279, %v5278
  %v5285 = vpack.c.b16 %v5280, %v5280
  %v5294 = vunpack.c.l.b16 %v5255
  %v5295 = vunpack.c.l.b16 %v5256
  %v5296 = vunpack.c.l.b16 %v5257
  %v5297 = vunpack.c.l.b16 %v5258
  %v5298 = vunpack.c.l.b16 %v5259
  %v5299 = vunpack.c.l.b16 %v5260
  %v5300 = vunpack.c.l.b16 %v5261
  %v5301 = vunpack.c.l.b16 %v5262
  %v5302 = vpack.c.b16 %v5295, %v5294
  %v5303 = vpack.c.b16 %v5297, %v5296
  %v5304 = vpack.c.b16 %v5299, %v5298
  %v5305 = vpack.c.b16 %v5301, %v5300
  %v5311 = vsel %vm1163, %v5281, 0
  %v5314 = vsel %vm1163, %v5282, 0
  %v5317 = vsel %vm1163, %v5283, 0
  %v5320 = vsel %vm1163, %v5284, 0
  %v5323 = vsel %vm1163, %v5285, 0
  %5325 = vmatpush.bf16.msra.mxu0 0
  %5326 = vmatpush.bf16.msra.mxu0 0
  %5327 = vmatpush.bf16.msra.mxu0 0
  %5328 = vmatpush.bf16.msra.mxu0 0
  %5329 = vmatpush.bf16.msra.mxu0 %v5305
  %5330 = vmatpush.bf16.msra.mxu0 %v5304
  %5331 = vmatpush.bf16.msra.mxu0 %v5303
  %5332 = vmatpush.bf16.msra.mxu0 %v5302
  %5333 = vmatmul.bf16.gmra.mxu0 %v5311
  %v5334 = vpop.f32.mrf.mxu0
  %v5335 = vadd.f32 0.0, %v5334
  %v5336 = vpop.f32.mrf.mxu0
  %v5337 = vadd.f32 0.0, %v5336
  %5338 = vmatmul.bf16.gmra.mxu0 %v5314
  %v5339 = vpop.f32.mrf.mxu0
  %v5340 = vadd.f32 0.0, %v5339
  %v5341 = vpop.f32.mrf.mxu0
  %v5342 = vadd.f32 0.0, %v5341
  %5343 = vmatmul.bf16.gmra.mxu0 %v5317
  %v5344 = vpop.f32.mrf.mxu0
  %v5345 = vadd.f32 0.0, %v5344
  %v5346 = vpop.f32.mrf.mxu0
  %v5347 = vadd.f32 0.0, %v5346
  %5348 = vmatmul.bf16.gmra.mxu0 %v5320
  %v5349 = vpop.f32.mrf.mxu0
  %v5350 = vadd.f32 0.0, %v5349
  %v5351 = vpop.f32.mrf.mxu0
  %v5352 = vadd.f32 0.0, %v5351
  %5353 = vmatmul.bf16.gmra.mxu0 %v5323
  %v5354 = vpop.f32.mrf.mxu0
  %v5355 = vadd.f32 0.0, %v5354
  %v5356 = vpop.f32.mrf.mxu0
  %5357 = vdwg.mxu0
  %v5358 = vadd.f32 %v5245, %v5335
  %v5359 = vadd.f32 %v5246, %v5337
  %v5360 = vadd.f32 %v5247, %v5340
  %v5361 = vadd.f32 %v5248, %v5342
  %v5362 = vadd.f32 %v5249, %v5345
  %v5363 = vadd.f32 %v5250, %v5347
  %v5364 = vadd.f32 %v5251, %v5350
  %v5365 = vadd.f32 %v5252, %v5352
  %v5366 = vadd.f32 %v5253, %v5355
  %s5367 = scalar_lea.vmem [#allocation2], 192
  %v5368 = vld [vmem:[%s5367] sm:$0xf]
  %v5369 = vld [vmem:[%s5367 + $0x4] sm:$0xf]
  %v5370 = vld [vmem:[%s5367 + $0x8] sm:$0xf]
  %v5371 = vld [vmem:[%s5367 + $0xc] sm:$0xf]
  %v5372 = vld [vmem:[%s5367 + $0x10] sm:$0xf]
  %v5373 = vld [vmem:[%s5367 + $0x14] sm:$0xf]
  %v5374 = vld [vmem:[%s5367 + $0x18] sm:$0xf]
  %v5375 = vld [vmem:[%s5367 + $0x1c] sm:$0xf]
  %v5385 = vunpack.c.l.b16 %v4613
  %v5386 = vunpack.c.l.b16 %v4614
  %v5387 = vunpack.c.l.b16 %v4615
  %v5388 = vunpack.c.l.b16 %v4616
  %v5389 = vunpack.c.l.b16 %v4617
  %v5390 = vunpack.c.l.b16 %v4618
  %v5391 = vunpack.c.l.b16 %v4619
  %v5392 = vunpack.c.l.b16 %v4620
  %v5393 = vunpack.c.l.b16 %v4621
  %v5394 = vpack.c.b16 %v5386, %v5385
  %v5395 = vpack.c.b16 %v5388, %v5387
  %v5396 = vpack.c.b16 %v5390, %v5389
  %v5397 = vpack.c.b16 %v5392, %v5391
  %v5398 = vpack.c.b16 %v5393, %v5393
  %v5407 = vunpack.c.l.b16 %v5368
  %v5408 = vunpack.c.l.b16 %v5369
  %v5409 = vunpack.c.l.b16 %v5370
  %v5410 = vunpack.c.l.b16 %v5371
  %v5411 = vunpack.c.l.b16 %v5372
  %v5412 = vunpack.c.l.b16 %v5373
  %v5413 = vunpack.c.l.b16 %v5374
  %v5414 = vunpack.c.l.b16 %v5375
  %v5415 = vpack.c.b16 %v5408, %v5407
  %v5416 = vpack.c.b16 %v5410, %v5409
  %v5417 = vpack.c.b16 %v5412, %v5411
  %v5418 = vpack.c.b16 %v5414, %v5413
  %v5424 = vsel %vm1163, %v5394, 0
  %v5427 = vsel %vm1163, %v5395, 0
  %v5430 = vsel %vm1163, %v5396, 0
  %v5433 = vsel %vm1163, %v5397, 0
  %v5436 = vsel %vm1163, %v5398, 0
  %5438 = vmatpush.bf16.msra.mxu0 0
  %5439 = vmatpush.bf16.msra.mxu0 0
  %5440 = vmatpush.bf16.msra.mxu0 0
  %5441 = vmatpush.bf16.msra.mxu0 0
  %5442 = vmatpush.bf16.msra.mxu0 %v5418
  %5443 = vmatpush.bf16.msra.mxu0 %v5417
  %5444 = vmatpush.bf16.msra.mxu0 %v5416
  %5445 = vmatpush.bf16.msra.mxu0 %v5415
  %5446 = vmatmul.bf16.gmra.mxu0 %v5424
  %v5447 = vpop.f32.mrf.mxu0
  %v5448 = vadd.f32 0.0, %v5447
  %v5449 = vpop.f32.mrf.mxu0
  %v5450 = vadd.f32 0.0, %v5449
  %5451 = vmatmul.bf16.gmra.mxu0 %v5427
  %v5452 = vpop.f32.mrf.mxu0
  %v5453 = vadd.f32 0.0, %v5452
  %v5454 = vpop.f32.mrf.mxu0
  %v5455 = vadd.f32 0.0, %v5454
  %5456 = vmatmul.bf16.gmra.mxu0 %v5430
  %v5457 = vpop.f32.mrf.mxu0
  %v5458 = vadd.f32 0.0, %v5457
  %v5459 = vpop.f32.mrf.mxu0
  %v5460 = vadd.f32 0.0, %v5459
  %5461 = vmatmul.bf16.gmra.mxu0 %v5433
  %v5462 = vpop.f32.mrf.mxu0
  %v5463 = vadd.f32 0.0, %v5462
  %v5464 = vpop.f32.mrf.mxu0
  %v5465 = vadd.f32 0.0, %v5464
  %5466 = vmatmul.bf16.gmra.mxu0 %v5436
  %v5467 = vpop.f32.mrf.mxu0
  %v5468 = vadd.f32 0.0, %v5467
  %v5469 = vpop.f32.mrf.mxu0
  %5470 = vdwg.mxu0
  %v5471 = vadd.f32 %v5358, %v5448
  %v5472 = vadd.f32 %v5359, %v5450
  %v5473 = vadd.f32 %v5360, %v5453
  %v5474 = vadd.f32 %v5361, %v5455
  %v5475 = vadd.f32 %v5362, %v5458
  %v5476 = vadd.f32 %v5363, %v5460
  %v5477 = vadd.f32 %v5364, %v5463
  %v5478 = vadd.f32 %v5365, %v5465
  %v5479 = vadd.f32 %v5366, %v5468
  %s5480 = scalar_lea.vmem [#allocation2], 224
  %v5481 = vld [vmem:[%s5480] sm:$0xf]
  %v5482 = vld [vmem:[%s5480 + $0x4] sm:$0xf]
  %v5483 = vld [vmem:[%s5480 + $0x8] sm:$0xf]
  %v5484 = vld [vmem:[%s5480 + $0xc] sm:$0xf]
  %v5485 = vld [vmem:[%s5480 + $0x10] sm:$0xf]
  %v5486 = vld [vmem:[%s5480 + $0x14] sm:$0xf]
  %v5487 = vld [vmem:[%s5480 + $0x18] sm:$0xf]
  %v5488 = vld [vmem:[%s5480 + $0x1c] sm:$0xf]
  %v5498 = vunpack.c.l.b16 %v4622
  %v5499 = vunpack.c.l.b16 %v4623
  %v5500 = vunpack.c.l.b16 %v4624
  %v5501 = vunpack.c.l.b16 %v4625
  %v5502 = vunpack.c.l.b16 %v4626
  %v5503 = vunpack.c.l.b16 %v4627
  %v5504 = vunpack.c.l.b16 %v4628
  %v5505 = vunpack.c.l.b16 %v4629
  %v5506 = vunpack.c.l.b16 %v4630
  %v5507 = vpack.c.b16 %v5499, %v5498
  %v5508 = vpack.c.b16 %v5501, %v5500
  %v5509 = vpack.c.b16 %v5503, %v5502
  %v5510 = vpack.c.b16 %v5505, %v5504
  %v5511 = vpack.c.b16 %v5506, %v5506
  %v5520 = vunpack.c.l.b16 %v5481
  %v5521 = vunpack.c.l.b16 %v5482
  %v5522 = vunpack.c.l.b16 %v5483
  %v5523 = vunpack.c.l.b16 %v5484
  %v5524 = vunpack.c.l.b16 %v5485
  %v5525 = vunpack.c.l.b16 %v5486
  %v5526 = vunpack.c.l.b16 %v5487
  %v5527 = vunpack.c.l.b16 %v5488
  %v5528 = vpack.c.b16 %v5521, %v5520
  %v5529 = vpack.c.b16 %v5523, %v5522
  %v5530 = vpack.c.b16 %v5525, %v5524
  %v5531 = vpack.c.b16 %v5527, %v5526
  %v5537 = vsel %vm1163, %v5507, 0
  %v5540 = vsel %vm1163, %v5508, 0
  %v5543 = vsel %vm1163, %v5509, 0
  %v5546 = vsel %vm1163, %v5510, 0
  %v5549 = vsel %vm1163, %v5511, 0
  %5551 = vmatpush.bf16.msra.mxu0 0
  %5552 = vmatpush.bf16.msra.mxu0 0
  %5553 = vmatpush.bf16.msra.mxu0 0
  %5554 = vmatpush.bf16.msra.mxu0 0
  %5555 = vmatpush.bf16.msra.mxu0 %v5531
  %5556 = vmatpush.bf16.msra.mxu0 %v5530
  %5557 = vmatpush.bf16.msra.mxu0 %v5529
  %5558 = vmatpush.bf16.msra.mxu0 %v5528
  %5559 = vmatmul.bf16.gmra.mxu0 %v5537
  %v5560 = vpop.f32.mrf.mxu0
  %v5561 = vadd.f32 0.0, %v5560
  %v5562 = vpop.f32.mrf.mxu0
  %v5563 = vadd.f32 0.0, %v5562
  %5564 = vmatmul.bf16.gmra.mxu0 %v5540
  %v5565 = vpop.f32.mrf.mxu0
  %v5566 = vadd.f32 0.0, %v5565
  %v5567 = vpop.f32.mrf.mxu0
  %v5568 = vadd.f32 0.0, %v5567
  %5569 = vmatmul.bf16.gmra.mxu0 %v5543
  %v5570 = vpop.f32.mrf.mxu0
  %v5571 = vadd.f32 0.0, %v5570
  %v5572 = vpop.f32.mrf.mxu0
  %v5573 = vadd.f32 0.0, %v5572
  %5574 = vmatmul.bf16.gmra.mxu0 %v5546
  %v5575 = vpop.f32.mrf.mxu0
  %v5576 = vadd.f32 0.0, %v5575
  %v5577 = vpop.f32.mrf.mxu0
  %v5578 = vadd.f32 0.0, %v5577
  %5579 = vmatmul.bf16.gmra.mxu0 %v5549
  %v5580 = vpop.f32.mrf.mxu0
  %v5581 = vadd.f32 0.0, %v5580
  %v5582 = vpop.f32.mrf.mxu0
  %5583 = vdwg.mxu0
  %v5584 = vadd.f32 %v5471, %v5561
  %v5585 = vadd.f32 %v5472, %v5563
  %v5586 = vadd.f32 %v5473, %v5566
  %v5587 = vadd.f32 %v5474, %v5568
  %v5588 = vadd.f32 %v5475, %v5571
  %v5589 = vadd.f32 %v5476, %v5573
  %v5590 = vadd.f32 %v5477, %v5576
  %v5591 = vadd.f32 %v5478, %v5578
  %v5592 = vadd.f32 %v5479, %v5581
  %s5593 = scalar_lea.vmem [#allocation2], 256
  %v5594 = vld [vmem:[%s5593] sm:$0xf]
  %v5595 = vld [vmem:[%s5593 + $0x4] sm:$0xf]
  %v5596 = vld [vmem:[%s5593 + $0x8] sm:$0xf]
  %v5597 = vld [vmem:[%s5593 + $0xc] sm:$0xf]
  %v5598 = vld [vmem:[%s5593 + $0x10] sm:$0xf]
  %v5599 = vld [vmem:[%s5593 + $0x14] sm:$0xf]
  %v5600 = vld [vmem:[%s5593 + $0x18] sm:$0xf]
  %v5601 = vld [vmem:[%s5593 + $0x1c] sm:$0xf]
  %v5611 = vunpack.c.l.b16 %v4631
  %v5612 = vunpack.c.l.b16 %v4632
  %v5613 = vunpack.c.l.b16 %v4633
  %v5614 = vunpack.c.l.b16 %v4634
  %v5615 = vunpack.c.l.b16 %v4635
  %v5616 = vunpack.c.l.b16 %v4636
  %v5617 = vunpack.c.l.b16 %v4637
  %v5618 = vunpack.c.l.b16 %v4638
  %v5619 = vunpack.c.l.b16 %v4639
  %v5620 = vpack.c.b16 %v5612, %v5611
  %v5621 = vpack.c.b16 %v5614, %v5613
  %v5622 = vpack.c.b16 %v5616, %v5615
  %v5623 = vpack.c.b16 %v5618, %v5617
  %v5624 = vpack.c.b16 %v5619, %v5619
  %v5633 = vunpack.c.l.b16 %v5594
  %v5634 = vunpack.c.l.b16 %v5595
  %v5635 = vunpack.c.l.b16 %v5596
  %v5636 = vunpack.c.l.b16 %v5597
  %v5637 = vunpack.c.l.b16 %v5598
  %v5638 = vunpack.c.l.b16 %v5599
  %v5639 = vunpack.c.l.b16 %v5600
  %v5640 = vunpack.c.l.b16 %v5601
  %v5641 = vpack.c.b16 %v5634, %v5633
  %v5642 = vpack.c.b16 %v5636, %v5635
  %v5643 = vpack.c.b16 %v5638, %v5637
  %v5644 = vpack.c.b16 %v5640, %v5639
  %v5650 = vsel %vm1163, %v5620, 0
  %v5653 = vsel %vm1163, %v5621, 0
  %v5656 = vsel %vm1163, %v5622, 0
  %v5659 = vsel %vm1163, %v5623, 0
  %v5662 = vsel %vm1163, %v5624, 0
  %5664 = vmatpush.bf16.msra.mxu0 0
  %5665 = vmatpush.bf16.msra.mxu0 0
  %5666 = vmatpush.bf16.msra.mxu0 0
  %5667 = vmatpush.bf16.msra.mxu0 0
  %5668 = vmatpush.bf16.msra.mxu0 %v5644
  %5669 = vmatpush.bf16.msra.mxu0 %v5643
  %5670 = vmatpush.bf16.msra.mxu0 %v5642
  %5671 = vmatpush.bf16.msra.mxu0 %v5641
  %5672 = vmatmul.bf16.gmra.mxu0 %v5650
  %v5673 = vpop.f32.mrf.mxu0
  %v5674 = vadd.f32 0.0, %v5673
  %v5675 = vpop.f32.mrf.mxu0
  %v5676 = vadd.f32 0.0, %v5675
  %5677 = vmatmul.bf16.gmra.mxu0 %v5653
  %v5678 = vpop.f32.mrf.mxu0
  %v5679 = vadd.f32 0.0, %v5678
  %v5680 = vpop.f32.mrf.mxu0
  %v5681 = vadd.f32 0.0, %v5680
  %5682 = vmatmul.bf16.gmra.mxu0 %v5656
  %v5683 = vpop.f32.mrf.mxu0
  %v5684 = vadd.f32 0.0, %v5683
  %v5685 = vpop.f32.mrf.mxu0
  %v5686 = vadd.f32 0.0, %v5685
  %5687 = vmatmul.bf16.gmra.mxu0 %v5659
  %v5688 = vpop.f32.mrf.mxu0
  %v5689 = vadd.f32 0.0, %v5688
  %v5690 = vpop.f32.mrf.mxu0
  %v5691 = vadd.f32 0.0, %v5690
  %5692 = vmatmul.bf16.gmra.mxu0 %v5662
  %v5693 = vpop.f32.mrf.mxu0
  %v5694 = vadd.f32 0.0, %v5693
  %v5695 = vpop.f32.mrf.mxu0
  %5696 = vdwg.mxu0
  %v5697 = vadd.f32 %v5584, %v5674
  %v5698 = vadd.f32 %v5585, %v5676
  %v5699 = vadd.f32 %v5586, %v5679
  %v5700 = vadd.f32 %v5587, %v5681
  %v5701 = vadd.f32 %v5588, %v5684
  %v5702 = vadd.f32 %v5589, %v5686
  %v5703 = vadd.f32 %v5590, %v5689
  %v5704 = vadd.f32 %v5591, %v5691
  %v5705 = vadd.f32 %v5592, %v5694
  %s5706 = scalar_lea.vmem [#allocation2], 288
  %v5707 = vld [vmem:[%s5706] sm:$0xf]
  %v5708 = vld [vmem:[%s5706 + $0x4] sm:$0xf]
  %v5709 = vld [vmem:[%s5706 + $0x8] sm:$0xf]
  %v5710 = vld [vmem:[%s5706 + $0xc] sm:$0xf]
  %v5711 = vld [vmem:[%s5706 + $0x10] sm:$0xf]
  %v5712 = vld [vmem:[%s5706 + $0x14] sm:$0xf]
  %v5713 = vld [vmem:[%s5706 + $0x18] sm:$0xf]
  %v5714 = vld [vmem:[%s5706 + $0x1c] sm:$0xf]
  %v5724 = vunpack.c.l.b16 %v4640
  %v5725 = vunpack.c.l.b16 %v4641
  %v5726 = vunpack.c.l.b16 %v4642
  %v5727 = vunpack.c.l.b16 %v4643
  %v5728 = vunpack.c.l.b16 %v4644
  %v5729 = vunpack.c.l.b16 %v4645
  %v5730 = vunpack.c.l.b16 %v4646
  %v5731 = vunpack.c.l.b16 %v4647
  %v5732 = vunpack.c.l.b16 %v4648
  %v5733 = vpack.c.b16 %v5725, %v5724
  %v5734 = vpack.c.b16 %v5727, %v5726
  %v5735 = vpack.c.b16 %v5729, %v5728
  %v5736 = vpack.c.b16 %v5731, %v5730
  %v5737 = vpack.c.b16 %v5732, %v5732
  %v5746 = vunpack.c.l.b16 %v5707
  %v5747 = vunpack.c.l.b16 %v5708
  %v5748 = vunpack.c.l.b16 %v5709
  %v5749 = vunpack.c.l.b16 %v5710
  %v5750 = vunpack.c.l.b16 %v5711
  %v5751 = vunpack.c.l.b16 %v5712
  %v5752 = vunpack.c.l.b16 %v5713
  %v5753 = vunpack.c.l.b16 %v5714
  %v5754 = vpack.c.b16 %v5747, %v5746
  %v5755 = vpack.c.b16 %v5749, %v5748
  %v5756 = vpack.c.b16 %v5751, %v5750
  %v5757 = vpack.c.b16 %v5753, %v5752
  %v5763 = vsel %vm1163, %v5733, 0
  %v5766 = vsel %vm1163, %v5734, 0
  %v5769 = vsel %vm1163, %v5735, 0
  %v5772 = vsel %vm1163, %v5736, 0
  %v5775 = vsel %vm1163, %v5737, 0
  %5777 = vmatpush.bf16.msra.mxu0 0
  %5778 = vmatpush.bf16.msra.mxu0 0
  %5779 = vmatpush.bf16.msra.mxu0 0
  %5780 = vmatpush.bf16.msra.mxu0 0
  %5781 = vmatpush.bf16.msra.mxu0 %v5757
  %5782 = vmatpush.bf16.msra.mxu0 %v5756
  %5783 = vmatpush.bf16.msra.mxu0 %v5755
  %5784 = vmatpush.bf16.msra.mxu0 %v5754
  %5785 = vmatmul.bf16.gmra.mxu0 %v5763
  %v5786 = vpop.f32.mrf.mxu0
  %v5787 = vadd.f32 0.0, %v5786
  %v5788 = vpop.f32.mrf.mxu0
  %v5789 = vadd.f32 0.0, %v5788
  %5790 = vmatmul.bf16.gmra.mxu0 %v5766
  %v5791 = vpop.f32.mrf.mxu0
  %v5792 = vadd.f32 0.0, %v5791
  %v5793 = vpop.f32.mrf.mxu0
  %v5794 = vadd.f32 0.0, %v5793
  %5795 = vmatmul.bf16.gmra.mxu0 %v5769
  %v5796 = vpop.f32.mrf.mxu0
  %v5797 = vadd.f32 0.0, %v5796
  %v5798 = vpop.f32.mrf.mxu0
  %v5799 = vadd.f32 0.0, %v5798
  %5800 = vmatmul.bf16.gmra.mxu0 %v5772
  %v5801 = vpop.f32.mrf.mxu0
  %v5802 = vadd.f32 0.0, %v5801
  %v5803 = vpop.f32.mrf.mxu0
  %v5804 = vadd.f32 0.0, %v5803
  %5805 = vmatmul.bf16.gmra.mxu0 %v5775
  %v5806 = vpop.f32.mrf.mxu0
  %v5807 = vadd.f32 0.0, %v5806
  %v5808 = vpop.f32.mrf.mxu0
  %5809 = vdwg.mxu0
  %v5810 = vadd.f32 %v5697, %v5787
  %v5811 = vadd.f32 %v5698, %v5789
  %v5812 = vadd.f32 %v5699, %v5792
  %v5813 = vadd.f32 %v5700, %v5794
  %v5814 = vadd.f32 %v5701, %v5797
  %v5815 = vadd.f32 %v5702, %v5799
  %v5816 = vadd.f32 %v5703, %v5802
  %v5817 = vadd.f32 %v5704, %v5804
  %v5818 = vadd.f32 %v5705, %v5807
  %s5819 = scalar_lea.vmem [#allocation2], 320
  %v5820 = vld [vmem:[%s5819] sm:$0xf]
  %v5821 = vld [vmem:[%s5819 + $0x4] sm:$0xf]
  %v5822 = vld [vmem:[%s5819 + $0x8] sm:$0xf]
  %v5823 = vld [vmem:[%s5819 + $0xc] sm:$0xf]
  %v5824 = vld [vmem:[%s5819 + $0x10] sm:$0xf]
  %v5825 = vld [vmem:[%s5819 + $0x14] sm:$0xf]
  %v5826 = vld [vmem:[%s5819 + $0x18] sm:$0xf]
  %v5827 = vld [vmem:[%s5819 + $0x1c] sm:$0xf]
  %v5837 = vunpack.c.l.b16 %v4649
  %v5838 = vunpack.c.l.b16 %v4650
  %v5839 = vunpack.c.l.b16 %v4651
  %v5840 = vunpack.c.l.b16 %v4652
  %v5841 = vunpack.c.l.b16 %v4653
  %v5842 = vunpack.c.l.b16 %v4654
  %v5843 = vunpack.c.l.b16 %v4655
  %v5844 = vunpack.c.l.b16 %v4656
  %v5845 = vunpack.c.l.b16 %v4657
  %v5846 = vpack.c.b16 %v5838, %v5837
  %v5847 = vpack.c.b16 %v5840, %v5839
  %v5848 = vpack.c.b16 %v5842, %v5841
  %v5849 = vpack.c.b16 %v5844, %v5843
  %v5850 = vpack.c.b16 %v5845, %v5845
  %v5859 = vunpack.c.l.b16 %v5820
  %v5860 = vunpack.c.l.b16 %v5821
  %v5861 = vunpack.c.l.b16 %v5822
  %v5862 = vunpack.c.l.b16 %v5823
  %v5863 = vunpack.c.l.b16 %v5824
  %v5864 = vunpack.c.l.b16 %v5825
  %v5865 = vunpack.c.l.b16 %v5826
  %v5866 = vunpack.c.l.b16 %v5827
  %v5867 = vpack.c.b16 %v5860, %v5859
  %v5868 = vpack.c.b16 %v5862, %v5861
  %v5869 = vpack.c.b16 %v5864, %v5863
  %v5870 = vpack.c.b16 %v5866, %v5865
  %v5876 = vsel %vm1163, %v5846, 0
  %v5879 = vsel %vm1163, %v5847, 0
  %v5882 = vsel %vm1163, %v5848, 0
  %v5885 = vsel %vm1163, %v5849, 0
  %v5888 = vsel %vm1163, %v5850, 0
  %5890 = vmatpush.bf16.msra.mxu0 0
  %5891 = vmatpush.bf16.msra.mxu0 0
  %5892 = vmatpush.bf16.msra.mxu0 0
  %5893 = vmatpush.bf16.msra.mxu0 0
  %5894 = vmatpush.bf16.msra.mxu0 %v5870
  %5895 = vmatpush.bf16.msra.mxu0 %v5869
  %5896 = vmatpush.bf16.msra.mxu0 %v5868
  %5897 = vmatpush.bf16.msra.mxu0 %v5867
  %5898 = vmatmul.bf16.gmra.mxu0 %v5876
  %v5899 = vpop.f32.mrf.mxu0
  %v5900 = vadd.f32 0.0, %v5899
  %v5901 = vpop.f32.mrf.mxu0
  %v5902 = vadd.f32 0.0, %v5901
  %5903 = vmatmul.bf16.gmra.mxu0 %v5879
  %v5904 = vpop.f32.mrf.mxu0
  %v5905 = vadd.f32 0.0, %v5904
  %v5906 = vpop.f32.mrf.mxu0
  %v5907 = vadd.f32 0.0, %v5906
  %5908 = vmatmul.bf16.gmra.mxu0 %v5882
  %v5909 = vpop.f32.mrf.mxu0
  %v5910 = vadd.f32 0.0, %v5909
  %v5911 = vpop.f32.mrf.mxu0
  %v5912 = vadd.f32 0.0, %v5911
  %5913 = vmatmul.bf16.gmra.mxu0 %v5885
  %v5914 = vpop.f32.mrf.mxu0
  %v5915 = vadd.f32 0.0, %v5914
  %v5916 = vpop.f32.mrf.mxu0
  %v5917 = vadd.f32 0.0, %v5916
  %5918 = vmatmul.bf16.gmra.mxu0 %v5888
  %v5919 = vpop.f32.mrf.mxu0
  %v5920 = vadd.f32 0.0, %v5919
  %v5921 = vpop.f32.mrf.mxu0
  %5922 = vdwg.mxu0
  %v5923 = vadd.f32 %v5810, %v5900
  %v5924 = vadd.f32 %v5811, %v5902
  %v5925 = vadd.f32 %v5812, %v5905
  %v5926 = vadd.f32 %v5813, %v5907
  %v5927 = vadd.f32 %v5814, %v5910
  %v5928 = vadd.f32 %v5815, %v5912
  %v5929 = vadd.f32 %v5816, %v5915
  %v5930 = vadd.f32 %v5817, %v5917
  %v5931 = vadd.f32 %v5818, %v5920
  %s5932 = scalar_lea.vmem [#allocation2], 352
  %v5933 = vld [vmem:[%s5932] sm:$0xf]
  %v5934 = vld [vmem:[%s5932 + $0x4] sm:$0xf]
  %v5935 = vld [vmem:[%s5932 + $0x8] sm:$0xf]
  %v5936 = vld [vmem:[%s5932 + $0xc] sm:$0xf]
  %v5937 = vld [vmem:[%s5932 + $0x10] sm:$0xf]
  %v5938 = vld [vmem:[%s5932 + $0x14] sm:$0xf]
  %v5939 = vld [vmem:[%s5932 + $0x18] sm:$0xf]
  %v5940 = vld [vmem:[%s5932 + $0x1c] sm:$0xf]
  %v5950 = vunpack.c.l.b16 %v4658
  %v5951 = vunpack.c.l.b16 %v4659
  %v5952 = vunpack.c.l.b16 %v4660
  %v5953 = vunpack.c.l.b16 %v4661
  %v5954 = vunpack.c.l.b16 %v4662
  %v5955 = vunpack.c.l.b16 %v4663
  %v5956 = vunpack.c.l.b16 %v4664
  %v5957 = vunpack.c.l.b16 %v4665
  %v5958 = vunpack.c.l.b16 %v4666
  %v5959 = vpack.c.b16 %v5951, %v5950
  %v5960 = vpack.c.b16 %v5953, %v5952
  %v5961 = vpack.c.b16 %v5955, %v5954
  %v5962 = vpack.c.b16 %v5957, %v5956
  %v5963 = vpack.c.b16 %v5958, %v5958
  %v5972 = vunpack.c.l.b16 %v5933
  %v5973 = vunpack.c.l.b16 %v5934
  %v5974 = vunpack.c.l.b16 %v5935
  %v5975 = vunpack.c.l.b16 %v5936
  %v5976 = vunpack.c.l.b16 %v5937
  %v5977 = vunpack.c.l.b16 %v5938
  %v5978 = vunpack.c.l.b16 %v5939
  %v5979 = vunpack.c.l.b16 %v5940
  %v5980 = vpack.c.b16 %v5973, %v5972
  %v5981 = vpack.c.b16 %v5975, %v5974
  %v5982 = vpack.c.b16 %v5977, %v5976
  %v5983 = vpack.c.b16 %v5979, %v5978
  %v5989 = vsel %vm1163, %v5959, 0
  %v5992 = vsel %vm1163, %v5960, 0
  %v5995 = vsel %vm1163, %v5961, 0
  %v5998 = vsel %vm1163, %v5962, 0
  %v6001 = vsel %vm1163, %v5963, 0
  %6003 = vmatpush.bf16.msra.mxu0 0
  %6004 = vmatpush.bf16.msra.mxu0 0
  %6005 = vmatpush.bf16.msra.mxu0 0
  %6006 = vmatpush.bf16.msra.mxu0 0
  %6007 = vmatpush.bf16.msra.mxu0 %v5983
  %6008 = vmatpush.bf16.msra.mxu0 %v5982
  %6009 = vmatpush.bf16.msra.mxu0 %v5981
  %6010 = vmatpush.bf16.msra.mxu0 %v5980
  %6011 = vmatmul.bf16.gmra.mxu0 %v5989
  %v6012 = vpop.f32.mrf.mxu0
  %v6013 = vadd.f32 0.0, %v6012
  %v6014 = vpop.f32.mrf.mxu0
  %v6015 = vadd.f32 0.0, %v6014
  %6016 = vmatmul.bf16.gmra.mxu0 %v5992
  %v6017 = vpop.f32.mrf.mxu0
  %v6018 = vadd.f32 0.0, %v6017
  %v6019 = vpop.f32.mrf.mxu0
  %v6020 = vadd.f32 0.0, %v6019
  %6021 = vmatmul.bf16.gmra.mxu0 %v5995
  %v6022 = vpop.f32.mrf.mxu0
  %v6023 = vadd.f32 0.0, %v6022
  %v6024 = vpop.f32.mrf.mxu0
  %v6025 = vadd.f32 0.0, %v6024
  %6026 = vmatmul.bf16.gmra.mxu0 %v5998
  %v6027 = vpop.f32.mrf.mxu0
  %v6028 = vadd.f32 0.0, %v6027
  %v6029 = vpop.f32.mrf.mxu0
  %v6030 = vadd.f32 0.0, %v6029
  %6031 = vmatmul.bf16.gmra.mxu0 %v6001
  %v6032 = vpop.f32.mrf.mxu0
  %v6033 = vadd.f32 0.0, %v6032
  %v6034 = vpop.f32.mrf.mxu0
  %6035 = vdwg.mxu0
  %v6036 = vadd.f32 %v5923, %v6013
  %v6037 = vadd.f32 %v5924, %v6015
  %v6038 = vadd.f32 %v5925, %v6018
  %v6039 = vadd.f32 %v5926, %v6020
  %v6040 = vadd.f32 %v5927, %v6023
  %v6041 = vadd.f32 %v5928, %v6025
  %v6042 = vadd.f32 %v5929, %v6028
  %v6043 = vadd.f32 %v5930, %v6030
  %v6044 = vadd.f32 %v5931, %v6033
  %s6045 = scalar_lea.vmem [#allocation2], 384
  %v6046 = vld [vmem:[%s6045] sm:$0xf]
  %v6047 = vld [vmem:[%s6045 + $0x4] sm:$0xf]
  %v6048 = vld [vmem:[%s6045 + $0x8] sm:$0xf]
  %v6049 = vld [vmem:[%s6045 + $0xc] sm:$0xf]
  %v6050 = vld [vmem:[%s6045 + $0x10] sm:$0xf]
  %v6051 = vld [vmem:[%s6045 + $0x14] sm:$0xf]
  %v6052 = vld [vmem:[%s6045 + $0x18] sm:$0xf]
  %v6053 = vld [vmem:[%s6045 + $0x1c] sm:$0xf]
  %v6063 = vunpack.c.l.b16 %v4667
  %v6064 = vunpack.c.l.b16 %v4668
  %v6065 = vunpack.c.l.b16 %v4669
  %v6066 = vunpack.c.l.b16 %v4670
  %v6067 = vunpack.c.l.b16 %v4671
  %v6068 = vunpack.c.l.b16 %v4672
  %v6069 = vunpack.c.l.b16 %v4673
  %v6070 = vunpack.c.l.b16 %v4674
  %v6071 = vunpack.c.l.b16 %v4675
  %v6072 = vpack.c.b16 %v6064, %v6063
  %v6073 = vpack.c.b16 %v6066, %v6065
  %v6074 = vpack.c.b16 %v6068, %v6067
  %v6075 = vpack.c.b16 %v6070, %v6069
  %v6076 = vpack.c.b16 %v6071, %v6071
  %v6085 = vunpack.c.l.b16 %v6046
  %v6086 = vunpack.c.l.b16 %v6047
  %v6087 = vunpack.c.l.b16 %v6048
  %v6088 = vunpack.c.l.b16 %v6049
  %v6089 = vunpack.c.l.b16 %v6050
  %v6090 = vunpack.c.l.b16 %v6051
  %v6091 = vunpack.c.l.b16 %v6052
  %v6092 = vunpack.c.l.b16 %v6053
  %v6093 = vpack.c.b16 %v6086, %v6085
  %v6094 = vpack.c.b16 %v6088, %v6087
  %v6095 = vpack.c.b16 %v6090, %v6089
  %v6096 = vpack.c.b16 %v6092, %v6091
  %v6102 = vsel %vm1163, %v6072, 0
  %v6105 = vsel %vm1163, %v6073, 0
  %v6108 = vsel %vm1163, %v6074, 0
  %v6111 = vsel %vm1163, %v6075, 0
  %v6114 = vsel %vm1163, %v6076, 0
  %6116 = vmatpush.bf16.msra.mxu0 0
  %6117 = vmatpush.bf16.msra.mxu0 0
  %6118 = vmatpush.bf16.msra.mxu0 0
  %6119 = vmatpush.bf16.msra.mxu0 0
  %6120 = vmatpush.bf16.msra.mxu0 %v6096
  %6121 = vmatpush.bf16.msra.mxu0 %v6095
  %6122 = vmatpush.bf16.msra.mxu0 %v6094
  %6123 = vmatpush.bf16.msra.mxu0 %v6093
  %6124 = vmatmul.bf16.gmra.mxu0 %v6102
  %v6125 = vpop.f32.mrf.mxu0
  %v6126 = vadd.f32 0.0, %v6125
  %v6127 = vpop.f32.mrf.mxu0
  %v6128 = vadd.f32 0.0, %v6127
  %6129 = vmatmul.bf16.gmra.mxu0 %v6105
  %v6130 = vpop.f32.mrf.mxu0
  %v6131 = vadd.f32 0.0, %v6130
  %v6132 = vpop.f32.mrf.mxu0
  %v6133 = vadd.f32 0.0, %v6132
  %6134 = vmatmul.bf16.gmra.mxu0 %v6108
  %v6135 = vpop.f32.mrf.mxu0
  %v6136 = vadd.f32 0.0, %v6135
  %v6137 = vpop.f32.mrf.mxu0
  %v6138 = vadd.f32 0.0, %v6137
  %6139 = vmatmul.bf16.gmra.mxu0 %v6111
  %v6140 = vpop.f32.mrf.mxu0
  %v6141 = vadd.f32 0.0, %v6140
  %v6142 = vpop.f32.mrf.mxu0
  %v6143 = vadd.f32 0.0, %v6142
  %6144 = vmatmul.bf16.gmra.mxu0 %v6114
  %v6145 = vpop.f32.mrf.mxu0
  %v6146 = vadd.f32 0.0, %v6145
  %v6147 = vpop.f32.mrf.mxu0
  %6148 = vdwg.mxu0
  %v6149 = vadd.f32 %v6036, %v6126
  %v6150 = vadd.f32 %v6037, %v6128
  %v6151 = vadd.f32 %v6038, %v6131
  %v6152 = vadd.f32 %v6039, %v6133
  %v6153 = vadd.f32 %v6040, %v6136
  %v6154 = vadd.f32 %v6041, %v6138
  %v6155 = vadd.f32 %v6042, %v6141
  %v6156 = vadd.f32 %v6043, %v6143
  %v6157 = vadd.f32 %v6044, %v6146
  %s6158 = scalar_lea.vmem [#allocation2], 416
  %v6159 = vld [vmem:[%s6158] sm:$0xf]
  %v6160 = vld [vmem:[%s6158 + $0x4] sm:$0xf]
  %v6161 = vld [vmem:[%s6158 + $0x8] sm:$0xf]
  %v6162 = vld [vmem:[%s6158 + $0xc] sm:$0xf]
  %v6163 = vld [vmem:[%s6158 + $0x10] sm:$0xf]
  %v6164 = vld [vmem:[%s6158 + $0x14] sm:$0xf]
  %v6165 = vld [vmem:[%s6158 + $0x18] sm:$0xf]
  %v6166 = vld [vmem:[%s6158 + $0x1c] sm:$0xf]
  %v6176 = vunpack.c.l.b16 %v4676
  %v6177 = vunpack.c.l.b16 %v4677
  %v6178 = vunpack.c.l.b16 %v4678
  %v6179 = vunpack.c.l.b16 %v4679
  %v6180 = vunpack.c.l.b16 %v4680
  %v6181 = vunpack.c.l.b16 %v4681
  %v6182 = vunpack.c.l.b16 %v4682
  %v6183 = vunpack.c.l.b16 %v4683
  %v6184 = vunpack.c.l.b16 %v4684
  %v6185 = vpack.c.b16 %v6177, %v6176
  %v6186 = vpack.c.b16 %v6179, %v6178
  %v6187 = vpack.c.b16 %v6181, %v6180
  %v6188 = vpack.c.b16 %v6183, %v6182
  %v6189 = vpack.c.b16 %v6184, %v6184
  %v6198 = vunpack.c.l.b16 %v6159
  %v6199 = vunpack.c.l.b16 %v6160
  %v6200 = vunpack.c.l.b16 %v6161
  %v6201 = vunpack.c.l.b16 %v6162
  %v6202 = vunpack.c.l.b16 %v6163
  %v6203 = vunpack.c.l.b16 %v6164
  %v6204 = vunpack.c.l.b16 %v6165
  %v6205 = vunpack.c.l.b16 %v6166
  %v6206 = vpack.c.b16 %v6199, %v6198
  %v6207 = vpack.c.b16 %v6201, %v6200
  %v6208 = vpack.c.b16 %v6203, %v6202
  %v6209 = vpack.c.b16 %v6205, %v6204
  %v6215 = vsel %vm1163, %v6185, 0
  %v6218 = vsel %vm1163, %v6186, 0
  %v6221 = vsel %vm1163, %v6187, 0
  %v6224 = vsel %vm1163, %v6188, 0
  %v6227 = vsel %vm1163, %v6189, 0
  %6229 = vmatpush.bf16.msra.mxu0 0
  %6230 = vmatpush.bf16.msra.mxu0 0
  %6231 = vmatpush.bf16.msra.mxu0 0
  %6232 = vmatpush.bf16.msra.mxu0 0
  %6233 = vmatpush.bf16.msra.mxu0 %v6209
  %6234 = vmatpush.bf16.msra.mxu0 %v6208
  %6235 = vmatpush.bf16.msra.mxu0 %v6207
  %6236 = vmatpush.bf16.msra.mxu0 %v6206
  %6237 = vmatmul.bf16.gmra.mxu0 %v6215
  %v6238 = vpop.f32.mrf.mxu0
  %v6239 = vadd.f32 0.0, %v6238
  %v6240 = vpop.f32.mrf.mxu0
  %v6241 = vadd.f32 0.0, %v6240
  %6242 = vmatmul.bf16.gmra.mxu0 %v6218
  %v6243 = vpop.f32.mrf.mxu0
  %v6244 = vadd.f32 0.0, %v6243
  %v6245 = vpop.f32.mrf.mxu0
  %v6246 = vadd.f32 0.0, %v6245
  %6247 = vmatmul.bf16.gmra.mxu0 %v6221
  %v6248 = vpop.f32.mrf.mxu0
  %v6249 = vadd.f32 0.0, %v6248
  %v6250 = vpop.f32.mrf.mxu0
  %v6251 = vadd.f32 0.0, %v6250
  %6252 = vmatmul.bf16.gmra.mxu0 %v6224
  %v6253 = vpop.f32.mrf.mxu0
  %v6254 = vadd.f32 0.0, %v6253
  %v6255 = vpop.f32.mrf.mxu0
  %v6256 = vadd.f32 0.0, %v6255
  %6257 = vmatmul.bf16.gmra.mxu0 %v6227
  %v6258 = vpop.f32.mrf.mxu0
  %v6259 = vadd.f32 0.0, %v6258
  %v6260 = vpop.f32.mrf.mxu0
  %6261 = vdwg.mxu0
  %v6262 = vadd.f32 %v6149, %v6239
  %v6263 = vadd.f32 %v6150, %v6241
  %v6264 = vadd.f32 %v6151, %v6244
  %v6265 = vadd.f32 %v6152, %v6246
  %v6266 = vadd.f32 %v6153, %v6249
  %v6267 = vadd.f32 %v6154, %v6251
  %v6268 = vadd.f32 %v6155, %v6254
  %v6269 = vadd.f32 %v6156, %v6256
  %v6270 = vadd.f32 %v6157, %v6259
  %s6271 = scalar_lea.vmem [#allocation2], 448
  %v6272 = vld [vmem:[%s6271] sm:$0xf]
  %v6273 = vld [vmem:[%s6271 + $0x4] sm:$0xf]
  %v6274 = vld [vmem:[%s6271 + $0x8] sm:$0xf]
  %v6275 = vld [vmem:[%s6271 + $0xc] sm:$0xf]
  %v6276 = vld [vmem:[%s6271 + $0x10] sm:$0xf]
  %v6277 = vld [vmem:[%s6271 + $0x14] sm:$0xf]
  %v6278 = vld [vmem:[%s6271 + $0x18] sm:$0xf]
  %v6279 = vld [vmem:[%s6271 + $0x1c] sm:$0xf]
  %v6289 = vunpack.c.l.b16 %v4685
  %v6290 = vunpack.c.l.b16 %v4686
  %v6291 = vunpack.c.l.b16 %v4687
  %v6292 = vunpack.c.l.b16 %v4688
  %v6293 = vunpack.c.l.b16 %v4689
  %v6294 = vunpack.c.l.b16 %v4690
  %v6295 = vunpack.c.l.b16 %v4691
  %v6296 = vunpack.c.l.b16 %v4692
  %v6297 = vunpack.c.l.b16 %v4693
  %v6298 = vpack.c.b16 %v6290, %v6289
  %v6299 = vpack.c.b16 %v6292, %v6291
  %v6300 = vpack.c.b16 %v6294, %v6293
  %v6301 = vpack.c.b16 %v6296, %v6295
  %v6302 = vpack.c.b16 %v6297, %v6297
  %v6311 = vunpack.c.l.b16 %v6272
  %v6312 = vunpack.c.l.b16 %v6273
  %v6313 = vunpack.c.l.b16 %v6274
  %v6314 = vunpack.c.l.b16 %v6275
  %v6315 = vunpack.c.l.b16 %v6276
  %v6316 = vunpack.c.l.b16 %v6277
  %v6317 = vunpack.c.l.b16 %v6278
  %v6318 = vunpack.c.l.b16 %v6279
  %v6319 = vpack.c.b16 %v6312, %v6311
  %v6320 = vpack.c.b16 %v6314, %v6313
  %v6321 = vpack.c.b16 %v6316, %v6315
  %v6322 = vpack.c.b16 %v6318, %v6317
  %v6328 = vsel %vm1163, %v6298, 0
  %v6331 = vsel %vm1163, %v6299, 0
  %v6334 = vsel %vm1163, %v6300, 0
  %v6337 = vsel %vm1163, %v6301, 0
  %v6340 = vsel %vm1163, %v6302, 0
  %6342 = vmatpush.bf16.msra.mxu0 0
  %6343 = vmatpush.bf16.msra.mxu0 0
  %6344 = vmatpush.bf16.msra.mxu0 0
  %6345 = vmatpush.bf16.msra.mxu0 0
  %6346 = vmatpush.bf16.msra.mxu0 %v6322
  %6347 = vmatpush.bf16.msra.mxu0 %v6321
  %6348 = vmatpush.bf16.msra.mxu0 %v6320
  %6349 = vmatpush.bf16.msra.mxu0 %v6319
  %6350 = vmatmul.bf16.gmra.mxu0 %v6328
  %v6351 = vpop.f32.mrf.mxu0
  %v6352 = vadd.f32 0.0, %v6351
  %v6353 = vpop.f32.mrf.mxu0
  %v6354 = vadd.f32 0.0, %v6353
  %6355 = vmatmul.bf16.gmra.mxu0 %v6331
  %v6356 = vpop.f32.mrf.mxu0
  %v6357 = vadd.f32 0.0, %v6356
  %v6358 = vpop.f32.mrf.mxu0
  %v6359 = vadd.f32 0.0, %v6358
  %6360 = vmatmul.bf16.gmra.mxu0 %v6334
  %v6361 = vpop.f32.mrf.mxu0
  %v6362 = vadd.f32 0.0, %v6361
  %v6363 = vpop.f32.mrf.mxu0
  %v6364 = vadd.f32 0.0, %v6363
  %6365 = vmatmul.bf16.gmra.mxu0 %v6337
  %v6366 = vpop.f32.mrf.mxu0
  %v6367 = vadd.f32 0.0, %v6366
  %v6368 = vpop.f32.mrf.mxu0
  %v6369 = vadd.f32 0.0, %v6368
  %6370 = vmatmul.bf16.gmra.mxu0 %v6340
  %v6371 = vpop.f32.mrf.mxu0
  %v6372 = vadd.f32 0.0, %v6371
  %v6373 = vpop.f32.mrf.mxu0
  %6374 = vdwg.mxu0
  %v6375 = vadd.f32 %v6262, %v6352
  %v6376 = vadd.f32 %v6263, %v6354
  %v6377 = vadd.f32 %v6264, %v6357
  %v6378 = vadd.f32 %v6265, %v6359
  %v6379 = vadd.f32 %v6266, %v6362
  %v6380 = vadd.f32 %v6267, %v6364
  %v6381 = vadd.f32 %v6268, %v6367
  %v6382 = vadd.f32 %v6269, %v6369
  %v6383 = vadd.f32 %v6270, %v6372
  %s6384 = scalar_lea.vmem [#allocation2], 480
  %v6385 = vld [vmem:[%s6384] sm:$0xf]
  %v6386 = vld [vmem:[%s6384 + $0x4] sm:$0xf]
  %v6387 = vld [vmem:[%s6384 + $0x8] sm:$0xf]
  %v6388 = vld [vmem:[%s6384 + $0xc] sm:$0xf]
  %v6389 = vld [vmem:[%s6384 + $0x10] sm:$0xf]
  %v6390 = vld [vmem:[%s6384 + $0x14] sm:$0xf]
  %v6391 = vld [vmem:[%s6384 + $0x18] sm:$0xf]
  %v6392 = vld [vmem:[%s6384 + $0x1c] sm:$0xf]
  %v6402 = vunpack.c.l.b16 %v4694
  %v6403 = vunpack.c.l.b16 %v4695
  %v6404 = vunpack.c.l.b16 %v4696
  %v6405 = vunpack.c.l.b16 %v4697
  %v6406 = vunpack.c.l.b16 %v4698
  %v6407 = vunpack.c.l.b16 %v4699
  %v6408 = vunpack.c.l.b16 %v4700
  %v6409 = vunpack.c.l.b16 %v4701
  %v6410 = vunpack.c.l.b16 %v4702
  %v6411 = vpack.c.b16 %v6403, %v6402
  %v6412 = vpack.c.b16 %v6405, %v6404
  %v6413 = vpack.c.b16 %v6407, %v6406
  %v6414 = vpack.c.b16 %v6409, %v6408
  %v6415 = vpack.c.b16 %v6410, %v6410
  %v6424 = vunpack.c.l.b16 %v6385
  %v6425 = vunpack.c.l.b16 %v6386
  %v6426 = vunpack.c.l.b16 %v6387
  %v6427 = vunpack.c.l.b16 %v6388
  %v6428 = vunpack.c.l.b16 %v6389
  %v6429 = vunpack.c.l.b16 %v6390
  %v6430 = vunpack.c.l.b16 %v6391
  %v6431 = vunpack.c.l.b16 %v6392
  %v6432 = vpack.c.b16 %v6425, %v6424
  %v6433 = vpack.c.b16 %v6427, %v6426
  %v6434 = vpack.c.b16 %v6429, %v6428
  %v6435 = vpack.c.b16 %v6431, %v6430
  %v6441 = vsel %vm1163, %v6411, 0
  %v6444 = vsel %vm1163, %v6412, 0
  %v6447 = vsel %vm1163, %v6413, 0
  %v6450 = vsel %vm1163, %v6414, 0
  %v6453 = vsel %vm1163, %v6415, 0
  %6455 = vmatpush.bf16.msra.mxu0 0
  %6456 = vmatpush.bf16.msra.mxu0 0
  %6457 = vmatpush.bf16.msra.mxu0 0
  %6458 = vmatpush.bf16.msra.mxu0 0
  %6459 = vmatpush.bf16.msra.mxu0 %v6435
  %6460 = vmatpush.bf16.msra.mxu0 %v6434
  %6461 = vmatpush.bf16.msra.mxu0 %v6433
  %6462 = vmatpush.bf16.msra.mxu0 %v6432
  %6463 = vmatmul.bf16.gmra.mxu0 %v6441
  %v6464 = vpop.f32.mrf.mxu0
  %v6465 = vadd.f32 0.0, %v6464
  %v6466 = vpop.f32.mrf.mxu0
  %v6467 = vadd.f32 0.0, %v6466
  %6468 = vmatmul.bf16.gmra.mxu0 %v6444
  %v6469 = vpop.f32.mrf.mxu0
  %v6470 = vadd.f32 0.0, %v6469
  %v6471 = vpop.f32.mrf.mxu0
  %v6472 = vadd.f32 0.0, %v6471
  %6473 = vmatmul.bf16.gmra.mxu0 %v6447
  %v6474 = vpop.f32.mrf.mxu0
  %v6475 = vadd.f32 0.0, %v6474
  %v6476 = vpop.f32.mrf.mxu0
  %v6477 = vadd.f32 0.0, %v6476
  %6478 = vmatmul.bf16.gmra.mxu0 %v6450
  %v6479 = vpop.f32.mrf.mxu0
  %v6480 = vadd.f32 0.0, %v6479
  %v6481 = vpop.f32.mrf.mxu0
  %v6482 = vadd.f32 0.0, %v6481
  %6483 = vmatmul.bf16.gmra.mxu0 %v6453
  %v6484 = vpop.f32.mrf.mxu0
  %v6485 = vadd.f32 0.0, %v6484
  %v6486 = vpop.f32.mrf.mxu0
  %6487 = vdwg.mxu0
  %v6488 = vadd.f32 %v6375, %v6465
  %v6489 = vadd.f32 %v6376, %v6467
  %v6490 = vadd.f32 %v6377, %v6470
  %v6491 = vadd.f32 %v6378, %v6472
  %v6492 = vadd.f32 %v6379, %v6475
  %v6493 = vadd.f32 %v6380, %v6477
  %v6494 = vadd.f32 %v6381, %v6480
  %v6495 = vadd.f32 %v6382, %v6482
  %v6496 = vadd.f32 %v6383, %v6485
  %v6497 = vadd.f32 %v6488, %v6489
  %v6498 = vadd.f32 %v6497, %v6490
  %v6499 = vadd.f32 %v6498, %v6491
  %v6500 = vadd.f32 %v6499, %v6492
  %v6501 = vadd.f32 %v6500, %v6493
  %v6502 = vadd.f32 %v6501, %v6494
  %v6503 = vadd.f32 %v6502, %v6495
  %v6504 = vadd.f32 %v6503, %v6496
  %v6505 = vrot.slane %v6504, 4
  %v6506 = vadd.f32 %v6504, %v6505
  %v6507 = vrot.slane %v6506, 2
  %v6508 = vadd.f32 %v6506, %v6507
  %v6509 = vrot.slane %v6508, 1
  %v6510 = vadd.f32 %v6508, %v6509
  %v6511 = vmul.f32 %v6510, 0.013888889
  %v6512 = vmul.f32 %v6488, %v6488
  %v6513 = vmul.f32 %v6489, %v6489
  %v6514 = vmul.f32 %v6490, %v6490
  %v6515 = vmul.f32 %v6491, %v6491
  %v6516 = vmul.f32 %v6492, %v6492
  %v6517 = vmul.f32 %v6493, %v6493
  %v6518 = vmul.f32 %v6494, %v6494
  %v6519 = vmul.f32 %v6495, %v6495
  %v6520 = vmul.f32 %v6496, %v6496
  %v6521 = vadd.f32 %v6512, %v6513
  %v6522 = vadd.f32 %v6521, %v6514
  %v6523 = vadd.f32 %v6522, %v6515
  %v6524 = vadd.f32 %v6523, %v6516
  %v6525 = vadd.f32 %v6524, %v6517
  %v6526 = vadd.f32 %v6525, %v6518
  %v6527 = vadd.f32 %v6526, %v6519
  %v6528 = vadd.f32 %v6527, %v6520
  %v6529 = vrot.slane %v6528, 4
  %v6530 = vadd.f32 %v6528, %v6529
  %v6531 = vrot.slane %v6530, 2
  %v6532 = vadd.f32 %v6530, %v6531
  %v6533 = vrot.slane %v6532, 1
  %v6534 = vadd.f32 %v6532, %v6533
  %v6535 = vmul.f32 %v6534, 0.013888889
  %v6536 = vmul.f32 %v6511, %v6511
  %v6537 = vsub.f32 %v6535, %v6536
  %v6538 = vmax.f32 %v6537, 0.0
  %v6539 = vadd.f32 %v6538, 1e-05
  %v6540 = vrsqrt.pop %v6539
  %v6541 = vmul.f32 %v6540, %v6539
  %v6542 = vmul.f32 %v6541, %v6540
  %v6543 = vmul.f32 0.5, %v6542
  %v6544 = vsub.f32 1.5, %v6543
  %v6545 = vmul.f32 %v6540, %v6544
  %vm6546 = vweird.f32 %v6539
  %vm6547 = vweird.f32 %v6540
  %vm6548 = vmor %vm6546, %vm6547
  %v6549 = vsel %vm6548, %v6540, %v6545
  %v6550 = vmul.f32 %v864, %v6549
  %v6551 = vmul.f32 %v6511, %v6550
  %v6553 = vrot.slane %v6551, 7
  %v6555 = vsub.f32 %v864, %v6553
  %v6556 = vperm.slane %v6550, 2
  %v6557 = vmul.f32 %v6488, %v6556
  %v6558 = vmul.f32 %v6489, %v6556
  %v6559 = vmul.f32 %v6490, %v6556
  %v6560 = vmul.f32 %v6491, %v6556
  %v6561 = vmul.f32 %v6492, %v6556
  %v6562 = vmul.f32 %v6493, %v6556
  %v6563 = vmul.f32 %v6494, %v6556
  %v6564 = vmul.f32 %v6495, %v6556
  %v6565 = vmul.f32 %v6496, %v6556
  %v6566 = vperm.slane %v6555, 3
  %v6567 = vadd.f32 %v6557, %v6566
  %v6568 = vadd.f32 %v6558, %v6566
  %v6569 = vadd.f32 %v6559, %v6566
  %v6570 = vadd.f32 %v6560, %v6566
  %v6571 = vadd.f32 %v6561, %v6566
  %v6572 = vadd.f32 %v6562, %v6566
  %v6573 = vadd.f32 %v6563, %v6566
  %v6574 = vadd.f32 %v6564, %v6566
  %v6575 = vadd.f32 %v6565, %v6566
  %vm6576 = vcmp.gt.f32.partialorder %v6567, 0.0
  %vm6577 = vcmp.gt.f32.partialorder %v6568, 0.0
  %vm6578 = vcmp.gt.f32.partialorder %v6569, 0.0
  %vm6579 = vcmp.gt.f32.partialorder %v6570, 0.0
  %vm6580 = vcmp.gt.f32.partialorder %v6571, 0.0
  %vm6581 = vcmp.gt.f32.partialorder %v6572, 0.0
  %vm6582 = vcmp.gt.f32.partialorder %v6573, 0.0
  %vm6583 = vcmp.gt.f32.partialorder %v6574, 0.0
  %vm6584 = vcmp.gt.f32.partialorder %v6575, 0.0
  %v6585 = vmul.f32 %v6567, 0.2
  %v6586 = vmul.f32 %v6568, 0.2
  %v6587 = vmul.f32 %v6569, 0.2
  %v6588 = vmul.f32 %v6570, 0.2
  %v6589 = vmul.f32 %v6571, 0.2
  %v6590 = vmul.f32 %v6572, 0.2
  %v6591 = vmul.f32 %v6573, 0.2
  %v6592 = vmul.f32 %v6574, 0.2
  %v6593 = vmul.f32 %v6575, 0.2
  %v6594 = vsel %vm6576, %v6567, %v6585
  %v6595 = vsel %vm6577, %v6568, %v6586
  %v6596 = vsel %vm6578, %v6569, %v6587
  %v6597 = vsel %vm6579, %v6570, %v6588
  %v6598 = vsel %vm6580, %v6571, %v6589
  %v6599 = vsel %vm6581, %v6572, %v6590
  %v6600 = vsel %vm6582, %v6573, %v6591
  %v6601 = vsel %vm6583, %v6574, %v6592
  %v6602 = vsel %vm6584, %v6575, %v6593
  %v6603 = vpack.c.bf16 %v6595, %v6594
  %v6604 = vpack.c.bf16 %v6597, %v6596
  %v6605 = vpack.c.bf16 %v6599, %v6598
  %v6606 = vpack.c.bf16 %v6601, %v6600
  %v6607 = vpack.c.bf16 %v6602, %v6602
  %v6608 = vld [vmem:[%s3] sm:$0xff]
  %v6609 = vld [vmem:[%s3 + $0x8] sm:$0xff]
  %v6610 = vld [vmem:[%s3 + $0x10] sm:$0xff]
  %v6611 = vld [vmem:[%s3 + $0x18] sm:$0xff]
  %v6612 = vld [vmem:[%s3 + $0x20] sm:$0xff]
  %v6613 = vld [vmem:[%s3 + $0x28] sm:$0xff]
  %v6614 = vld [vmem:[%s3 + $0x30] sm:$0xff]
  %v6615 = vld [vmem:[%s3 + $0x38] sm:$0xff]
  %v6616 = vld [vmem:[%s3 + $0x40] sm:$0xff]
  %v6617 = vld [vmem:[%s3 + $0x48] sm:$0xff]
  %v6618 = vld [vmem:[%s3 + $0x50] sm:$0xff]
  %v6619 = vld [vmem:[%s3 + $0x58] sm:$0xff]
  %v6620 = vld [vmem:[%s3 + $0x60] sm:$0xff]
  %v6621 = vld [vmem:[%s3 + $0x68] sm:$0xff]
  %v6622 = vld [vmem:[%s3 + $0x70] sm:$0xff]
  %v6623 = vld [vmem:[%s3 + $0x78] sm:$0xff]
  %v6624 = vld [vmem:[%s3 + $0x80] sm:$0xff]
  %v6625 = vld [vmem:[%s3 + $0x88] sm:$0xff]
  %v6626 = vld [vmem:[%s3 + $0x90] sm:$0xff]
  %v6627 = vld [vmem:[%s3 + $0x98] sm:$0xff]
  %v6628 = vld [vmem:[%s3 + $0xa0] sm:$0xff]
  %v6629 = vld [vmem:[%s3 + $0xa8] sm:$0xff]
  %v6630 = vld [vmem:[%s3 + $0xb0] sm:$0xff]
  %v6631 = vld [vmem:[%s3 + $0xb8] sm:$0xff]
  %v6632 = vld [vmem:[%s3 + $0xc0] sm:$0xff]
  %v6633 = vld [vmem:[%s3 + $0xc8] sm:$0xff]
  %v6634 = vld [vmem:[%s3 + $0xd0] sm:$0xff]
  %v6635 = vld [vmem:[%s3 + $0xd8] sm:$0xff]
  %v6636 = vld [vmem:[%s3 + $0xe0] sm:$0xff]
  %v6637 = vld [vmem:[%s3 + $0xe8] sm:$0xff]
  %v6638 = vld [vmem:[%s3 + $0xf0] sm:$0xff]
  %v6639 = vld [vmem:[%s3 + $0xf8] sm:$0xff]
  %v6640 = vld [vmem:[%s3 + $0x100] sm:$0xff]
  %v6641 = vld [vmem:[%s3 + $0x108] sm:$0xff]
  %v6642 = vld [vmem:[%s3 + $0x110] sm:$0xff]
  %v6643 = vld [vmem:[%s3 + $0x118] sm:$0xff]
  %v6644 = vld [vmem:[%s3 + $0x120] sm:$0xff]
  %v6645 = vld [vmem:[%s3 + $0x128] sm:$0xff]
  %v6646 = vld [vmem:[%s3 + $0x130] sm:$0xff]
  %v6647 = vld [vmem:[%s3 + $0x138] sm:$0xff]
  %v6648 = vld [vmem:[%s3 + $0x140] sm:$0xff]
  %v6649 = vld [vmem:[%s3 + $0x148] sm:$0xff]
  %v6650 = vld [vmem:[%s3 + $0x150] sm:$0xff]
  %v6651 = vld [vmem:[%s3 + $0x158] sm:$0xff]
  %v6652 = vld [vmem:[%s3 + $0x160] sm:$0xff]
  %v6653 = vld [vmem:[%s3 + $0x168] sm:$0xff]
  %v6654 = vld [vmem:[%s3 + $0x170] sm:$0xff]
  %v6655 = vld [vmem:[%s3 + $0x178] sm:$0xff]
  %v6656 = vld [vmem:[%s3 + $0x180] sm:$0xff]
  %v6657 = vld [vmem:[%s3 + $0x188] sm:$0xff]
  %v6658 = vld [vmem:[%s3 + $0x190] sm:$0xff]
  %v6659 = vld [vmem:[%s3 + $0x198] sm:$0xff]
  %v6660 = vld [vmem:[%s3 + $0x1a0] sm:$0xff]
  %v6661 = vld [vmem:[%s3 + $0x1a8] sm:$0xff]
  %v6662 = vld [vmem:[%s3 + $0x1b0] sm:$0xff]
  %v6663 = vld [vmem:[%s3 + $0x1b8] sm:$0xff]
  %v6664 = vld [vmem:[%s3 + $0x1c0] sm:$0xff]
  %v6665 = vld [vmem:[%s3 + $0x1c8] sm:$0xff]
  %v6666 = vld [vmem:[%s3 + $0x1d0] sm:$0xff]
  %v6667 = vld [vmem:[%s3 + $0x1d8] sm:$0xff]
  %v6668 = vld [vmem:[%s3 + $0x1e0] sm:$0xff]
  %v6669 = vld [vmem:[%s3 + $0x1e8] sm:$0xff]
  %v6670 = vld [vmem:[%s3 + $0x1f0] sm:$0xff]
  %v6671 = vld [vmem:[%s3 + $0x1f8] sm:$0xff]
  %v6672 = vld [vmem:[%s3 + $0x200] sm:$0xff]
  %v6673 = vld [vmem:[%s3 + $0x208] sm:$0xff]
  %v6674 = vld [vmem:[%s3 + $0x210] sm:$0xff]
  %v6675 = vld [vmem:[%s3 + $0x218] sm:$0xff]
  %v6676 = vld [vmem:[%s3 + $0x220] sm:$0xff]
  %v6677 = vld [vmem:[%s3 + $0x228] sm:$0xff]
  %v6678 = vld [vmem:[%s3 + $0x230] sm:$0xff]
  %v6679 = vld [vmem:[%s3 + $0x238] sm:$0xff]
  %v6680 = vld [vmem:[%s3 + $0x240] sm:$0xff]
  %v6681 = vld [vmem:[%s3 + $0x248] sm:$0xff]
  %v6682 = vld [vmem:[%s3 + $0x250] sm:$0xff]
  %v6683 = vld [vmem:[%s3 + $0x258] sm:$0xff]
  %v6684 = vld [vmem:[%s3 + $0x260] sm:$0xff]
  %v6685 = vld [vmem:[%s3 + $0x268] sm:$0xff]
  %v6686 = vld [vmem:[%s3 + $0x270] sm:$0xff]
  %v6687 = vld [vmem:[%s3 + $0x278] sm:$0xff]
  %v6688 = vld [vmem:[%s3 + $0x280] sm:$0xff]
  %6689 = vset.pattern.permute.xlu0 0
  %6690 = vperm.xlu0 %6689, %v6608
  %v6691 = vpop.permute.xlu0 %6690
  %6692 = vset.pattern.permute.xlu0 0
  %6693 = vperm.xlu0 %6692, %v6609
  %v6694 = vpop.permute.xlu0 %6693
  %6695 = vset.pattern.permute.xlu0 0
  %6696 = vperm.xlu0 %6695, %v6610
  %v6697 = vpop.permute.xlu0 %6696
  %6698 = vset.pattern.permute.xlu0 0
  %6699 = vperm.xlu0 %6698, %v6611
  %v6700 = vpop.permute.xlu0 %6699
  %6701 = vset.pattern.permute.xlu0 0
  %6702 = vperm.xlu0 %6701, %v6612
  %v6703 = vpop.permute.xlu0 %6702
  %6704 = vset.pattern.permute.xlu0 0
  %6705 = vperm.xlu0 %6704, %v6613
  %v6706 = vpop.permute.xlu0 %6705
  %6707 = vset.pattern.permute.xlu0 0
  %6708 = vperm.xlu0 %6707, %v6614
  %v6709 = vpop.permute.xlu0 %6708
  %6710 = vset.pattern.permute.xlu0 0
  %6711 = vperm.xlu0 %6710, %v6615
  %v6712 = vpop.permute.xlu0 %6711
  %6713 = vset.pattern.permute.xlu0 0
  %6714 = vperm.xlu0 %6713, %v6616
  %v6715 = vpop.permute.xlu0 %6714
  %6716 = vset.pattern.permute.xlu0 0
  %6717 = vperm.xlu0 %6716, %v6617
  %v6718 = vpop.permute.xlu0 %6717
  %6719 = vset.pattern.permute.xlu0 0
  %6720 = vperm.xlu0 %6719, %v6618
  %v6721 = vpop.permute.xlu0 %6720
  %6722 = vset.pattern.permute.xlu0 0
  %6723 = vperm.xlu0 %6722, %v6619
  %v6724 = vpop.permute.xlu0 %6723
  %6725 = vset.pattern.permute.xlu0 0
  %6726 = vperm.xlu0 %6725, %v6620
  %v6727 = vpop.permute.xlu0 %6726
  %6728 = vset.pattern.permute.xlu0 0
  %6729 = vperm.xlu0 %6728, %v6621
  %v6730 = vpop.permute.xlu0 %6729
  %6731 = vset.pattern.permute.xlu0 0
  %6732 = vperm.xlu0 %6731, %v6622
  %v6733 = vpop.permute.xlu0 %6732
  %6734 = vset.pattern.permute.xlu0 0
  %6735 = vperm.xlu0 %6734, %v6623
  %v6736 = vpop.permute.xlu0 %6735
  %6737 = vset.pattern.permute.xlu0 0
  %6738 = vperm.xlu0 %6737, %v6624
  %v6739 = vpop.permute.xlu0 %6738
  %6740 = vset.pattern.permute.xlu0 0
  %6741 = vperm.xlu0 %6740, %v6625
  %v6742 = vpop.permute.xlu0 %6741
  %6743 = vset.pattern.permute.xlu0 0
  %6744 = vperm.xlu0 %6743, %v6626
  %v6745 = vpop.permute.xlu0 %6744
  %6746 = vset.pattern.permute.xlu0 0
  %6747 = vperm.xlu0 %6746, %v6627
  %v6748 = vpop.permute.xlu0 %6747
  %6749 = vset.pattern.permute.xlu0 0
  %6750 = vperm.xlu0 %6749, %v6628
  %v6751 = vpop.permute.xlu0 %6750
  %6752 = vset.pattern.permute.xlu0 0
  %6753 = vperm.xlu0 %6752, %v6629
  %v6754 = vpop.permute.xlu0 %6753
  %6755 = vset.pattern.permute.xlu0 0
  %6756 = vperm.xlu0 %6755, %v6630
  %v6757 = vpop.permute.xlu0 %6756
  %6758 = vset.pattern.permute.xlu0 0
  %6759 = vperm.xlu0 %6758, %v6631
  %v6760 = vpop.permute.xlu0 %6759
  %6761 = vset.pattern.permute.xlu0 0
  %6762 = vperm.xlu0 %6761, %v6632
  %v6763 = vpop.permute.xlu0 %6762
  %6764 = vset.pattern.permute.xlu0 0
  %6765 = vperm.xlu0 %6764, %v6633
  %v6766 = vpop.permute.xlu0 %6765
  %6767 = vset.pattern.permute.xlu0 0
  %6768 = vperm.xlu0 %6767, %v6634
  %v6769 = vpop.permute.xlu0 %6768
  %6770 = vset.pattern.permute.xlu0 0
  %6771 = vperm.xlu0 %6770, %v6635
  %v6772 = vpop.permute.xlu0 %6771
  %6773 = vset.pattern.permute.xlu0 0
  %6774 = vperm.xlu0 %6773, %v6636
  %v6775 = vpop.permute.xlu0 %6774
  %6776 = vset.pattern.permute.xlu0 0
  %6777 = vperm.xlu0 %6776, %v6637
  %v6778 = vpop.permute.xlu0 %6777
  %6779 = vset.pattern.permute.xlu0 0
  %6780 = vperm.xlu0 %6779, %v6638
  %v6781 = vpop.permute.xlu0 %6780
  %6782 = vset.pattern.permute.xlu0 0
  %6783 = vperm.xlu0 %6782, %v6639
  %v6784 = vpop.permute.xlu0 %6783
  %6785 = vset.pattern.permute.xlu0 0
  %6786 = vperm.xlu0 %6785, %v6640
  %v6787 = vpop.permute.xlu0 %6786
  %6788 = vset.pattern.permute.xlu0 0
  %6789 = vperm.xlu0 %6788, %v6641
  %v6790 = vpop.permute.xlu0 %6789
  %6791 = vset.pattern.permute.xlu0 0
  %6792 = vperm.xlu0 %6791, %v6642
  %v6793 = vpop.permute.xlu0 %6792
  %6794 = vset.pattern.permute.xlu0 0
  %6795 = vperm.xlu0 %6794, %v6643
  %v6796 = vpop.permute.xlu0 %6795
  %6797 = vset.pattern.permute.xlu0 0
  %6798 = vperm.xlu0 %6797, %v6644
  %v6799 = vpop.permute.xlu0 %6798
  %6800 = vset.pattern.permute.xlu0 0
  %6801 = vperm.xlu0 %6800, %v6645
  %v6802 = vpop.permute.xlu0 %6801
  %6803 = vset.pattern.permute.xlu0 0
  %6804 = vperm.xlu0 %6803, %v6646
  %v6805 = vpop.permute.xlu0 %6804
  %6806 = vset.pattern.permute.xlu0 0
  %6807 = vperm.xlu0 %6806, %v6647
  %v6808 = vpop.permute.xlu0 %6807
  %6809 = vset.pattern.permute.xlu0 0
  %6810 = vperm.xlu0 %6809, %v6648
  %v6811 = vpop.permute.xlu0 %6810
  %6812 = vset.pattern.permute.xlu0 0
  %6813 = vperm.xlu0 %6812, %v6649
  %v6814 = vpop.permute.xlu0 %6813
  %6815 = vset.pattern.permute.xlu0 0
  %6816 = vperm.xlu0 %6815, %v6650
  %v6817 = vpop.permute.xlu0 %6816
  %6818 = vset.pattern.permute.xlu0 0
  %6819 = vperm.xlu0 %6818, %v6651
  %v6820 = vpop.permute.xlu0 %6819
  %6821 = vset.pattern.permute.xlu0 0
  %6822 = vperm.xlu0 %6821, %v6652
  %v6823 = vpop.permute.xlu0 %6822
  %6824 = vset.pattern.permute.xlu0 0
  %6825 = vperm.xlu0 %6824, %v6653
  %v6826 = vpop.permute.xlu0 %6825
  %6827 = vset.pattern.permute.xlu0 0
  %6828 = vperm.xlu0 %6827, %v6654
  %v6829 = vpop.permute.xlu0 %6828
  %6830 = vset.pattern.permute.xlu0 0
  %6831 = vperm.xlu0 %6830, %v6655
  %v6832 = vpop.permute.xlu0 %6831
  %6833 = vset.pattern.permute.xlu0 0
  %6834 = vperm.xlu0 %6833, %v6656
  %v6835 = vpop.permute.xlu0 %6834
  %6836 = vset.pattern.permute.xlu0 0
  %6837 = vperm.xlu0 %6836, %v6657
  %v6838 = vpop.permute.xlu0 %6837
  %6839 = vset.pattern.permute.xlu0 0
  %6840 = vperm.xlu0 %6839, %v6658
  %v6841 = vpop.permute.xlu0 %6840
  %6842 = vset.pattern.permute.xlu0 0
  %6843 = vperm.xlu0 %6842, %v6659
  %v6844 = vpop.permute.xlu0 %6843
  %6845 = vset.pattern.permute.xlu0 0
  %6846 = vperm.xlu0 %6845, %v6660
  %v6847 = vpop.permute.xlu0 %6846
  %6848 = vset.pattern.permute.xlu0 0
  %6849 = vperm.xlu0 %6848, %v6661
  %v6850 = vpop.permute.xlu0 %6849
  %6851 = vset.pattern.permute.xlu0 0
  %6852 = vperm.xlu0 %6851, %v6662
  %v6853 = vpop.permute.xlu0 %6852
  %6854 = vset.pattern.permute.xlu0 0
  %6855 = vperm.xlu0 %6854, %v6663
  %v6856 = vpop.permute.xlu0 %6855
  %6857 = vset.pattern.permute.xlu0 0
  %6858 = vperm.xlu0 %6857, %v6664
  %v6859 = vpop.permute.xlu0 %6858
  %6860 = vset.pattern.permute.xlu0 0
  %6861 = vperm.xlu0 %6860, %v6665
  %v6862 = vpop.permute.xlu0 %6861
  %6863 = vset.pattern.permute.xlu0 0
  %6864 = vperm.xlu0 %6863, %v6666
  %v6865 = vpop.permute.xlu0 %6864
  %6866 = vset.pattern.permute.xlu0 0
  %6867 = vperm.xlu0 %6866, %v6667
  %v6868 = vpop.permute.xlu0 %6867
  %6869 = vset.pattern.permute.xlu0 0
  %6870 = vperm.xlu0 %6869, %v6668
  %v6871 = vpop.permute.xlu0 %6870
  %6872 = vset.pattern.permute.xlu0 0
  %6873 = vperm.xlu0 %6872, %v6669
  %v6874 = vpop.permute.xlu0 %6873
  %6875 = vset.pattern.permute.xlu0 0
  %6876 = vperm.xlu0 %6875, %v6670
  %v6877 = vpop.permute.xlu0 %6876
  %6878 = vset.pattern.permute.xlu0 0
  %6879 = vperm.xlu0 %6878, %v6671
  %v6880 = vpop.permute.xlu0 %6879
  %6881 = vset.pattern.permute.xlu0 0
  %6882 = vperm.xlu0 %6881, %v6672
  %v6883 = vpop.permute.xlu0 %6882
  %6884 = vset.pattern.permute.xlu0 0
  %6885 = vperm.xlu0 %6884, %v6673
  %v6886 = vpop.permute.xlu0 %6885
  %6887 = vset.pattern.permute.xlu0 0
  %6888 = vperm.xlu0 %6887, %v6674
  %v6889 = vpop.permute.xlu0 %6888
  %6890 = vset.pattern.permute.xlu0 0
  %6891 = vperm.xlu0 %6890, %v6675
  %v6892 = vpop.permute.xlu0 %6891
  %6893 = vset.pattern.permute.xlu0 0
  %6894 = vperm.xlu0 %6893, %v6676
  %v6895 = vpop.permute.xlu0 %6894
  %6896 = vset.pattern.permute.xlu0 0
  %6897 = vperm.xlu0 %6896, %v6677
  %v6898 = vpop.permute.xlu0 %6897
  %6899 = vset.pattern.permute.xlu0 0
  %6900 = vperm.xlu0 %6899, %v6678
  %v6901 = vpop.permute.xlu0 %6900
  %6902 = vset.pattern.permute.xlu0 0
  %6903 = vperm.xlu0 %6902, %v6679
  %v6904 = vpop.permute.xlu0 %6903
  %6905 = vset.pattern.permute.xlu0 0
  %6906 = vperm.xlu0 %6905, %v6680
  %v6907 = vpop.permute.xlu0 %6906
  %6908 = vset.pattern.permute.xlu0 0
  %6909 = vperm.xlu0 %6908, %v6681
  %v6910 = vpop.permute.xlu0 %6909
  %6911 = vset.pattern.permute.xlu0 0
  %6912 = vperm.xlu0 %6911, %v6682
  %v6913 = vpop.permute.xlu0 %6912
  %6914 = vset.pattern.permute.xlu0 0
  %6915 = vperm.xlu0 %6914, %v6683
  %v6916 = vpop.permute.xlu0 %6915
  %6917 = vset.pattern.permute.xlu0 0
  %6918 = vperm.xlu0 %6917, %v6684
  %v6919 = vpop.permute.xlu0 %6918
  %6920 = vset.pattern.permute.xlu0 0
  %6921 = vperm.xlu0 %6920, %v6685
  %v6922 = vpop.permute.xlu0 %6921
  %6923 = vset.pattern.permute.xlu0 0
  %6924 = vperm.xlu0 %6923, %v6686
  %v6925 = vpop.permute.xlu0 %6924
  %6926 = vset.pattern.permute.xlu0 0
  %6927 = vperm.xlu0 %6926, %v6687
  %v6928 = vpop.permute.xlu0 %6927
  %6929 = vset.pattern.permute.xlu0 0
  %6930 = vperm.xlu0 %6929, %v6688
  %v6931 = vpop.permute.xlu0 %6930
  %vm6932 = vcmp.eq.s32.totalorder %v1577, %v6691
  %vm6933 = vcmp.eq.s32.totalorder %v1577, %v6694
  %vm6934 = vcmp.eq.s32.totalorder %v1577, %v6697
  %vm6935 = vcmp.eq.s32.totalorder %v1577, %v6700
  %vm6936 = vcmp.eq.s32.totalorder %v1577, %v6703
  %vm6937 = vcmp.eq.s32.totalorder %v1577, %v6706
  %vm6938 = vcmp.eq.s32.totalorder %v1577, %v6709
  %vm6939 = vcmp.eq.s32.totalorder %v1577, %v6712
  %vm6940 = vcmp.eq.s32.totalorder %v1577, %v6715
  %vm6941 = vcmp.eq.s32.totalorder %v1577, %v6718
  %vm6942 = vcmp.eq.s32.totalorder %v1577, %v6721
  %vm6943 = vcmp.eq.s32.totalorder %v1577, %v6724
  %vm6944 = vcmp.eq.s32.totalorder %v1577, %v6727
  %vm6945 = vcmp.eq.s32.totalorder %v1577, %v6730
  %vm6946 = vcmp.eq.s32.totalorder %v1577, %v6733
  %vm6947 = vcmp.eq.s32.totalorder %v1577, %v6736
  %vm6948 = vcmp.eq.s32.totalorder %v1577, %v6739
  %vm6949 = vcmp.eq.s32.totalorder %v1577, %v6742
  %vm6950 = vcmp.eq.s32.totalorder %v1577, %v6745
  %vm6951 = vcmp.eq.s32.totalorder %v1577, %v6748
  %vm6952 = vcmp.eq.s32.totalorder %v1577, %v6751
  %vm6953 = vcmp.eq.s32.totalorder %v1577, %v6754
  %vm6954 = vcmp.eq.s32.totalorder %v1577, %v6757
  %vm6955 = vcmp.eq.s32.totalorder %v1577, %v6760
  %vm6956 = vcmp.eq.s32.totalorder %v1577, %v6763
  %vm6957 = vcmp.eq.s32.totalorder %v1577, %v6766
  %vm6958 = vcmp.eq.s32.totalorder %v1577, %v6769
  %vm6959 = vcmp.eq.s32.totalorder %v1577, %v6772
  %vm6960 = vcmp.eq.s32.totalorder %v1577, %v6775
  %vm6961 = vcmp.eq.s32.totalorder %v1577, %v6778
  %vm6962 = vcmp.eq.s32.totalorder %v1577, %v6781
  %vm6963 = vcmp.eq.s32.totalorder %v1577, %v6784
  %vm6964 = vcmp.eq.s32.totalorder %v1577, %v6787
  %vm6965 = vcmp.eq.s32.totalorder %v1577, %v6790
  %vm6966 = vcmp.eq.s32.totalorder %v1577, %v6793
  %vm6967 = vcmp.eq.s32.totalorder %v1577, %v6796
  %vm6968 = vcmp.eq.s32.totalorder %v1577, %v6799
  %vm6969 = vcmp.eq.s32.totalorder %v1577, %v6802
  %vm6970 = vcmp.eq.s32.totalorder %v1577, %v6805
  %vm6971 = vcmp.eq.s32.totalorder %v1577, %v6808
  %vm6972 = vcmp.eq.s32.totalorder %v1577, %v6811
  %vm6973 = vcmp.eq.s32.totalorder %v1577, %v6814
  %vm6974 = vcmp.eq.s32.totalorder %v1577, %v6817
  %vm6975 = vcmp.eq.s32.totalorder %v1577, %v6820
  %vm6976 = vcmp.eq.s32.totalorder %v1577, %v6823
  %vm6977 = vcmp.eq.s32.totalorder %v1577, %v6826
  %vm6978 = vcmp.eq.s32.totalorder %v1577, %v6829
  %vm6979 = vcmp.eq.s32.totalorder %v1577, %v6832
  %vm6980 = vcmp.eq.s32.totalorder %v1577, %v6835
  %vm6981 = vcmp.eq.s32.totalorder %v1577, %v6838
  %vm6982 = vcmp.eq.s32.totalorder %v1577, %v6841
  %vm6983 = vcmp.eq.s32.totalorder %v1577, %v6844
  %vm6984 = vcmp.eq.s32.totalorder %v1577, %v6847
  %vm6985 = vcmp.eq.s32.totalorder %v1577, %v6850
  %vm6986 = vcmp.eq.s32.totalorder %v1577, %v6853
  %vm6987 = vcmp.eq.s32.totalorder %v1577, %v6856
  %vm6988 = vcmp.eq.s32.totalorder %v1577, %v6859
  %vm6989 = vcmp.eq.s32.totalorder %v1577, %v6862
  %vm6990 = vcmp.eq.s32.totalorder %v1577, %v6865
  %vm6991 = vcmp.eq.s32.totalorder %v1577, %v6868
  %vm6992 = vcmp.eq.s32.totalorder %v1577, %v6871
  %vm6993 = vcmp.eq.s32.totalorder %v1577, %v6874
  %vm6994 = vcmp.eq.s32.totalorder %v1577, %v6877
  %vm6995 = vcmp.eq.s32.totalorder %v1577, %v6880
  %vm6996 = vcmp.eq.s32.totalorder %v1577, %v6883
  %vm6997 = vcmp.eq.s32.totalorder %v1577, %v6886
  %vm6998 = vcmp.eq.s32.totalorder %v1577, %v6889
  %vm6999 = vcmp.eq.s32.totalorder %v1577, %v6892
  %vm7000 = vcmp.eq.s32.totalorder %v1577, %v6895
  %vm7001 = vcmp.eq.s32.totalorder %v1577, %v6898
  %vm7002 = vcmp.eq.s32.totalorder %v1577, %v6901
  %vm7003 = vcmp.eq.s32.totalorder %v1577, %v6904
  %vm7004 = vcmp.eq.s32.totalorder %v1577, %v6907
  %vm7005 = vcmp.eq.s32.totalorder %v1577, %v6910
  %vm7006 = vcmp.eq.s32.totalorder %v1577, %v6913
  %vm7007 = vcmp.eq.s32.totalorder %v1577, %v6916
  %vm7008 = vcmp.eq.s32.totalorder %v1577, %v6919
  %vm7009 = vcmp.eq.s32.totalorder %v1577, %v6922
  %vm7010 = vcmp.eq.s32.totalorder %v1577, %v6925
  %vm7011 = vcmp.eq.s32.totalorder %v1577, %v6928
  %vm7012 = vcmp.eq.s32.totalorder %v1577, %v6931
  %v7013 = vsel %vm6932, 1.0, 0.0
  %v7014 = vsel %vm6933, 1.0, 0.0
  %v7015 = vsel %vm6934, 1.0, 0.0
  %v7016 = vsel %vm6935, 1.0, 0.0
  %v7017 = vsel %vm6936, 1.0, 0.0
  %v7018 = vsel %vm6937, 1.0, 0.0
  %v7019 = vsel %vm6938, 1.0, 0.0
  %v7020 = vsel %vm6939, 1.0, 0.0
  %v7021 = vsel %vm6940, 1.0, 0.0
  %v7022 = vsel %vm6941, 1.0, 0.0
  %v7023 = vsel %vm6942, 1.0, 0.0
  %v7024 = vsel %vm6943, 1.0, 0.0
  %v7025 = vsel %vm6944, 1.0, 0.0
  %v7026 = vsel %vm6945, 1.0, 0.0
  %v7027 = vsel %vm6946, 1.0, 0.0
  %v7028 = vsel %vm6947, 1.0, 0.0
  %v7029 = vsel %vm6948, 1.0, 0.0
  %v7030 = vsel %vm6949, 1.0, 0.0
  %v7031 = vsel %vm6950, 1.0, 0.0
  %v7032 = vsel %vm6951, 1.0, 0.0
  %v7033 = vsel %vm6952, 1.0, 0.0
  %v7034 = vsel %vm6953, 1.0, 0.0
  %v7035 = vsel %vm6954, 1.0, 0.0
  %v7036 = vsel %vm6955, 1.0, 0.0
  %v7037 = vsel %vm6956, 1.0, 0.0
  %v7038 = vsel %vm6957, 1.0, 0.0
  %v7039 = vsel %vm6958, 1.0, 0.0
  %v7040 = vsel %vm6959, 1.0, 0.0
  %v7041 = vsel %vm6960, 1.0, 0.0
  %v7042 = vsel %vm6961, 1.0, 0.0
  %v7043 = vsel %vm6962, 1.0, 0.0
  %v7044 = vsel %vm6963, 1.0, 0.0
  %v7045 = vsel %vm6964, 1.0, 0.0
  %v7046 = vsel %vm6965, 1.0, 0.0
  %v7047 = vsel %vm6966, 1.0, 0.0
  %v7048 = vsel %vm6967, 1.0, 0.0
  %v7049 = vsel %vm6968, 1.0, 0.0
  %v7050 = vsel %vm6969, 1.0, 0.0
  %v7051 = vsel %vm6970, 1.0, 0.0
  %v7052 = vsel %vm6971, 1.0, 0.0
  %v7053 = vsel %vm6972, 1.0, 0.0
  %v7054 = vsel %vm6973, 1.0, 0.0
  %v7055 = vsel %vm6974, 1.0, 0.0
  %v7056 = vsel %vm6975, 1.0, 0.0
  %v7057 = vsel %vm6976, 1.0, 0.0
  %v7058 = vsel %vm6977, 1.0, 0.0
  %v7059 = vsel %vm6978, 1.0, 0.0
  %v7060 = vsel %vm6979, 1.0, 0.0
  %v7061 = vsel %vm6980, 1.0, 0.0
  %v7062 = vsel %vm6981, 1.0, 0.0
  %v7063 = vsel %vm6982, 1.0, 0.0
  %v7064 = vsel %vm6983, 1.0, 0.0
  %v7065 = vsel %vm6984, 1.0, 0.0
  %v7066 = vsel %vm6985, 1.0, 0.0
  %v7067 = vsel %vm6986, 1.0, 0.0
  %v7068 = vsel %vm6987, 1.0, 0.0
  %v7069 = vsel %vm6988, 1.0, 0.0
  %v7070 = vsel %vm6989, 1.0, 0.0
  %v7071 = vsel %vm6990, 1.0, 0.0
  %v7072 = vsel %vm6991, 1.0, 0.0
  %v7073 = vsel %vm6992, 1.0, 0.0
  %v7074 = vsel %vm6993, 1.0, 0.0
  %v7075 = vsel %vm6994, 1.0, 0.0
  %v7076 = vsel %vm6995, 1.0, 0.0
  %v7077 = vsel %vm6996, 1.0, 0.0
  %v7078 = vsel %vm6997, 1.0, 0.0
  %v7079 = vsel %vm6998, 1.0, 0.0
  %v7080 = vsel %vm6999, 1.0, 0.0
  %v7081 = vsel %vm7000, 1.0, 0.0
  %v7082 = vsel %vm7001, 1.0, 0.0
  %v7083 = vsel %vm7002, 1.0, 0.0
  %v7084 = vsel %vm7003, 1.0, 0.0
  %v7085 = vsel %vm7004, 1.0, 0.0
  %v7086 = vsel %vm7005, 1.0, 0.0
  %v7087 = vsel %vm7006, 1.0, 0.0
  %v7088 = vsel %vm7007, 1.0, 0.0
  %v7089 = vsel %vm7008, 1.0, 0.0
  %v7090 = vsel %vm7009, 1.0, 0.0
  %v7091 = vsel %vm7010, 1.0, 0.0
  %v7092 = vsel %vm7011, 1.0, 0.0
  %v7093 = vsel %vm7012, 1.0, 0.0
  %v7094 = vpack.c.bf16 %v7014, %v7013
  %v7095 = vpack.c.bf16 %v7016, %v7015
  %v7096 = vpack.c.bf16 %v7018, %v7017
  %v7097 = vpack.c.bf16 %v7020, %v7019
  %v7098 = vpack.c.bf16 %v7022, %v7021
  %v7099 = vpack.c.bf16 %v7024, %v7023
  %v7100 = vpack.c.bf16 %v7026, %v7025
  %v7101 = vpack.c.bf16 %v7028, %v7027
  %v7102 = vpack.c.bf16 %v7030, %v7029
  %v7103 = vpack.c.bf16 %v7032, %v7031
  %v7104 = vpack.c.bf16 %v7034, %v7033
  %v7105 = vpack.c.bf16 %v7036, %v7035
  %v7106 = vpack.c.bf16 %v7038, %v7037
  %v7107 = vpack.c.bf16 %v7040, %v7039
  %v7108 = vpack.c.bf16 %v7042, %v7041
  %v7109 = vpack.c.bf16 %v7044, %v7043
  %v7110 = vpack.c.bf16 %v7046, %v7045
  %v7111 = vpack.c.bf16 %v7048, %v7047
  %v7112 = vpack.c.bf16 %v7050, %v7049
  %v7113 = vpack.c.bf16 %v7052, %v7051
  %v7114 = vpack.c.bf16 %v7054, %v7053
  %v7115 = vpack.c.bf16 %v7056, %v7055
  %v7116 = vpack.c.bf16 %v7058, %v7057
  %v7117 = vpack.c.bf16 %v7060, %v7059
  %v7118 = vpack.c.bf16 %v7062, %v7061
  %v7119 = vpack.c.bf16 %v7064, %v7063
  %v7120 = vpack.c.bf16 %v7066, %v7065
  %v7121 = vpack.c.bf16 %v7068, %v7067
  %v7122 = vpack.c.bf16 %v7070, %v7069
  %v7123 = vpack.c.bf16 %v7072, %v7071
  %v7124 = vpack.c.bf16 %v7074, %v7073
  %v7125 = vpack.c.bf16 %v7076, %v7075
  %v7126 = vpack.c.bf16 %v7078, %v7077
  %v7127 = vpack.c.bf16 %v7080, %v7079
  %v7128 = vpack.c.bf16 %v7082, %v7081
  %v7129 = vpack.c.bf16 %v7084, %v7083
  %v7130 = vpack.c.bf16 %v7086, %v7085
  %v7131 = vpack.c.bf16 %v7088, %v7087
  %v7132 = vpack.c.bf16 %v7090, %v7089
  %v7133 = vpack.c.bf16 %v7092, %v7091
  %v7134 = vpack.c.bf16 %v7093, %v7093
  %vm7135 = vcmask 588800
  %v7137 = vsel %vm7135, %v7094, 0
  %v7140 = vsel %vm7135, %v7095, 0
  %v7143 = vsel %vm7135, %v7096, 0
  %v7146 = vsel %vm7135, %v7097, 0
  %v7149 = vsel %vm7135, %v7098, 0
  %v7152 = vsel %vm7135, %v7099, 0
  %v7155 = vsel %vm7135, %v7100, 0
  %v7158 = vsel %vm7135, %v7101, 0
  %v7161 = vsel %vm7135, %v7102, 0
  %v7164 = vsel %vm7135, %v7103, 0
  %v7167 = vsel %vm7135, %v7104, 0
  %v7170 = vsel %vm7135, %v7105, 0
  %v7173 = vsel %vm7135, %v7106, 0
  %v7176 = vsel %vm7135, %v7107, 0
  %v7179 = vsel %vm7135, %v7108, 0
  %v7182 = vsel %vm7135, %v7109, 0
  %v7185 = vsel %vm7135, %v7110, 0
  %v7188 = vsel %vm7135, %v7111, 0
  %v7191 = vsel %vm7135, %v7112, 0
  %v7194 = vsel %vm7135, %v7113, 0
  %v7197 = vsel %vm7135, %v7114, 0
  %v7200 = vsel %vm7135, %v7115, 0
  %v7203 = vsel %vm7135, %v7116, 0
  %v7206 = vsel %vm7135, %v7117, 0
  %v7209 = vsel %vm7135, %v7118, 0
  %v7212 = vsel %vm7135, %v7119, 0
  %v7215 = vsel %vm7135, %v7120, 0
  %v7218 = vsel %vm7135, %v7121, 0
  %v7221 = vsel %vm7135, %v7122, 0
  %v7224 = vsel %vm7135, %v7123, 0
  %v7227 = vsel %vm7135, %v7124, 0
  %v7230 = vsel %vm7135, %v7125, 0
  %v7233 = vsel %vm7135, %v7126, 0
  %v7236 = vsel %vm7135, %v7127, 0
  %v7239 = vsel %vm7135, %v7128, 0
  %v7242 = vsel %vm7135, %v7129, 0
  %v7245 = vsel %vm7135, %v7130, 0
  %v7248 = vsel %vm7135, %v7131, 0
  %v7251 = vsel %vm7135, %v7132, 0
  %v7254 = vsel %vm7135, %v7133, 0
  %v7257 = vsel %vm7135, %v7134, 0
  %vm7259 = vcmask 1043456
  %v7261 = vsel %vm7259, %v6607, 0
  %7263 = vmatpush.bf16.msra.mxu0 0
  %7264 = vmatpush.bf16.msra.mxu0 0
  %7265 = vmatpush.bf16.msra.mxu0 0
  %7266 = vmatpush.bf16.msra.mxu0 %v7261
  %7267 = vmatpush.bf16.msra.mxu0 %v6606
  %7268 = vmatpush.bf16.msra.mxu0 %v6605
  %7269 = vmatpush.bf16.msra.mxu0 %v6604
  %7270 = vmatpush.bf16.msra.mxu0 %v6603
  %7271 = vmatmul.bf16.gmra.mxu0 %v7137
  %v7272 = vpop.f32.mrf.mxu0
  %v7273 = vadd.f32 0.0, %v7272
  %v7274 = vpop.f32.mrf.mxu0
  %v7275 = vadd.f32 0.0, %v7274
  %7276 = vmatmul.bf16.gmra.mxu0 %v7140
  %v7277 = vpop.f32.mrf.mxu0
  %v7278 = vadd.f32 0.0, %v7277
  %v7279 = vpop.f32.mrf.mxu0
  %v7280 = vadd.f32 0.0, %v7279
  %7281 = vmatmul.bf16.gmra.mxu0 %v7143
  %v7282 = vpop.f32.mrf.mxu0
  %v7283 = vadd.f32 0.0, %v7282
  %v7284 = vpop.f32.mrf.mxu0
  %v7285 = vadd.f32 0.0, %v7284
  %7286 = vmatmul.bf16.gmra.mxu0 %v7146
  %v7287 = vpop.f32.mrf.mxu0
  %v7288 = vadd.f32 0.0, %v7287
  %v7289 = vpop.f32.mrf.mxu0
  %v7290 = vadd.f32 0.0, %v7289
  %7291 = vmatmul.bf16.gmra.mxu0 %v7149
  %v7292 = vpop.f32.mrf.mxu0
  %v7293 = vadd.f32 0.0, %v7292
  %v7294 = vpop.f32.mrf.mxu0
  %v7295 = vadd.f32 0.0, %v7294
  %7296 = vmatmul.bf16.gmra.mxu0 %v7152
  %v7297 = vpop.f32.mrf.mxu0
  %v7298 = vadd.f32 0.0, %v7297
  %v7299 = vpop.f32.mrf.mxu0
  %v7300 = vadd.f32 0.0, %v7299
  %7301 = vmatmul.bf16.gmra.mxu0 %v7155
  %v7302 = vpop.f32.mrf.mxu0
  %v7303 = vadd.f32 0.0, %v7302
  %v7304 = vpop.f32.mrf.mxu0
  %v7305 = vadd.f32 0.0, %v7304
  %7306 = vmatmul.bf16.gmra.mxu0 %v7158
  %v7307 = vpop.f32.mrf.mxu0
  %v7308 = vadd.f32 0.0, %v7307
  %v7309 = vpop.f32.mrf.mxu0
  %v7310 = vadd.f32 0.0, %v7309
  %7311 = vmatmul.bf16.gmra.mxu0 %v7161
  %v7312 = vpop.f32.mrf.mxu0
  %v7313 = vadd.f32 0.0, %v7312
  %v7314 = vpop.f32.mrf.mxu0
  %v7315 = vadd.f32 0.0, %v7314
  %7316 = vmatmul.bf16.gmra.mxu0 %v7164
  %v7317 = vpop.f32.mrf.mxu0
  %v7318 = vadd.f32 0.0, %v7317
  %v7319 = vpop.f32.mrf.mxu0
  %v7320 = vadd.f32 0.0, %v7319
  %7321 = vmatmul.bf16.gmra.mxu0 %v7167
  %v7322 = vpop.f32.mrf.mxu0
  %v7323 = vadd.f32 0.0, %v7322
  %v7324 = vpop.f32.mrf.mxu0
  %v7325 = vadd.f32 0.0, %v7324
  %7326 = vmatmul.bf16.gmra.mxu0 %v7170
  %v7327 = vpop.f32.mrf.mxu0
  %v7328 = vadd.f32 0.0, %v7327
  %v7329 = vpop.f32.mrf.mxu0
  %v7330 = vadd.f32 0.0, %v7329
  %7331 = vmatmul.bf16.gmra.mxu0 %v7173
  %v7332 = vpop.f32.mrf.mxu0
  %v7333 = vadd.f32 0.0, %v7332
  %v7334 = vpop.f32.mrf.mxu0
  %v7335 = vadd.f32 0.0, %v7334
  %7336 = vmatmul.bf16.gmra.mxu0 %v7176
  %v7337 = vpop.f32.mrf.mxu0
  %v7338 = vadd.f32 0.0, %v7337
  %v7339 = vpop.f32.mrf.mxu0
  %v7340 = vadd.f32 0.0, %v7339
  %7341 = vmatmul.bf16.gmra.mxu0 %v7179
  %v7342 = vpop.f32.mrf.mxu0
  %v7343 = vadd.f32 0.0, %v7342
  %v7344 = vpop.f32.mrf.mxu0
  %v7345 = vadd.f32 0.0, %v7344
  %7346 = vmatmul.bf16.gmra.mxu0 %v7182
  %v7347 = vpop.f32.mrf.mxu0
  %v7348 = vadd.f32 0.0, %v7347
  %v7349 = vpop.f32.mrf.mxu0
  %v7350 = vadd.f32 0.0, %v7349
  %7351 = vmatmul.bf16.gmra.mxu0 %v7185
  %v7352 = vpop.f32.mrf.mxu0
  %v7353 = vadd.f32 0.0, %v7352
  %v7354 = vpop.f32.mrf.mxu0
  %v7355 = vadd.f32 0.0, %v7354
  %7356 = vmatmul.bf16.gmra.mxu0 %v7188
  %v7357 = vpop.f32.mrf.mxu0
  %v7358 = vadd.f32 0.0, %v7357
  %v7359 = vpop.f32.mrf.mxu0
  %v7360 = vadd.f32 0.0, %v7359
  %7361 = vmatmul.bf16.gmra.mxu0 %v7191
  %v7362 = vpop.f32.mrf.mxu0
  %v7363 = vadd.f32 0.0, %v7362
  %v7364 = vpop.f32.mrf.mxu0
  %v7365 = vadd.f32 0.0, %v7364
  %7366 = vmatmul.bf16.gmra.mxu0 %v7194
  %v7367 = vpop.f32.mrf.mxu0
  %v7368 = vadd.f32 0.0, %v7367
  %v7369 = vpop.f32.mrf.mxu0
  %v7370 = vadd.f32 0.0, %v7369
  %7371 = vmatmul.bf16.gmra.mxu0 %v7197
  %v7372 = vpop.f32.mrf.mxu0
  %v7373 = vadd.f32 0.0, %v7372
  %v7374 = vpop.f32.mrf.mxu0
  %v7375 = vadd.f32 0.0, %v7374
  %7376 = vmatmul.bf16.gmra.mxu0 %v7200
  %v7377 = vpop.f32.mrf.mxu0
  %v7378 = vadd.f32 0.0, %v7377
  %v7379 = vpop.f32.mrf.mxu0
  %v7380 = vadd.f32 0.0, %v7379
  %7381 = vmatmul.bf16.gmra.mxu0 %v7203
  %v7382 = vpop.f32.mrf.mxu0
  %v7383 = vadd.f32 0.0, %v7382
  %v7384 = vpop.f32.mrf.mxu0
  %v7385 = vadd.f32 0.0, %v7384
  %7386 = vmatmul.bf16.gmra.mxu0 %v7206
  %v7387 = vpop.f32.mrf.mxu0
  %v7388 = vadd.f32 0.0, %v7387
  %v7389 = vpop.f32.mrf.mxu0
  %v7390 = vadd.f32 0.0, %v7389
  %7391 = vmatmul.bf16.gmra.mxu0 %v7209
  %v7392 = vpop.f32.mrf.mxu0
  %v7393 = vadd.f32 0.0, %v7392
  %v7394 = vpop.f32.mrf.mxu0
  %v7395 = vadd.f32 0.0, %v7394
  %7396 = vmatmul.bf16.gmra.mxu0 %v7212
  %v7397 = vpop.f32.mrf.mxu0
  %v7398 = vadd.f32 0.0, %v7397
  %v7399 = vpop.f32.mrf.mxu0
  %v7400 = vadd.f32 0.0, %v7399
  %7401 = vmatmul.bf16.gmra.mxu0 %v7215
  %v7402 = vpop.f32.mrf.mxu0
  %v7403 = vadd.f32 0.0, %v7402
  %v7404 = vpop.f32.mrf.mxu0
  %v7405 = vadd.f32 0.0, %v7404
  %7406 = vmatmul.bf16.gmra.mxu0 %v7218
  %v7407 = vpop.f32.mrf.mxu0
  %v7408 = vadd.f32 0.0, %v7407
  %v7409 = vpop.f32.mrf.mxu0
  %v7410 = vadd.f32 0.0, %v7409
  %7411 = vmatmul.bf16.gmra.mxu0 %v7221
  %v7412 = vpop.f32.mrf.mxu0
  %v7413 = vadd.f32 0.0, %v7412
  %v7414 = vpop.f32.mrf.mxu0
  %v7415 = vadd.f32 0.0, %v7414
  %7416 = vmatmul.bf16.gmra.mxu0 %v7224
  %v7417 = vpop.f32.mrf.mxu0
  %v7418 = vadd.f32 0.0, %v7417
  %v7419 = vpop.f32.mrf.mxu0
  %v7420 = vadd.f32 0.0, %v7419
  %7421 = vmatmul.bf16.gmra.mxu0 %v7227
  %v7422 = vpop.f32.mrf.mxu0
  %v7423 = vadd.f32 0.0, %v7422
  %v7424 = vpop.f32.mrf.mxu0
  %v7425 = vadd.f32 0.0, %v7424
  %7426 = vmatmul.bf16.gmra.mxu0 %v7230
  %v7427 = vpop.f32.mrf.mxu0
  %v7428 = vadd.f32 0.0, %v7427
  %v7429 = vpop.f32.mrf.mxu0
  %v7430 = vadd.f32 0.0, %v7429
  %7431 = vmatmul.bf16.gmra.mxu0 %v7233
  %v7432 = vpop.f32.mrf.mxu0
  %v7433 = vadd.f32 0.0, %v7432
  %v7434 = vpop.f32.mrf.mxu0
  %v7435 = vadd.f32 0.0, %v7434
  %7436 = vmatmul.bf16.gmra.mxu0 %v7236
  %v7437 = vpop.f32.mrf.mxu0
  %v7438 = vadd.f32 0.0, %v7437
  %v7439 = vpop.f32.mrf.mxu0
  %v7440 = vadd.f32 0.0, %v7439
  %7441 = vmatmul.bf16.gmra.mxu0 %v7239
  %v7442 = vpop.f32.mrf.mxu0
  %v7443 = vadd.f32 0.0, %v7442
  %v7444 = vpop.f32.mrf.mxu0
  %v7445 = vadd.f32 0.0, %v7444
  %7446 = vmatmul.bf16.gmra.mxu0 %v7242
  %v7447 = vpop.f32.mrf.mxu0
  %v7448 = vadd.f32 0.0, %v7447
  %v7449 = vpop.f32.mrf.mxu0
  %v7450 = vadd.f32 0.0, %v7449
  %7451 = vmatmul.bf16.gmra.mxu0 %v7245
  %v7452 = vpop.f32.mrf.mxu0
  %v7453 = vadd.f32 0.0, %v7452
  %v7454 = vpop.f32.mrf.mxu0
  %v7455 = vadd.f32 0.0, %v7454
  %7456 = vmatmul.bf16.gmra.mxu0 %v7248
  %v7457 = vpop.f32.mrf.mxu0
  %v7458 = vadd.f32 0.0, %v7457
  %v7459 = vpop.f32.mrf.mxu0
  %v7460 = vadd.f32 0.0, %v7459
  %7461 = vmatmul.bf16.gmra.mxu0 %v7251
  %v7462 = vpop.f32.mrf.mxu0
  %v7463 = vadd.f32 0.0, %v7462
  %v7464 = vpop.f32.mrf.mxu0
  %v7465 = vadd.f32 0.0, %v7464
  %7466 = vmatmul.bf16.gmra.mxu0 %v7254
  %v7467 = vpop.f32.mrf.mxu0
  %v7468 = vadd.f32 0.0, %v7467
  %v7469 = vpop.f32.mrf.mxu0
  %v7470 = vadd.f32 0.0, %v7469
  %7471 = vmatmul.bf16.gmra.mxu0 %v7257
  %v7472 = vpop.f32.mrf.mxu0
  %v7473 = vadd.f32 0.0, %v7472
  %v7474 = vpop.f32.mrf.mxu0
  %7475 = vdwg.mxu0
  %v7476 = vpack.c.bf16 %v7273, %v7273
  %v7477 = vpack.c.bf16 %v7275, %v7275
  %v7478 = vpack.c.bf16 %v7278, %v7278
  %v7479 = vpack.c.bf16 %v7280, %v7280
  %v7480 = vpack.c.bf16 %v7283, %v7283
  %v7481 = vpack.c.bf16 %v7285, %v7285
  %v7482 = vpack.c.bf16 %v7288, %v7288
  %v7483 = vpack.c.bf16 %v7290, %v7290
  %v7484 = vpack.c.bf16 %v7293, %v7293
  %v7485 = vpack.c.bf16 %v7295, %v7295
  %v7486 = vpack.c.bf16 %v7298, %v7298
  %v7487 = vpack.c.bf16 %v7300, %v7300
  %v7488 = vpack.c.bf16 %v7303, %v7303
  %v7489 = vpack.c.bf16 %v7305, %v7305
  %v7490 = vpack.c.bf16 %v7308, %v7308
  %v7491 = vpack.c.bf16 %v7310, %v7310
  %v7492 = vpack.c.bf16 %v7313, %v7313
  %v7493 = vpack.c.bf16 %v7315, %v7315
  %v7494 = vpack.c.bf16 %v7318, %v7318
  %v7495 = vpack.c.bf16 %v7320, %v7320
  %v7496 = vpack.c.bf16 %v7323, %v7323
  %v7497 = vpack.c.bf16 %v7325, %v7325
  %v7498 = vpack.c.bf16 %v7328, %v7328
  %v7499 = vpack.c.bf16 %v7330, %v7330
  %v7500 = vpack.c.bf16 %v7333, %v7333
  %v7501 = vpack.c.bf16 %v7335, %v7335
  %v7502 = vpack.c.bf16 %v7338, %v7338
  %v7503 = vpack.c.bf16 %v7340, %v7340
  %v7504 = vpack.c.bf16 %v7343, %v7343
  %v7505 = vpack.c.bf16 %v7345, %v7345
  %v7506 = vpack.c.bf16 %v7348, %v7348
  %v7507 = vpack.c.bf16 %v7350, %v7350
  %v7508 = vpack.c.bf16 %v7353, %v7353
  %v7509 = vpack.c.bf16 %v7355, %v7355
  %v7510 = vpack.c.bf16 %v7358, %v7358
  %v7511 = vpack.c.bf16 %v7360, %v7360
  %v7512 = vpack.c.bf16 %v7363, %v7363
  %v7513 = vpack.c.bf16 %v7365, %v7365
  %v7514 = vpack.c.bf16 %v7368, %v7368
  %v7515 = vpack.c.bf16 %v7370, %v7370
  %v7516 = vpack.c.bf16 %v7373, %v7373
  %v7517 = vpack.c.bf16 %v7375, %v7375
  %v7518 = vpack.c.bf16 %v7378, %v7378
  %v7519 = vpack.c.bf16 %v7380, %v7380
  %v7520 = vpack.c.bf16 %v7383, %v7383
  %v7521 = vpack.c.bf16 %v7385, %v7385
  %v7522 = vpack.c.bf16 %v7388, %v7388
  %v7523 = vpack.c.bf16 %v7390, %v7390
  %v7524 = vpack.c.bf16 %v7393, %v7393
  %v7525 = vpack.c.bf16 %v7395, %v7395
  %v7526 = vpack.c.bf16 %v7398, %v7398
  %v7527 = vpack.c.bf16 %v7400, %v7400
  %v7528 = vpack.c.bf16 %v7403, %v7403
  %v7529 = vpack.c.bf16 %v7405, %v7405
  %v7530 = vpack.c.bf16 %v7408, %v7408
  %v7531 = vpack.c.bf16 %v7410, %v7410
  %v7532 = vpack.c.bf16 %v7413, %v7413
  %v7533 = vpack.c.bf16 %v7415, %v7415
  %v7534 = vpack.c.bf16 %v7418, %v7418
  %v7535 = vpack.c.bf16 %v7420, %v7420
  %v7536 = vpack.c.bf16 %v7423, %v7423
  %v7537 = vpack.c.bf16 %v7425, %v7425
  %v7538 = vpack.c.bf16 %v7428, %v7428
  %v7539 = vpack.c.bf16 %v7430, %v7430
  %v7540 = vpack.c.bf16 %v7433, %v7433
  %v7541 = vpack.c.bf16 %v7435, %v7435
  %v7542 = vpack.c.bf16 %v7438, %v7438
  %v7543 = vpack.c.bf16 %v7440, %v7440
  %v7544 = vpack.c.bf16 %v7443, %v7443
  %v7545 = vpack.c.bf16 %v7445, %v7445
  %v7546 = vpack.c.bf16 %v7448, %v7448
  %v7547 = vpack.c.bf16 %v7450, %v7450
  %v7548 = vpack.c.bf16 %v7453, %v7453
  %v7549 = vpack.c.bf16 %v7455, %v7455
  %v7550 = vpack.c.bf16 %v7458, %v7458
  %v7551 = vpack.c.bf16 %v7460, %v7460
  %v7552 = vpack.c.bf16 %v7463, %v7463
  %v7553 = vpack.c.bf16 %v7465, %v7465
  %v7554 = vpack.c.bf16 %v7468, %v7468
  %v7555 = vpack.c.bf16 %v7470, %v7470
  %v7556 = vpack.c.bf16 %v7473, %v7473
  %s7557 = smul.u32 4, 9
  %s7558 = smul.u32 %s7557, 16
  %s7559 = smul.u32 %s7558, 1
  %s7560 = sshll.u32 %s7559, 4
  %7561 = dma.done %s174, %s7560
  %v7562 = vld [vmem:[#allocation3] sm:$0xf]
  %v7563 = vld [vmem:[#allocation3 + $0x4] sm:$0xf]
  %v7564 = vld [vmem:[#allocation3 + $0x8] sm:$0xf]
  %v7565 = vld [vmem:[#allocation3 + $0xc] sm:$0xf]
  %v7566 = vld [vmem:[#allocation3 + $0x10] sm:$0xf]
  %v7567 = vld [vmem:[#allocation3 + $0x14] sm:$0xf]
  %v7568 = vld [vmem:[#allocation3 + $0x18] sm:$0xf]
  %v7569 = vld [vmem:[#allocation3 + $0x1c] sm:$0xf]
  %v7570 = vld [vmem:[#allocation3 + $0x20] sm:$0xf]
  %v7571 = vld [vmem:[#allocation3 + $0x24] sm:$0xf]
  %v7572 = vld [vmem:[#allocation3 + $0x28] sm:$0xf]
  %v7573 = vld [vmem:[#allocation3 + $0x2c] sm:$0xf]
  %v7574 = vld [vmem:[#allocation3 + $0x30] sm:$0xf]
  %v7575 = vld [vmem:[#allocation3 + $0x34] sm:$0xf]
  %v7576 = vld [vmem:[#allocation3 + $0x38] sm:$0xf]
  %v7577 = vld [vmem:[#allocation3 + $0x3c] sm:$0xf]
  %s7578 = scalar_lea.vmem [#allocation3], 64
  %v7579 = vld [vmem:[%s7578] sm:$0xf]
  %v7580 = vld [vmem:[%s7578 + $0x4] sm:$0xf]
  %v7581 = vld [vmem:[%s7578 + $0x8] sm:$0xf]
  %v7582 = vld [vmem:[%s7578 + $0xc] sm:$0xf]
  %v7583 = vld [vmem:[%s7578 + $0x10] sm:$0xf]
  %v7584 = vld [vmem:[%s7578 + $0x14] sm:$0xf]
  %v7585 = vld [vmem:[%s7578 + $0x18] sm:$0xf]
  %v7586 = vld [vmem:[%s7578 + $0x1c] sm:$0xf]
  %v7587 = vld [vmem:[%s7578 + $0x20] sm:$0xf]
  %v7588 = vld [vmem:[%s7578 + $0x24] sm:$0xf]
  %v7589 = vld [vmem:[%s7578 + $0x28] sm:$0xf]
  %v7590 = vld [vmem:[%s7578 + $0x2c] sm:$0xf]
  %v7591 = vld [vmem:[%s7578 + $0x30] sm:$0xf]
  %v7592 = vld [vmem:[%s7578 + $0x34] sm:$0xf]
  %v7593 = vld [vmem:[%s7578 + $0x38] sm:$0xf]
  %v7594 = vld [vmem:[%s7578 + $0x3c] sm:$0xf]
  %v7604 = vunpack.c.l.b16 %v7485
  %v7605 = vunpack.c.l.b16 %v7486
  %v7606 = vunpack.c.l.b16 %v7487
  %v7607 = vunpack.c.l.b16 %v7488
  %v7608 = vunpack.c.l.b16 %v7489
  %v7609 = vunpack.c.l.b16 %v7490
  %v7610 = vunpack.c.l.b16 %v7491
  %v7611 = vunpack.c.l.b16 %v7492
  %v7612 = vunpack.c.l.b16 %v7493
  %v7613 = vpack.c.b16 %v7605, %v7604
  %v7614 = vpack.c.b16 %v7607, %v7606
  %v7615 = vpack.c.b16 %v7609, %v7608
  %v7616 = vpack.c.b16 %v7611, %v7610
  %v7617 = vpack.c.b16 %v7612, %v7612
  %v7639 = vunpack.c.l.b16 %v7579
  %v7640 = vunpack.c.l.b16 %v7580
  %v7641 = vunpack.c.l.b16 %v7581
  %v7642 = vunpack.c.l.b16 %v7582
  %v7643 = vunpack.c.l.b16 %v7583
  %v7644 = vunpack.c.l.b16 %v7584
  %v7645 = vunpack.c.l.b16 %v7585
  %v7646 = vunpack.c.l.b16 %v7586
  %v7647 = vunpack.c.l.b16 %v7587
  %v7648 = vunpack.c.l.b16 %v7588
  %v7649 = vunpack.c.l.b16 %v7589
  %v7650 = vunpack.c.l.b16 %v7590
  %v7651 = vunpack.c.l.b16 %v7591
  %v7652 = vunpack.c.l.b16 %v7592
  %v7653 = vunpack.c.l.b16 %v7593
  %v7654 = vunpack.c.l.b16 %v7594
  %v7655 = vpack.c.b16 %v7640, %v7639
  %v7656 = vpack.c.b16 %v7642, %v7641
  %v7657 = vpack.c.b16 %v7644, %v7643
  %v7658 = vpack.c.b16 %v7646, %v7645
  %v7659 = vpack.c.b16 %v7648, %v7647
  %v7660 = vpack.c.b16 %v7650, %v7649
  %v7661 = vpack.c.b16 %v7652, %v7651
  %v7662 = vpack.c.b16 %v7654, %v7653
  %7671 = vmatpush.bf16.msra.mxu0 %v7662
  %7672 = vmatpush.bf16.msra.mxu0 %v7661
  %7673 = vmatpush.bf16.msra.mxu0 %v7660
  %7674 = vmatpush.bf16.msra.mxu0 %v7659
  %7675 = vmatpush.bf16.msra.mxu0 %v7658
  %7676 = vmatpush.bf16.msra.mxu0 %v7657
  %7677 = vmatpush.bf16.msra.mxu0 %v7656
  %7678 = vmatpush.bf16.msra.mxu0 %v7655
  %7679 = vmatmul.bf16.gmra.mxu0 %v7613
  %v7680 = vpop.f32.mrf.mxu0
  %v7681 = vadd.f32 0.0, %v7680
  %v7682 = vpop.f32.mrf.mxu0
  %v7683 = vadd.f32 0.0, %v7682
  %7684 = vmatmul.bf16.gmra.mxu0 %v7614
  %v7685 = vpop.f32.mrf.mxu0
  %v7686 = vadd.f32 0.0, %v7685
  %v7687 = vpop.f32.mrf.mxu0
  %v7688 = vadd.f32 0.0, %v7687
  %7689 = vmatmul.bf16.gmra.mxu0 %v7615
  %v7690 = vpop.f32.mrf.mxu0
  %v7691 = vadd.f32 0.0, %v7690
  %v7692 = vpop.f32.mrf.mxu0
  %v7693 = vadd.f32 0.0, %v7692
  %7694 = vmatmul.bf16.gmra.mxu0 %v7616
  %v7695 = vpop.f32.mrf.mxu0
  %v7696 = vadd.f32 0.0, %v7695
  %v7697 = vpop.f32.mrf.mxu0
  %v7698 = vadd.f32 0.0, %v7697
  %7699 = vmatmul.bf16.gmra.mxu0 %v7617
  %v7700 = vpop.f32.mrf.mxu0
  %v7701 = vadd.f32 0.0, %v7700
  %v7702 = vpop.f32.mrf.mxu0
  %7703 = vdwg.mxu0
  %v7713 = vunpack.c.l.b16 %v7476
  %v7714 = vunpack.c.l.b16 %v7477
  %v7715 = vunpack.c.l.b16 %v7478
  %v7716 = vunpack.c.l.b16 %v7479
  %v7717 = vunpack.c.l.b16 %v7480
  %v7718 = vunpack.c.l.b16 %v7481
  %v7719 = vunpack.c.l.b16 %v7482
  %v7720 = vunpack.c.l.b16 %v7483
  %v7721 = vunpack.c.l.b16 %v7484
  %v7722 = vpack.c.b16 %v7714, %v7713
  %v7723 = vpack.c.b16 %v7716, %v7715
  %v7724 = vpack.c.b16 %v7718, %v7717
  %v7725 = vpack.c.b16 %v7720, %v7719
  %v7726 = vpack.c.b16 %v7721, %v7721
  %v7748 = vunpack.c.l.b16 %v7562
  %v7749 = vunpack.c.l.b16 %v7563
  %v7750 = vunpack.c.l.b16 %v7564
  %v7751 = vunpack.c.l.b16 %v7565
  %v7752 = vunpack.c.l.b16 %v7566
  %v7753 = vunpack.c.l.b16 %v7567
  %v7754 = vunpack.c.l.b16 %v7568
  %v7755 = vunpack.c.l.b16 %v7569
  %v7756 = vunpack.c.l.b16 %v7570
  %v7757 = vunpack.c.l.b16 %v7571
  %v7758 = vunpack.c.l.b16 %v7572
  %v7759 = vunpack.c.l.b16 %v7573
  %v7760 = vunpack.c.l.b16 %v7574
  %v7761 = vunpack.c.l.b16 %v7575
  %v7762 = vunpack.c.l.b16 %v7576
  %v7763 = vunpack.c.l.b16 %v7577
  %v7764 = vpack.c.b16 %v7749, %v7748
  %v7765 = vpack.c.b16 %v7751, %v7750
  %v7766 = vpack.c.b16 %v7753, %v7752
  %v7767 = vpack.c.b16 %v7755, %v7754
  %v7768 = vpack.c.b16 %v7757, %v7756
  %v7769 = vpack.c.b16 %v7759, %v7758
  %v7770 = vpack.c.b16 %v7761, %v7760
  %v7771 = vpack.c.b16 %v7763, %v7762
  %7780 = vmatpush.bf16.msra.mxu0 %v7771
  %7781 = vmatpush.bf16.msra.mxu0 %v7770
  %7782 = vmatpush.bf16.msra.mxu0 %v7769
  %7783 = vmatpush.bf16.msra.mxu0 %v7768
  %7784 = vmatpush.bf16.msra.mxu0 %v7767
  %7785 = vmatpush.bf16.msra.mxu0 %v7766
  %7786 = vmatpush.bf16.msra.mxu0 %v7765
  %7787 = vmatpush.bf16.msra.mxu0 %v7764
  %7788 = vmatmul.bf16.gmra.mxu0 %v7722
  %v7789 = vpop.f32.mrf.mxu0
  %v7790 = vadd.f32 %v7681, %v7789
  %v7791 = vpop.f32.mrf.mxu0
  %v7792 = vadd.f32 %v7683, %v7791
  %7793 = vmatmul.bf16.gmra.mxu0 %v7723
  %v7794 = vpop.f32.mrf.mxu0
  %v7795 = vadd.f32 %v7686, %v7794
  %v7796 = vpop.f32.mrf.mxu0
  %v7797 = vadd.f32 %v7688, %v7796
  %7798 = vmatmul.bf16.gmra.mxu0 %v7724
  %v7799 = vpop.f32.mrf.mxu0
  %v7800 = vadd.f32 %v7691, %v7799
  %v7801 = vpop.f32.mrf.mxu0
  %v7802 = vadd.f32 %v7693, %v7801
  %7803 = vmatmul.bf16.gmra.mxu0 %v7725
  %v7804 = vpop.f32.mrf.mxu0
  %v7805 = vadd.f32 %v7696, %v7804
  %v7806 = vpop.f32.mrf.mxu0
  %v7807 = vadd.f32 %v7698, %v7806
  %7808 = vmatmul.bf16.gmra.mxu0 %v7726
  %v7809 = vpop.f32.mrf.mxu0
  %v7810 = vadd.f32 %v7701, %v7809
  %v7811 = vpop.f32.mrf.mxu0
  %7812 = vdwg.mxu0
  %s7813 = scalar_lea.vmem [#allocation3], 128
  %v7814 = vld [vmem:[%s7813] sm:$0xf]
  %v7815 = vld [vmem:[%s7813 + $0x4] sm:$0xf]
  %v7816 = vld [vmem:[%s7813 + $0x8] sm:$0xf]
  %v7817 = vld [vmem:[%s7813 + $0xc] sm:$0xf]
  %v7818 = vld [vmem:[%s7813 + $0x10] sm:$0xf]
  %v7819 = vld [vmem:[%s7813 + $0x14] sm:$0xf]
  %v7820 = vld [vmem:[%s7813 + $0x18] sm:$0xf]
  %v7821 = vld [vmem:[%s7813 + $0x1c] sm:$0xf]
  %v7822 = vld [vmem:[%s7813 + $0x20] sm:$0xf]
  %v7823 = vld [vmem:[%s7813 + $0x24] sm:$0xf]
  %v7824 = vld [vmem:[%s7813 + $0x28] sm:$0xf]
  %v7825 = vld [vmem:[%s7813 + $0x2c] sm:$0xf]
  %v7826 = vld [vmem:[%s7813 + $0x30] sm:$0xf]
  %v7827 = vld [vmem:[%s7813 + $0x34] sm:$0xf]
  %v7828 = vld [vmem:[%s7813 + $0x38] sm:$0xf]
  %v7829 = vld [vmem:[%s7813 + $0x3c] sm:$0xf]
  %v7839 = vunpack.c.l.b16 %v7494
  %v7840 = vunpack.c.l.b16 %v7495
  %v7841 = vunpack.c.l.b16 %v7496
  %v7842 = vunpack.c.l.b16 %v7497
  %v7843 = vunpack.c.l.b16 %v7498
  %v7844 = vunpack.c.l.b16 %v7499
  %v7845 = vunpack.c.l.b16 %v7500
  %v7846 = vunpack.c.l.b16 %v7501
  %v7847 = vunpack.c.l.b16 %v7502
  %v7848 = vpack.c.b16 %v7840, %v7839
  %v7849 = vpack.c.b16 %v7842, %v7841
  %v7850 = vpack.c.b16 %v7844, %v7843
  %v7851 = vpack.c.b16 %v7846, %v7845
  %v7852 = vpack.c.b16 %v7847, %v7847
  %v7874 = vunpack.c.l.b16 %v7814
  %v7875 = vunpack.c.l.b16 %v7815
  %v7876 = vunpack.c.l.b16 %v7816
  %v7877 = vunpack.c.l.b16 %v7817
  %v7878 = vunpack.c.l.b16 %v7818
  %v7879 = vunpack.c.l.b16 %v7819
  %v7880 = vunpack.c.l.b16 %v7820
  %v7881 = vunpack.c.l.b16 %v7821
  %v7882 = vunpack.c.l.b16 %v7822
  %v7883 = vunpack.c.l.b16 %v7823
  %v7884 = vunpack.c.l.b16 %v7824
  %v7885 = vunpack.c.l.b16 %v7825
  %v7886 = vunpack.c.l.b16 %v7826
  %v7887 = vunpack.c.l.b16 %v7827
  %v7888 = vunpack.c.l.b16 %v7828
  %v7889 = vunpack.c.l.b16 %v7829
  %v7890 = vpack.c.b16 %v7875, %v7874
  %v7891 = vpack.c.b16 %v7877, %v7876
  %v7892 = vpack.c.b16 %v7879, %v7878
  %v7893 = vpack.c.b16 %v7881, %v7880
  %v7894 = vpack.c.b16 %v7883, %v7882
  %v7895 = vpack.c.b16 %v7885, %v7884
  %v7896 = vpack.c.b16 %v7887, %v7886
  %v7897 = vpack.c.b16 %v7889, %v7888
  %7906 = vmatpush.bf16.msra.mxu0 %v7897
  %7907 = vmatpush.bf16.msra.mxu0 %v7896
  %7908 = vmatpush.bf16.msra.mxu0 %v7895
  %7909 = vmatpush.bf16.msra.mxu0 %v7894
  %7910 = vmatpush.bf16.msra.mxu0 %v7893
  %7911 = vmatpush.bf16.msra.mxu0 %v7892
  %7912 = vmatpush.bf16.msra.mxu0 %v7891
  %7913 = vmatpush.bf16.msra.mxu0 %v7890
  %7914 = vmatmul.bf16.gmra.mxu0 %v7848
  %v7915 = vpop.f32.mrf.mxu0
  %v7916 = vadd.f32 0.0, %v7915
  %v7917 = vpop.f32.mrf.mxu0
  %v7918 = vadd.f32 0.0, %v7917
  %7919 = vmatmul.bf16.gmra.mxu0 %v7849
  %v7920 = vpop.f32.mrf.mxu0
  %v7921 = vadd.f32 0.0, %v7920
  %v7922 = vpop.f32.mrf.mxu0
  %v7923 = vadd.f32 0.0, %v7922
  %7924 = vmatmul.bf16.gmra.mxu0 %v7850
  %v7925 = vpop.f32.mrf.mxu0
  %v7926 = vadd.f32 0.0, %v7925
  %v7927 = vpop.f32.mrf.mxu0
  %v7928 = vadd.f32 0.0, %v7927
  %7929 = vmatmul.bf16.gmra.mxu0 %v7851
  %v7930 = vpop.f32.mrf.mxu0
  %v7931 = vadd.f32 0.0, %v7930
  %v7932 = vpop.f32.mrf.mxu0
  %v7933 = vadd.f32 0.0, %v7932
  %7934 = vmatmul.bf16.gmra.mxu0 %v7852
  %v7935 = vpop.f32.mrf.mxu0
  %v7936 = vadd.f32 0.0, %v7935
  %v7937 = vpop.f32.mrf.mxu0
  %7938 = vdwg.mxu0
  %v7939 = vadd.f32 %v7790, %v7916
  %v7940 = vadd.f32 %v7792, %v7918
  %v7941 = vadd.f32 %v7795, %v7921
  %v7942 = vadd.f32 %v7797, %v7923
  %v7943 = vadd.f32 %v7800, %v7926
  %v7944 = vadd.f32 %v7802, %v7928
  %v7945 = vadd.f32 %v7805, %v7931
  %v7946 = vadd.f32 %v7807, %v7933
  %v7947 = vadd.f32 %v7810, %v7936
  %s7948 = scalar_lea.vmem [#allocation3], 192
  %v7949 = vld [vmem:[%s7948] sm:$0xf]
  %v7950 = vld [vmem:[%s7948 + $0x4] sm:$0xf]
  %v7951 = vld [vmem:[%s7948 + $0x8] sm:$0xf]
  %v7952 = vld [vmem:[%s7948 + $0xc] sm:$0xf]
  %v7953 = vld [vmem:[%s7948 + $0x10] sm:$0xf]
  %v7954 = vld [vmem:[%s7948 + $0x14] sm:$0xf]
  %v7955 = vld [vmem:[%s7948 + $0x18] sm:$0xf]
  %v7956 = vld [vmem:[%s7948 + $0x1c] sm:$0xf]
  %v7957 = vld [vmem:[%s7948 + $0x20] sm:$0xf]
  %v7958 = vld [vmem:[%s7948 + $0x24] sm:$0xf]
  %v7959 = vld [vmem:[%s7948 + $0x28] sm:$0xf]
  %v7960 = vld [vmem:[%s7948 + $0x2c] sm:$0xf]
  %v7961 = vld [vmem:[%s7948 + $0x30] sm:$0xf]
  %v7962 = vld [vmem:[%s7948 + $0x34] sm:$0xf]
  %v7963 = vld [vmem:[%s7948 + $0x38] sm:$0xf]
  %v7964 = vld [vmem:[%s7948 + $0x3c] sm:$0xf]
  %v7974 = vunpack.c.l.b16 %v7503
  %v7975 = vunpack.c.l.b16 %v7504
  %v7976 = vunpack.c.l.b16 %v7505
  %v7977 = vunpack.c.l.b16 %v7506
  %v7978 = vunpack.c.l.b16 %v7507
  %v7979 = vunpack.c.l.b16 %v7508
  %v7980 = vunpack.c.l.b16 %v7509
  %v7981 = vunpack.c.l.b16 %v7510
  %v7982 = vunpack.c.l.b16 %v7511
  %v7983 = vpack.c.b16 %v7975, %v7974
  %v7984 = vpack.c.b16 %v7977, %v7976
  %v7985 = vpack.c.b16 %v7979, %v7978
  %v7986 = vpack.c.b16 %v7981, %v7980
  %v7987 = vpack.c.b16 %v7982, %v7982
  %v8009 = vunpack.c.l.b16 %v7949
  %v8010 = vunpack.c.l.b16 %v7950
  %v8011 = vunpack.c.l.b16 %v7951
  %v8012 = vunpack.c.l.b16 %v7952
  %v8013 = vunpack.c.l.b16 %v7953
  %v8014 = vunpack.c.l.b16 %v7954
  %v8015 = vunpack.c.l.b16 %v7955
  %v8016 = vunpack.c.l.b16 %v7956
  %v8017 = vunpack.c.l.b16 %v7957
  %v8018 = vunpack.c.l.b16 %v7958
  %v8019 = vunpack.c.l.b16 %v7959
  %v8020 = vunpack.c.l.b16 %v7960
  %v8021 = vunpack.c.l.b16 %v7961
  %v8022 = vunpack.c.l.b16 %v7962
  %v8023 = vunpack.c.l.b16 %v7963
  %v8024 = vunpack.c.l.b16 %v7964
  %v8025 = vpack.c.b16 %v8010, %v8009
  %v8026 = vpack.c.b16 %v8012, %v8011
  %v8027 = vpack.c.b16 %v8014, %v8013
  %v8028 = vpack.c.b16 %v8016, %v8015
  %v8029 = vpack.c.b16 %v8018, %v8017
  %v8030 = vpack.c.b16 %v8020, %v8019
  %v8031 = vpack.c.b16 %v8022, %v8021
  %v8032 = vpack.c.b16 %v8024, %v8023
  %8041 = vmatpush.bf16.msra.mxu0 %v8032
  %8042 = vmatpush.bf16.msra.mxu0 %v8031
  %8043 = vmatpush.bf16.msra.mxu0 %v8030
  %8044 = vmatpush.bf16.msra.mxu0 %v8029
  %8045 = vmatpush.bf16.msra.mxu0 %v8028
  %8046 = vmatpush.bf16.msra.mxu0 %v8027
  %8047 = vmatpush.bf16.msra.mxu0 %v8026
  %8048 = vmatpush.bf16.msra.mxu0 %v8025
  %8049 = vmatmul.bf16.gmra.mxu0 %v7983
  %v8050 = vpop.f32.mrf.mxu0
  %v8051 = vadd.f32 0.0, %v8050
  %v8052 = vpop.f32.mrf.mxu0
  %v8053 = vadd.f32 0.0, %v8052
  %8054 = vmatmul.bf16.gmra.mxu0 %v7984
  %v8055 = vpop.f32.mrf.mxu0
  %v8056 = vadd.f32 0.0, %v8055
  %v8057 = vpop.f32.mrf.mxu0
  %v8058 = vadd.f32 0.0, %v8057
  %8059 = vmatmul.bf16.gmra.mxu0 %v7985
  %v8060 = vpop.f32.mrf.mxu0
  %v8061 = vadd.f32 0.0, %v8060
  %v8062 = vpop.f32.mrf.mxu0
  %v8063 = vadd.f32 0.0, %v8062
  %8064 = vmatmul.bf16.gmra.mxu0 %v7986
  %v8065 = vpop.f32.mrf.mxu0
  %v8066 = vadd.f32 0.0, %v8065
  %v8067 = vpop.f32.mrf.mxu0
  %v8068 = vadd.f32 0.0, %v8067
  %8069 = vmatmul.bf16.gmra.mxu0 %v7987
  %v8070 = vpop.f32.mrf.mxu0
  %v8071 = vadd.f32 0.0, %v8070
  %v8072 = vpop.f32.mrf.mxu0
  %8073 = vdwg.mxu0
  %v8074 = vadd.f32 %v7939, %v8051
  %v8075 = vadd.f32 %v7940, %v8053
  %v8076 = vadd.f32 %v7941, %v8056
  %v8077 = vadd.f32 %v7942, %v8058
  %v8078 = vadd.f32 %v7943, %v8061
  %v8079 = vadd.f32 %v7944, %v8063
  %v8080 = vadd.f32 %v7945, %v8066
  %v8081 = vadd.f32 %v7946, %v8068
  %v8082 = vadd.f32 %v7947, %v8071
  %s8083 = scalar_lea.vmem [#allocation3], 256
  %v8084 = vld [vmem:[%s8083] sm:$0xf]
  %v8085 = vld [vmem:[%s8083 + $0x4] sm:$0xf]
  %v8086 = vld [vmem:[%s8083 + $0x8] sm:$0xf]
  %v8087 = vld [vmem:[%s8083 + $0xc] sm:$0xf]
  %v8088 = vld [vmem:[%s8083 + $0x10] sm:$0xf]
  %v8089 = vld [vmem:[%s8083 + $0x14] sm:$0xf]
  %v8090 = vld [vmem:[%s8083 + $0x18] sm:$0xf]
  %v8091 = vld [vmem:[%s8083 + $0x1c] sm:$0xf]
  %v8092 = vld [vmem:[%s8083 + $0x20] sm:$0xf]
  %v8093 = vld [vmem:[%s8083 + $0x24] sm:$0xf]
  %v8094 = vld [vmem:[%s8083 + $0x28] sm:$0xf]
  %v8095 = vld [vmem:[%s8083 + $0x2c] sm:$0xf]
  %v8096 = vld [vmem:[%s8083 + $0x30] sm:$0xf]
  %v8097 = vld [vmem:[%s8083 + $0x34] sm:$0xf]
  %v8098 = vld [vmem:[%s8083 + $0x38] sm:$0xf]
  %v8099 = vld [vmem:[%s8083 + $0x3c] sm:$0xf]
  %v8109 = vunpack.c.l.b16 %v7512
  %v8110 = vunpack.c.l.b16 %v7513
  %v8111 = vunpack.c.l.b16 %v7514
  %v8112 = vunpack.c.l.b16 %v7515
  %v8113 = vunpack.c.l.b16 %v7516
  %v8114 = vunpack.c.l.b16 %v7517
  %v8115 = vunpack.c.l.b16 %v7518
  %v8116 = vunpack.c.l.b16 %v7519
  %v8117 = vunpack.c.l.b16 %v7520
  %v8118 = vpack.c.b16 %v8110, %v8109
  %v8119 = vpack.c.b16 %v8112, %v8111
  %v8120 = vpack.c.b16 %v8114, %v8113
  %v8121 = vpack.c.b16 %v8116, %v8115
  %v8122 = vpack.c.b16 %v8117, %v8117
  %v8144 = vunpack.c.l.b16 %v8084
  %v8145 = vunpack.c.l.b16 %v8085
  %v8146 = vunpack.c.l.b16 %v8086
  %v8147 = vunpack.c.l.b16 %v8087
  %v8148 = vunpack.c.l.b16 %v8088
  %v8149 = vunpack.c.l.b16 %v8089
  %v8150 = vunpack.c.l.b16 %v8090
  %v8151 = vunpack.c.l.b16 %v8091
  %v8152 = vunpack.c.l.b16 %v8092
  %v8153 = vunpack.c.l.b16 %v8093
  %v8154 = vunpack.c.l.b16 %v8094
  %v8155 = vunpack.c.l.b16 %v8095
  %v8156 = vunpack.c.l.b16 %v8096
  %v8157 = vunpack.c.l.b16 %v8097
  %v8158 = vunpack.c.l.b16 %v8098
  %v8159 = vunpack.c.l.b16 %v8099
  %v8160 = vpack.c.b16 %v8145, %v8144
  %v8161 = vpack.c.b16 %v8147, %v8146
  %v8162 = vpack.c.b16 %v8149, %v8148
  %v8163 = vpack.c.b16 %v8151, %v8150
  %v8164 = vpack.c.b16 %v8153, %v8152
  %v8165 = vpack.c.b16 %v8155, %v8154
  %v8166 = vpack.c.b16 %v8157, %v8156
  %v8167 = vpack.c.b16 %v8159, %v8158
  %8176 = vmatpush.bf16.msra.mxu0 %v8167
  %8177 = vmatpush.bf16.msra.mxu0 %v8166
  %8178 = vmatpush.bf16.msra.mxu0 %v8165
  %8179 = vmatpush.bf16.msra.mxu0 %v8164
  %8180 = vmatpush.bf16.msra.mxu0 %v8163
  %8181 = vmatpush.bf16.msra.mxu0 %v8162
  %8182 = vmatpush.bf16.msra.mxu0 %v8161
  %8183 = vmatpush.bf16.msra.mxu0 %v8160
  %8184 = vmatmul.bf16.gmra.mxu0 %v8118
  %v8185 = vpop.f32.mrf.mxu0
  %v8186 = vadd.f32 0.0, %v8185
  %v8187 = vpop.f32.mrf.mxu0
  %v8188 = vadd.f32 0.0, %v8187
  %8189 = vmatmul.bf16.gmra.mxu0 %v8119
  %v8190 = vpop.f32.mrf.mxu0
  %v8191 = vadd.f32 0.0, %v8190
  %v8192 = vpop.f32.mrf.mxu0
  %v8193 = vadd.f32 0.0, %v8192
  %8194 = vmatmul.bf16.gmra.mxu0 %v8120
  %v8195 = vpop.f32.mrf.mxu0
  %v8196 = vadd.f32 0.0, %v8195
  %v8197 = vpop.f32.mrf.mxu0
  %v8198 = vadd.f32 0.0, %v8197
  %8199 = vmatmul.bf16.gmra.mxu0 %v8121
  %v8200 = vpop.f32.mrf.mxu0
  %v8201 = vadd.f32 0.0, %v8200
  %v8202 = vpop.f32.mrf.mxu0
  %v8203 = vadd.f32 0.0, %v8202
  %8204 = vmatmul.bf16.gmra.mxu0 %v8122
  %v8205 = vpop.f32.mrf.mxu0
  %v8206 = vadd.f32 0.0, %v8205
  %v8207 = vpop.f32.mrf.mxu0
  %8208 = vdwg.mxu0
  %v8209 = vadd.f32 %v8074, %v8186
  %v8210 = vadd.f32 %v8075, %v8188
  %v8211 = vadd.f32 %v8076, %v8191
  %v8212 = vadd.f32 %v8077, %v8193
  %v8213 = vadd.f32 %v8078, %v8196
  %v8214 = vadd.f32 %v8079, %v8198
  %v8215 = vadd.f32 %v8080, %v8201
  %v8216 = vadd.f32 %v8081, %v8203
  %v8217 = vadd.f32 %v8082, %v8206
  %s8218 = scalar_lea.vmem [#allocation3], 320
  %v8219 = vld [vmem:[%s8218] sm:$0xf]
  %v8220 = vld [vmem:[%s8218 + $0x4] sm:$0xf]
  %v8221 = vld [vmem:[%s8218 + $0x8] sm:$0xf]
  %v8222 = vld [vmem:[%s8218 + $0xc] sm:$0xf]
  %v8223 = vld [vmem:[%s8218 + $0x10] sm:$0xf]
  %v8224 = vld [vmem:[%s8218 + $0x14] sm:$0xf]
  %v8225 = vld [vmem:[%s8218 + $0x18] sm:$0xf]
  %v8226 = vld [vmem:[%s8218 + $0x1c] sm:$0xf]
  %v8227 = vld [vmem:[%s8218 + $0x20] sm:$0xf]
  %v8228 = vld [vmem:[%s8218 + $0x24] sm:$0xf]
  %v8229 = vld [vmem:[%s8218 + $0x28] sm:$0xf]
  %v8230 = vld [vmem:[%s8218 + $0x2c] sm:$0xf]
  %v8231 = vld [vmem:[%s8218 + $0x30] sm:$0xf]
  %v8232 = vld [vmem:[%s8218 + $0x34] sm:$0xf]
  %v8233 = vld [vmem:[%s8218 + $0x38] sm:$0xf]
  %v8234 = vld [vmem:[%s8218 + $0x3c] sm:$0xf]
  %v8244 = vunpack.c.l.b16 %v7521
  %v8245 = vunpack.c.l.b16 %v7522
  %v8246 = vunpack.c.l.b16 %v7523
  %v8247 = vunpack.c.l.b16 %v7524
  %v8248 = vunpack.c.l.b16 %v7525
  %v8249 = vunpack.c.l.b16 %v7526
  %v8250 = vunpack.c.l.b16 %v7527
  %v8251 = vunpack.c.l.b16 %v7528
  %v8252 = vunpack.c.l.b16 %v7529
  %v8253 = vpack.c.b16 %v8245, %v8244
  %v8254 = vpack.c.b16 %v8247, %v8246
  %v8255 = vpack.c.b16 %v8249, %v8248
  %v8256 = vpack.c.b16 %v8251, %v8250
  %v8257 = vpack.c.b16 %v8252, %v8252
  %v8279 = vunpack.c.l.b16 %v8219
  %v8280 = vunpack.c.l.b16 %v8220
  %v8281 = vunpack.c.l.b16 %v8221
  %v8282 = vunpack.c.l.b16 %v8222
  %v8283 = vunpack.c.l.b16 %v8223
  %v8284 = vunpack.c.l.b16 %v8224
  %v8285 = vunpack.c.l.b16 %v8225
  %v8286 = vunpack.c.l.b16 %v8226
  %v8287 = vunpack.c.l.b16 %v8227
  %v8288 = vunpack.c.l.b16 %v8228
  %v8289 = vunpack.c.l.b16 %v8229
  %v8290 = vunpack.c.l.b16 %v8230
  %v8291 = vunpack.c.l.b16 %v8231
  %v8292 = vunpack.c.l.b16 %v8232
  %v8293 = vunpack.c.l.b16 %v8233
  %v8294 = vunpack.c.l.b16 %v8234
  %v8295 = vpack.c.b16 %v8280, %v8279
  %v8296 = vpack.c.b16 %v8282, %v8281
  %v8297 = vpack.c.b16 %v8284, %v8283
  %v8298 = vpack.c.b16 %v8286, %v8285
  %v8299 = vpack.c.b16 %v8288, %v8287
  %v8300 = vpack.c.b16 %v8290, %v8289
  %v8301 = vpack.c.b16 %v8292, %v8291
  %v8302 = vpack.c.b16 %v8294, %v8293
  %8311 = vmatpush.bf16.msra.mxu0 %v8302
  %8312 = vmatpush.bf16.msra.mxu0 %v8301
  %8313 = vmatpush.bf16.msra.mxu0 %v8300
  %8314 = vmatpush.bf16.msra.mxu0 %v8299
  %8315 = vmatpush.bf16.msra.mxu0 %v8298
  %8316 = vmatpush.bf16.msra.mxu0 %v8297
  %8317 = vmatpush.bf16.msra.mxu0 %v8296
  %8318 = vmatpush.bf16.msra.mxu0 %v8295
  %8319 = vmatmul.bf16.gmra.mxu0 %v8253
  %v8320 = vpop.f32.mrf.mxu0
  %v8321 = vadd.f32 0.0, %v8320
  %v8322 = vpop.f32.mrf.mxu0
  %v8323 = vadd.f32 0.0, %v8322
  %8324 = vmatmul.bf16.gmra.mxu0 %v8254
  %v8325 = vpop.f32.mrf.mxu0
  %v8326 = vadd.f32 0.0, %v8325
  %v8327 = vpop.f32.mrf.mxu0
  %v8328 = vadd.f32 0.0, %v8327
  %8329 = vmatmul.bf16.gmra.mxu0 %v8255
  %v8330 = vpop.f32.mrf.mxu0
  %v8331 = vadd.f32 0.0, %v8330
  %v8332 = vpop.f32.mrf.mxu0
  %v8333 = vadd.f32 0.0, %v8332
  %8334 = vmatmul.bf16.gmra.mxu0 %v8256
  %v8335 = vpop.f32.mrf.mxu0
  %v8336 = vadd.f32 0.0, %v8335
  %v8337 = vpop.f32.mrf.mxu0
  %v8338 = vadd.f32 0.0, %v8337
  %8339 = vmatmul.bf16.gmra.mxu0 %v8257
  %v8340 = vpop.f32.mrf.mxu0
  %v8341 = vadd.f32 0.0, %v8340
  %v8342 = vpop.f32.mrf.mxu0
  %8343 = vdwg.mxu0
  %v8344 = vadd.f32 %v8209, %v8321
  %v8345 = vadd.f32 %v8210, %v8323
  %v8346 = vadd.f32 %v8211, %v8326
  %v8347 = vadd.f32 %v8212, %v8328
  %v8348 = vadd.f32 %v8213, %v8331
  %v8349 = vadd.f32 %v8214, %v8333
  %v8350 = vadd.f32 %v8215, %v8336
  %v8351 = vadd.f32 %v8216, %v8338
  %v8352 = vadd.f32 %v8217, %v8341
  %s8353 = scalar_lea.vmem [#allocation3], 384
  %v8354 = vld [vmem:[%s8353] sm:$0xf]
  %v8355 = vld [vmem:[%s8353 + $0x4] sm:$0xf]
  %v8356 = vld [vmem:[%s8353 + $0x8] sm:$0xf]
  %v8357 = vld [vmem:[%s8353 + $0xc] sm:$0xf]
  %v8358 = vld [vmem:[%s8353 + $0x10] sm:$0xf]
  %v8359 = vld [vmem:[%s8353 + $0x14] sm:$0xf]
  %v8360 = vld [vmem:[%s8353 + $0x18] sm:$0xf]
  %v8361 = vld [vmem:[%s8353 + $0x1c] sm:$0xf]
  %v8362 = vld [vmem:[%s8353 + $0x20] sm:$0xf]
  %v8363 = vld [vmem:[%s8353 + $0x24] sm:$0xf]
  %v8364 = vld [vmem:[%s8353 + $0x28] sm:$0xf]
  %v8365 = vld [vmem:[%s8353 + $0x2c] sm:$0xf]
  %v8366 = vld [vmem:[%s8353 + $0x30] sm:$0xf]
  %v8367 = vld [vmem:[%s8353 + $0x34] sm:$0xf]
  %v8368 = vld [vmem:[%s8353 + $0x38] sm:$0xf]
  %v8369 = vld [vmem:[%s8353 + $0x3c] sm:$0xf]
  %v8379 = vunpack.c.l.b16 %v7530
  %v8380 = vunpack.c.l.b16 %v7531
  %v8381 = vunpack.c.l.b16 %v7532
  %v8382 = vunpack.c.l.b16 %v7533
  %v8383 = vunpack.c.l.b16 %v7534
  %v8384 = vunpack.c.l.b16 %v7535
  %v8385 = vunpack.c.l.b16 %v7536
  %v8386 = vunpack.c.l.b16 %v7537
  %v8387 = vunpack.c.l.b16 %v7538
  %v8388 = vpack.c.b16 %v8380, %v8379
  %v8389 = vpack.c.b16 %v8382, %v8381
  %v8390 = vpack.c.b16 %v8384, %v8383
  %v8391 = vpack.c.b16 %v8386, %v8385
  %v8392 = vpack.c.b16 %v8387, %v8387
  %v8414 = vunpack.c.l.b16 %v8354
  %v8415 = vunpack.c.l.b16 %v8355
  %v8416 = vunpack.c.l.b16 %v8356
  %v8417 = vunpack.c.l.b16 %v8357
  %v8418 = vunpack.c.l.b16 %v8358
  %v8419 = vunpack.c.l.b16 %v8359
  %v8420 = vunpack.c.l.b16 %v8360
  %v8421 = vunpack.c.l.b16 %v8361
  %v8422 = vunpack.c.l.b16 %v8362
  %v8423 = vunpack.c.l.b16 %v8363
  %v8424 = vunpack.c.l.b16 %v8364
  %v8425 = vunpack.c.l.b16 %v8365
  %v8426 = vunpack.c.l.b16 %v8366
  %v8427 = vunpack.c.l.b16 %v8367
  %v8428 = vunpack.c.l.b16 %v8368
  %v8429 = vunpack.c.l.b16 %v8369
  %v8430 = vpack.c.b16 %v8415, %v8414
  %v8431 = vpack.c.b16 %v8417, %v8416
  %v8432 = vpack.c.b16 %v8419, %v8418
  %v8433 = vpack.c.b16 %v8421, %v8420
  %v8434 = vpack.c.b16 %v8423, %v8422
  %v8435 = vpack.c.b16 %v8425, %v8424
  %v8436 = vpack.c.b16 %v8427, %v8426
  %v8437 = vpack.c.b16 %v8429, %v8428
  %8446 = vmatpush.bf16.msra.mxu0 %v8437
  %8447 = vmatpush.bf16.msra.mxu0 %v8436
  %8448 = vmatpush.bf16.msra.mxu0 %v8435
  %8449 = vmatpush.bf16.msra.mxu0 %v8434
  %8450 = vmatpush.bf16.msra.mxu0 %v8433
  %8451 = vmatpush.bf16.msra.mxu0 %v8432
  %8452 = vmatpush.bf16.msra.mxu0 %v8431
  %8453 = vmatpush.bf16.msra.mxu0 %v8430
  %8454 = vmatmul.bf16.gmra.mxu0 %v8388
  %v8455 = vpop.f32.mrf.mxu0
  %v8456 = vadd.f32 0.0, %v8455
  %v8457 = vpop.f32.mrf.mxu0
  %v8458 = vadd.f32 0.0, %v8457
  %8459 = vmatmul.bf16.gmra.mxu0 %v8389
  %v8460 = vpop.f32.mrf.mxu0
  %v8461 = vadd.f32 0.0, %v8460
  %v8462 = vpop.f32.mrf.mxu0
  %v8463 = vadd.f32 0.0, %v8462
  %8464 = vmatmul.bf16.gmra.mxu0 %v8390
  %v8465 = vpop.f32.mrf.mxu0
  %v8466 = vadd.f32 0.0, %v8465
  %v8467 = vpop.f32.mrf.mxu0
  %v8468 = vadd.f32 0.0, %v8467
  %8469 = vmatmul.bf16.gmra.mxu0 %v8391
  %v8470 = vpop.f32.mrf.mxu0
  %v8471 = vadd.f32 0.0, %v8470
  %v8472 = vpop.f32.mrf.mxu0
  %v8473 = vadd.f32 0.0, %v8472
  %8474 = vmatmul.bf16.gmra.mxu0 %v8392
  %v8475 = vpop.f32.mrf.mxu0
  %v8476 = vadd.f32 0.0, %v8475
  %v8477 = vpop.f32.mrf.mxu0
  %8478 = vdwg.mxu0
  %v8479 = vadd.f32 %v8344, %v8456
  %v8480 = vadd.f32 %v8345, %v8458
  %v8481 = vadd.f32 %v8346, %v8461
  %v8482 = vadd.f32 %v8347, %v8463
  %v8483 = vadd.f32 %v8348, %v8466
  %v8484 = vadd.f32 %v8349, %v8468
  %v8485 = vadd.f32 %v8350, %v8471
  %v8486 = vadd.f32 %v8351, %v8473
  %v8487 = vadd.f32 %v8352, %v8476
  %s8488 = scalar_lea.vmem [#allocation3], 448
  %v8489 = vld [vmem:[%s8488] sm:$0xf]
  %v8490 = vld [vmem:[%s8488 + $0x4] sm:$0xf]
  %v8491 = vld [vmem:[%s8488 + $0x8] sm:$0xf]
  %v8492 = vld [vmem:[%s8488 + $0xc] sm:$0xf]
  %v8493 = vld [vmem:[%s8488 + $0x10] sm:$0xf]
  %v8494 = vld [vmem:[%s8488 + $0x14] sm:$0xf]
  %v8495 = vld [vmem:[%s8488 + $0x18] sm:$0xf]
  %v8496 = vld [vmem:[%s8488 + $0x1c] sm:$0xf]
  %v8497 = vld [vmem:[%s8488 + $0x20] sm:$0xf]
  %v8498 = vld [vmem:[%s8488 + $0x24] sm:$0xf]
  %v8499 = vld [vmem:[%s8488 + $0x28] sm:$0xf]
  %v8500 = vld [vmem:[%s8488 + $0x2c] sm:$0xf]
  %v8501 = vld [vmem:[%s8488 + $0x30] sm:$0xf]
  %v8502 = vld [vmem:[%s8488 + $0x34] sm:$0xf]
  %v8503 = vld [vmem:[%s8488 + $0x38] sm:$0xf]
  %v8504 = vld [vmem:[%s8488 + $0x3c] sm:$0xf]
  %v8514 = vunpack.c.l.b16 %v7539
  %v8515 = vunpack.c.l.b16 %v7540
  %v8516 = vunpack.c.l.b16 %v7541
  %v8517 = vunpack.c.l.b16 %v7542
  %v8518 = vunpack.c.l.b16 %v7543
  %v8519 = vunpack.c.l.b16 %v7544
  %v8520 = vunpack.c.l.b16 %v7545
  %v8521 = vunpack.c.l.b16 %v7546
  %v8522 = vunpack.c.l.b16 %v7547
  %v8523 = vpack.c.b16 %v8515, %v8514
  %v8524 = vpack.c.b16 %v8517, %v8516
  %v8525 = vpack.c.b16 %v8519, %v8518
  %v8526 = vpack.c.b16 %v8521, %v8520
  %v8527 = vpack.c.b16 %v8522, %v8522
  %v8549 = vunpack.c.l.b16 %v8489
  %v8550 = vunpack.c.l.b16 %v8490
  %v8551 = vunpack.c.l.b16 %v8491
  %v8552 = vunpack.c.l.b16 %v8492
  %v8553 = vunpack.c.l.b16 %v8493
  %v8554 = vunpack.c.l.b16 %v8494
  %v8555 = vunpack.c.l.b16 %v8495
  %v8556 = vunpack.c.l.b16 %v8496
  %v8557 = vunpack.c.l.b16 %v8497
  %v8558 = vunpack.c.l.b16 %v8498
  %v8559 = vunpack.c.l.b16 %v8499
  %v8560 = vunpack.c.l.b16 %v8500
  %v8561 = vunpack.c.l.b16 %v8501
  %v8562 = vunpack.c.l.b16 %v8502
  %v8563 = vunpack.c.l.b16 %v8503
  %v8564 = vunpack.c.l.b16 %v8504
  %v8565 = vpack.c.b16 %v8550, %v8549
  %v8566 = vpack.c.b16 %v8552, %v8551
  %v8567 = vpack.c.b16 %v8554, %v8553
  %v8568 = vpack.c.b16 %v8556, %v8555
  %v8569 = vpack.c.b16 %v8558, %v8557
  %v8570 = vpack.c.b16 %v8560, %v8559
  %v8571 = vpack.c.b16 %v8562, %v8561
  %v8572 = vpack.c.b16 %v8564, %v8563
  %8581 = vmatpush.bf16.msra.mxu0 %v8572
  %8582 = vmatpush.bf16.msra.mxu0 %v8571
  %8583 = vmatpush.bf16.msra.mxu0 %v8570
  %8584 = vmatpush.bf16.msra.mxu0 %v8569
  %8585 = vmatpush.bf16.msra.mxu0 %v8568
  %8586 = vmatpush.bf16.msra.mxu0 %v8567
  %8587 = vmatpush.bf16.msra.mxu0 %v8566
  %8588 = vmatpush.bf16.msra.mxu0 %v8565
  %8589 = vmatmul.bf16.gmra.mxu0 %v8523
  %v8590 = vpop.f32.mrf.mxu0
  %v8591 = vadd.f32 0.0, %v8590
  %v8592 = vpop.f32.mrf.mxu0
  %v8593 = vadd.f32 0.0, %v8592
  %8594 = vmatmul.bf16.gmra.mxu0 %v8524
  %v8595 = vpop.f32.mrf.mxu0
  %v8596 = vadd.f32 0.0, %v8595
  %v8597 = vpop.f32.mrf.mxu0
  %v8598 = vadd.f32 0.0, %v8597
  %8599 = vmatmul.bf16.gmra.mxu0 %v8525
  %v8600 = vpop.f32.mrf.mxu0
  %v8601 = vadd.f32 0.0, %v8600
  %v8602 = vpop.f32.mrf.mxu0
  %v8603 = vadd.f32 0.0, %v8602
  %8604 = vmatmul.bf16.gmra.mxu0 %v8526
  %v8605 = vpop.f32.mrf.mxu0
  %v8606 = vadd.f32 0.0, %v8605
  %v8607 = vpop.f32.mrf.mxu0
  %v8608 = vadd.f32 0.0, %v8607
  %8609 = vmatmul.bf16.gmra.mxu0 %v8527
  %v8610 = vpop.f32.mrf.mxu0
  %v8611 = vadd.f32 0.0, %v8610
  %v8612 = vpop.f32.mrf.mxu0
  %8613 = vdwg.mxu0
  %v8614 = vadd.f32 %v8479, %v8591
  %v8615 = vadd.f32 %v8480, %v8593
  %v8616 = vadd.f32 %v8481, %v8596
  %v8617 = vadd.f32 %v8482, %v8598
  %v8618 = vadd.f32 %v8483, %v8601
  %v8619 = vadd.f32 %v8484, %v8603
  %v8620 = vadd.f32 %v8485, %v8606
  %v8621 = vadd.f32 %v8486, %v8608
  %v8622 = vadd.f32 %v8487, %v8611
  %s8623 = scalar_lea.vmem [#allocation3], 512
  %v8624 = vld [vmem:[%s8623] sm:$0xf]
  %v8625 = vld [vmem:[%s8623 + $0x4] sm:$0xf]
  %v8626 = vld [vmem:[%s8623 + $0x8] sm:$0xf]
  %v8627 = vld [vmem:[%s8623 + $0xc] sm:$0xf]
  %v8628 = vld [vmem:[%s8623 + $0x10] sm:$0xf]
  %v8629 = vld [vmem:[%s8623 + $0x14] sm:$0xf]
  %v8630 = vld [vmem:[%s8623 + $0x18] sm:$0xf]
  %v8631 = vld [vmem:[%s8623 + $0x1c] sm:$0xf]
  %v8632 = vld [vmem:[%s8623 + $0x20] sm:$0xf]
  %v8633 = vld [vmem:[%s8623 + $0x24] sm:$0xf]
  %v8634 = vld [vmem:[%s8623 + $0x28] sm:$0xf]
  %v8635 = vld [vmem:[%s8623 + $0x2c] sm:$0xf]
  %v8636 = vld [vmem:[%s8623 + $0x30] sm:$0xf]
  %v8637 = vld [vmem:[%s8623 + $0x34] sm:$0xf]
  %v8638 = vld [vmem:[%s8623 + $0x38] sm:$0xf]
  %v8639 = vld [vmem:[%s8623 + $0x3c] sm:$0xf]
  %v8649 = vunpack.c.l.b16 %v7548
  %v8650 = vunpack.c.l.b16 %v7549
  %v8651 = vunpack.c.l.b16 %v7550
  %v8652 = vunpack.c.l.b16 %v7551
  %v8653 = vunpack.c.l.b16 %v7552
  %v8654 = vunpack.c.l.b16 %v7553
  %v8655 = vunpack.c.l.b16 %v7554
  %v8656 = vunpack.c.l.b16 %v7555
  %v8657 = vunpack.c.l.b16 %v7556
  %v8658 = vpack.c.b16 %v8650, %v8649
  %v8659 = vpack.c.b16 %v8652, %v8651
  %v8660 = vpack.c.b16 %v8654, %v8653
  %v8661 = vpack.c.b16 %v8656, %v8655
  %v8662 = vpack.c.b16 %v8657, %v8657
  %v8684 = vunpack.c.l.b16 %v8624
  %v8685 = vunpack.c.l.b16 %v8625
  %v8686 = vunpack.c.l.b16 %v8626
  %v8687 = vunpack.c.l.b16 %v8627
  %v8688 = vunpack.c.l.b16 %v8628
  %v8689 = vunpack.c.l.b16 %v8629
  %v8690 = vunpack.c.l.b16 %v8630
  %v8691 = vunpack.c.l.b16 %v8631
  %v8692 = vunpack.c.l.b16 %v8632
  %v8693 = vunpack.c.l.b16 %v8633
  %v8694 = vunpack.c.l.b16 %v8634
  %v8695 = vunpack.c.l.b16 %v8635
  %v8696 = vunpack.c.l.b16 %v8636
  %v8697 = vunpack.c.l.b16 %v8637
  %v8698 = vunpack.c.l.b16 %v8638
  %v8699 = vunpack.c.l.b16 %v8639
  %v8700 = vpack.c.b16 %v8685, %v8684
  %v8701 = vpack.c.b16 %v8687, %v8686
  %v8702 = vpack.c.b16 %v8689, %v8688
  %v8703 = vpack.c.b16 %v8691, %v8690
  %v8704 = vpack.c.b16 %v8693, %v8692
  %v8705 = vpack.c.b16 %v8695, %v8694
  %v8706 = vpack.c.b16 %v8697, %v8696
  %v8707 = vpack.c.b16 %v8699, %v8698
  %8716 = vmatpush.bf16.msra.mxu0 %v8707
  %8717 = vmatpush.bf16.msra.mxu0 %v8706
  %8718 = vmatpush.bf16.msra.mxu0 %v8705
  %8719 = vmatpush.bf16.msra.mxu0 %v8704
  %8720 = vmatpush.bf16.msra.mxu0 %v8703
  %8721 = vmatpush.bf16.msra.mxu0 %v8702
  %8722 = vmatpush.bf16.msra.mxu0 %v8701
  %8723 = vmatpush.bf16.msra.mxu0 %v8700
  %8724 = vmatmul.bf16.gmra.mxu0 %v8658
  %v8725 = vpop.f32.mrf.mxu0
  %v8726 = vadd.f32 0.0, %v8725
  %v8727 = vpop.f32.mrf.mxu0
  %v8728 = vadd.f32 0.0, %v8727
  %8729 = vmatmul.bf16.gmra.mxu0 %v8659
  %v8730 = vpop.f32.mrf.mxu0
  %v8731 = vadd.f32 0.0, %v8730
  %v8732 = vpop.f32.mrf.mxu0
  %v8733 = vadd.f32 0.0, %v8732
  %8734 = vmatmul.bf16.gmra.mxu0 %v8660
  %v8735 = vpop.f32.mrf.mxu0
  %v8736 = vadd.f32 0.0, %v8735
  %v8737 = vpop.f32.mrf.mxu0
  %v8738 = vadd.f32 0.0, %v8737
  %8739 = vmatmul.bf16.gmra.mxu0 %v8661
  %v8740 = vpop.f32.mrf.mxu0
  %v8741 = vadd.f32 0.0, %v8740
  %v8742 = vpop.f32.mrf.mxu0
  %v8743 = vadd.f32 0.0, %v8742
  %8744 = vmatmul.bf16.gmra.mxu0 %v8662
  %v8745 = vpop.f32.mrf.mxu0
  %v8746 = vadd.f32 0.0, %v8745
  %v8747 = vpop.f32.mrf.mxu0
  %8748 = vdwg.mxu0
  %v8749 = vadd.f32 %v8614, %v8726
  %v8750 = vadd.f32 %v8615, %v8728
  %v8751 = vadd.f32 %v8616, %v8731
  %v8752 = vadd.f32 %v8617, %v8733
  %v8753 = vadd.f32 %v8618, %v8736
  %v8754 = vadd.f32 %v8619, %v8738
  %v8755 = vadd.f32 %v8620, %v8741
  %v8756 = vadd.f32 %v8621, %v8743
  %v8757 = vadd.f32 %v8622, %v8746
  %v8758 = vadd.f32 %v8749, %v8750
  %v8759 = vadd.f32 %v8758, %v8751
  %v8760 = vadd.f32 %v8759, %v8752
  %v8761 = vadd.f32 %v8760, %v8753
  %v8762 = vadd.f32 %v8761, %v8754
  %v8763 = vadd.f32 %v8762, %v8755
  %v8764 = vadd.f32 %v8763, %v8756
  %v8765 = vadd.f32 %v8764, %v8757
  %v8766 = vrot.slane %v8765, 4
  %v8767 = vadd.f32 %v8765, %v8766
  %v8768 = vrot.slane %v8767, 2
  %v8769 = vadd.f32 %v8767, %v8768
  %v8770 = vrot.slane %v8769, 1
  %v8771 = vadd.f32 %v8769, %v8770
  %v8772 = vmul.f32 %v8771, 0.013888889
  %v8773 = vmul.f32 %v8749, %v8749
  %v8774 = vmul.f32 %v8750, %v8750
  %v8775 = vmul.f32 %v8751, %v8751
  %v8776 = vmul.f32 %v8752, %v8752
  %v8777 = vmul.f32 %v8753, %v8753
  %v8778 = vmul.f32 %v8754, %v8754
  %v8779 = vmul.f32 %v8755, %v8755
  %v8780 = vmul.f32 %v8756, %v8756
  %v8781 = vmul.f32 %v8757, %v8757
  %v8782 = vadd.f32 %v8773, %v8774
  %v8783 = vadd.f32 %v8782, %v8775
  %v8784 = vadd.f32 %v8783, %v8776
  %v8785 = vadd.f32 %v8784, %v8777
  %v8786 = vadd.f32 %v8785, %v8778
  %v8787 = vadd.f32 %v8786, %v8779
  %v8788 = vadd.f32 %v8787, %v8780
  %v8789 = vadd.f32 %v8788, %v8781
  %v8790 = vrot.slane %v8789, 4
  %v8791 = vadd.f32 %v8789, %v8790
  %v8792 = vrot.slane %v8791, 2
  %v8793 = vadd.f32 %v8791, %v8792
  %v8794 = vrot.slane %v8793, 1
  %v8795 = vadd.f32 %v8793, %v8794
  %v8796 = vmul.f32 %v8795, 0.013888889
  %v8797 = vmul.f32 %v8772, %v8772
  %v8798 = vsub.f32 %v8796, %v8797
  %v8799 = vmax.f32 %v8798, 0.0
  %v8800 = vadd.f32 %v8799, 1e-05
  %v8801 = vrsqrt.pop %v8800
  %v8802 = vmul.f32 %v8801, %v8800
  %v8803 = vmul.f32 %v8802, %v8801
  %v8804 = vmul.f32 0.5, %v8803
  %v8805 = vsub.f32 1.5, %v8804
  %v8806 = vmul.f32 %v8801, %v8805
  %vm8807 = vweird.f32 %v8800
  %vm8808 = vweird.f32 %v8801
  %vm8809 = vmor %vm8807, %vm8808
  %v8810 = vsel %vm8809, %v8801, %v8806
  %v8811 = vmul.f32 %v864, %v8810
  %v8812 = vmul.f32 %v8772, %v8811
  %v8814 = vrot.slane %v8812, 7
  %v8816 = vsub.f32 %v864, %v8814
  %v8817 = vperm.slane %v8811, 4
  %v8818 = vmul.f32 %v8749, %v8817
  %v8819 = vmul.f32 %v8750, %v8817
  %v8820 = vmul.f32 %v8751, %v8817
  %v8821 = vmul.f32 %v8752, %v8817
  %v8822 = vmul.f32 %v8753, %v8817
  %v8823 = vmul.f32 %v8754, %v8817
  %v8824 = vmul.f32 %v8755, %v8817
  %v8825 = vmul.f32 %v8756, %v8817
  %v8826 = vmul.f32 %v8757, %v8817
  %v8827 = vperm.slane %v8816, 5
  %v8828 = vadd.f32 %v8818, %v8827
  %v8829 = vadd.f32 %v8819, %v8827
  %v8830 = vadd.f32 %v8820, %v8827
  %v8831 = vadd.f32 %v8821, %v8827
  %v8832 = vadd.f32 %v8822, %v8827
  %v8833 = vadd.f32 %v8823, %v8827
  %v8834 = vadd.f32 %v8824, %v8827
  %v8835 = vadd.f32 %v8825, %v8827
  %v8836 = vadd.f32 %v8826, %v8827
  %vm8837 = vcmp.gt.f32.partialorder %v8828, 0.0
  %vm8838 = vcmp.gt.f32.partialorder %v8829, 0.0
  %vm8839 = vcmp.gt.f32.partialorder %v8830, 0.0
  %vm8840 = vcmp.gt.f32.partialorder %v8831, 0.0
  %vm8841 = vcmp.gt.f32.partialorder %v8832, 0.0
  %vm8842 = vcmp.gt.f32.partialorder %v8833, 0.0
  %vm8843 = vcmp.gt.f32.partialorder %v8834, 0.0
  %vm8844 = vcmp.gt.f32.partialorder %v8835, 0.0
  %vm8845 = vcmp.gt.f32.partialorder %v8836, 0.0
  %v8846 = vmul.f32 %v8828, 0.2
  %v8847 = vmul.f32 %v8829, 0.2
  %v8848 = vmul.f32 %v8830, 0.2
  %v8849 = vmul.f32 %v8831, 0.2
  %v8850 = vmul.f32 %v8832, 0.2
  %v8851 = vmul.f32 %v8833, 0.2
  %v8852 = vmul.f32 %v8834, 0.2
  %v8853 = vmul.f32 %v8835, 0.2
  %v8854 = vmul.f32 %v8836, 0.2
  %v8855 = vsel %vm8837, %v8828, %v8846
  %v8856 = vsel %vm8838, %v8829, %v8847
  %v8857 = vsel %vm8839, %v8830, %v8848
  %v8858 = vsel %vm8840, %v8831, %v8849
  %v8859 = vsel %vm8841, %v8832, %v8850
  %v8860 = vsel %vm8842, %v8833, %v8851
  %v8861 = vsel %vm8843, %v8834, %v8852
  %v8862 = vsel %vm8844, %v8835, %v8853
  %v8863 = vsel %vm8845, %v8836, %v8854
  %v8864 = vpack.c.bf16 %v8856, %v8855
  %v8865 = vpack.c.bf16 %v8858, %v8857
  %v8866 = vpack.c.bf16 %v8860, %v8859
  %v8867 = vpack.c.bf16 %v8862, %v8861
  %v8868 = vpack.c.bf16 %v8863, %v8863
  %v8869 = vld [vmem:[%s4] sm:$0xff]
  %v8870 = vld [vmem:[%s4 + $0x8] sm:$0xff]
  %v8871 = vld [vmem:[%s4 + $0x10] sm:$0xff]
  %v8872 = vld [vmem:[%s4 + $0x18] sm:$0xff]
  %v8873 = vld [vmem:[%s4 + $0x20] sm:$0xff]
  %v8874 = vld [vmem:[%s4 + $0x28] sm:$0xff]
  %v8875 = vld [vmem:[%s4 + $0x30] sm:$0xff]
  %v8876 = vld [vmem:[%s4 + $0x38] sm:$0xff]
  %v8877 = vld [vmem:[%s4 + $0x40] sm:$0xff]
  %v8878 = vld [vmem:[%s4 + $0x48] sm:$0xff]
  %v8879 = vld [vmem:[%s4 + $0x50] sm:$0xff]
  %v8880 = vld [vmem:[%s4 + $0x58] sm:$0xff]
  %v8881 = vld [vmem:[%s4 + $0x60] sm:$0xff]
  %v8882 = vld [vmem:[%s4 + $0x68] sm:$0xff]
  %v8883 = vld [vmem:[%s4 + $0x70] sm:$0xff]
  %v8884 = vld [vmem:[%s4 + $0x78] sm:$0xff]
  %v8885 = vld [vmem:[%s4 + $0x80] sm:$0xff]
  %v8886 = vld [vmem:[%s4 + $0x88] sm:$0xff]
  %v8887 = vld [vmem:[%s4 + $0x90] sm:$0xff]
  %v8888 = vld [vmem:[%s4 + $0x98] sm:$0xff]
  %v8889 = vld [vmem:[%s4 + $0xa0] sm:$0xff]
  %v8890 = vld [vmem:[%s4 + $0xa8] sm:$0xff]
  %v8891 = vld [vmem:[%s4 + $0xb0] sm:$0xff]
  %v8892 = vld [vmem:[%s4 + $0xb8] sm:$0xff]
  %v8893 = vld [vmem:[%s4 + $0xc0] sm:$0xff]
  %v8894 = vld [vmem:[%s4 + $0xc8] sm:$0xff]
  %v8895 = vld [vmem:[%s4 + $0xd0] sm:$0xff]
  %v8896 = vld [vmem:[%s4 + $0xd8] sm:$0xff]
  %v8897 = vld [vmem:[%s4 + $0xe0] sm:$0xff]
  %v8898 = vld [vmem:[%s4 + $0xe8] sm:$0xff]
  %v8899 = vld [vmem:[%s4 + $0xf0] sm:$0xff]
  %v8900 = vld [vmem:[%s4 + $0xf8] sm:$0xff]
  %v8901 = vld [vmem:[%s4 + $0x100] sm:$0xff]
  %v8902 = vld [vmem:[%s4 + $0x108] sm:$0xff]
  %v8903 = vld [vmem:[%s4 + $0x110] sm:$0xff]
  %v8904 = vld [vmem:[%s4 + $0x118] sm:$0xff]
  %v8905 = vld [vmem:[%s4 + $0x120] sm:$0xff]
  %v8906 = vld [vmem:[%s4 + $0x128] sm:$0xff]
  %v8907 = vld [vmem:[%s4 + $0x130] sm:$0xff]
  %v8908 = vld [vmem:[%s4 + $0x138] sm:$0xff]
  %v8909 = vld [vmem:[%s4 + $0x140] sm:$0xff]
  %v8910 = vld [vmem:[%s4 + $0x148] sm:$0xff]
  %v8911 = vld [vmem:[%s4 + $0x150] sm:$0xff]
  %v8912 = vld [vmem:[%s4 + $0x158] sm:$0xff]
  %v8913 = vld [vmem:[%s4 + $0x160] sm:$0xff]
  %v8914 = vld [vmem:[%s4 + $0x168] sm:$0xff]
  %v8915 = vld [vmem:[%s4 + $0x170] sm:$0xff]
  %v8916 = vld [vmem:[%s4 + $0x178] sm:$0xff]
  %8917 = vset.pattern.permute.xlu0 0
  %8918 = vperm.xlu0 %8917, %v8869
  %v8919 = vpop.permute.xlu0 %8918
  %8920 = vset.pattern.permute.xlu0 0
  %8921 = vperm.xlu0 %8920, %v8870
  %v8922 = vpop.permute.xlu0 %8921
  %8923 = vset.pattern.permute.xlu0 0
  %8924 = vperm.xlu0 %8923, %v8871
  %v8925 = vpop.permute.xlu0 %8924
  %8926 = vset.pattern.permute.xlu0 0
  %8927 = vperm.xlu0 %8926, %v8872
  %v8928 = vpop.permute.xlu0 %8927
  %8929 = vset.pattern.permute.xlu0 0
  %8930 = vperm.xlu0 %8929, %v8873
  %v8931 = vpop.permute.xlu0 %8930
  %8932 = vset.pattern.permute.xlu0 0
  %8933 = vperm.xlu0 %8932, %v8874
  %v8934 = vpop.permute.xlu0 %8933
  %8935 = vset.pattern.permute.xlu0 0
  %8936 = vperm.xlu0 %8935, %v8875
  %v8937 = vpop.permute.xlu0 %8936
  %8938 = vset.pattern.permute.xlu0 0
  %8939 = vperm.xlu0 %8938, %v8876
  %v8940 = vpop.permute.xlu0 %8939
  %8941 = vset.pattern.permute.xlu0 0
  %8942 = vperm.xlu0 %8941, %v8877
  %v8943 = vpop.permute.xlu0 %8942
  %8944 = vset.pattern.permute.xlu0 0
  %8945 = vperm.xlu0 %8944, %v8878
  %v8946 = vpop.permute.xlu0 %8945
  %8947 = vset.pattern.permute.xlu0 0
  %8948 = vperm.xlu0 %8947, %v8879
  %v8949 = vpop.permute.xlu0 %8948
  %8950 = vset.pattern.permute.xlu0 0
  %8951 = vperm.xlu0 %8950, %v8880
  %v8952 = vpop.permute.xlu0 %8951
  %8953 = vset.pattern.permute.xlu0 0
  %8954 = vperm.xlu0 %8953, %v8881
  %v8955 = vpop.permute.xlu0 %8954
  %8956 = vset.pattern.permute.xlu0 0
  %8957 = vperm.xlu0 %8956, %v8882
  %v8958 = vpop.permute.xlu0 %8957
  %8959 = vset.pattern.permute.xlu0 0
  %8960 = vperm.xlu0 %8959, %v8883
  %v8961 = vpop.permute.xlu0 %8960
  %8962 = vset.pattern.permute.xlu0 0
  %8963 = vperm.xlu0 %8962, %v8884
  %v8964 = vpop.permute.xlu0 %8963
  %8965 = vset.pattern.permute.xlu0 0
  %8966 = vperm.xlu0 %8965, %v8885
  %v8967 = vpop.permute.xlu0 %8966
  %8968 = vset.pattern.permute.xlu0 0
  %8969 = vperm.xlu0 %8968, %v8886
  %v8970 = vpop.permute.xlu0 %8969
  %8971 = vset.pattern.permute.xlu0 0
  %8972 = vperm.xlu0 %8971, %v8887
  %v8973 = vpop.permute.xlu0 %8972
  %8974 = vset.pattern.permute.xlu0 0
  %8975 = vperm.xlu0 %8974, %v8888
  %v8976 = vpop.permute.xlu0 %8975
  %8977 = vset.pattern.permute.xlu0 0
  %8978 = vperm.xlu0 %8977, %v8889
  %v8979 = vpop.permute.xlu0 %8978
  %8980 = vset.pattern.permute.xlu0 0
  %8981 = vperm.xlu0 %8980, %v8890
  %v8982 = vpop.permute.xlu0 %8981
  %8983 = vset.pattern.permute.xlu0 0
  %8984 = vperm.xlu0 %8983, %v8891
  %v8985 = vpop.permute.xlu0 %8984
  %8986 = vset.pattern.permute.xlu0 0
  %8987 = vperm.xlu0 %8986, %v8892
  %v8988 = vpop.permute.xlu0 %8987
  %8989 = vset.pattern.permute.xlu0 0
  %8990 = vperm.xlu0 %8989, %v8893
  %v8991 = vpop.permute.xlu0 %8990
  %8992 = vset.pattern.permute.xlu0 0
  %8993 = vperm.xlu0 %8992, %v8894
  %v8994 = vpop.permute.xlu0 %8993
  %8995 = vset.pattern.permute.xlu0 0
  %8996 = vperm.xlu0 %8995, %v8895
  %v8997 = vpop.permute.xlu0 %8996
  %8998 = vset.pattern.permute.xlu0 0
  %8999 = vperm.xlu0 %8998, %v8896
  %v9000 = vpop.permute.xlu0 %8999
  %9001 = vset.pattern.permute.xlu0 0
  %9002 = vperm.xlu0 %9001, %v8897
  %v9003 = vpop.permute.xlu0 %9002
  %9004 = vset.pattern.permute.xlu0 0
  %9005 = vperm.xlu0 %9004, %v8898
  %v9006 = vpop.permute.xlu0 %9005
  %9007 = vset.pattern.permute.xlu0 0
  %9008 = vperm.xlu0 %9007, %v8899
  %v9009 = vpop.permute.xlu0 %9008
  %9010 = vset.pattern.permute.xlu0 0
  %9011 = vperm.xlu0 %9010, %v8900
  %v9012 = vpop.permute.xlu0 %9011
  %9013 = vset.pattern.permute.xlu0 0
  %9014 = vperm.xlu0 %9013, %v8901
  %v9015 = vpop.permute.xlu0 %9014
  %9016 = vset.pattern.permute.xlu0 0
  %9017 = vperm.xlu0 %9016, %v8902
  %v9018 = vpop.permute.xlu0 %9017
  %9019 = vset.pattern.permute.xlu0 0
  %9020 = vperm.xlu0 %9019, %v8903
  %v9021 = vpop.permute.xlu0 %9020
  %9022 = vset.pattern.permute.xlu0 0
  %9023 = vperm.xlu0 %9022, %v8904
  %v9024 = vpop.permute.xlu0 %9023
  %9025 = vset.pattern.permute.xlu0 0
  %9026 = vperm.xlu0 %9025, %v8905
  %v9027 = vpop.permute.xlu0 %9026
  %9028 = vset.pattern.permute.xlu0 0
  %9029 = vperm.xlu0 %9028, %v8906
  %v9030 = vpop.permute.xlu0 %9029
  %9031 = vset.pattern.permute.xlu0 0
  %9032 = vperm.xlu0 %9031, %v8907
  %v9033 = vpop.permute.xlu0 %9032
  %9034 = vset.pattern.permute.xlu0 0
  %9035 = vperm.xlu0 %9034, %v8908
  %v9036 = vpop.permute.xlu0 %9035
  %9037 = vset.pattern.permute.xlu0 0
  %9038 = vperm.xlu0 %9037, %v8909
  %v9039 = vpop.permute.xlu0 %9038
  %9040 = vset.pattern.permute.xlu0 0
  %9041 = vperm.xlu0 %9040, %v8910
  %v9042 = vpop.permute.xlu0 %9041
  %9043 = vset.pattern.permute.xlu0 0
  %9044 = vperm.xlu0 %9043, %v8911
  %v9045 = vpop.permute.xlu0 %9044
  %9046 = vset.pattern.permute.xlu0 0
  %9047 = vperm.xlu0 %9046, %v8912
  %v9048 = vpop.permute.xlu0 %9047
  %9049 = vset.pattern.permute.xlu0 0
  %9050 = vperm.xlu0 %9049, %v8913
  %v9051 = vpop.permute.xlu0 %9050
  %9052 = vset.pattern.permute.xlu0 0
  %9053 = vperm.xlu0 %9052, %v8914
  %v9054 = vpop.permute.xlu0 %9053
  %9055 = vset.pattern.permute.xlu0 0
  %9056 = vperm.xlu0 %9055, %v8915
  %v9057 = vpop.permute.xlu0 %9056
  %9058 = vset.pattern.permute.xlu0 0
  %9059 = vperm.xlu0 %9058, %v8916
  %v9060 = vpop.permute.xlu0 %9059
  %vm9061 = vcmp.eq.s32.totalorder %v1577, %v8919
  %vm9062 = vcmp.eq.s32.totalorder %v1577, %v8922
  %vm9063 = vcmp.eq.s32.totalorder %v1577, %v8925
  %vm9064 = vcmp.eq.s32.totalorder %v1577, %v8928
  %vm9065 = vcmp.eq.s32.totalorder %v1577, %v8931
  %vm9066 = vcmp.eq.s32.totalorder %v1577, %v8934
  %vm9067 = vcmp.eq.s32.totalorder %v1577, %v8937
  %vm9068 = vcmp.eq.s32.totalorder %v1577, %v8940
  %vm9069 = vcmp.eq.s32.totalorder %v1577, %v8943
  %vm9070 = vcmp.eq.s32.totalorder %v1577, %v8946
  %vm9071 = vcmp.eq.s32.totalorder %v1577, %v8949
  %vm9072 = vcmp.eq.s32.totalorder %v1577, %v8952
  %vm9073 = vcmp.eq.s32.totalorder %v1577, %v8955
  %vm9074 = vcmp.eq.s32.totalorder %v1577, %v8958
  %vm9075 = vcmp.eq.s32.totalorder %v1577, %v8961
  %vm9076 = vcmp.eq.s32.totalorder %v1577, %v8964
  %vm9077 = vcmp.eq.s32.totalorder %v1577, %v8967
  %vm9078 = vcmp.eq.s32.totalorder %v1577, %v8970
  %vm9079 = vcmp.eq.s32.totalorder %v1577, %v8973
  %vm9080 = vcmp.eq.s32.totalorder %v1577, %v8976
  %vm9081 = vcmp.eq.s32.totalorder %v1577, %v8979
  %vm9082 = vcmp.eq.s32.totalorder %v1577, %v8982
  %vm9083 = vcmp.eq.s32.totalorder %v1577, %v8985
  %vm9084 = vcmp.eq.s32.totalorder %v1577, %v8988
  %vm9085 = vcmp.eq.s32.totalorder %v1577, %v8991
  %vm9086 = vcmp.eq.s32.totalorder %v1577, %v8994
  %vm9087 = vcmp.eq.s32.totalorder %v1577, %v8997
  %vm9088 = vcmp.eq.s32.totalorder %v1577, %v9000
  %vm9089 = vcmp.eq.s32.totalorder %v1577, %v9003
  %vm9090 = vcmp.eq.s32.totalorder %v1577, %v9006
  %vm9091 = vcmp.eq.s32.totalorder %v1577, %v9009
  %vm9092 = vcmp.eq.s32.totalorder %v1577, %v9012
  %vm9093 = vcmp.eq.s32.totalorder %v1577, %v9015
  %vm9094 = vcmp.eq.s32.totalorder %v1577, %v9018
  %vm9095 = vcmp.eq.s32.totalorder %v1577, %v9021
  %vm9096 = vcmp.eq.s32.totalorder %v1577, %v9024
  %vm9097 = vcmp.eq.s32.totalorder %v1577, %v9027
  %vm9098 = vcmp.eq.s32.totalorder %v1577, %v9030
  %vm9099 = vcmp.eq.s32.totalorder %v1577, %v9033
  %vm9100 = vcmp.eq.s32.totalorder %v1577, %v9036
  %vm9101 = vcmp.eq.s32.totalorder %v1577, %v9039
  %vm9102 = vcmp.eq.s32.totalorder %v1577, %v9042
  %vm9103 = vcmp.eq.s32.totalorder %v1577, %v9045
  %vm9104 = vcmp.eq.s32.totalorder %v1577, %v9048
  %vm9105 = vcmp.eq.s32.totalorder %v1577, %v9051
  %vm9106 = vcmp.eq.s32.totalorder %v1577, %v9054
  %vm9107 = vcmp.eq.s32.totalorder %v1577, %v9057
  %vm9108 = vcmp.eq.s32.totalorder %v1577, %v9060
  %v9109 = vsel %vm9061, 1.0, 0.0
  %v9110 = vsel %vm9062, 1.0, 0.0
  %v9111 = vsel %vm9063, 1.0, 0.0
  %v9112 = vsel %vm9064, 1.0, 0.0
  %v9113 = vsel %vm9065, 1.0, 0.0
  %v9114 = vsel %vm9066, 1.0, 0.0
  %v9115 = vsel %vm9067, 1.0, 0.0
  %v9116 = vsel %vm9068, 1.0, 0.0
  %v9117 = vsel %vm9069, 1.0, 0.0
  %v9118 = vsel %vm9070, 1.0, 0.0
  %v9119 = vsel %vm9071, 1.0, 0.0
  %v9120 = vsel %vm9072, 1.0, 0.0
  %v9121 = vsel %vm9073, 1.0, 0.0
  %v9122 = vsel %vm9074, 1.0, 0.0
  %v9123 = vsel %vm9075, 1.0, 0.0
  %v9124 = vsel %vm9076, 1.0, 0.0
  %v9125 = vsel %vm9077, 1.0, 0.0
  %v9126 = vsel %vm9078, 1.0, 0.0
  %v9127 = vsel %vm9079, 1.0, 0.0
  %v9128 = vsel %vm9080, 1.0, 0.0
  %v9129 = vsel %vm9081, 1.0, 0.0
  %v9130 = vsel %vm9082, 1.0, 0.0
  %v9131 = vsel %vm9083, 1.0, 0.0
  %v9132 = vsel %vm9084, 1.0, 0.0
  %v9133 = vsel %vm9085, 1.0, 0.0
  %v9134 = vsel %vm9086, 1.0, 0.0
  %v9135 = vsel %vm9087, 1.0, 0.0
  %v9136 = vsel %vm9088, 1.0, 0.0
  %v9137 = vsel %vm9089, 1.0, 0.0
  %v9138 = vsel %vm9090, 1.0, 0.0
  %v9139 = vsel %vm9091, 1.0, 0.0
  %v9140 = vsel %vm9092, 1.0, 0.0
  %v9141 = vsel %vm9093, 1.0, 0.0
  %v9142 = vsel %vm9094, 1.0, 0.0
  %v9143 = vsel %vm9095, 1.0, 0.0
  %v9144 = vsel %vm9096, 1.0, 0.0
  %v9145 = vsel %vm9097, 1.0, 0.0
  %v9146 = vsel %vm9098, 1.0, 0.0
  %v9147 = vsel %vm9099, 1.0, 0.0
  %v9148 = vsel %vm9100, 1.0, 0.0
  %v9149 = vsel %vm9101, 1.0, 0.0
  %v9150 = vsel %vm9102, 1.0, 0.0
  %v9151 = vsel %vm9103, 1.0, 0.0
  %v9152 = vsel %vm9104, 1.0, 0.0
  %v9153 = vsel %vm9105, 1.0, 0.0
  %v9154 = vsel %vm9106, 1.0, 0.0
  %v9155 = vsel %vm9107, 1.0, 0.0
  %v9156 = vsel %vm9108, 1.0, 0.0
  %v9157 = vpack.c.bf16 %v9110, %v9109
  %v9158 = vpack.c.bf16 %v9112, %v9111
  %v9159 = vpack.c.bf16 %v9114, %v9113
  %v9160 = vpack.c.bf16 %v9116, %v9115
  %v9161 = vpack.c.bf16 %v9118, %v9117
  %v9162 = vpack.c.bf16 %v9120, %v9119
  %v9163 = vpack.c.bf16 %v9122, %v9121
  %v9164 = vpack.c.bf16 %v9124, %v9123
  %v9165 = vpack.c.bf16 %v9126, %v9125
  %v9166 = vpack.c.bf16 %v9128, %v9127
  %v9167 = vpack.c.bf16 %v9130, %v9129
  %v9168 = vpack.c.bf16 %v9132, %v9131
  %v9169 = vpack.c.bf16 %v9134, %v9133
  %v9170 = vpack.c.bf16 %v9136, %v9135
  %v9171 = vpack.c.bf16 %v9138, %v9137
  %v9172 = vpack.c.bf16 %v9140, %v9139
  %v9173 = vpack.c.bf16 %v9142, %v9141
  %v9174 = vpack.c.bf16 %v9144, %v9143
  %v9175 = vpack.c.bf16 %v9146, %v9145
  %v9176 = vpack.c.bf16 %v9148, %v9147
  %v9177 = vpack.c.bf16 %v9150, %v9149
  %v9178 = vpack.c.bf16 %v9152, %v9151
  %v9179 = vpack.c.bf16 %v9154, %v9153
  %v9180 = vpack.c.bf16 %v9156, %v9155
  %v9182 = vsel %vm7135, %v9157, 0
  %v9185 = vsel %vm7135, %v9158, 0
  %v9188 = vsel %vm7135, %v9159, 0
  %v9191 = vsel %vm7135, %v9160, 0
  %v9194 = vsel %vm7135, %v9161, 0
  %v9197 = vsel %vm7135, %v9162, 0
  %v9200 = vsel %vm7135, %v9163, 0
  %v9203 = vsel %vm7135, %v9164, 0
  %v9206 = vsel %vm7135, %v9165, 0
  %v9209 = vsel %vm7135, %v9166, 0
  %v9212 = vsel %vm7135, %v9167, 0
  %v9215 = vsel %vm7135, %v9168, 0
  %v9218 = vsel %vm7135, %v9169, 0
  %v9221 = vsel %vm7135, %v9170, 0
  %v9224 = vsel %vm7135, %v9171, 0
  %v9227 = vsel %vm7135, %v9172, 0
  %v9230 = vsel %vm7135, %v9173, 0
  %v9233 = vsel %vm7135, %v9174, 0
  %v9236 = vsel %vm7135, %v9175, 0
  %v9239 = vsel %vm7135, %v9176, 0
  %v9242 = vsel %vm7135, %v9177, 0
  %v9245 = vsel %vm7135, %v9178, 0
  %v9248 = vsel %vm7135, %v9179, 0
  %v9251 = vsel %vm7135, %v9180, 0
  %v9254 = vsel %vm7259, %v8868, 0
  %9256 = vmatpush.bf16.msra.mxu0 0
  %9257 = vmatpush.bf16.msra.mxu0 0
  %9258 = vmatpush.bf16.msra.mxu0 0
  %9259 = vmatpush.bf16.msra.mxu0 %v9254
  %9260 = vmatpush.bf16.msra.mxu0 %v8867
  %9261 = vmatpush.bf16.msra.mxu0 %v8866
  %9262 = vmatpush.bf16.msra.mxu0 %v8865
  %9263 = vmatpush.bf16.msra.mxu0 %v8864
  %9264 = vmatmul.bf16.gmra.mxu0 %v9182
  %v9265 = vpop.f32.mrf.mxu0
  %v9266 = vadd.f32 0.0, %v9265
  %v9267 = vpop.f32.mrf.mxu0
  %v9268 = vadd.f32 0.0, %v9267
  %9269 = vmatmul.bf16.gmra.mxu0 %v9185
  %v9270 = vpop.f32.mrf.mxu0
  %v9271 = vadd.f32 0.0, %v9270
  %v9272 = vpop.f32.mrf.mxu0
  %v9273 = vadd.f32 0.0, %v9272
  %9274 = vmatmul.bf16.gmra.mxu0 %v9188
  %v9275 = vpop.f32.mrf.mxu0
  %v9276 = vadd.f32 0.0, %v9275
  %v9277 = vpop.f32.mrf.mxu0
  %v9278 = vadd.f32 0.0, %v9277
  %9279 = vmatmul.bf16.gmra.mxu0 %v9191
  %v9280 = vpop.f32.mrf.mxu0
  %v9281 = vadd.f32 0.0, %v9280
  %v9282 = vpop.f32.mrf.mxu0
  %v9283 = vadd.f32 0.0, %v9282
  %9284 = vmatmul.bf16.gmra.mxu0 %v9194
  %v9285 = vpop.f32.mrf.mxu0
  %v9286 = vadd.f32 0.0, %v9285
  %v9287 = vpop.f32.mrf.mxu0
  %v9288 = vadd.f32 0.0, %v9287
  %9289 = vmatmul.bf16.gmra.mxu0 %v9197
  %v9290 = vpop.f32.mrf.mxu0
  %v9291 = vadd.f32 0.0, %v9290
  %v9292 = vpop.f32.mrf.mxu0
  %v9293 = vadd.f32 0.0, %v9292
  %9294 = vmatmul.bf16.gmra.mxu0 %v9200
  %v9295 = vpop.f32.mrf.mxu0
  %v9296 = vadd.f32 0.0, %v9295
  %v9297 = vpop.f32.mrf.mxu0
  %v9298 = vadd.f32 0.0, %v9297
  %9299 = vmatmul.bf16.gmra.mxu0 %v9203
  %v9300 = vpop.f32.mrf.mxu0
  %v9301 = vadd.f32 0.0, %v9300
  %v9302 = vpop.f32.mrf.mxu0
  %v9303 = vadd.f32 0.0, %v9302
  %9304 = vmatmul.bf16.gmra.mxu0 %v9206
  %v9305 = vpop.f32.mrf.mxu0
  %v9306 = vadd.f32 0.0, %v9305
  %v9307 = vpop.f32.mrf.mxu0
  %v9308 = vadd.f32 0.0, %v9307
  %9309 = vmatmul.bf16.gmra.mxu0 %v9209
  %v9310 = vpop.f32.mrf.mxu0
  %v9311 = vadd.f32 0.0, %v9310
  %v9312 = vpop.f32.mrf.mxu0
  %v9313 = vadd.f32 0.0, %v9312
  %9314 = vmatmul.bf16.gmra.mxu0 %v9212
  %v9315 = vpop.f32.mrf.mxu0
  %v9316 = vadd.f32 0.0, %v9315
  %v9317 = vpop.f32.mrf.mxu0
  %v9318 = vadd.f32 0.0, %v9317
  %9319 = vmatmul.bf16.gmra.mxu0 %v9215
  %v9320 = vpop.f32.mrf.mxu0
  %v9321 = vadd.f32 0.0, %v9320
  %v9322 = vpop.f32.mrf.mxu0
  %v9323 = vadd.f32 0.0, %v9322
  %9324 = vmatmul.bf16.gmra.mxu0 %v9218
  %v9325 = vpop.f32.mrf.mxu0
  %v9326 = vadd.f32 0.0, %v9325
  %v9327 = vpop.f32.mrf.mxu0
  %v9328 = vadd.f32 0.0, %v9327
  %9329 = vmatmul.bf16.gmra.mxu0 %v9221
  %v9330 = vpop.f32.mrf.mxu0
  %v9331 = vadd.f32 0.0, %v9330
  %v9332 = vpop.f32.mrf.mxu0
  %v9333 = vadd.f32 0.0, %v9332
  %9334 = vmatmul.bf16.gmra.mxu0 %v9224
  %v9335 = vpop.f32.mrf.mxu0
  %v9336 = vadd.f32 0.0, %v9335
  %v9337 = vpop.f32.mrf.mxu0
  %v9338 = vadd.f32 0.0, %v9337
  %9339 = vmatmul.bf16.gmra.mxu0 %v9227
  %v9340 = vpop.f32.mrf.mxu0
  %v9341 = vadd.f32 0.0, %v9340
  %v9342 = vpop.f32.mrf.mxu0
  %v9343 = vadd.f32 0.0, %v9342
  %9344 = vmatmul.bf16.gmra.mxu0 %v9230
  %v9345 = vpop.f32.mrf.mxu0
  %v9346 = vadd.f32 0.0, %v9345
  %v9347 = vpop.f32.mrf.mxu0
  %v9348 = vadd.f32 0.0, %v9347
  %9349 = vmatmul.bf16.gmra.mxu0 %v9233
  %v9350 = vpop.f32.mrf.mxu0
  %v9351 = vadd.f32 0.0, %v9350
  %v9352 = vpop.f32.mrf.mxu0
  %v9353 = vadd.f32 0.0, %v9352
  %9354 = vmatmul.bf16.gmra.mxu0 %v9236
  %v9355 = vpop.f32.mrf.mxu0
  %v9356 = vadd.f32 0.0, %v9355
  %v9357 = vpop.f32.mrf.mxu0
  %v9358 = vadd.f32 0.0, %v9357
  %9359 = vmatmul.bf16.gmra.mxu0 %v9239
  %v9360 = vpop.f32.mrf.mxu0
  %v9361 = vadd.f32 0.0, %v9360
  %v9362 = vpop.f32.mrf.mxu0
  %v9363 = vadd.f32 0.0, %v9362
  %9364 = vmatmul.bf16.gmra.mxu0 %v9242
  %v9365 = vpop.f32.mrf.mxu0
  %v9366 = vadd.f32 0.0, %v9365
  %v9367 = vpop.f32.mrf.mxu0
  %v9368 = vadd.f32 0.0, %v9367
  %9369 = vmatmul.bf16.gmra.mxu0 %v9245
  %v9370 = vpop.f32.mrf.mxu0
  %v9371 = vadd.f32 0.0, %v9370
  %v9372 = vpop.f32.mrf.mxu0
  %v9373 = vadd.f32 0.0, %v9372
  %9374 = vmatmul.bf16.gmra.mxu0 %v9248
  %v9375 = vpop.f32.mrf.mxu0
  %v9376 = vadd.f32 0.0, %v9375
  %v9377 = vpop.f32.mrf.mxu0
  %v9378 = vadd.f32 0.0, %v9377
  %9379 = vmatmul.bf16.gmra.mxu0 %v9251
  %v9380 = vpop.f32.mrf.mxu0
  %v9381 = vadd.f32 0.0, %v9380
  %v9382 = vpop.f32.mrf.mxu0
  %v9383 = vadd.f32 0.0, %v9382
  %9384 = vdwg.mxu0
  %v9385 = vpack.c.bf16 %v9266, %v9266
  %v9386 = vpack.c.bf16 %v9268, %v9268
  %v9387 = vpack.c.bf16 %v9271, %v9271
  %v9388 = vpack.c.bf16 %v9273, %v9273
  %v9389 = vpack.c.bf16 %v9276, %v9276
  %v9390 = vpack.c.bf16 %v9278, %v9278
  %v9391 = vpack.c.bf16 %v9281, %v9281
  %v9392 = vpack.c.bf16 %v9283, %v9283
  %v9393 = vpack.c.bf16 %v9286, %v9286
  %v9394 = vpack.c.bf16 %v9288, %v9288
  %v9395 = vpack.c.bf16 %v9291, %v9291
  %v9396 = vpack.c.bf16 %v9293, %v9293
  %v9397 = vpack.c.bf16 %v9296, %v9296
  %v9398 = vpack.c.bf16 %v9298, %v9298
  %v9399 = vpack.c.bf16 %v9301, %v9301
  %v9400 = vpack.c.bf16 %v9303, %v9303
  %v9401 = vpack.c.bf16 %v9306, %v9306
  %v9402 = vpack.c.bf16 %v9308, %v9308
  %v9403 = vpack.c.bf16 %v9311, %v9311
  %v9404 = vpack.c.bf16 %v9313, %v9313
  %v9405 = vpack.c.bf16 %v9316, %v9316
  %v9406 = vpack.c.bf16 %v9318, %v9318
  %v9407 = vpack.c.bf16 %v9321, %v9321
  %v9408 = vpack.c.bf16 %v9323, %v9323
  %v9409 = vpack.c.bf16 %v9326, %v9326
  %v9410 = vpack.c.bf16 %v9328, %v9328
  %v9411 = vpack.c.bf16 %v9331, %v9331
  %v9412 = vpack.c.bf16 %v9333, %v9333
  %v9413 = vpack.c.bf16 %v9336, %v9336
  %v9414 = vpack.c.bf16 %v9338, %v9338
  %v9415 = vpack.c.bf16 %v9341, %v9341
  %v9416 = vpack.c.bf16 %v9343, %v9343
  %v9417 = vpack.c.bf16 %v9346, %v9346
  %v9418 = vpack.c.bf16 %v9348, %v9348
  %v9419 = vpack.c.bf16 %v9351, %v9351
  %v9420 = vpack.c.bf16 %v9353, %v9353
  %v9421 = vpack.c.bf16 %v9356, %v9356
  %v9422 = vpack.c.bf16 %v9358, %v9358
  %v9423 = vpack.c.bf16 %v9361, %v9361
  %v9424 = vpack.c.bf16 %v9363, %v9363
  %v9425 = vpack.c.bf16 %v9366, %v9366
  %v9426 = vpack.c.bf16 %v9368, %v9368
  %v9427 = vpack.c.bf16 %v9371, %v9371
  %v9428 = vpack.c.bf16 %v9373, %v9373
  %v9429 = vpack.c.bf16 %v9376, %v9376
  %v9430 = vpack.c.bf16 %v9378, %v9378
  %v9431 = vpack.c.bf16 %v9381, %v9381
  %v9432 = vpack.c.bf16 %v9383, %v9383
  %s9433 = smul.u32 %s4703, 16
  %s9434 = smul.u32 %s9433, 2
  %s9435 = sshll.u32 %s9434, 4
  %9436 = dma.done %s335, %s9435
  %v9437 = vld [vmem:[#allocation4] sm:$0xff]
  %v9438 = vld [vmem:[#allocation4 + $0x8] sm:$0xff]
  %v9439 = vld [vmem:[#allocation4 + $0x10] sm:$0xff]
  %v9440 = vld [vmem:[#allocation4 + $0x18] sm:$0xff]
  %v9441 = vld [vmem:[#allocation4 + $0x20] sm:$0xff]
  %v9442 = vld [vmem:[#allocation4 + $0x28] sm:$0xff]
  %v9443 = vld [vmem:[#allocation4 + $0x30] sm:$0xff]
  %v9444 = vld [vmem:[#allocation4 + $0x38] sm:$0xff]
  %v9445 = vld [vmem:[#allocation4 + $0x40] sm:$0xff]
  %v9446 = vld [vmem:[#allocation4 + $0x48] sm:$0xff]
  %v9447 = vld [vmem:[#allocation4 + $0x50] sm:$0xff]
  %v9448 = vld [vmem:[#allocation4 + $0x58] sm:$0xff]
  %v9449 = vld [vmem:[#allocation4 + $0x60] sm:$0xff]
  %v9450 = vld [vmem:[#allocation4 + $0x68] sm:$0xff]
  %v9451 = vld [vmem:[#allocation4 + $0x70] sm:$0xff]
  %v9452 = vld [vmem:[#allocation4 + $0x78] sm:$0xff]
  %s9453 = scalar_lea.vmem [#allocation4], 128
  %v9454 = vld [vmem:[%s9453] sm:$0xff]
  %v9455 = vld [vmem:[%s9453 + $0x8] sm:$0xff]
  %v9456 = vld [vmem:[%s9453 + $0x10] sm:$0xff]
  %v9457 = vld [vmem:[%s9453 + $0x18] sm:$0xff]
  %v9458 = vld [vmem:[%s9453 + $0x20] sm:$0xff]
  %v9459 = vld [vmem:[%s9453 + $0x28] sm:$0xff]
  %v9460 = vld [vmem:[%s9453 + $0x30] sm:$0xff]
  %v9461 = vld [vmem:[%s9453 + $0x38] sm:$0xff]
  %v9462 = vld [vmem:[%s9453 + $0x40] sm:$0xff]
  %v9463 = vld [vmem:[%s9453 + $0x48] sm:$0xff]
  %v9464 = vld [vmem:[%s9453 + $0x50] sm:$0xff]
  %v9465 = vld [vmem:[%s9453 + $0x58] sm:$0xff]
  %v9466 = vld [vmem:[%s9453 + $0x60] sm:$0xff]
  %v9467 = vld [vmem:[%s9453 + $0x68] sm:$0xff]
  %v9468 = vld [vmem:[%s9453 + $0x70] sm:$0xff]
  %v9469 = vld [vmem:[%s9453 + $0x78] sm:$0xff]
  %v9473 = vunpack.c.l.b16 %v9388
  %v9474 = vunpack.c.l.b16 %v9389
  %v9475 = vunpack.c.l.b16 %v9390
  %v9476 = vpack.c.b16 %v9474, %v9473
  %v9477 = vpack.c.b16 %v9475, %v9475
  %v9496 = vunpack.c.l.b16 %v9454
  %v9497 = vunpack.c.h.b16 %v9454
  %v9498 = vunpack.c.l.b16 %v9455
  %v9499 = vunpack.c.h.b16 %v9455
  %v9500 = vunpack.c.l.b16 %v9456
  %v9501 = vunpack.c.h.b16 %v9456
  %v9502 = vunpack.c.l.b16 %v9457
  %v9503 = vunpack.c.h.b16 %v9457
  %v9504 = vunpack.c.l.b16 %v9458
  %v9505 = vunpack.c.h.b16 %v9458
  %v9506 = vunpack.c.l.b16 %v9459
  %v9507 = vunpack.c.h.b16 %v9459
  %v9508 = vunpack.c.l.b16 %v9460
  %v9509 = vunpack.c.h.b16 %v9460
  %v9510 = vunpack.c.l.b16 %v9461
  %v9511 = vunpack.c.h.b16 %v9461
  %v9512 = vunpack.c.l.b16 %v9462
  %v9513 = vunpack.c.h.b16 %v9462
  %v9514 = vunpack.c.l.b16 %v9463
  %v9515 = vunpack.c.h.b16 %v9463
  %v9516 = vunpack.c.l.b16 %v9464
  %v9517 = vunpack.c.h.b16 %v9464
  %v9518 = vunpack.c.l.b16 %v9465
  %v9519 = vunpack.c.h.b16 %v9465
  %v9520 = vunpack.c.l.b16 %v9466
  %v9521 = vunpack.c.h.b16 %v9466
  %v9522 = vunpack.c.l.b16 %v9467
  %v9523 = vunpack.c.h.b16 %v9467
  %v9524 = vunpack.c.l.b16 %v9468
  %v9525 = vunpack.c.h.b16 %v9468
  %v9526 = vunpack.c.l.b16 %v9469
  %v9527 = vunpack.c.h.b16 %v9469
  %v9528 = vpack.c.b16 %v9498, %v9496
  %v9529 = vpack.c.b16 %v9499, %v9497
  %v9530 = vpack.c.b16 %v9502, %v9500
  %v9531 = vpack.c.b16 %v9503, %v9501
  %v9532 = vpack.c.b16 %v9506, %v9504
  %v9533 = vpack.c.b16 %v9507, %v9505
  %v9534 = vpack.c.b16 %v9510, %v9508
  %v9535 = vpack.c.b16 %v9511, %v9509
  %v9536 = vpack.c.b16 %v9514, %v9512
  %v9537 = vpack.c.b16 %v9515, %v9513
  %v9538 = vpack.c.b16 %v9518, %v9516
  %v9539 = vpack.c.b16 %v9519, %v9517
  %v9540 = vpack.c.b16 %v9522, %v9520
  %v9541 = vpack.c.b16 %v9523, %v9521
  %v9542 = vpack.c.b16 %v9526, %v9524
  %v9543 = vpack.c.b16 %v9527, %v9525
  %9560 = vmatpush.bf16.msra.mxu0 %v9542
  %9561 = vmatpush.bf16.msra.mxu0 %v9540
  %9562 = vmatpush.bf16.msra.mxu0 %v9538
  %9563 = vmatpush.bf16.msra.mxu0 %v9536
  %9564 = vmatpush.bf16.msra.mxu0 %v9534
  %9565 = vmatpush.bf16.msra.mxu0 %v9532
  %9566 = vmatpush.bf16.msra.mxu0 %v9530
  %9567 = vmatpush.bf16.msra.mxu0 %v9528
  %9568 = vmatmul.bf16.gmra.mxu0 %v9476
  %v9569 = vpop.f32.mrf.mxu0
  %v9570 = vadd.f32 0.0, %v9569
  %v9571 = vpop.f32.mrf.mxu0
  %v9572 = vadd.f32 0.0, %v9571
  %9573 = vmatmul.bf16.gmra.mxu0 %v9477
  %v9574 = vpop.f32.mrf.mxu0
  %v9575 = vadd.f32 0.0, %v9574
  %v9576 = vpop.f32.mrf.mxu0
  %9577 = vdwg.mxu0
  %9578 = vmatpush.bf16.msra.mxu0 %v9543
  %9579 = vmatpush.bf16.msra.mxu0 %v9541
  %9580 = vmatpush.bf16.msra.mxu0 %v9539
  %9581 = vmatpush.bf16.msra.mxu0 %v9537
  %9582 = vmatpush.bf16.msra.mxu0 %v9535
  %9583 = vmatpush.bf16.msra.mxu0 %v9533
  %9584 = vmatpush.bf16.msra.mxu0 %v9531
  %9585 = vmatpush.bf16.msra.mxu0 %v9529
  %9586 = vmatmul.bf16.gmra.mxu0 %v9476
  %v9587 = vpop.f32.mrf.mxu0
  %v9588 = vadd.f32 0.0, %v9587
  %v9589 = vpop.f32.mrf.mxu0
  %v9590 = vadd.f32 0.0, %v9589
  %9591 = vmatmul.bf16.gmra.mxu0 %v9477
  %v9592 = vpop.f32.mrf.mxu0
  %v9593 = vadd.f32 0.0, %v9592
  %v9594 = vpop.f32.mrf.mxu0
  %9595 = vdwg.mxu0
  %v9599 = vunpack.c.l.b16 %v9385
  %v9600 = vunpack.c.l.b16 %v9386
  %v9601 = vunpack.c.l.b16 %v9387
  %v9602 = vpack.c.b16 %v9600, %v9599
  %v9603 = vpack.c.b16 %v9601, %v9601
  %v9622 = vunpack.c.l.b16 %v9437
  %v9623 = vunpack.c.h.b16 %v9437
  %v9624 = vunpack.c.l.b16 %v9438
  %v9625 = vunpack.c.h.b16 %v9438
  %v9626 = vunpack.c.l.b16 %v9439
  %v9627 = vunpack.c.h.b16 %v9439
  %v9628 = vunpack.c.l.b16 %v9440
  %v9629 = vunpack.c.h.b16 %v9440
  %v9630 = vunpack.c.l.b16 %v9441
  %v9631 = vunpack.c.h.b16 %v9441
  %v9632 = vunpack.c.l.b16 %v9442
  %v9633 = vunpack.c.h.b16 %v9442
  %v9634 = vunpack.c.l.b16 %v9443
  %v9635 = vunpack.c.h.b16 %v9443
  %v9636 = vunpack.c.l.b16 %v9444
  %v9637 = vunpack.c.h.b16 %v9444
  %v9638 = vunpack.c.l.b16 %v9445
  %v9639 = vunpack.c.h.b16 %v9445
  %v9640 = vunpack.c.l.b16 %v9446
  %v9641 = vunpack.c.h.b16 %v9446
  %v9642 = vunpack.c.l.b16 %v9447
  %v9643 = vunpack.c.h.b16 %v9447
  %v9644 = vunpack.c.l.b16 %v9448
  %v9645 = vunpack.c.h.b16 %v9448
  %v9646 = vunpack.c.l.b16 %v9449
  %v9647 = vunpack.c.h.b16 %v9449
  %v9648 = vunpack.c.l.b16 %v9450
  %v9649 = vunpack.c.h.b16 %v9450
  %v9650 = vunpack.c.l.b16 %v9451
  %v9651 = vunpack.c.h.b16 %v9451
  %v9652 = vunpack.c.l.b16 %v9452
  %v9653 = vunpack.c.h.b16 %v9452
  %v9654 = vpack.c.b16 %v9624, %v9622
  %v9655 = vpack.c.b16 %v9625, %v9623
  %v9656 = vpack.c.b16 %v9628, %v9626
  %v9657 = vpack.c.b16 %v9629, %v9627
  %v9658 = vpack.c.b16 %v9632, %v9630
  %v9659 = vpack.c.b16 %v9633, %v9631
  %v9660 = vpack.c.b16 %v9636, %v9634
  %v9661 = vpack.c.b16 %v9637, %v9635
  %v9662 = vpack.c.b16 %v9640, %v9638
  %v9663 = vpack.c.b16 %v9641, %v9639
  %v9664 = vpack.c.b16 %v9644, %v9642
  %v9665 = vpack.c.b16 %v9645, %v9643
  %v9666 = vpack.c.b16 %v9648, %v9646
  %v9667 = vpack.c.b16 %v9649, %v9647
  %v9668 = vpack.c.b16 %v9652, %v9650
  %v9669 = vpack.c.b16 %v9653, %v9651
  %9686 = vmatpush.bf16.msra.mxu0 %v9668
  %9687 = vmatpush.bf16.msra.mxu0 %v9666
  %9688 = vmatpush.bf16.msra.mxu0 %v9664
  %9689 = vmatpush.bf16.msra.mxu0 %v9662
  %9690 = vmatpush.bf16.msra.mxu0 %v9660
  %9691 = vmatpush.bf16.msra.mxu0 %v9658
  %9692 = vmatpush.bf16.msra.mxu0 %v9656
  %9693 = vmatpush.bf16.msra.mxu0 %v9654
  %9694 = vmatmul.bf16.gmra.mxu0 %v9602
  %v9695 = vpop.f32.mrf.mxu0
  %v9696 = vadd.f32 %v9570, %v9695
  %v9697 = vpop.f32.mrf.mxu0
  %v9698 = vadd.f32 %v9572, %v9697
  %9699 = vmatmul.bf16.gmra.mxu0 %v9603
  %v9700 = vpop.f32.mrf.mxu0
  %v9701 = vadd.f32 %v9575, %v9700
  %v9702 = vpop.f32.mrf.mxu0
  %9703 = vdwg.mxu0
  %9704 = vmatpush.bf16.msra.mxu0 %v9669
  %9705 = vmatpush.bf16.msra.mxu0 %v9667
  %9706 = vmatpush.bf16.msra.mxu0 %v9665
  %9707 = vmatpush.bf16.msra.mxu0 %v9663
  %9708 = vmatpush.bf16.msra.mxu0 %v9661
  %9709 = vmatpush.bf16.msra.mxu0 %v9659
  %9710 = vmatpush.bf16.msra.mxu0 %v9657
  %9711 = vmatpush.bf16.msra.mxu0 %v9655
  %9712 = vmatmul.bf16.gmra.mxu0 %v9602
  %v9713 = vpop.f32.mrf.mxu0
  %v9714 = vadd.f32 %v9588, %v9713
  %v9715 = vpop.f32.mrf.mxu0
  %v9716 = vadd.f32 %v9590, %v9715
  %9717 = vmatmul.bf16.gmra.mxu0 %v9603
  %v9718 = vpop.f32.mrf.mxu0
  %v9719 = vadd.f32 %v9593, %v9718
  %v9720 = vpop.f32.mrf.mxu0
  %9721 = vdwg.mxu0
  %s9722 = scalar_lea.vmem [#allocation4], 256
  %v9723 = vld [vmem:[%s9722] sm:$0xff]
  %v9724 = vld [vmem:[%s9722 + $0x8] sm:$0xff]
  %v9725 = vld [vmem:[%s9722 + $0x10] sm:$0xff]
  %v9726 = vld [vmem:[%s9722 + $0x18] sm:$0xff]
  %v9727 = vld [vmem:[%s9722 + $0x20] sm:$0xff]
  %v9728 = vld [vmem:[%s9722 + $0x28] sm:$0xff]
  %v9729 = vld [vmem:[%s9722 + $0x30] sm:$0xff]
  %v9730 = vld [vmem:[%s9722 + $0x38] sm:$0xff]
  %v9731 = vld [vmem:[%s9722 + $0x40] sm:$0xff]
  %v9732 = vld [vmem:[%s9722 + $0x48] sm:$0xff]
  %v9733 = vld [vmem:[%s9722 + $0x50] sm:$0xff]
  %v9734 = vld [vmem:[%s9722 + $0x58] sm:$0xff]
  %v9735 = vld [vmem:[%s9722 + $0x60] sm:$0xff]
  %v9736 = vld [vmem:[%s9722 + $0x68] sm:$0xff]
  %v9737 = vld [vmem:[%s9722 + $0x70] sm:$0xff]
  %v9738 = vld [vmem:[%s9722 + $0x78] sm:$0xff]
  %v9742 = vunpack.c.l.b16 %v9391
  %v9743 = vunpack.c.l.b16 %v9392
  %v9744 = vunpack.c.l.b16 %v9393
  %v9745 = vpack.c.b16 %v9743, %v9742
  %v9746 = vpack.c.b16 %v9744, %v9744
  %v9765 = vunpack.c.l.b16 %v9723
  %v9766 = vunpack.c.h.b16 %v9723
  %v9767 = vunpack.c.l.b16 %v9724
  %v9768 = vunpack.c.h.b16 %v9724
  %v9769 = vunpack.c.l.b16 %v9725
  %v9770 = vunpack.c.h.b16 %v9725
  %v9771 = vunpack.c.l.b16 %v9726
  %v9772 = vunpack.c.h.b16 %v9726
  %v9773 = vunpack.c.l.b16 %v9727
  %v9774 = vunpack.c.h.b16 %v9727
  %v9775 = vunpack.c.l.b16 %v9728
  %v9776 = vunpack.c.h.b16 %v9728
  %v9777 = vunpack.c.l.b16 %v9729
  %v9778 = vunpack.c.h.b16 %v9729
  %v9779 = vunpack.c.l.b16 %v9730
  %v9780 = vunpack.c.h.b16 %v9730
  %v9781 = vunpack.c.l.b16 %v9731
  %v9782 = vunpack.c.h.b16 %v9731
  %v9783 = vunpack.c.l.b16 %v9732
  %v9784 = vunpack.c.h.b16 %v9732
  %v9785 = vunpack.c.l.b16 %v9733
  %v9786 = vunpack.c.h.b16 %v9733
  %v9787 = vunpack.c.l.b16 %v9734
  %v9788 = vunpack.c.h.b16 %v9734
  %v9789 = vunpack.c.l.b16 %v9735
  %v9790 = vunpack.c.h.b16 %v9735
  %v9791 = vunpack.c.l.b16 %v9736
  %v9792 = vunpack.c.h.b16 %v9736
  %v9793 = vunpack.c.l.b16 %v9737
  %v9794 = vunpack.c.h.b16 %v9737
  %v9795 = vunpack.c.l.b16 %v9738
  %v9796 = vunpack.c.h.b16 %v9738
  %v9797 = vpack.c.b16 %v9767, %v9765
  %v9798 = vpack.c.b16 %v9768, %v9766
  %v9799 = vpack.c.b16 %v9771, %v9769
  %v9800 = vpack.c.b16 %v9772, %v9770
  %v9801 = vpack.c.b16 %v9775, %v9773
  %v9802 = vpack.c.b16 %v9776, %v9774
  %v9803 = vpack.c.b16 %v9779, %v9777
  %v9804 = vpack.c.b16 %v9780, %v9778
  %v9805 = vpack.c.b16 %v9783, %v9781
  %v9806 = vpack.c.b16 %v9784, %v9782
  %v9807 = vpack.c.b16 %v9787, %v9785
  %v9808 = vpack.c.b16 %v9788, %v9786
  %v9809 = vpack.c.b16 %v9791, %v9789
  %v9810 = vpack.c.b16 %v9792, %v9790
  %v9811 = vpack.c.b16 %v9795, %v9793
  %v9812 = vpack.c.b16 %v9796, %v9794
  %9829 = vmatpush.bf16.msra.mxu0 %v9811
  %9830 = vmatpush.bf16.msra.mxu0 %v9809
  %9831 = vmatpush.bf16.msra.mxu0 %v9807
  %9832 = vmatpush.bf16.msra.mxu0 %v9805
  %9833 = vmatpush.bf16.msra.mxu0 %v9803
  %9834 = vmatpush.bf16.msra.mxu0 %v9801
  %9835 = vmatpush.bf16.msra.mxu0 %v9799
  %9836 = vmatpush.bf16.msra.mxu0 %v9797
  %9837 = vmatmul.bf16.gmra.mxu0 %v9745
  %v9838 = vpop.f32.mrf.mxu0
  %v9839 = vadd.f32 0.0, %v9838
  %v9840 = vpop.f32.mrf.mxu0
  %v9841 = vadd.f32 0.0, %v9840
  %9842 = vmatmul.bf16.gmra.mxu0 %v9746
  %v9843 = vpop.f32.mrf.mxu0
  %v9844 = vadd.f32 0.0, %v9843
  %v9845 = vpop.f32.mrf.mxu0
  %9846 = vdwg.mxu0
  %9847 = vmatpush.bf16.msra.mxu0 %v9812
  %9848 = vmatpush.bf16.msra.mxu0 %v9810
  %9849 = vmatpush.bf16.msra.mxu0 %v9808
  %9850 = vmatpush.bf16.msra.mxu0 %v9806
  %9851 = vmatpush.bf16.msra.mxu0 %v9804
  %9852 = vmatpush.bf16.msra.mxu0 %v9802
  %9853 = vmatpush.bf16.msra.mxu0 %v9800
  %9854 = vmatpush.bf16.msra.mxu0 %v9798
  %9855 = vmatmul.bf16.gmra.mxu0 %v9745
  %v9856 = vpop.f32.mrf.mxu0
  %v9857 = vadd.f32 0.0, %v9856
  %v9858 = vpop.f32.mrf.mxu0
  %v9859 = vadd.f32 0.0, %v9858
  %9860 = vmatmul.bf16.gmra.mxu0 %v9746
  %v9861 = vpop.f32.mrf.mxu0
  %v9862 = vadd.f32 0.0, %v9861
  %v9863 = vpop.f32.mrf.mxu0
  %9864 = vdwg.mxu0
  %v9865 = vadd.f32 %v9696, %v9839
  %v9866 = vadd.f32 %v9714, %v9857
  %v9867 = vadd.f32 %v9698, %v9841
  %v9868 = vadd.f32 %v9716, %v9859
  %v9869 = vadd.f32 %v9701, %v9844
  %v9870 = vadd.f32 %v9719, %v9862
  %s9871 = scalar_lea.vmem [#allocation4], 384
  %v9872 = vld [vmem:[%s9871] sm:$0xff]
  %v9873 = vld [vmem:[%s9871 + $0x8] sm:$0xff]
  %v9874 = vld [vmem:[%s9871 + $0x10] sm:$0xff]
  %v9875 = vld [vmem:[%s9871 + $0x18] sm:$0xff]
  %v9876 = vld [vmem:[%s9871 + $0x20] sm:$0xff]
  %v9877 = vld [vmem:[%s9871 + $0x28] sm:$0xff]
  %v9878 = vld [vmem:[%s9871 + $0x30] sm:$0xff]
  %v9879 = vld [vmem:[%s9871 + $0x38] sm:$0xff]
  %v9880 = vld [vmem:[%s9871 + $0x40] sm:$0xff]
  %v9881 = vld [vmem:[%s9871 + $0x48] sm:$0xff]
  %v9882 = vld [vmem:[%s9871 + $0x50] sm:$0xff]
  %v9883 = vld [vmem:[%s9871 + $0x58] sm:$0xff]
  %v9884 = vld [vmem:[%s9871 + $0x60] sm:$0xff]
  %v9885 = vld [vmem:[%s9871 + $0x68] sm:$0xff]
  %v9886 = vld [vmem:[%s9871 + $0x70] sm:$0xff]
  %v9887 = vld [vmem:[%s9871 + $0x78] sm:$0xff]
  %v9891 = vunpack.c.l.b16 %v9394
  %v9892 = vunpack.c.l.b16 %v9395
  %v9893 = vunpack.c.l.b16 %v9396
  %v9894 = vpack.c.b16 %v9892, %v9891
  %v9895 = vpack.c.b16 %v9893, %v9893
  %v9914 = vunpack.c.l.b16 %v9872
  %v9915 = vunpack.c.h.b16 %v9872
  %v9916 = vunpack.c.l.b16 %v9873
  %v9917 = vunpack.c.h.b16 %v9873
  %v9918 = vunpack.c.l.b16 %v9874
  %v9919 = vunpack.c.h.b16 %v9874
  %v9920 = vunpack.c.l.b16 %v9875
  %v9921 = vunpack.c.h.b16 %v9875
  %v9922 = vunpack.c.l.b16 %v9876
  %v9923 = vunpack.c.h.b16 %v9876
  %v9924 = vunpack.c.l.b16 %v9877
  %v9925 = vunpack.c.h.b16 %v9877
  %v9926 = vunpack.c.l.b16 %v9878
  %v9927 = vunpack.c.h.b16 %v9878
  %v9928 = vunpack.c.l.b16 %v9879
  %v9929 = vunpack.c.h.b16 %v9879
  %v9930 = vunpack.c.l.b16 %v9880
  %v9931 = vunpack.c.h.b16 %v9880
  %v9932 = vunpack.c.l.b16 %v9881
  %v9933 = vunpack.c.h.b16 %v9881
  %v9934 = vunpack.c.l.b16 %v9882
  %v9935 = vunpack.c.h.b16 %v9882
  %v9936 = vunpack.c.l.b16 %v9883
  %v9937 = vunpack.c.h.b16 %v9883
  %v9938 = vunpack.c.l.b16 %v9884
  %v9939 = vunpack.c.h.b16 %v9884
  %v9940 = vunpack.c.l.b16 %v9885
  %v9941 = vunpack.c.h.b16 %v9885
  %v9942 = vunpack.c.l.b16 %v9886
  %v9943 = vunpack.c.h.b16 %v9886
  %v9944 = vunpack.c.l.b16 %v9887
  %v9945 = vunpack.c.h.b16 %v9887
  %v9946 = vpack.c.b16 %v9916, %v9914
  %v9947 = vpack.c.b16 %v9917, %v9915
  %v9948 = vpack.c.b16 %v9920, %v9918
  %v9949 = vpack.c.b16 %v9921, %v9919
  %v9950 = vpack.c.b16 %v9924, %v9922
  %v9951 = vpack.c.b16 %v9925, %v9923
  %v9952 = vpack.c.b16 %v9928, %v9926
  %v9953 = vpack.c.b16 %v9929, %v9927
  %v9954 = vpack.c.b16 %v9932, %v9930
  %v9955 = vpack.c.b16 %v9933, %v9931
  %v9956 = vpack.c.b16 %v9936, %v9934
  %v9957 = vpack.c.b16 %v9937, %v9935
  %v9958 = vpack.c.b16 %v9940, %v9938
  %v9959 = vpack.c.b16 %v9941, %v9939
  %v9960 = vpack.c.b16 %v9944, %v9942
  %v9961 = vpack.c.b16 %v9945, %v9943
  %9978 = vmatpush.bf16.msra.mxu0 %v9960
  %9979 = vmatpush.bf16.msra.mxu0 %v9958
  %9980 = vmatpush.bf16.msra.mxu0 %v9956
  %9981 = vmatpush.bf16.msra.mxu0 %v9954
  %9982 = vmatpush.bf16.msra.mxu0 %v9952
  %9983 = vmatpush.bf16.msra.mxu0 %v9950
  %9984 = vmatpush.bf16.msra.mxu0 %v9948
  %9985 = vmatpush.bf16.msra.mxu0 %v9946
  %9986 = vmatmul.bf16.gmra.mxu0 %v9894
  %v9987 = vpop.f32.mrf.mxu0
  %v9988 = vadd.f32 0.0, %v9987
  %v9989 = vpop.f32.mrf.mxu0
  %v9990 = vadd.f32 0.0, %v9989
  %9991 = vmatmul.bf16.gmra.mxu0 %v9895
  %v9992 = vpop.f32.mrf.mxu0
  %v9993 = vadd.f32 0.0, %v9992
  %v9994 = vpop.f32.mrf.mxu0
  %9995 = vdwg.mxu0
  %9996 = vmatpush.bf16.msra.mxu0 %v9961
  %9997 = vmatpush.bf16.msra.mxu0 %v9959
  %9998 = vmatpush.bf16.msra.mxu0 %v9957
  %9999 = vmatpush.bf16.msra.mxu0 %v9955
  %10000 = vmatpush.bf16.msra.mxu0 %v9953
  %10001 = vmatpush.bf16.msra.mxu0 %v9951
  %10002 = vmatpush.bf16.msra.mxu0 %v9949
  %10003 = vmatpush.bf16.msra.mxu0 %v9947
  %10004 = vmatmul.bf16.gmra.mxu0 %v9894
  %v10005 = vpop.f32.mrf.mxu0
  %v10006 = vadd.f32 0.0, %v10005
  %v10007 = vpop.f32.mrf.mxu0
  %v10008 = vadd.f32 0.0, %v10007
  %10009 = vmatmul.bf16.gmra.mxu0 %v9895
  %v10010 = vpop.f32.mrf.mxu0
  %v10011 = vadd.f32 0.0, %v10010
  %v10012 = vpop.f32.mrf.mxu0
  %10013 = vdwg.mxu0
  %v10014 = vadd.f32 %v9865, %v9988
  %v10015 = vadd.f32 %v9866, %v10006
  %v10016 = vadd.f32 %v9867, %v9990
  %v10017 = vadd.f32 %v9868, %v10008
  %v10018 = vadd.f32 %v9869, %v9993
  %v10019 = vadd.f32 %v9870, %v10011
  %s10020 = scalar_lea.vmem [#allocation4], 512
  %v10021 = vld [vmem:[%s10020] sm:$0xff]
  %v10022 = vld [vmem:[%s10020 + $0x8] sm:$0xff]
  %v10023 = vld [vmem:[%s10020 + $0x10] sm:$0xff]
  %v10024 = vld [vmem:[%s10020 + $0x18] sm:$0xff]
  %v10025 = vld [vmem:[%s10020 + $0x20] sm:$0xff]
  %v10026 = vld [vmem:[%s10020 + $0x28] sm:$0xff]
  %v10027 = vld [vmem:[%s10020 + $0x30] sm:$0xff]
  %v10028 = vld [vmem:[%s10020 + $0x38] sm:$0xff]
  %v10029 = vld [vmem:[%s10020 + $0x40] sm:$0xff]
  %v10030 = vld [vmem:[%s10020 + $0x48] sm:$0xff]
  %v10031 = vld [vmem:[%s10020 + $0x50] sm:$0xff]
  %v10032 = vld [vmem:[%s10020 + $0x58] sm:$0xff]
  %v10033 = vld [vmem:[%s10020 + $0x60] sm:$0xff]
  %v10034 = vld [vmem:[%s10020 + $0x68] sm:$0xff]
  %v10035 = vld [vmem:[%s10020 + $0x70] sm:$0xff]
  %v10036 = vld [vmem:[%s10020 + $0x78] sm:$0xff]
  %v10040 = vunpack.c.l.b16 %v9397
  %v10041 = vunpack.c.l.b16 %v9398
  %v10042 = vunpack.c.l.b16 %v9399
  %v10043 = vpack.c.b16 %v10041, %v10040
  %v10044 = vpack.c.b16 %v10042, %v10042
  %v10063 = vunpack.c.l.b16 %v10021
  %v10064 = vunpack.c.h.b16 %v10021
  %v10065 = vunpack.c.l.b16 %v10022
  %v10066 = vunpack.c.h.b16 %v10022
  %v10067 = vunpack.c.l.b16 %v10023
  %v10068 = vunpack.c.h.b16 %v10023
  %v10069 = vunpack.c.l.b16 %v10024
  %v10070 = vunpack.c.h.b16 %v10024
  %v10071 = vunpack.c.l.b16 %v10025
  %v10072 = vunpack.c.h.b16 %v10025
  %v10073 = vunpack.c.l.b16 %v10026
  %v10074 = vunpack.c.h.b16 %v10026
  %v10075 = vunpack.c.l.b16 %v10027
  %v10076 = vunpack.c.h.b16 %v10027
  %v10077 = vunpack.c.l.b16 %v10028
  %v10078 = vunpack.c.h.b16 %v10028
  %v10079 = vunpack.c.l.b16 %v10029
  %v10080 = vunpack.c.h.b16 %v10029
  %v10081 = vunpack.c.l.b16 %v10030
  %v10082 = vunpack.c.h.b16 %v10030
  %v10083 = vunpack.c.l.b16 %v10031
  %v10084 = vunpack.c.h.b16 %v10031
  %v10085 = vunpack.c.l.b16 %v10032
  %v10086 = vunpack.c.h.b16 %v10032
  %v10087 = vunpack.c.l.b16 %v10033
  %v10088 = vunpack.c.h.b16 %v10033
  %v10089 = vunpack.c.l.b16 %v10034
  %v10090 = vunpack.c.h.b16 %v10034
  %v10091 = vunpack.c.l.b16 %v10035
  %v10092 = vunpack.c.h.b16 %v10035
  %v10093 = vunpack.c.l.b16 %v10036
  %v10094 = vunpack.c.h.b16 %v10036
  %v10095 = vpack.c.b16 %v10065, %v10063
  %v10096 = vpack.c.b16 %v10066, %v10064
  %v10097 = vpack.c.b16 %v10069, %v10067
  %v10098 = vpack.c.b16 %v10070, %v10068
  %v10099 = vpack.c.b16 %v10073, %v10071
  %v10100 = vpack.c.b16 %v10074, %v10072
  %v10101 = vpack.c.b16 %v10077, %v10075
  %v10102 = vpack.c.b16 %v10078, %v10076
  %v10103 = vpack.c.b16 %v10081, %v10079
  %v10104 = vpack.c.b16 %v10082, %v10080
  %v10105 = vpack.c.b16 %v10085, %v10083
  %v10106 = vpack.c.b16 %v10086, %v10084
  %v10107 = vpack.c.b16 %v10089, %v10087
  %v10108 = vpack.c.b16 %v10090, %v10088
  %v10109 = vpack.c.b16 %v10093, %v10091
  %v10110 = vpack.c.b16 %v10094, %v10092
  %10127 = vmatpush.bf16.msra.mxu0 %v10109
  %10128 = vmatpush.bf16.msra.mxu0 %v10107
  %10129 = vmatpush.bf16.msra.mxu0 %v10105
  %10130 = vmatpush.bf16.msra.mxu0 %v10103
  %10131 = vmatpush.bf16.msra.mxu0 %v10101
  %10132 = vmatpush.bf16.msra.mxu0 %v10099
  %10133 = vmatpush.bf16.msra.mxu0 %v10097
  %10134 = vmatpush.bf16.msra.mxu0 %v10095
  %10135 = vmatmul.bf16.gmra.mxu0 %v10043
  %v10136 = vpop.f32.mrf.mxu0
  %v10137 = vadd.f32 0.0, %v10136
  %v10138 = vpop.f32.mrf.mxu0
  %v10139 = vadd.f32 0.0, %v10138
  %10140 = vmatmul.bf16.gmra.mxu0 %v10044
  %v10141 = vpop.f32.mrf.mxu0
  %v10142 = vadd.f32 0.0, %v10141
  %v10143 = vpop.f32.mrf.mxu0
  %10144 = vdwg.mxu0
  %10145 = vmatpush.bf16.msra.mxu0 %v10110
  %10146 = vmatpush.bf16.msra.mxu0 %v10108
  %10147 = vmatpush.bf16.msra.mxu0 %v10106
  %10148 = vmatpush.bf16.msra.mxu0 %v10104
  %10149 = vmatpush.bf16.msra.mxu0 %v10102
  %10150 = vmatpush.bf16.msra.mxu0 %v10100
  %10151 = vmatpush.bf16.msra.mxu0 %v10098
  %10152 = vmatpush.bf16.msra.mxu0 %v10096
  %10153 = vmatmul.bf16.gmra.mxu0 %v10043
  %v10154 = vpop.f32.mrf.mxu0
  %v10155 = vadd.f32 0.0, %v10154
  %v10156 = vpop.f32.mrf.mxu0
  %v10157 = vadd.f32 0.0, %v10156
  %10158 = vmatmul.bf16.gmra.mxu0 %v10044
  %v10159 = vpop.f32.mrf.mxu0
  %v10160 = vadd.f32 0.0, %v10159
  %v10161 = vpop.f32.mrf.mxu0
  %10162 = vdwg.mxu0
  %v10163 = vadd.f32 %v10014, %v10137
  %v10164 = vadd.f32 %v10015, %v10155
  %v10165 = vadd.f32 %v10016, %v10139
  %v10166 = vadd.f32 %v10017, %v10157
  %v10167 = vadd.f32 %v10018, %v10142
  %v10168 = vadd.f32 %v10019, %v10160
  %s10169 = scalar_lea.vmem [#allocation4], 640
  %v10170 = vld [vmem:[%s10169] sm:$0xff]
  %v10171 = vld [vmem:[%s10169 + $0x8] sm:$0xff]
  %v10172 = vld [vmem:[%s10169 + $0x10] sm:$0xff]
  %v10173 = vld [vmem:[%s10169 + $0x18] sm:$0xff]
  %v10174 = vld [vmem:[%s10169 + $0x20] sm:$0xff]
  %v10175 = vld [vmem:[%s10169 + $0x28] sm:$0xff]
  %v10176 = vld [vmem:[%s10169 + $0x30] sm:$0xff]
  %v10177 = vld [vmem:[%s10169 + $0x38] sm:$0xff]
  %v10178 = vld [vmem:[%s10169 + $0x40] sm:$0xff]
  %v10179 = vld [vmem:[%s10169 + $0x48] sm:$0xff]
  %v10180 = vld [vmem:[%s10169 + $0x50] sm:$0xff]
  %v10181 = vld [vmem:[%s10169 + $0x58] sm:$0xff]
  %v10182 = vld [vmem:[%s10169 + $0x60] sm:$0xff]
  %v10183 = vld [vmem:[%s10169 + $0x68] sm:$0xff]
  %v10184 = vld [vmem:[%s10169 + $0x70] sm:$0xff]
  %v10185 = vld [vmem:[%s10169 + $0x78] sm:$0xff]
  %v10189 = vunpack.c.l.b16 %v9400
  %v10190 = vunpack.c.l.b16 %v9401
  %v10191 = vunpack.c.l.b16 %v9402
  %v10192 = vpack.c.b16 %v10190, %v10189
  %v10193 = vpack.c.b16 %v10191, %v10191
  %v10212 = vunpack.c.l.b16 %v10170
  %v10213 = vunpack.c.h.b16 %v10170
  %v10214 = vunpack.c.l.b16 %v10171
  %v10215 = vunpack.c.h.b16 %v10171
  %v10216 = vunpack.c.l.b16 %v10172
  %v10217 = vunpack.c.h.b16 %v10172
  %v10218 = vunpack.c.l.b16 %v10173
  %v10219 = vunpack.c.h.b16 %v10173
  %v10220 = vunpack.c.l.b16 %v10174
  %v10221 = vunpack.c.h.b16 %v10174
  %v10222 = vunpack.c.l.b16 %v10175
  %v10223 = vunpack.c.h.b16 %v10175
  %v10224 = vunpack.c.l.b16 %v10176
  %v10225 = vunpack.c.h.b16 %v10176
  %v10226 = vunpack.c.l.b16 %v10177
  %v10227 = vunpack.c.h.b16 %v10177
  %v10228 = vunpack.c.l.b16 %v10178
  %v10229 = vunpack.c.h.b16 %v10178
  %v10230 = vunpack.c.l.b16 %v10179
  %v10231 = vunpack.c.h.b16 %v10179
  %v10232 = vunpack.c.l.b16 %v10180
  %v10233 = vunpack.c.h.b16 %v10180
  %v10234 = vunpack.c.l.b16 %v10181
  %v10235 = vunpack.c.h.b16 %v10181
  %v10236 = vunpack.c.l.b16 %v10182
  %v10237 = vunpack.c.h.b16 %v10182
  %v10238 = vunpack.c.l.b16 %v10183
  %v10239 = vunpack.c.h.b16 %v10183
  %v10240 = vunpack.c.l.b16 %v10184
  %v10241 = vunpack.c.h.b16 %v10184
  %v10242 = vunpack.c.l.b16 %v10185
  %v10243 = vunpack.c.h.b16 %v10185
  %v10244 = vpack.c.b16 %v10214, %v10212
  %v10245 = vpack.c.b16 %v10215, %v10213
  %v10246 = vpack.c.b16 %v10218, %v10216
  %v10247 = vpack.c.b16 %v10219, %v10217
  %v10248 = vpack.c.b16 %v10222, %v10220
  %v10249 = vpack.c.b16 %v10223, %v10221
  %v10250 = vpack.c.b16 %v10226, %v10224
  %v10251 = vpack.c.b16 %v10227, %v10225
  %v10252 = vpack.c.b16 %v10230, %v10228
  %v10253 = vpack.c.b16 %v10231, %v10229
  %v10254 = vpack.c.b16 %v10234, %v10232
  %v10255 = vpack.c.b16 %v10235, %v10233
  %v10256 = vpack.c.b16 %v10238, %v10236
  %v10257 = vpack.c.b16 %v10239, %v10237
  %v10258 = vpack.c.b16 %v10242, %v10240
  %v10259 = vpack.c.b16 %v10243, %v10241
  %10276 = vmatpush.bf16.msra.mxu0 %v10258
  %10277 = vmatpush.bf16.msra.mxu0 %v10256
  %10278 = vmatpush.bf16.msra.mxu0 %v10254
  %10279 = vmatpush.bf16.msra.mxu0 %v10252
  %10280 = vmatpush.bf16.msra.mxu0 %v10250
  %10281 = vmatpush.bf16.msra.mxu0 %v10248
  %10282 = vmatpush.bf16.msra.mxu0 %v10246
  %10283 = vmatpush.bf16.msra.mxu0 %v10244
  %10284 = vmatmul.bf16.gmra.mxu0 %v10192
  %v10285 = vpop.f32.mrf.mxu0
  %v10286 = vadd.f32 0.0, %v10285
  %v10287 = vpop.f32.mrf.mxu0
  %v10288 = vadd.f32 0.0, %v10287
  %10289 = vmatmul.bf16.gmra.mxu0 %v10193
  %v10290 = vpop.f32.mrf.mxu0
  %v10291 = vadd.f32 0.0, %v10290
  %v10292 = vpop.f32.mrf.mxu0
  %10293 = vdwg.mxu0
  %10294 = vmatpush.bf16.msra.mxu0 %v10259
  %10295 = vmatpush.bf16.msra.mxu0 %v10257
  %10296 = vmatpush.bf16.msra.mxu0 %v10255
  %10297 = vmatpush.bf16.msra.mxu0 %v10253
  %10298 = vmatpush.bf16.msra.mxu0 %v10251
  %10299 = vmatpush.bf16.msra.mxu0 %v10249
  %10300 = vmatpush.bf16.msra.mxu0 %v10247
  %10301 = vmatpush.bf16.msra.mxu0 %v10245
  %10302 = vmatmul.bf16.gmra.mxu0 %v10192
  %v10303 = vpop.f32.mrf.mxu0
  %v10304 = vadd.f32 0.0, %v10303
  %v10305 = vpop.f32.mrf.mxu0
  %v10306 = vadd.f32 0.0, %v10305
  %10307 = vmatmul.bf16.gmra.mxu0 %v10193
  %v10308 = vpop.f32.mrf.mxu0
  %v10309 = vadd.f32 0.0, %v10308
  %v10310 = vpop.f32.mrf.mxu0
  %10311 = vdwg.mxu0
  %v10312 = vadd.f32 %v10163, %v10286
  %v10313 = vadd.f32 %v10164, %v10304
  %v10314 = vadd.f32 %v10165, %v10288
  %v10315 = vadd.f32 %v10166, %v10306
  %v10316 = vadd.f32 %v10167, %v10291
  %v10317 = vadd.f32 %v10168, %v10309
  %s10318 = scalar_lea.vmem [#allocation4], 768
  %v10319 = vld [vmem:[%s10318] sm:$0xff]
  %v10320 = vld [vmem:[%s10318 + $0x8] sm:$0xff]
  %v10321 = vld [vmem:[%s10318 + $0x10] sm:$0xff]
  %v10322 = vld [vmem:[%s10318 + $0x18] sm:$0xff]
  %v10323 = vld [vmem:[%s10318 + $0x20] sm:$0xff]
  %v10324 = vld [vmem:[%s10318 + $0x28] sm:$0xff]
  %v10325 = vld [vmem:[%s10318 + $0x30] sm:$0xff]
  %v10326 = vld [vmem:[%s10318 + $0x38] sm:$0xff]
  %v10327 = vld [vmem:[%s10318 + $0x40] sm:$0xff]
  %v10328 = vld [vmem:[%s10318 + $0x48] sm:$0xff]
  %v10329 = vld [vmem:[%s10318 + $0x50] sm:$0xff]
  %v10330 = vld [vmem:[%s10318 + $0x58] sm:$0xff]
  %v10331 = vld [vmem:[%s10318 + $0x60] sm:$0xff]
  %v10332 = vld [vmem:[%s10318 + $0x68] sm:$0xff]
  %v10333 = vld [vmem:[%s10318 + $0x70] sm:$0xff]
  %v10334 = vld [vmem:[%s10318 + $0x78] sm:$0xff]
  %v10338 = vunpack.c.l.b16 %v9403
  %v10339 = vunpack.c.l.b16 %v9404
  %v10340 = vunpack.c.l.b16 %v9405
  %v10341 = vpack.c.b16 %v10339, %v10338
  %v10342 = vpack.c.b16 %v10340, %v10340
  %v10361 = vunpack.c.l.b16 %v10319
  %v10362 = vunpack.c.h.b16 %v10319
  %v10363 = vunpack.c.l.b16 %v10320
  %v10364 = vunpack.c.h.b16 %v10320
  %v10365 = vunpack.c.l.b16 %v10321
  %v10366 = vunpack.c.h.b16 %v10321
  %v10367 = vunpack.c.l.b16 %v10322
  %v10368 = vunpack.c.h.b16 %v10322
  %v10369 = vunpack.c.l.b16 %v10323
  %v10370 = vunpack.c.h.b16 %v10323
  %v10371 = vunpack.c.l.b16 %v10324
  %v10372 = vunpack.c.h.b16 %v10324
  %v10373 = vunpack.c.l.b16 %v10325
  %v10374 = vunpack.c.h.b16 %v10325
  %v10375 = vunpack.c.l.b16 %v10326
  %v10376 = vunpack.c.h.b16 %v10326
  %v10377 = vunpack.c.l.b16 %v10327
  %v10378 = vunpack.c.h.b16 %v10327
  %v10379 = vunpack.c.l.b16 %v10328
  %v10380 = vunpack.c.h.b16 %v10328
  %v10381 = vunpack.c.l.b16 %v10329
  %v10382 = vunpack.c.h.b16 %v10329
  %v10383 = vunpack.c.l.b16 %v10330
  %v10384 = vunpack.c.h.b16 %v10330
  %v10385 = vunpack.c.l.b16 %v10331
  %v10386 = vunpack.c.h.b16 %v10331
  %v10387 = vunpack.c.l.b16 %v10332
  %v10388 = vunpack.c.h.b16 %v10332
  %v10389 = vunpack.c.l.b16 %v10333
  %v10390 = vunpack.c.h.b16 %v10333
  %v10391 = vunpack.c.l.b16 %v10334
  %v10392 = vunpack.c.h.b16 %v10334
  %v10393 = vpack.c.b16 %v10363, %v10361
  %v10394 = vpack.c.b16 %v10364, %v10362
  %v10395 = vpack.c.b16 %v10367, %v10365
  %v10396 = vpack.c.b16 %v10368, %v10366
  %v10397 = vpack.c.b16 %v10371, %v10369
  %v10398 = vpack.c.b16 %v10372, %v10370
  %v10399 = vpack.c.b16 %v10375, %v10373
  %v10400 = vpack.c.b16 %v10376, %v10374
  %v10401 = vpack.c.b16 %v10379, %v10377
  %v10402 = vpack.c.b16 %v10380, %v10378
  %v10403 = vpack.c.b16 %v10383, %v10381
  %v10404 = vpack.c.b16 %v10384, %v10382
  %v10405 = vpack.c.b16 %v10387, %v10385
  %v10406 = vpack.c.b16 %v10388, %v10386
  %v10407 = vpack.c.b16 %v10391, %v10389
  %v10408 = vpack.c.b16 %v10392, %v10390
  %10425 = vmatpush.bf16.msra.mxu0 %v10407
  %10426 = vmatpush.bf16.msra.mxu0 %v10405
  %10427 = vmatpush.bf16.msra.mxu0 %v10403
  %10428 = vmatpush.bf16.msra.mxu0 %v10401
  %10429 = vmatpush.bf16.msra.mxu0 %v10399
  %10430 = vmatpush.bf16.msra.mxu0 %v10397
  %10431 = vmatpush.bf16.msra.mxu0 %v10395
  %10432 = vmatpush.bf16.msra.mxu0 %v10393
  %10433 = vmatmul.bf16.gmra.mxu0 %v10341
  %v10434 = vpop.f32.mrf.mxu0
  %v10435 = vadd.f32 0.0, %v10434
  %v10436 = vpop.f32.mrf.mxu0
  %v10437 = vadd.f32 0.0, %v10436
  %10438 = vmatmul.bf16.gmra.mxu0 %v10342
  %v10439 = vpop.f32.mrf.mxu0
  %v10440 = vadd.f32 0.0, %v10439
  %v10441 = vpop.f32.mrf.mxu0
  %10442 = vdwg.mxu0
  %10443 = vmatpush.bf16.msra.mxu0 %v10408
  %10444 = vmatpush.bf16.msra.mxu0 %v10406
  %10445 = vmatpush.bf16.msra.mxu0 %v10404
  %10446 = vmatpush.bf16.msra.mxu0 %v10402
  %10447 = vmatpush.bf16.msra.mxu0 %v10400
  %10448 = vmatpush.bf16.msra.mxu0 %v10398
  %10449 = vmatpush.bf16.msra.mxu0 %v10396
  %10450 = vmatpush.bf16.msra.mxu0 %v10394
  %10451 = vmatmul.bf16.gmra.mxu0 %v10341
  %v10452 = vpop.f32.mrf.mxu0
  %v10453 = vadd.f32 0.0, %v10452
  %v10454 = vpop.f32.mrf.mxu0
  %v10455 = vadd.f32 0.0, %v10454
  %10456 = vmatmul.bf16.gmra.mxu0 %v10342
  %v10457 = vpop.f32.mrf.mxu0
  %v10458 = vadd.f32 0.0, %v10457
  %v10459 = vpop.f32.mrf.mxu0
  %10460 = vdwg.mxu0
  %v10461 = vadd.f32 %v10312, %v10435
  %v10462 = vadd.f32 %v10313, %v10453
  %v10463 = vadd.f32 %v10314, %v10437
  %v10464 = vadd.f32 %v10315, %v10455
  %v10465 = vadd.f32 %v10316, %v10440
  %v10466 = vadd.f32 %v10317, %v10458
  %s10467 = scalar_lea.vmem [#allocation4], 896
  %v10468 = vld [vmem:[%s10467] sm:$0xff]
  %v10469 = vld [vmem:[%s10467 + $0x8] sm:$0xff]
  %v10470 = vld [vmem:[%s10467 + $0x10] sm:$0xff]
  %v10471 = vld [vmem:[%s10467 + $0x18] sm:$0xff]
  %v10472 = vld [vmem:[%s10467 + $0x20] sm:$0xff]
  %v10473 = vld [vmem:[%s10467 + $0x28] sm:$0xff]
  %v10474 = vld [vmem:[%s10467 + $0x30] sm:$0xff]
  %v10475 = vld [vmem:[%s10467 + $0x38] sm:$0xff]
  %v10476 = vld [vmem:[%s10467 + $0x40] sm:$0xff]
  %v10477 = vld [vmem:[%s10467 + $0x48] sm:$0xff]
  %v10478 = vld [vmem:[%s10467 + $0x50] sm:$0xff]
  %v10479 = vld [vmem:[%s10467 + $0x58] sm:$0xff]
  %v10480 = vld [vmem:[%s10467 + $0x60] sm:$0xff]
  %v10481 = vld [vmem:[%s10467 + $0x68] sm:$0xff]
  %v10482 = vld [vmem:[%s10467 + $0x70] sm:$0xff]
  %v10483 = vld [vmem:[%s10467 + $0x78] sm:$0xff]
  %v10487 = vunpack.c.l.b16 %v9406
  %v10488 = vunpack.c.l.b16 %v9407
  %v10489 = vunpack.c.l.b16 %v9408
  %v10490 = vpack.c.b16 %v10488, %v10487
  %v10491 = vpack.c.b16 %v10489, %v10489
  %v10510 = vunpack.c.l.b16 %v10468
  %v10511 = vunpack.c.h.b16 %v10468
  %v10512 = vunpack.c.l.b16 %v10469
  %v10513 = vunpack.c.h.b16 %v10469
  %v10514 = vunpack.c.l.b16 %v10470
  %v10515 = vunpack.c.h.b16 %v10470
  %v10516 = vunpack.c.l.b16 %v10471
  %v10517 = vunpack.c.h.b16 %v10471
  %v10518 = vunpack.c.l.b16 %v10472
  %v10519 = vunpack.c.h.b16 %v10472
  %v10520 = vunpack.c.l.b16 %v10473
  %v10521 = vunpack.c.h.b16 %v10473
  %v10522 = vunpack.c.l.b16 %v10474
  %v10523 = vunpack.c.h.b16 %v10474
  %v10524 = vunpack.c.l.b16 %v10475
  %v10525 = vunpack.c.h.b16 %v10475
  %v10526 = vunpack.c.l.b16 %v10476
  %v10527 = vunpack.c.h.b16 %v10476
  %v10528 = vunpack.c.l.b16 %v10477
  %v10529 = vunpack.c.h.b16 %v10477
  %v10530 = vunpack.c.l.b16 %v10478
  %v10531 = vunpack.c.h.b16 %v10478
  %v10532 = vunpack.c.l.b16 %v10479
  %v10533 = vunpack.c.h.b16 %v10479
  %v10534 = vunpack.c.l.b16 %v10480
  %v10535 = vunpack.c.h.b16 %v10480
  %v10536 = vunpack.c.l.b16 %v10481
  %v10537 = vunpack.c.h.b16 %v10481
  %v10538 = vunpack.c.l.b16 %v10482
  %v10539 = vunpack.c.h.b16 %v10482
  %v10540 = vunpack.c.l.b16 %v10483
  %v10541 = vunpack.c.h.b16 %v10483
  %v10542 = vpack.c.b16 %v10512, %v10510
  %v10543 = vpack.c.b16 %v10513, %v10511
  %v10544 = vpack.c.b16 %v10516, %v10514
  %v10545 = vpack.c.b16 %v10517, %v10515
  %v10546 = vpack.c.b16 %v10520, %v10518
  %v10547 = vpack.c.b16 %v10521, %v10519
  %v10548 = vpack.c.b16 %v10524, %v10522
  %v10549 = vpack.c.b16 %v10525, %v10523
  %v10550 = vpack.c.b16 %v10528, %v10526
  %v10551 = vpack.c.b16 %v10529, %v10527
  %v10552 = vpack.c.b16 %v10532, %v10530
  %v10553 = vpack.c.b16 %v10533, %v10531
  %v10554 = vpack.c.b16 %v10536, %v10534
  %v10555 = vpack.c.b16 %v10537, %v10535
  %v10556 = vpack.c.b16 %v10540, %v10538
  %v10557 = vpack.c.b16 %v10541, %v10539
  %10574 = vmatpush.bf16.msra.mxu0 %v10556
  %10575 = vmatpush.bf16.msra.mxu0 %v10554
  %10576 = vmatpush.bf16.msra.mxu0 %v10552
  %10577 = vmatpush.bf16.msra.mxu0 %v10550
  %10578 = vmatpush.bf16.msra.mxu0 %v10548
  %10579 = vmatpush.bf16.msra.mxu0 %v10546
  %10580 = vmatpush.bf16.msra.mxu0 %v10544
  %10581 = vmatpush.bf16.msra.mxu0 %v10542
  %10582 = vmatmul.bf16.gmra.mxu0 %v10490
  %v10583 = vpop.f32.mrf.mxu0
  %v10584 = vadd.f32 0.0, %v10583
  %v10585 = vpop.f32.mrf.mxu0
  %v10586 = vadd.f32 0.0, %v10585
  %10587 = vmatmul.bf16.gmra.mxu0 %v10491
  %v10588 = vpop.f32.mrf.mxu0
  %v10589 = vadd.f32 0.0, %v10588
  %v10590 = vpop.f32.mrf.mxu0
  %10591 = vdwg.mxu0
  %10592 = vmatpush.bf16.msra.mxu0 %v10557
  %10593 = vmatpush.bf16.msra.mxu0 %v10555
  %10594 = vmatpush.bf16.msra.mxu0 %v10553
  %10595 = vmatpush.bf16.msra.mxu0 %v10551
  %10596 = vmatpush.bf16.msra.mxu0 %v10549
  %10597 = vmatpush.bf16.msra.mxu0 %v10547
  %10598 = vmatpush.bf16.msra.mxu0 %v10545
  %10599 = vmatpush.bf16.msra.mxu0 %v10543
  %10600 = vmatmul.bf16.gmra.mxu0 %v10490
  %v10601 = vpop.f32.mrf.mxu0
  %v10602 = vadd.f32 0.0, %v10601
  %v10603 = vpop.f32.mrf.mxu0
  %v10604 = vadd.f32 0.0, %v10603
  %10605 = vmatmul.bf16.gmra.mxu0 %v10491
  %v10606 = vpop.f32.mrf.mxu0
  %v10607 = vadd.f32 0.0, %v10606
  %v10608 = vpop.f32.mrf.mxu0
  %10609 = vdwg.mxu0
  %v10610 = vadd.f32 %v10461, %v10584
  %v10611 = vadd.f32 %v10462, %v10602
  %v10612 = vadd.f32 %v10463, %v10586
  %v10613 = vadd.f32 %v10464, %v10604
  %v10614 = vadd.f32 %v10465, %v10589
  %v10615 = vadd.f32 %v10466, %v10607
  %s10616 = scalar_lea.vmem [#allocation4], 1024
  %v10617 = vld [vmem:[%s10616] sm:$0xff]
  %v10618 = vld [vmem:[%s10616 + $0x8] sm:$0xff]
  %v10619 = vld [vmem:[%s10616 + $0x10] sm:$0xff]
  %v10620 = vld [vmem:[%s10616 + $0x18] sm:$0xff]
  %v10621 = vld [vmem:[%s10616 + $0x20] sm:$0xff]
  %v10622 = vld [vmem:[%s10616 + $0x28] sm:$0xff]
  %v10623 = vld [vmem:[%s10616 + $0x30] sm:$0xff]
  %v10624 = vld [vmem:[%s10616 + $0x38] sm:$0xff]
  %v10625 = vld [vmem:[%s10616 + $0x40] sm:$0xff]
  %v10626 = vld [vmem:[%s10616 + $0x48] sm:$0xff]
  %v10627 = vld [vmem:[%s10616 + $0x50] sm:$0xff]
  %v10628 = vld [vmem:[%s10616 + $0x58] sm:$0xff]
  %v10629 = vld [vmem:[%s10616 + $0x60] sm:$0xff]
  %v10630 = vld [vmem:[%s10616 + $0x68] sm:$0xff]
  %v10631 = vld [vmem:[%s10616 + $0x70] sm:$0xff]
  %v10632 = vld [vmem:[%s10616 + $0x78] sm:$0xff]
  %v10636 = vunpack.c.l.b16 %v9409
  %v10637 = vunpack.c.l.b16 %v9410
  %v10638 = vunpack.c.l.b16 %v9411
  %v10639 = vpack.c.b16 %v10637, %v10636
  %v10640 = vpack.c.b16 %v10638, %v10638
  %v10659 = vunpack.c.l.b16 %v10617
  %v10660 = vunpack.c.h.b16 %v10617
  %v10661 = vunpack.c.l.b16 %v10618
  %v10662 = vunpack.c.h.b16 %v10618
  %v10663 = vunpack.c.l.b16 %v10619
  %v10664 = vunpack.c.h.b16 %v10619
  %v10665 = vunpack.c.l.b16 %v10620
  %v10666 = vunpack.c.h.b16 %v10620
  %v10667 = vunpack.c.l.b16 %v10621
  %v10668 = vunpack.c.h.b16 %v10621
  %v10669 = vunpack.c.l.b16 %v10622
  %v10670 = vunpack.c.h.b16 %v10622
  %v10671 = vunpack.c.l.b16 %v10623
  %v10672 = vunpack.c.h.b16 %v10623
  %v10673 = vunpack.c.l.b16 %v10624
  %v10674 = vunpack.c.h.b16 %v10624
  %v10675 = vunpack.c.l.b16 %v10625
  %v10676 = vunpack.c.h.b16 %v10625
  %v10677 = vunpack.c.l.b16 %v10626
  %v10678 = vunpack.c.h.b16 %v10626
  %v10679 = vunpack.c.l.b16 %v10627
  %v10680 = vunpack.c.h.b16 %v10627
  %v10681 = vunpack.c.l.b16 %v10628
  %v10682 = vunpack.c.h.b16 %v10628
  %v10683 = vunpack.c.l.b16 %v10629
  %v10684 = vunpack.c.h.b16 %v10629
  %v10685 = vunpack.c.l.b16 %v10630
  %v10686 = vunpack.c.h.b16 %v10630
  %v10687 = vunpack.c.l.b16 %v10631
  %v10688 = vunpack.c.h.b16 %v10631
  %v10689 = vunpack.c.l.b16 %v10632
  %v10690 = vunpack.c.h.b16 %v10632
  %v10691 = vpack.c.b16 %v10661, %v10659
  %v10692 = vpack.c.b16 %v10662, %v10660
  %v10693 = vpack.c.b16 %v10665, %v10663
  %v10694 = vpack.c.b16 %v10666, %v10664
  %v10695 = vpack.c.b16 %v10669, %v10667
  %v10696 = vpack.c.b16 %v10670, %v10668
  %v10697 = vpack.c.b16 %v10673, %v10671
  %v10698 = vpack.c.b16 %v10674, %v10672
  %v10699 = vpack.c.b16 %v10677, %v10675
  %v10700 = vpack.c.b16 %v10678, %v10676
  %v10701 = vpack.c.b16 %v10681, %v10679
  %v10702 = vpack.c.b16 %v10682, %v10680
  %v10703 = vpack.c.b16 %v10685, %v10683
  %v10704 = vpack.c.b16 %v10686, %v10684
  %v10705 = vpack.c.b16 %v10689, %v10687
  %v10706 = vpack.c.b16 %v10690, %v10688
  %10723 = vmatpush.bf16.msra.mxu0 %v10705
  %10724 = vmatpush.bf16.msra.mxu0 %v10703
  %10725 = vmatpush.bf16.msra.mxu0 %v10701
  %10726 = vmatpush.bf16.msra.mxu0 %v10699
  %10727 = vmatpush.bf16.msra.mxu0 %v10697
  %10728 = vmatpush.bf16.msra.mxu0 %v10695
  %10729 = vmatpush.bf16.msra.mxu0 %v10693
  %10730 = vmatpush.bf16.msra.mxu0 %v10691
  %10731 = vmatmul.bf16.gmra.mxu0 %v10639
  %v10732 = vpop.f32.mrf.mxu0
  %v10733 = vadd.f32 0.0, %v10732
  %v10734 = vpop.f32.mrf.mxu0
  %v10735 = vadd.f32 0.0, %v10734
  %10736 = vmatmul.bf16.gmra.mxu0 %v10640
  %v10737 = vpop.f32.mrf.mxu0
  %v10738 = vadd.f32 0.0, %v10737
  %v10739 = vpop.f32.mrf.mxu0
  %10740 = vdwg.mxu0
  %10741 = vmatpush.bf16.msra.mxu0 %v10706
  %10742 = vmatpush.bf16.msra.mxu0 %v10704
  %10743 = vmatpush.bf16.msra.mxu0 %v10702
  %10744 = vmatpush.bf16.msra.mxu0 %v10700
  %10745 = vmatpush.bf16.msra.mxu0 %v10698
  %10746 = vmatpush.bf16.msra.mxu0 %v10696
  %10747 = vmatpush.bf16.msra.mxu0 %v10694
  %10748 = vmatpush.bf16.msra.mxu0 %v10692
  %10749 = vmatmul.bf16.gmra.mxu0 %v10639
  %v10750 = vpop.f32.mrf.mxu0
  %v10751 = vadd.f32 0.0, %v10750
  %v10752 = vpop.f32.mrf.mxu0
  %v10753 = vadd.f32 0.0, %v10752
  %10754 = vmatmul.bf16.gmra.mxu0 %v10640
  %v10755 = vpop.f32.mrf.mxu0
  %v10756 = vadd.f32 0.0, %v10755
  %v10757 = vpop.f32.mrf.mxu0
  %10758 = vdwg.mxu0
  %v10759 = vadd.f32 %v10610, %v10733
  %v10760 = vadd.f32 %v10611, %v10751
  %v10761 = vadd.f32 %v10612, %v10735
  %v10762 = vadd.f32 %v10613, %v10753
  %v10763 = vadd.f32 %v10614, %v10738
  %v10764 = vadd.f32 %v10615, %v10756
  %s10765 = scalar_lea.vmem [#allocation4], 1152
  %v10766 = vld [vmem:[%s10765] sm:$0xff]
  %v10767 = vld [vmem:[%s10765 + $0x8] sm:$0xff]
  %v10768 = vld [vmem:[%s10765 + $0x10] sm:$0xff]
  %v10769 = vld [vmem:[%s10765 + $0x18] sm:$0xff]
  %v10770 = vld [vmem:[%s10765 + $0x20] sm:$0xff]
  %v10771 = vld [vmem:[%s10765 + $0x28] sm:$0xff]
  %v10772 = vld [vmem:[%s10765 + $0x30] sm:$0xff]
  %v10773 = vld [vmem:[%s10765 + $0x38] sm:$0xff]
  %v10774 = vld [vmem:[%s10765 + $0x40] sm:$0xff]
  %v10775 = vld [vmem:[%s10765 + $0x48] sm:$0xff]
  %v10776 = vld [vmem:[%s10765 + $0x50] sm:$0xff]
  %v10777 = vld [vmem:[%s10765 + $0x58] sm:$0xff]
  %v10778 = vld [vmem:[%s10765 + $0x60] sm:$0xff]
  %v10779 = vld [vmem:[%s10765 + $0x68] sm:$0xff]
  %v10780 = vld [vmem:[%s10765 + $0x70] sm:$0xff]
  %v10781 = vld [vmem:[%s10765 + $0x78] sm:$0xff]
  %v10785 = vunpack.c.l.b16 %v9412
  %v10786 = vunpack.c.l.b16 %v9413
  %v10787 = vunpack.c.l.b16 %v9414
  %v10788 = vpack.c.b16 %v10786, %v10785
  %v10789 = vpack.c.b16 %v10787, %v10787
  %v10808 = vunpack.c.l.b16 %v10766
  %v10809 = vunpack.c.h.b16 %v10766
  %v10810 = vunpack.c.l.b16 %v10767
  %v10811 = vunpack.c.h.b16 %v10767
  %v10812 = vunpack.c.l.b16 %v10768
  %v10813 = vunpack.c.h.b16 %v10768
  %v10814 = vunpack.c.l.b16 %v10769
  %v10815 = vunpack.c.h.b16 %v10769
  %v10816 = vunpack.c.l.b16 %v10770
  %v10817 = vunpack.c.h.b16 %v10770
  %v10818 = vunpack.c.l.b16 %v10771
  %v10819 = vunpack.c.h.b16 %v10771
  %v10820 = vunpack.c.l.b16 %v10772
  %v10821 = vunpack.c.h.b16 %v10772
  %v10822 = vunpack.c.l.b16 %v10773
  %v10823 = vunpack.c.h.b16 %v10773
  %v10824 = vunpack.c.l.b16 %v10774
  %v10825 = vunpack.c.h.b16 %v10774
  %v10826 = vunpack.c.l.b16 %v10775
  %v10827 = vunpack.c.h.b16 %v10775
  %v10828 = vunpack.c.l.b16 %v10776
  %v10829 = vunpack.c.h.b16 %v10776
  %v10830 = vunpack.c.l.b16 %v10777
  %v10831 = vunpack.c.h.b16 %v10777
  %v10832 = vunpack.c.l.b16 %v10778
  %v10833 = vunpack.c.h.b16 %v10778
  %v10834 = vunpack.c.l.b16 %v10779
  %v10835 = vunpack.c.h.b16 %v10779
  %v10836 = vunpack.c.l.b16 %v10780
  %v10837 = vunpack.c.h.b16 %v10780
  %v10838 = vunpack.c.l.b16 %v10781
  %v10839 = vunpack.c.h.b16 %v10781
  %v10840 = vpack.c.b16 %v10810, %v10808
  %v10841 = vpack.c.b16 %v10811, %v10809
  %v10842 = vpack.c.b16 %v10814, %v10812
  %v10843 = vpack.c.b16 %v10815, %v10813
  %v10844 = vpack.c.b16 %v10818, %v10816
  %v10845 = vpack.c.b16 %v10819, %v10817
  %v10846 = vpack.c.b16 %v10822, %v10820
  %v10847 = vpack.c.b16 %v10823, %v10821
  %v10848 = vpack.c.b16 %v10826, %v10824
  %v10849 = vpack.c.b16 %v10827, %v10825
  %v10850 = vpack.c.b16 %v10830, %v10828
  %v10851 = vpack.c.b16 %v10831, %v10829
  %v10852 = vpack.c.b16 %v10834, %v10832
  %v10853 = vpack.c.b16 %v10835, %v10833
  %v10854 = vpack.c.b16 %v10838, %v10836
  %v10855 = vpack.c.b16 %v10839, %v10837
  %10872 = vmatpush.bf16.msra.mxu0 %v10854
  %10873 = vmatpush.bf16.msra.mxu0 %v10852
  %10874 = vmatpush.bf16.msra.mxu0 %v10850
  %10875 = vmatpush.bf16.msra.mxu0 %v10848
  %10876 = vmatpush.bf16.msra.mxu0 %v10846
  %10877 = vmatpush.bf16.msra.mxu0 %v10844
  %10878 = vmatpush.bf16.msra.mxu0 %v10842
  %10879 = vmatpush.bf16.msra.mxu0 %v10840
  %10880 = vmatmul.bf16.gmra.mxu0 %v10788
  %v10881 = vpop.f32.mrf.mxu0
  %v10882 = vadd.f32 0.0, %v10881
  %v10883 = vpop.f32.mrf.mxu0
  %v10884 = vadd.f32 0.0, %v10883
  %10885 = vmatmul.bf16.gmra.mxu0 %v10789
  %v10886 = vpop.f32.mrf.mxu0
  %v10887 = vadd.f32 0.0, %v10886
  %v10888 = vpop.f32.mrf.mxu0
  %10889 = vdwg.mxu0
  %10890 = vmatpush.bf16.msra.mxu0 %v10855
  %10891 = vmatpush.bf16.msra.mxu0 %v10853
  %10892 = vmatpush.bf16.msra.mxu0 %v10851
  %10893 = vmatpush.bf16.msra.mxu0 %v10849
  %10894 = vmatpush.bf16.msra.mxu0 %v10847
  %10895 = vmatpush.bf16.msra.mxu0 %v10845
  %10896 = vmatpush.bf16.msra.mxu0 %v10843
  %10897 = vmatpush.bf16.msra.mxu0 %v10841
  %10898 = vmatmul.bf16.gmra.mxu0 %v10788
  %v10899 = vpop.f32.mrf.mxu0
  %v10900 = vadd.f32 0.0, %v10899
  %v10901 = vpop.f32.mrf.mxu0
  %v10902 = vadd.f32 0.0, %v10901
  %10903 = vmatmul.bf16.gmra.mxu0 %v10789
  %v10904 = vpop.f32.mrf.mxu0
  %v10905 = vadd.f32 0.0, %v10904
  %v10906 = vpop.f32.mrf.mxu0
  %10907 = vdwg.mxu0
  %v10908 = vadd.f32 %v10759, %v10882
  %v10909 = vadd.f32 %v10760, %v10900
  %v10910 = vadd.f32 %v10761, %v10884
  %v10911 = vadd.f32 %v10762, %v10902
  %v10912 = vadd.f32 %v10763, %v10887
  %v10913 = vadd.f32 %v10764, %v10905
  %s10914 = scalar_lea.vmem [#allocation4], 1280
  %v10915 = vld [vmem:[%s10914] sm:$0xff]
  %v10916 = vld [vmem:[%s10914 + $0x8] sm:$0xff]
  %v10917 = vld [vmem:[%s10914 + $0x10] sm:$0xff]
  %v10918 = vld [vmem:[%s10914 + $0x18] sm:$0xff]
  %v10919 = vld [vmem:[%s10914 + $0x20] sm:$0xff]
  %v10920 = vld [vmem:[%s10914 + $0x28] sm:$0xff]
  %v10921 = vld [vmem:[%s10914 + $0x30] sm:$0xff]
  %v10922 = vld [vmem:[%s10914 + $0x38] sm:$0xff]
  %v10923 = vld [vmem:[%s10914 + $0x40] sm:$0xff]
  %v10924 = vld [vmem:[%s10914 + $0x48] sm:$0xff]
  %v10925 = vld [vmem:[%s10914 + $0x50] sm:$0xff]
  %v10926 = vld [vmem:[%s10914 + $0x58] sm:$0xff]
  %v10927 = vld [vmem:[%s10914 + $0x60] sm:$0xff]
  %v10928 = vld [vmem:[%s10914 + $0x68] sm:$0xff]
  %v10929 = vld [vmem:[%s10914 + $0x70] sm:$0xff]
  %v10930 = vld [vmem:[%s10914 + $0x78] sm:$0xff]
  %v10934 = vunpack.c.l.b16 %v9415
  %v10935 = vunpack.c.l.b16 %v9416
  %v10936 = vunpack.c.l.b16 %v9417
  %v10937 = vpack.c.b16 %v10935, %v10934
  %v10938 = vpack.c.b16 %v10936, %v10936
  %v10957 = vunpack.c.l.b16 %v10915
  %v10958 = vunpack.c.h.b16 %v10915
  %v10959 = vunpack.c.l.b16 %v10916
  %v10960 = vunpack.c.h.b16 %v10916
  %v10961 = vunpack.c.l.b16 %v10917
  %v10962 = vunpack.c.h.b16 %v10917
  %v10963 = vunpack.c.l.b16 %v10918
  %v10964 = vunpack.c.h.b16 %v10918
  %v10965 = vunpack.c.l.b16 %v10919
  %v10966 = vunpack.c.h.b16 %v10919
  %v10967 = vunpack.c.l.b16 %v10920
  %v10968 = vunpack.c.h.b16 %v10920
  %v10969 = vunpack.c.l.b16 %v10921
  %v10970 = vunpack.c.h.b16 %v10921
  %v10971 = vunpack.c.l.b16 %v10922
  %v10972 = vunpack.c.h.b16 %v10922
  %v10973 = vunpack.c.l.b16 %v10923
  %v10974 = vunpack.c.h.b16 %v10923
  %v10975 = vunpack.c.l.b16 %v10924
  %v10976 = vunpack.c.h.b16 %v10924
  %v10977 = vunpack.c.l.b16 %v10925
  %v10978 = vunpack.c.h.b16 %v10925
  %v10979 = vunpack.c.l.b16 %v10926
  %v10980 = vunpack.c.h.b16 %v10926
  %v10981 = vunpack.c.l.b16 %v10927
  %v10982 = vunpack.c.h.b16 %v10927
  %v10983 = vunpack.c.l.b16 %v10928
  %v10984 = vunpack.c.h.b16 %v10928
  %v10985 = vunpack.c.l.b16 %v10929
  %v10986 = vunpack.c.h.b16 %v10929
  %v10987 = vunpack.c.l.b16 %v10930
  %v10988 = vunpack.c.h.b16 %v10930
  %v10989 = vpack.c.b16 %v10959, %v10957
  %v10990 = vpack.c.b16 %v10960, %v10958
  %v10991 = vpack.c.b16 %v10963, %v10961
  %v10992 = vpack.c.b16 %v10964, %v10962
  %v10993 = vpack.c.b16 %v10967, %v10965
  %v10994 = vpack.c.b16 %v10968, %v10966
  %v10995 = vpack.c.b16 %v10971, %v10969
  %v10996 = vpack.c.b16 %v10972, %v10970
  %v10997 = vpack.c.b16 %v10975, %v10973
  %v10998 = vpack.c.b16 %v10976, %v10974
  %v10999 = vpack.c.b16 %v10979, %v10977
  %v11000 = vpack.c.b16 %v10980, %v10978
  %v11001 = vpack.c.b16 %v10983, %v10981
  %v11002 = vpack.c.b16 %v10984, %v10982
  %v11003 = vpack.c.b16 %v10987, %v10985
  %v11004 = vpack.c.b16 %v10988, %v10986
  %11021 = vmatpush.bf16.msra.mxu0 %v11003
  %11022 = vmatpush.bf16.msra.mxu0 %v11001
  %11023 = vmatpush.bf16.msra.mxu0 %v10999
  %11024 = vmatpush.bf16.msra.mxu0 %v10997
  %11025 = vmatpush.bf16.msra.mxu0 %v10995
  %11026 = vmatpush.bf16.msra.mxu0 %v10993
  %11027 = vmatpush.bf16.msra.mxu0 %v10991
  %11028 = vmatpush.bf16.msra.mxu0 %v10989
  %11029 = vmatmul.bf16.gmra.mxu0 %v10937
  %v11030 = vpop.f32.mrf.mxu0
  %v11031 = vadd.f32 0.0, %v11030
  %v11032 = vpop.f32.mrf.mxu0
  %v11033 = vadd.f32 0.0, %v11032
  %11034 = vmatmul.bf16.gmra.mxu0 %v10938
  %v11035 = vpop.f32.mrf.mxu0
  %v11036 = vadd.f32 0.0, %v11035
  %v11037 = vpop.f32.mrf.mxu0
  %11038 = vdwg.mxu0
  %11039 = vmatpush.bf16.msra.mxu0 %v11004
  %11040 = vmatpush.bf16.msra.mxu0 %v11002
  %11041 = vmatpush.bf16.msra.mxu0 %v11000
  %11042 = vmatpush.bf16.msra.mxu0 %v10998
  %11043 = vmatpush.bf16.msra.mxu0 %v10996
  %11044 = vmatpush.bf16.msra.mxu0 %v10994
  %11045 = vmatpush.bf16.msra.mxu0 %v10992
  %11046 = vmatpush.bf16.msra.mxu0 %v10990
  %11047 = vmatmul.bf16.gmra.mxu0 %v10937
  %v11048 = vpop.f32.mrf.mxu0
  %v11049 = vadd.f32 0.0, %v11048
  %v11050 = vpop.f32.mrf.mxu0
  %v11051 = vadd.f32 0.0, %v11050
  %11052 = vmatmul.bf16.gmra.mxu0 %v10938
  %v11053 = vpop.f32.mrf.mxu0
  %v11054 = vadd.f32 0.0, %v11053
  %v11055 = vpop.f32.mrf.mxu0
  %11056 = vdwg.mxu0
  %v11057 = vadd.f32 %v10908, %v11031
  %v11058 = vadd.f32 %v10909, %v11049
  %v11059 = vadd.f32 %v10910, %v11033
  %v11060 = vadd.f32 %v10911, %v11051
  %v11061 = vadd.f32 %v10912, %v11036
  %v11062 = vadd.f32 %v10913, %v11054
  %s11063 = scalar_lea.vmem [#allocation4], 1408
  %v11064 = vld [vmem:[%s11063] sm:$0xff]
  %v11065 = vld [vmem:[%s11063 + $0x8] sm:$0xff]
  %v11066 = vld [vmem:[%s11063 + $0x10] sm:$0xff]
  %v11067 = vld [vmem:[%s11063 + $0x18] sm:$0xff]
  %v11068 = vld [vmem:[%s11063 + $0x20] sm:$0xff]
  %v11069 = vld [vmem:[%s11063 + $0x28] sm:$0xff]
  %v11070 = vld [vmem:[%s11063 + $0x30] sm:$0xff]
  %v11071 = vld [vmem:[%s11063 + $0x38] sm:$0xff]
  %v11072 = vld [vmem:[%s11063 + $0x40] sm:$0xff]
  %v11073 = vld [vmem:[%s11063 + $0x48] sm:$0xff]
  %v11074 = vld [vmem:[%s11063 + $0x50] sm:$0xff]
  %v11075 = vld [vmem:[%s11063 + $0x58] sm:$0xff]
  %v11076 = vld [vmem:[%s11063 + $0x60] sm:$0xff]
  %v11077 = vld [vmem:[%s11063 + $0x68] sm:$0xff]
  %v11078 = vld [vmem:[%s11063 + $0x70] sm:$0xff]
  %v11079 = vld [vmem:[%s11063 + $0x78] sm:$0xff]
  %v11083 = vunpack.c.l.b16 %v9418
  %v11084 = vunpack.c.l.b16 %v9419
  %v11085 = vunpack.c.l.b16 %v9420
  %v11086 = vpack.c.b16 %v11084, %v11083
  %v11087 = vpack.c.b16 %v11085, %v11085
  %v11106 = vunpack.c.l.b16 %v11064
  %v11107 = vunpack.c.h.b16 %v11064
  %v11108 = vunpack.c.l.b16 %v11065
  %v11109 = vunpack.c.h.b16 %v11065
  %v11110 = vunpack.c.l.b16 %v11066
  %v11111 = vunpack.c.h.b16 %v11066
  %v11112 = vunpack.c.l.b16 %v11067
  %v11113 = vunpack.c.h.b16 %v11067
  %v11114 = vunpack.c.l.b16 %v11068
  %v11115 = vunpack.c.h.b16 %v11068
  %v11116 = vunpack.c.l.b16 %v11069
  %v11117 = vunpack.c.h.b16 %v11069
  %v11118 = vunpack.c.l.b16 %v11070
  %v11119 = vunpack.c.h.b16 %v11070
  %v11120 = vunpack.c.l.b16 %v11071
  %v11121 = vunpack.c.h.b16 %v11071
  %v11122 = vunpack.c.l.b16 %v11072
  %v11123 = vunpack.c.h.b16 %v11072
  %v11124 = vunpack.c.l.b16 %v11073
  %v11125 = vunpack.c.h.b16 %v11073
  %v11126 = vunpack.c.l.b16 %v11074
  %v11127 = vunpack.c.h.b16 %v11074
  %v11128 = vunpack.c.l.b16 %v11075
  %v11129 = vunpack.c.h.b16 %v11075
  %v11130 = vunpack.c.l.b16 %v11076
  %v11131 = vunpack.c.h.b16 %v11076
  %v11132 = vunpack.c.l.b16 %v11077
  %v11133 = vunpack.c.h.b16 %v11077
  %v11134 = vunpack.c.l.b16 %v11078
  %v11135 = vunpack.c.h.b16 %v11078
  %v11136 = vunpack.c.l.b16 %v11079
  %v11137 = vunpack.c.h.b16 %v11079
  %v11138 = vpack.c.b16 %v11108, %v11106
  %v11139 = vpack.c.b16 %v11109, %v11107
  %v11140 = vpack.c.b16 %v11112, %v11110
  %v11141 = vpack.c.b16 %v11113, %v11111
  %v11142 = vpack.c.b16 %v11116, %v11114
  %v11143 = vpack.c.b16 %v11117, %v11115
  %v11144 = vpack.c.b16 %v11120, %v11118
  %v11145 = vpack.c.b16 %v11121, %v11119
  %v11146 = vpack.c.b16 %v11124, %v11122
  %v11147 = vpack.c.b16 %v11125, %v11123
  %v11148 = vpack.c.b16 %v11128, %v11126
  %v11149 = vpack.c.b16 %v11129, %v11127
  %v11150 = vpack.c.b16 %v11132, %v11130
  %v11151 = vpack.c.b16 %v11133, %v11131
  %v11152 = vpack.c.b16 %v11136, %v11134
  %v11153 = vpack.c.b16 %v11137, %v11135
  %11170 = vmatpush.bf16.msra.mxu0 %v11152
  %11171 = vmatpush.bf16.msra.mxu0 %v11150
  %11172 = vmatpush.bf16.msra.mxu0 %v11148
  %11173 = vmatpush.bf16.msra.mxu0 %v11146
  %11174 = vmatpush.bf16.msra.mxu0 %v11144
  %11175 = vmatpush.bf16.msra.mxu0 %v11142
  %11176 = vmatpush.bf16.msra.mxu0 %v11140
  %11177 = vmatpush.bf16.msra.mxu0 %v11138
  %11178 = vmatmul.bf16.gmra.mxu0 %v11086
  %v11179 = vpop.f32.mrf.mxu0
  %v11180 = vadd.f32 0.0, %v11179
  %v11181 = vpop.f32.mrf.mxu0
  %v11182 = vadd.f32 0.0, %v11181
  %11183 = vmatmul.bf16.gmra.mxu0 %v11087
  %v11184 = vpop.f32.mrf.mxu0
  %v11185 = vadd.f32 0.0, %v11184
  %v11186 = vpop.f32.mrf.mxu0
  %11187 = vdwg.mxu0
  %11188 = vmatpush.bf16.msra.mxu0 %v11153
  %11189 = vmatpush.bf16.msra.mxu0 %v11151
  %11190 = vmatpush.bf16.msra.mxu0 %v11149
  %11191 = vmatpush.bf16.msra.mxu0 %v11147
  %11192 = vmatpush.bf16.msra.mxu0 %v11145
  %11193 = vmatpush.bf16.msra.mxu0 %v11143
  %11194 = vmatpush.bf16.msra.mxu0 %v11141
  %11195 = vmatpush.bf16.msra.mxu0 %v11139
  %11196 = vmatmul.bf16.gmra.mxu0 %v11086
  %v11197 = vpop.f32.mrf.mxu0
  %v11198 = vadd.f32 0.0, %v11197
  %v11199 = vpop.f32.mrf.mxu0
  %v11200 = vadd.f32 0.0, %v11199
  %11201 = vmatmul.bf16.gmra.mxu0 %v11087
  %v11202 = vpop.f32.mrf.mxu0
  %v11203 = vadd.f32 0.0, %v11202
  %v11204 = vpop.f32.mrf.mxu0
  %11205 = vdwg.mxu0
  %v11206 = vadd.f32 %v11057, %v11180
  %v11207 = vadd.f32 %v11058, %v11198
  %v11208 = vadd.f32 %v11059, %v11182
  %v11209 = vadd.f32 %v11060, %v11200
  %v11210 = vadd.f32 %v11061, %v11185
  %v11211 = vadd.f32 %v11062, %v11203
  %s11212 = scalar_lea.vmem [#allocation4], 1536
  %v11213 = vld [vmem:[%s11212] sm:$0xff]
  %v11214 = vld [vmem:[%s11212 + $0x8] sm:$0xff]
  %v11215 = vld [vmem:[%s11212 + $0x10] sm:$0xff]
  %v11216 = vld [vmem:[%s11212 + $0x18] sm:$0xff]
  %v11217 = vld [vmem:[%s11212 + $0x20] sm:$0xff]
  %v11218 = vld [vmem:[%s11212 + $0x28] sm:$0xff]
  %v11219 = vld [vmem:[%s11212 + $0x30] sm:$0xff]
  %v11220 = vld [vmem:[%s11212 + $0x38] sm:$0xff]
  %v11221 = vld [vmem:[%s11212 + $0x40] sm:$0xff]
  %v11222 = vld [vmem:[%s11212 + $0x48] sm:$0xff]
  %v11223 = vld [vmem:[%s11212 + $0x50] sm:$0xff]
  %v11224 = vld [vmem:[%s11212 + $0x58] sm:$0xff]
  %v11225 = vld [vmem:[%s11212 + $0x60] sm:$0xff]
  %v11226 = vld [vmem:[%s11212 + $0x68] sm:$0xff]
  %v11227 = vld [vmem:[%s11212 + $0x70] sm:$0xff]
  %v11228 = vld [vmem:[%s11212 + $0x78] sm:$0xff]
  %v11232 = vunpack.c.l.b16 %v9421
  %v11233 = vunpack.c.l.b16 %v9422
  %v11234 = vunpack.c.l.b16 %v9423
  %v11235 = vpack.c.b16 %v11233, %v11232
  %v11236 = vpack.c.b16 %v11234, %v11234
  %v11255 = vunpack.c.l.b16 %v11213
  %v11256 = vunpack.c.h.b16 %v11213
  %v11257 = vunpack.c.l.b16 %v11214
  %v11258 = vunpack.c.h.b16 %v11214
  %v11259 = vunpack.c.l.b16 %v11215
  %v11260 = vunpack.c.h.b16 %v11215
  %v11261 = vunpack.c.l.b16 %v11216
  %v11262 = vunpack.c.h.b16 %v11216
  %v11263 = vunpack.c.l.b16 %v11217
  %v11264 = vunpack.c.h.b16 %v11217
  %v11265 = vunpack.c.l.b16 %v11218
  %v11266 = vunpack.c.h.b16 %v11218
  %v11267 = vunpack.c.l.b16 %v11219
  %v11268 = vunpack.c.h.b16 %v11219
  %v11269 = vunpack.c.l.b16 %v11220
  %v11270 = vunpack.c.h.b16 %v11220
  %v11271 = vunpack.c.l.b16 %v11221
  %v11272 = vunpack.c.h.b16 %v11221
  %v11273 = vunpack.c.l.b16 %v11222
  %v11274 = vunpack.c.h.b16 %v11222
  %v11275 = vunpack.c.l.b16 %v11223
  %v11276 = vunpack.c.h.b16 %v11223
  %v11277 = vunpack.c.l.b16 %v11224
  %v11278 = vunpack.c.h.b16 %v11224
  %v11279 = vunpack.c.l.b16 %v11225
  %v11280 = vunpack.c.h.b16 %v11225
  %v11281 = vunpack.c.l.b16 %v11226
  %v11282 = vunpack.c.h.b16 %v11226
  %v11283 = vunpack.c.l.b16 %v11227
  %v11284 = vunpack.c.h.b16 %v11227
  %v11285 = vunpack.c.l.b16 %v11228
  %v11286 = vunpack.c.h.b16 %v11228
  %v11287 = vpack.c.b16 %v11257, %v11255
  %v11288 = vpack.c.b16 %v11258, %v11256
  %v11289 = vpack.c.b16 %v11261, %v11259
  %v11290 = vpack.c.b16 %v11262, %v11260
  %v11291 = vpack.c.b16 %v11265, %v11263
  %v11292 = vpack.c.b16 %v11266, %v11264
  %v11293 = vpack.c.b16 %v11269, %v11267
  %v11294 = vpack.c.b16 %v11270, %v11268
  %v11295 = vpack.c.b16 %v11273, %v11271
  %v11296 = vpack.c.b16 %v11274, %v11272
  %v11297 = vpack.c.b16 %v11277, %v11275
  %v11298 = vpack.c.b16 %v11278, %v11276
  %v11299 = vpack.c.b16 %v11281, %v11279
  %v11300 = vpack.c.b16 %v11282, %v11280
  %v11301 = vpack.c.b16 %v11285, %v11283
  %v11302 = vpack.c.b16 %v11286, %v11284
  %11319 = vmatpush.bf16.msra.mxu0 %v11301
  %11320 = vmatpush.bf16.msra.mxu0 %v11299
  %11321 = vmatpush.bf16.msra.mxu0 %v11297
  %11322 = vmatpush.bf16.msra.mxu0 %v11295
  %11323 = vmatpush.bf16.msra.mxu0 %v11293
  %11324 = vmatpush.bf16.msra.mxu0 %v11291
  %11325 = vmatpush.bf16.msra.mxu0 %v11289
  %11326 = vmatpush.bf16.msra.mxu0 %v11287
  %11327 = vmatmul.bf16.gmra.mxu0 %v11235
  %v11328 = vpop.f32.mrf.mxu0
  %v11329 = vadd.f32 0.0, %v11328
  %v11330 = vpop.f32.mrf.mxu0
  %v11331 = vadd.f32 0.0, %v11330
  %11332 = vmatmul.bf16.gmra.mxu0 %v11236
  %v11333 = vpop.f32.mrf.mxu0
  %v11334 = vadd.f32 0.0, %v11333
  %v11335 = vpop.f32.mrf.mxu0
  %11336 = vdwg.mxu0
  %11337 = vmatpush.bf16.msra.mxu0 %v11302
  %11338 = vmatpush.bf16.msra.mxu0 %v11300
  %11339 = vmatpush.bf16.msra.mxu0 %v11298
  %11340 = vmatpush.bf16.msra.mxu0 %v11296
  %11341 = vmatpush.bf16.msra.mxu0 %v11294
  %11342 = vmatpush.bf16.msra.mxu0 %v11292
  %11343 = vmatpush.bf16.msra.mxu0 %v11290
  %11344 = vmatpush.bf16.msra.mxu0 %v11288
  %11345 = vmatmul.bf16.gmra.mxu0 %v11235
  %v11346 = vpop.f32.mrf.mxu0
  %v11347 = vadd.f32 0.0, %v11346
  %v11348 = vpop.f32.mrf.mxu0
  %v11349 = vadd.f32 0.0, %v11348
  %11350 = vmatmul.bf16.gmra.mxu0 %v11236
  %v11351 = vpop.f32.mrf.mxu0
  %v11352 = vadd.f32 0.0, %v11351
  %v11353 = vpop.f32.mrf.mxu0
  %11354 = vdwg.mxu0
  %v11355 = vadd.f32 %v11206, %v11329
  %v11356 = vadd.f32 %v11207, %v11347
  %v11357 = vadd.f32 %v11208, %v11331
  %v11358 = vadd.f32 %v11209, %v11349
  %v11359 = vadd.f32 %v11210, %v11334
  %v11360 = vadd.f32 %v11211, %v11352
  %s11361 = scalar_lea.vmem [#allocation4], 1664
  %v11362 = vld [vmem:[%s11361] sm:$0xff]
  %v11363 = vld [vmem:[%s11361 + $0x8] sm:$0xff]
  %v11364 = vld [vmem:[%s11361 + $0x10] sm:$0xff]
  %v11365 = vld [vmem:[%s11361 + $0x18] sm:$0xff]
  %v11366 = vld [vmem:[%s11361 + $0x20] sm:$0xff]
  %v11367 = vld [vmem:[%s11361 + $0x28] sm:$0xff]
  %v11368 = vld [vmem:[%s11361 + $0x30] sm:$0xff]
  %v11369 = vld [vmem:[%s11361 + $0x38] sm:$0xff]
  %v11370 = vld [vmem:[%s11361 + $0x40] sm:$0xff]
  %v11371 = vld [vmem:[%s11361 + $0x48] sm:$0xff]
  %v11372 = vld [vmem:[%s11361 + $0x50] sm:$0xff]
  %v11373 = vld [vmem:[%s11361 + $0x58] sm:$0xff]
  %v11374 = vld [vmem:[%s11361 + $0x60] sm:$0xff]
  %v11375 = vld [vmem:[%s11361 + $0x68] sm:$0xff]
  %v11376 = vld [vmem:[%s11361 + $0x70] sm:$0xff]
  %v11377 = vld [vmem:[%s11361 + $0x78] sm:$0xff]
  %v11381 = vunpack.c.l.b16 %v9424
  %v11382 = vunpack.c.l.b16 %v9425
  %v11383 = vunpack.c.l.b16 %v9426
  %v11384 = vpack.c.b16 %v11382, %v11381
  %v11385 = vpack.c.b16 %v11383, %v11383
  %v11404 = vunpack.c.l.b16 %v11362
  %v11405 = vunpack.c.h.b16 %v11362
  %v11406 = vunpack.c.l.b16 %v11363
  %v11407 = vunpack.c.h.b16 %v11363
  %v11408 = vunpack.c.l.b16 %v11364
  %v11409 = vunpack.c.h.b16 %v11364
  %v11410 = vunpack.c.l.b16 %v11365
  %v11411 = vunpack.c.h.b16 %v11365
  %v11412 = vunpack.c.l.b16 %v11366
  %v11413 = vunpack.c.h.b16 %v11366
  %v11414 = vunpack.c.l.b16 %v11367
  %v11415 = vunpack.c.h.b16 %v11367
  %v11416 = vunpack.c.l.b16 %v11368
  %v11417 = vunpack.c.h.b16 %v11368
  %v11418 = vunpack.c.l.b16 %v11369
  %v11419 = vunpack.c.h.b16 %v11369
  %v11420 = vunpack.c.l.b16 %v11370
  %v11421 = vunpack.c.h.b16 %v11370
  %v11422 = vunpack.c.l.b16 %v11371
  %v11423 = vunpack.c.h.b16 %v11371
  %v11424 = vunpack.c.l.b16 %v11372
  %v11425 = vunpack.c.h.b16 %v11372
  %v11426 = vunpack.c.l.b16 %v11373
  %v11427 = vunpack.c.h.b16 %v11373
  %v11428 = vunpack.c.l.b16 %v11374
  %v11429 = vunpack.c.h.b16 %v11374
  %v11430 = vunpack.c.l.b16 %v11375
  %v11431 = vunpack.c.h.b16 %v11375
  %v11432 = vunpack.c.l.b16 %v11376
  %v11433 = vunpack.c.h.b16 %v11376
  %v11434 = vunpack.c.l.b16 %v11377
  %v11435 = vunpack.c.h.b16 %v11377
  %v11436 = vpack.c.b16 %v11406, %v11404
  %v11437 = vpack.c.b16 %v11407, %v11405
  %v11438 = vpack.c.b16 %v11410, %v11408
  %v11439 = vpack.c.b16 %v11411, %v11409
  %v11440 = vpack.c.b16 %v11414, %v11412
  %v11441 = vpack.c.b16 %v11415, %v11413
  %v11442 = vpack.c.b16 %v11418, %v11416
  %v11443 = vpack.c.b16 %v11419, %v11417
  %v11444 = vpack.c.b16 %v11422, %v11420
  %v11445 = vpack.c.b16 %v11423, %v11421
  %v11446 = vpack.c.b16 %v11426, %v11424
  %v11447 = vpack.c.b16 %v11427, %v11425
  %v11448 = vpack.c.b16 %v11430, %v11428
  %v11449 = vpack.c.b16 %v11431, %v11429
  %v11450 = vpack.c.b16 %v11434, %v11432
  %v11451 = vpack.c.b16 %v11435, %v11433
  %11468 = vmatpush.bf16.msra.mxu0 %v11450
  %11469 = vmatpush.bf16.msra.mxu0 %v11448
  %11470 = vmatpush.bf16.msra.mxu0 %v11446
  %11471 = vmatpush.bf16.msra.mxu0 %v11444
  %11472 = vmatpush.bf16.msra.mxu0 %v11442
  %11473 = vmatpush.bf16.msra.mxu0 %v11440
  %11474 = vmatpush.bf16.msra.mxu0 %v11438
  %11475 = vmatpush.bf16.msra.mxu0 %v11436
  %11476 = vmatmul.bf16.gmra.mxu0 %v11384
  %v11477 = vpop.f32.mrf.mxu0
  %v11478 = vadd.f32 0.0, %v11477
  %v11479 = vpop.f32.mrf.mxu0
  %v11480 = vadd.f32 0.0, %v11479
  %11481 = vmatmul.bf16.gmra.mxu0 %v11385
  %v11482 = vpop.f32.mrf.mxu0
  %v11483 = vadd.f32 0.0, %v11482
  %v11484 = vpop.f32.mrf.mxu0
  %11485 = vdwg.mxu0
  %11486 = vmatpush.bf16.msra.mxu0 %v11451
  %11487 = vmatpush.bf16.msra.mxu0 %v11449
  %11488 = vmatpush.bf16.msra.mxu0 %v11447
  %11489 = vmatpush.bf16.msra.mxu0 %v11445
  %11490 = vmatpush.bf16.msra.mxu0 %v11443
  %11491 = vmatpush.bf16.msra.mxu0 %v11441
  %11492 = vmatpush.bf16.msra.mxu0 %v11439
  %11493 = vmatpush.bf16.msra.mxu0 %v11437
  %11494 = vmatmul.bf16.gmra.mxu0 %v11384
  %v11495 = vpop.f32.mrf.mxu0
  %v11496 = vadd.f32 0.0, %v11495
  %v11497 = vpop.f32.mrf.mxu0
  %v11498 = vadd.f32 0.0, %v11497
  %11499 = vmatmul.bf16.gmra.mxu0 %v11385
  %v11500 = vpop.f32.mrf.mxu0
  %v11501 = vadd.f32 0.0, %v11500
  %v11502 = vpop.f32.mrf.mxu0
  %11503 = vdwg.mxu0
  %v11504 = vadd.f32 %v11355, %v11478
  %v11505 = vadd.f32 %v11356, %v11496
  %v11506 = vadd.f32 %v11357, %v11480
  %v11507 = vadd.f32 %v11358, %v11498
  %v11508 = vadd.f32 %v11359, %v11483
  %v11509 = vadd.f32 %v11360, %v11501
  %s11510 = scalar_lea.vmem [#allocation4], 1792
  %v11511 = vld [vmem:[%s11510] sm:$0xff]
  %v11512 = vld [vmem:[%s11510 + $0x8] sm:$0xff]
  %v11513 = vld [vmem:[%s11510 + $0x10] sm:$0xff]
  %v11514 = vld [vmem:[%s11510 + $0x18] sm:$0xff]
  %v11515 = vld [vmem:[%s11510 + $0x20] sm:$0xff]
  %v11516 = vld [vmem:[%s11510 + $0x28] sm:$0xff]
  %v11517 = vld [vmem:[%s11510 + $0x30] sm:$0xff]
  %v11518 = vld [vmem:[%s11510 + $0x38] sm:$0xff]
  %v11519 = vld [vmem:[%s11510 + $0x40] sm:$0xff]
  %v11520 = vld [vmem:[%s11510 + $0x48] sm:$0xff]
  %v11521 = vld [vmem:[%s11510 + $0x50] sm:$0xff]
  %v11522 = vld [vmem:[%s11510 + $0x58] sm:$0xff]
  %v11523 = vld [vmem:[%s11510 + $0x60] sm:$0xff]
  %v11524 = vld [vmem:[%s11510 + $0x68] sm:$0xff]
  %v11525 = vld [vmem:[%s11510 + $0x70] sm:$0xff]
  %v11526 = vld [vmem:[%s11510 + $0x78] sm:$0xff]
  %v11530 = vunpack.c.l.b16 %v9427
  %v11531 = vunpack.c.l.b16 %v9428
  %v11532 = vunpack.c.l.b16 %v9429
  %v11533 = vpack.c.b16 %v11531, %v11530
  %v11534 = vpack.c.b16 %v11532, %v11532
  %v11553 = vunpack.c.l.b16 %v11511
  %v11554 = vunpack.c.h.b16 %v11511
  %v11555 = vunpack.c.l.b16 %v11512
  %v11556 = vunpack.c.h.b16 %v11512
  %v11557 = vunpack.c.l.b16 %v11513
  %v11558 = vunpack.c.h.b16 %v11513
  %v11559 = vunpack.c.l.b16 %v11514
  %v11560 = vunpack.c.h.b16 %v11514
  %v11561 = vunpack.c.l.b16 %v11515
  %v11562 = vunpack.c.h.b16 %v11515
  %v11563 = vunpack.c.l.b16 %v11516
  %v11564 = vunpack.c.h.b16 %v11516
  %v11565 = vunpack.c.l.b16 %v11517
  %v11566 = vunpack.c.h.b16 %v11517
  %v11567 = vunpack.c.l.b16 %v11518
  %v11568 = vunpack.c.h.b16 %v11518
  %v11569 = vunpack.c.l.b16 %v11519
  %v11570 = vunpack.c.h.b16 %v11519
  %v11571 = vunpack.c.l.b16 %v11520
  %v11572 = vunpack.c.h.b16 %v11520
  %v11573 = vunpack.c.l.b16 %v11521
  %v11574 = vunpack.c.h.b16 %v11521
  %v11575 = vunpack.c.l.b16 %v11522
  %v11576 = vunpack.c.h.b16 %v11522
  %v11577 = vunpack.c.l.b16 %v11523
  %v11578 = vunpack.c.h.b16 %v11523
  %v11579 = vunpack.c.l.b16 %v11524
  %v11580 = vunpack.c.h.b16 %v11524
  %v11581 = vunpack.c.l.b16 %v11525
  %v11582 = vunpack.c.h.b16 %v11525
  %v11583 = vunpack.c.l.b16 %v11526
  %v11584 = vunpack.c.h.b16 %v11526
  %v11585 = vpack.c.b16 %v11555, %v11553
  %v11586 = vpack.c.b16 %v11556, %v11554
  %v11587 = vpack.c.b16 %v11559, %v11557
  %v11588 = vpack.c.b16 %v11560, %v11558
  %v11589 = vpack.c.b16 %v11563, %v11561
  %v11590 = vpack.c.b16 %v11564, %v11562
  %v11591 = vpack.c.b16 %v11567, %v11565
  %v11592 = vpack.c.b16 %v11568, %v11566
  %v11593 = vpack.c.b16 %v11571, %v11569
  %v11594 = vpack.c.b16 %v11572, %v11570
  %v11595 = vpack.c.b16 %v11575, %v11573
  %v11596 = vpack.c.b16 %v11576, %v11574
  %v11597 = vpack.c.b16 %v11579, %v11577
  %v11598 = vpack.c.b16 %v11580, %v11578
  %v11599 = vpack.c.b16 %v11583, %v11581
  %v11600 = vpack.c.b16 %v11584, %v11582
  %11617 = vmatpush.bf16.msra.mxu0 %v11599
  %11618 = vmatpush.bf16.msra.mxu0 %v11597
  %11619 = vmatpush.bf16.msra.mxu0 %v11595
  %11620 = vmatpush.bf16.msra.mxu0 %v11593
  %11621 = vmatpush.bf16.msra.mxu0 %v11591
  %11622 = vmatpush.bf16.msra.mxu0 %v11589
  %11623 = vmatpush.bf16.msra.mxu0 %v11587
  %11624 = vmatpush.bf16.msra.mxu0 %v11585
  %11625 = vmatmul.bf16.gmra.mxu0 %v11533
  %v11626 = vpop.f32.mrf.mxu0
  %v11627 = vadd.f32 0.0, %v11626
  %v11628 = vpop.f32.mrf.mxu0
  %v11629 = vadd.f32 0.0, %v11628
  %11630 = vmatmul.bf16.gmra.mxu0 %v11534
  %v11631 = vpop.f32.mrf.mxu0
  %v11632 = vadd.f32 0.0, %v11631
  %v11633 = vpop.f32.mrf.mxu0
  %11634 = vdwg.mxu0
  %11635 = vmatpush.bf16.msra.mxu0 %v11600
  %11636 = vmatpush.bf16.msra.mxu0 %v11598
  %11637 = vmatpush.bf16.msra.mxu0 %v11596
  %11638 = vmatpush.bf16.msra.mxu0 %v11594
  %11639 = vmatpush.bf16.msra.mxu0 %v11592
  %11640 = vmatpush.bf16.msra.mxu0 %v11590
  %11641 = vmatpush.bf16.msra.mxu0 %v11588
  %11642 = vmatpush.bf16.msra.mxu0 %v11586
  %11643 = vmatmul.bf16.gmra.mxu0 %v11533
  %v11644 = vpop.f32.mrf.mxu0
  %v11645 = vadd.f32 0.0, %v11644
  %v11646 = vpop.f32.mrf.mxu0
  %v11647 = vadd.f32 0.0, %v11646
  %11648 = vmatmul.bf16.gmra.mxu0 %v11534
  %v11649 = vpop.f32.mrf.mxu0
  %v11650 = vadd.f32 0.0, %v11649
  %v11651 = vpop.f32.mrf.mxu0
  %11652 = vdwg.mxu0
  %v11653 = vadd.f32 %v11504, %v11627
  %v11654 = vadd.f32 %v11505, %v11645
  %v11655 = vadd.f32 %v11506, %v11629
  %v11656 = vadd.f32 %v11507, %v11647
  %v11657 = vadd.f32 %v11508, %v11632
  %v11658 = vadd.f32 %v11509, %v11650
  %s11659 = scalar_lea.vmem [#allocation4], 1920
  %v11660 = vld [vmem:[%s11659] sm:$0xff]
  %v11661 = vld [vmem:[%s11659 + $0x8] sm:$0xff]
  %v11662 = vld [vmem:[%s11659 + $0x10] sm:$0xff]
  %v11663 = vld [vmem:[%s11659 + $0x18] sm:$0xff]
  %v11664 = vld [vmem:[%s11659 + $0x20] sm:$0xff]
  %v11665 = vld [vmem:[%s11659 + $0x28] sm:$0xff]
  %v11666 = vld [vmem:[%s11659 + $0x30] sm:$0xff]
  %v11667 = vld [vmem:[%s11659 + $0x38] sm:$0xff]
  %v11668 = vld [vmem:[%s11659 + $0x40] sm:$0xff]
  %v11669 = vld [vmem:[%s11659 + $0x48] sm:$0xff]
  %v11670 = vld [vmem:[%s11659 + $0x50] sm:$0xff]
  %v11671 = vld [vmem:[%s11659 + $0x58] sm:$0xff]
  %v11672 = vld [vmem:[%s11659 + $0x60] sm:$0xff]
  %v11673 = vld [vmem:[%s11659 + $0x68] sm:$0xff]
  %v11674 = vld [vmem:[%s11659 + $0x70] sm:$0xff]
  %v11675 = vld [vmem:[%s11659 + $0x78] sm:$0xff]
  %v11679 = vunpack.c.l.b16 %v9430
  %v11680 = vunpack.c.l.b16 %v9431
  %v11681 = vunpack.c.l.b16 %v9432
  %v11682 = vpack.c.b16 %v11680, %v11679
  %v11683 = vpack.c.b16 %v11681, %v11681
  %v11702 = vunpack.c.l.b16 %v11660
  %v11703 = vunpack.c.h.b16 %v11660
  %v11704 = vunpack.c.l.b16 %v11661
  %v11705 = vunpack.c.h.b16 %v11661
  %v11706 = vunpack.c.l.b16 %v11662
  %v11707 = vunpack.c.h.b16 %v11662
  %v11708 = vunpack.c.l.b16 %v11663
  %v11709 = vunpack.c.h.b16 %v11663
  %v11710 = vunpack.c.l.b16 %v11664
  %v11711 = vunpack.c.h.b16 %v11664
  %v11712 = vunpack.c.l.b16 %v11665
  %v11713 = vunpack.c.h.b16 %v11665
  %v11714 = vunpack.c.l.b16 %v11666
  %v11715 = vunpack.c.h.b16 %v11666
  %v11716 = vunpack.c.l.b16 %v11667
  %v11717 = vunpack.c.h.b16 %v11667
  %v11718 = vunpack.c.l.b16 %v11668
  %v11719 = vunpack.c.h.b16 %v11668
  %v11720 = vunpack.c.l.b16 %v11669
  %v11721 = vunpack.c.h.b16 %v11669
  %v11722 = vunpack.c.l.b16 %v11670
  %v11723 = vunpack.c.h.b16 %v11670
  %v11724 = vunpack.c.l.b16 %v11671
  %v11725 = vunpack.c.h.b16 %v11671
  %v11726 = vunpack.c.l.b16 %v11672
  %v11727 = vunpack.c.h.b16 %v11672
  %v11728 = vunpack.c.l.b16 %v11673
  %v11729 = vunpack.c.h.b16 %v11673
  %v11730 = vunpack.c.l.b16 %v11674
  %v11731 = vunpack.c.h.b16 %v11674
  %v11732 = vunpack.c.l.b16 %v11675
  %v11733 = vunpack.c.h.b16 %v11675
  %v11734 = vpack.c.b16 %v11704, %v11702
  %v11735 = vpack.c.b16 %v11705, %v11703
  %v11736 = vpack.c.b16 %v11708, %v11706
  %v11737 = vpack.c.b16 %v11709, %v11707
  %v11738 = vpack.c.b16 %v11712, %v11710
  %v11739 = vpack.c.b16 %v11713, %v11711
  %v11740 = vpack.c.b16 %v11716, %v11714
  %v11741 = vpack.c.b16 %v11717, %v11715
  %v11742 = vpack.c.b16 %v11720, %v11718
  %v11743 = vpack.c.b16 %v11721, %v11719
  %v11744 = vpack.c.b16 %v11724, %v11722
  %v11745 = vpack.c.b16 %v11725, %v11723
  %v11746 = vpack.c.b16 %v11728, %v11726
  %v11747 = vpack.c.b16 %v11729, %v11727
  %v11748 = vpack.c.b16 %v11732, %v11730
  %v11749 = vpack.c.b16 %v11733, %v11731
  %11766 = vmatpush.bf16.msra.mxu0 %v11748
  %11767 = vmatpush.bf16.msra.mxu0 %v11746
  %11768 = vmatpush.bf16.msra.mxu0 %v11744
  %11769 = vmatpush.bf16.msra.mxu0 %v11742
  %11770 = vmatpush.bf16.msra.mxu0 %v11740
  %11771 = vmatpush.bf16.msra.mxu0 %v11738
  %11772 = vmatpush.bf16.msra.mxu0 %v11736
  %11773 = vmatpush.bf16.msra.mxu0 %v11734
  %11774 = vmatmul.bf16.gmra.mxu0 %v11682
  %v11775 = vpop.f32.mrf.mxu0
  %v11776 = vadd.f32 0.0, %v11775
  %v11777 = vpop.f32.mrf.mxu0
  %v11778 = vadd.f32 0.0, %v11777
  %11779 = vmatmul.bf16.gmra.mxu0 %v11683
  %v11780 = vpop.f32.mrf.mxu0
  %v11781 = vadd.f32 0.0, %v11780
  %v11782 = vpop.f32.mrf.mxu0
  %11783 = vdwg.mxu0
  %11784 = vmatpush.bf16.msra.mxu0 %v11749
  %11785 = vmatpush.bf16.msra.mxu0 %v11747
  %11786 = vmatpush.bf16.msra.mxu0 %v11745
  %11787 = vmatpush.bf16.msra.mxu0 %v11743
  %11788 = vmatpush.bf16.msra.mxu0 %v11741
  %11789 = vmatpush.bf16.msra.mxu0 %v11739
  %11790 = vmatpush.bf16.msra.mxu0 %v11737
  %11791 = vmatpush.bf16.msra.mxu0 %v11735
  %11792 = vmatmul.bf16.gmra.mxu0 %v11682
  %v11793 = vpop.f32.mrf.mxu0
  %v11794 = vadd.f32 0.0, %v11793
  %v11795 = vpop.f32.mrf.mxu0
  %v11796 = vadd.f32 0.0, %v11795
  %11797 = vmatmul.bf16.gmra.mxu0 %v11683
  %v11798 = vpop.f32.mrf.mxu0
  %v11799 = vadd.f32 0.0, %v11798
  %v11800 = vpop.f32.mrf.mxu0
  %11801 = vdwg.mxu0
  %v11802 = vadd.f32 %v11653, %v11776
  %v11803 = vadd.f32 %v11654, %v11794
  %v11804 = vadd.f32 %v11655, %v11778
  %v11805 = vadd.f32 %v11656, %v11796
  %v11806 = vadd.f32 %v11657, %v11781
  %v11807 = vadd.f32 %v11658, %v11799
  %v11808 = vadd.f32 %v11802, %v11804
  %v11809 = vadd.f32 %v11808, %v11806
  %v11810 = vrot.slane %v11809, 4
  %v11811 = vadd.f32 %v11809, %v11810
  %v11812 = vrot.slane %v11811, 2
  %v11813 = vadd.f32 %v11811, %v11812
  %v11814 = vrot.slane %v11813, 1
  %v11815 = vadd.f32 %v11813, %v11814
  %v11816 = vadd.f32 %v11803, %v11805
  %v11817 = vadd.f32 %v11816, %v11807
  %v11818 = vrot.slane %v11817, 4
  %v11819 = vadd.f32 %v11817, %v11818
  %v11820 = vrot.slane %v11819, 2
  %v11821 = vadd.f32 %v11819, %v11820
  %v11822 = vrot.slane %v11821, 1
  %v11823 = vadd.f32 %v11821, %v11822
  %v11824 = vmul.f32 %v11815, 0.055555556
  %v11825 = vmul.f32 %v11823, 0.055555556
  %v11826 = vmul.f32 %v11802, %v11802
  %v11827 = vmul.f32 %v11803, %v11803
  %v11828 = vmul.f32 %v11804, %v11804
  %v11829 = vmul.f32 %v11805, %v11805
  %v11830 = vmul.f32 %v11806, %v11806
  %v11831 = vmul.f32 %v11807, %v11807
  %v11832 = vadd.f32 %v11826, %v11828
  %v11833 = vadd.f32 %v11832, %v11830
  %v11834 = vrot.slane %v11833, 4
  %v11835 = vadd.f32 %v11833, %v11834
  %v11836 = vrot.slane %v11835, 2
  %v11837 = vadd.f32 %v11835, %v11836
  %v11838 = vrot.slane %v11837, 1
  %v11839 = vadd.f32 %v11837, %v11838
  %v11840 = vadd.f32 %v11827, %v11829
  %v11841 = vadd.f32 %v11840, %v11831
  %v11842 = vrot.slane %v11841, 4
  %v11843 = vadd.f32 %v11841, %v11842
  %v11844 = vrot.slane %v11843, 2
  %v11845 = vadd.f32 %v11843, %v11844
  %v11846 = vrot.slane %v11845, 1
  %v11847 = vadd.f32 %v11845, %v11846
  %v11848 = vmul.f32 %v11839, 0.055555556
  %v11849 = vmul.f32 %v11847, 0.055555556
  %v11850 = vmul.f32 %v11824, %v11824
  %v11851 = vmul.f32 %v11825, %v11825
  %v11852 = vsub.f32 %v11848, %v11850
  %v11853 = vsub.f32 %v11849, %v11851
  %v11854 = vmax.f32 %v11852, 0.0
  %v11855 = vmax.f32 %v11853, 0.0
  %v11856 = vadd.f32 %v11854, 1e-05
  %v11857 = vadd.f32 %v11855, 1e-05
  %v11858 = vrsqrt.pop %v11856
  %v11859 = vmul.f32 %v11858, %v11856
  %v11860 = vmul.f32 %v11859, %v11858
  %v11861 = vmul.f32 0.5, %v11860
  %v11862 = vsub.f32 1.5, %v11861
  %v11863 = vmul.f32 %v11858, %v11862
  %vm11864 = vweird.f32 %v11856
  %vm11865 = vweird.f32 %v11858
  %vm11866 = vmor %vm11864, %vm11865
  %v11867 = vsel %vm11866, %v11858, %v11863
  %v11868 = vrsqrt.pop %v11857
  %v11869 = vmul.f32 %v11868, %v11857
  %v11870 = vmul.f32 %v11869, %v11868
  %v11871 = vmul.f32 0.5, %v11870
  %v11872 = vsub.f32 1.5, %v11871
  %v11873 = vmul.f32 %v11868, %v11872
  %vm11874 = vweird.f32 %v11857
  %vm11875 = vweird.f32 %v11868
  %vm11876 = vmor %vm11874, %vm11875
  %v11877 = vsel %vm11876, %v11868, %v11873
  %v11878 = vmul.f32 %v864, %v11867
  %v11879 = vmul.f32 %v865, %v11877
  %v11880 = vmul.f32 %v11824, %v11878
  %v11881 = vmul.f32 %v11825, %v11879
  %v11884 = vrot.slane %v11880, 7
  %v11885 = vrot.slane %v11881, 7
  %v11888 = vsub.f32 %v864, %v11884
  %v11889 = vsub.f32 %v865, %v11885
  %v11890 = vperm.slane %v11878, 6
  %v11891 = vperm.slane %v11879, 6
  %v11892 = vmul.f32 %v11802, %v11890
  %v11893 = vmul.f32 %v11803, %v11891
  %v11894 = vmul.f32 %v11804, %v11890
  %v11895 = vmul.f32 %v11805, %v11891
  %v11896 = vmul.f32 %v11806, %v11890
  %v11897 = vmul.f32 %v11807, %v11891
  %v11898 = vperm.slane %v11888, 7
  %v11899 = vperm.slane %v11889, 7
  %v11900 = vadd.f32 %v11892, %v11898
  %v11901 = vadd.f32 %v11893, %v11899
  %v11902 = vadd.f32 %v11894, %v11898
  %v11903 = vadd.f32 %v11895, %v11899
  %v11904 = vadd.f32 %v11896, %v11898
  %v11905 = vadd.f32 %v11897, %v11899
  %vm11906 = vcmp.gt.f32.partialorder %v11900, 0.0
  %vm11907 = vcmp.gt.f32.partialorder %v11901, 0.0
  %vm11908 = vcmp.gt.f32.partialorder %v11902, 0.0
  %vm11909 = vcmp.gt.f32.partialorder %v11903, 0.0
  %vm11910 = vcmp.gt.f32.partialorder %v11904, 0.0
  %vm11911 = vcmp.gt.f32.partialorder %v11905, 0.0
  %v11912 = vmul.f32 %v11900, 0.2
  %v11913 = vmul.f32 %v11901, 0.2
  %v11914 = vmul.f32 %v11902, 0.2
  %v11915 = vmul.f32 %v11903, 0.2
  %v11916 = vmul.f32 %v11904, 0.2
  %v11917 = vmul.f32 %v11905, 0.2
  %v11918 = vsel %vm11906, %v11900, %v11912
  %v11919 = vsel %vm11907, %v11901, %v11913
  %v11920 = vsel %vm11908, %v11902, %v11914
  %v11921 = vsel %vm11909, %v11903, %v11915
  %v11922 = vsel %vm11910, %v11904, %v11916
  %v11923 = vsel %vm11911, %v11905, %v11917
  %v11924 = vld [vmem:[%s6] sm:$0xff]
  %v11925 = vld [vmem:[%s6 + $0x8] sm:$0xff]
  %v11926 = vld [vmem:[%s6 + $0x10] sm:$0xff]
  %v11927 = vld [vmem:[%s6 + $0x18] sm:$0xff]
  %v11928 = vld [vmem:[%s6 + $0x20] sm:$0xff]
  %v11929 = vld [vmem:[%s6 + $0x28] sm:$0xff]
  %v11930 = vmul.f32 %v11918, %v11924
  %v11931 = vmul.f32 %v11919, %v11925
  %v11932 = vmul.f32 %v11920, %v11926
  %v11933 = vmul.f32 %v11921, %v11927
  %v11934 = vmul.f32 %v11922, %v11928
  %v11935 = vmul.f32 %v11923, %v11929
  %v11936 = vlaneseq
  %v11937 = vshrl.u32 %v11936, 7
  %v11938 = vmul.u32 %v11937, 9
  %vm11939 = vcmp.ge.s32.totalorder %v1577, %v11938
  %v11940 = vadd.s32 %v11937, 1
  %v11941 = vmul.u32 %v11940, 9
  %vm11942 = vcmp.lt.s32.totalorder %v1577, %v11941
  %vm11943 = vmand %vm11939, %vm11942
  %v11944 = vsel %vm11943, 1.0, 0.0
  %vm11945 = vcmask 195584
  %v11947 = vsel %vm11945, %v11944, 0
  %11949 = vmatpush.msra.mxu0 0.0
  %11950 = vmatpush.msra.mxu0 0.0
  %11951 = vmatpush.msra.mxu0 0.0
  %11952 = vmatpush.msra.mxu0 0.0
  %11953 = vmatpush.msra.mxu0 0.0
  %11954 = vmatpush.msra.mxu0 0.0
  %11955 = vmatpush.msra.mxu0 0.0
  %11956 = vmatpush.msra.mxu0 0.0
  %11957 = vmatpush.msra.mxu0 0.0
  %11958 = vmatpush.msra.mxu0 0.0
  %11959 = vmatpush.msra.mxu0 0.0
  %11960 = vmatpush.msra.mxu0 0.0
  %11961 = vmatpush.msra.mxu0 0.0
  %11962 = vmatpush.msra.mxu0 %v11934
  %11963 = vmatpush.msra.mxu0 %v11932
  %11964 = vmatpush.msra.mxu0 %v11930
  %11965 = vmatmul.f32.gmra.mxu0 %v11947
  %v11966 = vpop.f32.mrf.mxu0
  %v11967 = vadd.f32 0.0, %v11966
  %11968 = vdwg.mxu0
  %11969 = vmatpush.msra.mxu0 0.0
  %11970 = vmatpush.msra.mxu0 0.0
  %11971 = vmatpush.msra.mxu0 0.0
  %11972 = vmatpush.msra.mxu0 0.0
  %11973 = vmatpush.msra.mxu0 0.0
  %11974 = vmatpush.msra.mxu0 0.0
  %11975 = vmatpush.msra.mxu0 0.0
  %11976 = vmatpush.msra.mxu0 0.0
  %11977 = vmatpush.msra.mxu0 0.0
  %11978 = vmatpush.msra.mxu0 0.0
  %11979 = vmatpush.msra.mxu0 0.0
  %11980 = vmatpush.msra.mxu0 0.0
  %11981 = vmatpush.msra.mxu0 0.0
  %11982 = vmatpush.msra.mxu0 %v11935
  %11983 = vmatpush.msra.mxu0 %v11933
  %11984 = vmatpush.msra.mxu0 %v11931
  %11985 = vmatmul.f32.gmra.mxu0 %v11947
  %v11986 = vpop.f32.mrf.mxu0
  %v11987 = vadd.f32 0.0, %v11986
  %11988 = vdwg.mxu0
  %vm11989 = vcmask 1041408
  %v11990 = vsel %vm11989, %v11967, 0.0
  %v11991 = vsel %vm11989, %v11987, 0.0
  %v11992 = vadd.f32 %v11990, %v11991
  %11993 = vadd.xlane.f32.xlu0 %v11992
  %v11994 = vpop.xlane.xlu0 %11993
  %v11995 = vperm.slane %v866, 0
  %v11996 = vadd.f32 %v11994, %v11995
  %v11997 = vsub.f32 0.0, %v11996
  %v11998 = vmul.f32 %v11997, 1.442695
  %v11999 = vpow.pop %v11998
  %v12000 = vadd.f32 %v11999, 1.0
  %v12001 = vrcp.pop %v12000
  %v12002 = vmul.f32 %v12000, %v12001
  %v12003 = vsub.f32 1.0, %v12002
  %v12004 = vmul.f32 %v12001, %v12003
  %v12005 = vadd.f32 %v12001, %v12004
  %vm12006 = vweird.f32 %v12000
  %vm12007 = vweird.f32 %v12001
  %vm12008 = vmor %vm12006, %vm12007
  %v12009 = vsel %vm12008, %v12001, %v12005
  %v12010 = vand.u32 2147483647, %v12000
  %vm12011 = vcmp.eq.f32.partialorder %v12010, 8.507059e+37
  %v12012 = vand.u32 %v12000, 2147483648
  %v12013 = vor.u32 1.1754944e-38, %v12012
  %v12014 = vsel %vm12011, %v12013, %v12009
  %v12015 = vmul.f32 1.0, %v12014
  %vm12016 = vcmask 1024
  %12017 = vst.msk [vmem:[%s10] sm:$0x3] %vm12016, %v12015
  // Predicated region
  $region87: #{discriminator_forward.1} parent=0 // pred_check
    _
  $region88: #{discriminator_forward.1} parent=0 // pred_check_branch
    %12019 = sbr.rel (0) target = $region90
  $region89: #{discriminator_forward.1} parent=0 // pred_region
    _
  $region90: #{discriminator_forward.1} parent=0 // pred_fallthru
    _
  // Predicated region
  $region91: #{discriminator_forward.1} parent=0 // pred_check
    _
  $region92: #{discriminator_forward.1} parent=0 // pred_check_branch
    %12021 = sbr.rel (0) target = $region94
  $region93: #{discriminator_forward.1} parent=0 // pred_region
    _
  $region94: #{discriminator_forward.1} parent=0 // pred_fallthru
    _
  %12022 = vsyncmov [#allocation5]
  %s12023 = vpop.sfrf %12022
  %p12024 = scmp.eq.s32.totalorder %s12023, 0
  %p12025 = pneg %p12024
  %12027 = shalt.err (%p12025)
  %s12028 = scalar_lea.sflag [#allocation5], 1
  %12029 = vsyncmov %s12028
  %s12030 = vpop.sfrf %12029
  %p12031 = scmp.eq.s32.totalorder %s12030, 0
  %p12032 = pneg %p12031
  %12034 = shalt.err (%p12032)
  %s12035 = scalar_lea.sflag [#allocation5], 2
  %12036 = vsyncmov %s12035
  %s12037 = vpop.sfrf %12036
  %p12038 = scmp.eq.s32.totalorder %s12037, 0
  %p12039 = pneg %p12038
  %12041 = shalt.err (%p12039)

</llo_original>
